<compile_context>
chip_gen: v6e
topology: v6e:2x2x1
jax: 0.10.0
libtpu: 0.0.40
codegen_flags: <defaults>
</compile_context>

<pallas_src>
import functools

import jax
import jax.numpy as jnp
from jax import lax
from jax.experimental import pallas as pl
from jax.experimental.pallas import tpu as pltpu


def _round_up(x, m):
    return (x + m - 1) // m * m


def _conv3x3(src, w_ref, out_rows, width, cin, acc=None):
    """3x3 'SAME' conv as 3 per-ky im2col matmuls (K = 3*cin), f32 accumulation.

    src  : (out_rows+2, width+2, cin) bf16 value, already zero-padded by 1 in both
           spatial dims relative to the out_rows x width output window.
    w_ref: (9*cin, cout) bf16 ref, rows in (ky, kx, ci) order, BN scale folded in.
    """
    m = out_rows * width
    for ky in range(3):
        slab = jnp.concatenate(
            [src[ky:ky + out_rows, kx:kx + width, :].reshape(m, cin)
             for kx in range(3)], axis=-1)                       # (m, 3*cin) bf16
        part = jnp.dot(slab, w_ref[ky * 3 * cin:(ky + 1) * 3 * cin, :],
                       preferred_element_type=jnp.float32)
        acc = part if acc is None else acc + part
    return acc                                                   # (m, cout) f32


def _block_kernel(x_ref, w1_ref, b1_ref, w2_ref, ws_ref, bo_ref, out_ref, *,
                  w_valid):
    """One (image, row-tile) grid step of the fused residual block.

    x_ref  : (1, H+4, Wp+2, Cpi) bf16  zero-padded input (2-row / 1-col halo);
             its block index ignores the row-tile axis, so it stays VMEM-resident
             across all row tiles of one image.
    w1_ref : (9*Cpi, Cpo) bf16  conv1 weight, im2col (ky,kx,ci) order, *bn1 scale
    w2_ref : (9*Cpo, Cpo) bf16  conv2 weight, *bn2 scale
    ws_ref : (Cpi,  Cpo)  bf16  1x1 projection-shortcut weight, *bn_s scale
    b1_ref : (1, Cpo) f32       bn1 shift
    bo_ref : (1, Cpo) f32       bn2 shift + bn_s shift (pre-summed)
    out_ref: (1, TH, Wp, Cpo) bf16  lane-dense output tile
    w_valid: static int, number of real (unpadded) output columns
    """
    _, hp4, _, cpi = x_ref.shape
    _, th, wp, cpo = out_ref.shape
    h = hp4 - 4

    t = pl.program_id(1)
    row0 = t * th
    if th % 8 == 0:
        row0 = pl.multiple_of(row0, 8)

    # Halo'd input window: TH output rows need TH+2 rows of x1 -> TH+4 input rows.
    xw = x_ref[0, pl.ds(row0, th + 4), :, :]                     # (TH+4, Wp+2, Cpi)

    # ---- conv1 (3x3, pad=1), bn1 scale folded into w1; shift + relu in f32 ----
    acc1 = _conv3x3(xw, w1_ref, th + 2, wp, cpi)
    x1 = jnp.maximum(acc1 + b1_ref[...], 0.0).reshape(th + 2, wp, cpo)

    # Boundary-only halo masking: only x1 rows 0 / TH+1 can fall outside the image
    # (they are conv2's zero row-padding). Tiny (TH+2,1,1) row mask, one select.
    r = lax.broadcasted_iota(jnp.int32, (th + 2, 1, 1), 0)
    top_ok = row0 >= 1
    bot_ok = row0 + th < h
    valid = jnp.logical_and(jnp.logical_or(r > 0, top_ok),
                            jnp.logical_or(r < th + 1, bot_ok))
    x1 = jnp.where(valid, x1, 0.0)
    if w_valid < wp:   # static: zero the width-alignment columns before conv2
        c = lax.broadcasted_iota(jnp.int32, (1, wp, 1), 1)
        x1 = jnp.where(c < w_valid, x1, 0.0)
    x1 = x1.astype(jnp.bfloat16)

    # ---- projection shortcut (1x1 conv, bn_s scale folded): seed the f32 acc ----
    m2 = th * wp
    xin = xw[2:2 + th, 1:1 + wp, :].reshape(m2, cpi)             # center tap, out rows
    acc2 = jnp.dot(xin, ws_ref[...], preferred_element_type=jnp.float32)

    # ---- conv2 (3x3, pad=1), bn2 scale folded into w2 ----
    zcol = jnp.zeros((th + 2, 1, cpo), jnp.bfloat16)
    x1p = jnp.concatenate([zcol, x1, zcol], axis=1)              # (TH+2, Wp+2, Cpo)
    acc2 = _conv3x3(x1p, w2_ref, th, wp, cpo, acc=acc2)

    out = jnp.maximum(acc2 + bo_ref[...], 0.0)                   # shifts + final relu
    out_ref[...] = out.astype(out_ref.dtype).reshape(1, th, wp, cpo)


def _fold_bn(p, eps=1e-5):
    gamma, beta, mean, var = p
    scale = gamma / jnp.sqrt(var + eps)
    shift = beta - mean * scale
    return scale.astype(jnp.float32), shift.astype(jnp.float32)


def _fold_weight(w, scale, ci_pad, co_pad):
    """(kh,kw,ci,co) f32 * per-co BN scale -> zero-padded (kh*kw*ci_pad, co_pad) bf16."""
    w = w.astype(jnp.float32) * scale                             # fold in f32
    kh, kw, ci, co = w.shape
    w = jnp.pad(w, ((0, 0), (0, 0), (0, ci_pad - ci), (0, co_pad - co)))
    return w.reshape(kh * kw * ci_pad, co_pad).astype(jnp.bfloat16)


def _pad_shift(shift, co_pad):
    return jnp.pad(shift, (0, co_pad - shift.shape[0])).reshape(1, co_pad).astype(jnp.float32)


def _vmem_budget():
    cap = 64 << 20
    try:
        info = pltpu.get_tpu_info()
        cap = int(getattr(info, "vmem_capacity_bytes", cap) or cap)
    except Exception:
        pass
    # ~96 MiB on 128 MiB parts (v5e/v6e), ~48 MiB on 64 MiB/TC parts (v7x).
    return int(min(cap * 3 // 4, 100 << 20))


def _pick_row_tile(H, Wp, Cpi, Cpo, vmem_limit, requested=None):
    weights = (9 * Cpi + 9 * Cpo + Cpi) * Cpo * 2 + 2 * Cpo * 4     # single-buffered
    x_blk = 2 * (H + 4) * (Wp + 2) * Cpi * 2                        # dbl-buffered input

    def fits(th):
        m1, m2 = (th + 2) * Wp, th * Wp
        out_blk = 2 * th * Wp * Cpo * 2                             # bf16, dbl-buffered
        live = (m1 * 3 * Cpi * 2 + m1 * Cpo * 4                     # conv1 slab + acc
                + (th + 2) * (Wp + 2) * Cpo * 2                     # x1 (bf16, padded)
                + m2 * 3 * Cpo * 2 + m2 * Cpo * 4)                  # conv2 slab + acc
        return weights + x_blk + out_blk + live * 3 // 2 <= vmem_limit

    if requested is not None and H % requested == 0 and fits(requested):
        return requested
    for th in range(min(H, 32), 0, -1):   # largest divisor of H (<=32) that fits
        if H % th == 0 and fits(th):
            return th
    return 1


def block_forward(x_nchw, params, *, row_tile=None):
    """Fused Pallas residual block. NCHW f32 in (like the PyTorch module), NCHW bf16 out."""
    x = jnp.transpose(x_nchw, (0, 2, 3, 1)).astype(jnp.float32)     # NCHW -> NHWC
    N, H, W, Cin = x.shape
    Cout = params["w1"].shape[-1]
    Cpi = _round_up(Cin, 128)        # lane-dense channel padding
    Cpo = _round_up(Cout, 128)
    Wp = _round_up(W, 8)             # sublane-aligned width
    # TODO(synk): Cin << 128 wastes conv1/shortcut MXU work (factor Cpi/Cin); this
    #             kernel targets standard ResNet stage widths (Cin >= 64).

    vmem_limit = _vmem_budget()
    TH = _pick_row_tile(H, Wp, Cpi, Cpo, vmem_limit, row_tile)
    num_tiles = H // TH

    # 2-row / 1-col (+ width-alignment) zero halo, channels padded to 128 lanes.
    xpad = jnp.pad(x, ((0, 0), (2, 2), (1, Wp - W + 1), (0, Cpi - Cin))
                   ).astype(jnp.bfloat16)

    # BN folded into weights (f32 fold, single bf16 cast); only shifts remain.
    s1, b1 = _fold_bn(params["bn1"])
    s2, b2 = _fold_bn(params["bn2"])
    ss, bs = _fold_bn(params["bns"])
    w1 = _fold_weight(params["w1"], s1, Cpi, Cpo)    # (9*Cpi, Cpo)
    w2 = _fold_weight(params["w2"], s2, Cpo, Cpo)    # (9*Cpo, Cpo)
    ws = _fold_weight(params["ws"], ss, Cpi, Cpo)    # (Cpi,  Cpo)
    b1v = _pad_shift(b1, Cpo)
    bov = _pad_shift(b2 + bs, Cpo)                   # bn2 + bn_s shifts pre-summed

    kernel = functools.partial(_block_kernel, w_valid=W)

    def build(single_buffer_consts):
        def const_spec(shape):
            if single_buffer_consts:
                return pl.BlockSpec(shape, lambda n, t: (0, 0),
                                    pipeline_mode=pl.Buffered(1))
            return pl.BlockSpec(shape, lambda n, t: (0, 0))

        return pl.pallas_call(
            kernel,
            out_shape=jax.ShapeDtypeStruct((N, H, Wp, Cpo), jnp.bfloat16),
            grid=(N, num_tiles),
            in_specs=[
                # Whole padded image, resident across its row tiles.
                pl.BlockSpec((1, H + 4, Wp + 2, Cpi), lambda n, t: (n, 0, 0, 0)),
                const_spec((9 * Cpi, Cpo)),
                const_spec((1, Cpo)),
                const_spec((9 * Cpo, Cpo)),
                const_spec((Cpi, Cpo)),
                const_spec((1, Cpo)),
            ],
            out_specs=pl.BlockSpec((1, TH, Wp, Cpo), lambda n, t: (n, t, 0, 0)),
            compiler_params=pltpu.CompilerParams(
                # batch axis "parallel" (v7x megacore split lands on it, avoiding a
                # duplicate fetch of the resident image block); row-tile "arbitrary".
                dimension_semantics=("parallel", "arbitrary"),
                vmem_limit_bytes=vmem_limit),
        )

    args = (xpad, w1, b1v, w2, ws, bov)
    try:
        out = build(True)(*args)            # single-buffered constant operands
    except Exception:
        out = build(False)(*args)           # fallback if pl.Buffered(1) unsupported

    out = out[:, :, :W, :Cout]                                    # drop padding
    return jnp.transpose(out, (0, 3, 1, 2))                       # NHWC -> NCHW


def block_reference(x_nchw, params):
    """Pure-JAX f32 reference (XLA conv) with identical semantics."""
    x = jnp.transpose(x_nchw, (0, 2, 3, 1)).astype(jnp.float32)

    def conv(inp, w):
        return lax.conv_general_dilated(
            inp, w, window_strides=(1, 1), padding="SAME",
            dimension_numbers=("NHWC", "HWIO", "NHWC"))

    def bn(y, p, eps=1e-5):
        g, b, m, v = p
        return (y - m) / jnp.sqrt(v + eps) * g + b

    x1 = jnp.maximum(bn(conv(x, params["w1"]), params["bn1"]), 0.0)
    x2 = bn(conv(x1, params["w2"]), params["bn2"])
    sc = bn(conv(x, params["ws"]), params["bns"])
    out = jnp.maximum(x2 + sc, 0.0)
    return jnp.transpose(out, (0, 3, 1, 2))


def make_params(key, in_channels, out_channels):
    ks = jax.random.split(key, 15)

    def bn_params(k, c):
        k1, k2, k3, k4 = jax.random.split(k, 4)
        gamma = 1.0 + 0.1 * jax.random.normal(k1, (c,), jnp.float32)
        beta = 0.1 * jax.random.normal(k2, (c,), jnp.float32)
        mean = 0.1 * jax.random.normal(k3, (c,), jnp.float32)
        var = jax.random.uniform(k4, (c,), jnp.float32, 0.5, 1.5)
        return (gamma, beta, mean, var)

    return {
        "w1": 0.1 * jax.random.normal(ks[0], (3, 3, in_channels, out_channels), jnp.float32),
        "w2": 0.1 * jax.random.normal(ks[1], (3, 3, out_channels, out_channels), jnp.float32),
        "ws": 0.1 * jax.random.normal(ks[2], (1, 1, in_channels, out_channels), jnp.float32),
        "bn1": bn_params(ks[3], out_channels),
        "bn2": bn_params(ks[4], out_channels),
        "bns": bn_params(ks[5], out_channels),
    }


if __name__ == "__main__":
    key = jax.random.PRNGKey(0)
    k_x, k_p = jax.random.split(key)

    N, Cin, Cout, H, W = 2, 4, 8, 16, 16          # projection-shortcut path
    x = jax.random.normal(k_x, (N, Cin, H, W), jnp.float32)   # PyTorch-style NCHW
    params = make_params(k_p, Cin, Cout)

    out = jax.block_until_ready(block_forward(x, params))
    ref = jax.block_until_ready(block_reference(x, params))

    assert out.shape == (N, Cout, H, W)
    err = float(jnp.max(jnp.abs(out - ref)))
    # bf16 matmul inputs, bf16 output (f32 accumulation) vs pure-f32 reference.
    assert jnp.allclose(out, ref, atol=1e-1, rtol=2e-2), f"max abs err {err}"
    print("KERNEL_OK")
</pallas_src>

<mosaic_0001>
module attributes {stable_mosaic.version = 11 : i64} {
  func.func @_block_kernel(%arg0: i32, %arg1: i32, %arg2: memref<1x20x18x128xbf16, #tpu.memory_space<vmem>>, %arg3: memref<1152x128xbf16, #tpu.memory_space<vmem>>, %arg4: memref<1x128xf32, #tpu.memory_space<vmem>>, %arg5: memref<1152x128xbf16, #tpu.memory_space<vmem>>, %arg6: memref<128x128xbf16, #tpu.memory_space<vmem>>, %arg7: memref<1x128xf32, #tpu.memory_space<vmem>>, %arg8: memref<1x16x16x128xbf16, #tpu.memory_space<vmem>>) attributes {dimension_semantics = [#tpu.dimension_semantics<parallel>, #tpu.dimension_semantics<arbitrary>], iteration_bounds = array<i64: 2, 1>, scalar_prefetch = 0 : i64, scratch_operands = 0 : i64, tpu.core_type = #tpu.core_type<tc>, window_params = [{transform_indices = @transform_0, window_bounds = array<i64: 1, 20, 18, 128>}, {pipeline_mode = #tpu.pipeline_mode<synchronous>, transform_indices = @transform_1, window_bounds = array<i64: 1152, 128>}, {pipeline_mode = #tpu.pipeline_mode<synchronous>, transform_indices = @transform_2, window_bounds = array<i64: 1, 128>}, {pipeline_mode = #tpu.pipeline_mode<synchronous>, transform_indices = @transform_3, window_bounds = array<i64: 1152, 128>}, {pipeline_mode = #tpu.pipeline_mode<synchronous>, transform_indices = @transform_4, window_bounds = array<i64: 128, 128>}, {pipeline_mode = #tpu.pipeline_mode<synchronous>, transform_indices = @transform_5, window_bounds = array<i64: 1, 128>}, {transform_indices = @transform_6, window_bounds = array<i64: 1, 16, 16, 128>}]} {
    %c16_i32 = arith.constant 16 : i32
    %0 = arith.muli %arg1, %c16_i32 : i32
    %1 = tpu.assume_multiple %0, 8 : i32
    %c0 = arith.constant 0 : index
    %2 = arith.index_cast %1 : i32 to index
    %c0_0 = arith.constant 0 : index
    %c0_1 = arith.constant 0 : index
    %3 = vector.load %arg2[%c0, %2, %c0_0, %c0_1] : memref<1x20x18x128xbf16, #tpu.memory_space<vmem>>, vector<1x20x18x128xbf16>
    %4 = vector.shape_cast %3 : vector<1x20x18x128xbf16> to vector<20x18x128xbf16>
    %5 = vector.extract_strided_slice %4 {offsets = [0, 0, 0], sizes = [18, 16, 128], strides = [1, 1, 1]} : vector<20x18x128xbf16> to vector<18x16x128xbf16>
    %6 = vector.shape_cast %5 : vector<18x16x128xbf16> to vector<288x128xbf16>
    %7 = vector.extract_strided_slice %4 {offsets = [0, 1, 0], sizes = [18, 16, 128], strides = [1, 1, 1]} : vector<20x18x128xbf16> to vector<18x16x128xbf16>
    %8 = vector.shape_cast %7 : vector<18x16x128xbf16> to vector<288x128xbf16>
    %9 = vector.extract_strided_slice %4 {offsets = [0, 2, 0], sizes = [18, 16, 128], strides = [1, 1, 1]} : vector<20x18x128xbf16> to vector<18x16x128xbf16>
    %10 = vector.shape_cast %9 : vector<18x16x128xbf16> to vector<288x128xbf16>
    %11 = tpu.concatenate %6, %8, %10 in 1 : vector<288x128xbf16>, vector<288x128xbf16>, vector<288x128xbf16> -> vector<288x384xbf16>
    %c0_2 = arith.constant 0 : index
    %c0_3 = arith.constant 0 : index
    %12 = vector.load %arg3[%c0_2, %c0_3] : memref<1152x128xbf16, #tpu.memory_space<vmem>>, vector<384x128xbf16>
    %cst = arith.constant dense<0.000000e+00> : vector<288x128xf32>
    %13 = tpu.matmul %11, %12, %cst {dimension_numbers = #tpu.dot_dimension_numbers<[1], [0], [0], [1], [0, 0, 1, 1], [], []>} : vector<288x384xbf16>, vector<384x128xbf16>, vector<288x128xf32> -> vector<288x128xf32>
    %14 = vector.extract_strided_slice %4 {offsets = [1, 0, 0], sizes = [18, 16, 128], strides = [1, 1, 1]} : vector<20x18x128xbf16> to vector<18x16x128xbf16>
    %15 = vector.shape_cast %14 : vector<18x16x128xbf16> to vector<288x128xbf16>
    %16 = vector.extract_strided_slice %4 {offsets = [1, 1, 0], sizes = [18, 16, 128], strides = [1, 1, 1]} : vector<20x18x128xbf16> to vector<18x16x128xbf16>
    %17 = vector.shape_cast %16 : vector<18x16x128xbf16> to vector<288x128xbf16>
    %18 = vector.extract_strided_slice %4 {offsets = [1, 2, 0], sizes = [18, 16, 128], strides = [1, 1, 1]} : vector<20x18x128xbf16> to vector<18x16x128xbf16>
    %19 = vector.shape_cast %18 : vector<18x16x128xbf16> to vector<288x128xbf16>
    %20 = tpu.concatenate %15, %17, %19 in 1 : vector<288x128xbf16>, vector<288x128xbf16>, vector<288x128xbf16> -> vector<288x384xbf16>
    %c384 = arith.constant 384 : index
    %c0_4 = arith.constant 0 : index
    %21 = vector.load %arg3[%c384, %c0_4] : memref<1152x128xbf16, #tpu.memory_space<vmem>>, vector<384x128xbf16>
    %cst_5 = arith.constant dense<0.000000e+00> : vector<288x128xf32>
    %22 = tpu.matmul %20, %21, %cst_5 {dimension_numbers = #tpu.dot_dimension_numbers<[1], [0], [0], [1], [0, 0, 1, 1], [], []>} : vector<288x384xbf16>, vector<384x128xbf16>, vector<288x128xf32> -> vector<288x128xf32>
    %23 = arith.addf %13, %22 : vector<288x128xf32>
    %24 = vector.extract_strided_slice %4 {offsets = [2, 0, 0], sizes = [18, 16, 128], strides = [1, 1, 1]} : vector<20x18x128xbf16> to vector<18x16x128xbf16>
    %25 = vector.shape_cast %24 : vector<18x16x128xbf16> to vector<288x128xbf16>
    %26 = vector.extract_strided_slice %4 {offsets = [2, 1, 0], sizes = [18, 16, 128], strides = [1, 1, 1]} : vector<20x18x128xbf16> to vector<18x16x128xbf16>
    %27 = vector.shape_cast %26 : vector<18x16x128xbf16> to vector<288x128xbf16>
    %28 = vector.extract_strided_slice %4 {offsets = [2, 2, 0], sizes = [18, 16, 128], strides = [1, 1, 1]} : vector<20x18x128xbf16> to vector<18x16x128xbf16>
    %29 = vector.shape_cast %28 : vector<18x16x128xbf16> to vector<288x128xbf16>
    %30 = tpu.concatenate %25, %27, %29 in 1 : vector<288x128xbf16>, vector<288x128xbf16>, vector<288x128xbf16> -> vector<288x384xbf16>
    %c768 = arith.constant 768 : index
    %c0_6 = arith.constant 0 : index
    %31 = vector.load %arg3[%c768, %c0_6] : memref<1152x128xbf16, #tpu.memory_space<vmem>>, vector<384x128xbf16>
    %cst_7 = arith.constant dense<0.000000e+00> : vector<288x128xf32>
    %32 = tpu.matmul %30, %31, %cst_7 {dimension_numbers = #tpu.dot_dimension_numbers<[1], [0], [0], [1], [0, 0, 1, 1], [], []>} : vector<288x384xbf16>, vector<384x128xbf16>, vector<288x128xf32> -> vector<288x128xf32>
    %33 = arith.addf %23, %32 : vector<288x128xf32>
    %c0_8 = arith.constant 0 : index
    %c0_9 = arith.constant 0 : index
    %34 = vector.load %arg4[%c0_8, %c0_9] : memref<1x128xf32, #tpu.memory_space<vmem>>, vector<1x128xf32>
    %35 = vector.broadcast %34 : vector<1x128xf32> to vector<288x128xf32>
    %36 = arith.addf %33, %35 : vector<288x128xf32>
    %cst_10 = arith.constant 0.000000e+00 : f32
    %37 = vector.broadcast %cst_10 : f32 to vector<288x128xf32>
    %38 = arith.maximumf %36, %37 : vector<288x128xf32>
    %39 = vector.shape_cast %38 : vector<288x128xf32> to vector<18x16x128xf32>
    %40 = tpu.iota {dimensions = array<i32: 0>} : vector<18x1x1xi32>
    %c1_i32 = arith.constant 1 : i32
    %41 = arith.cmpi sge, %1, %c1_i32 : i32
    %c16_i32_11 = arith.constant 16 : i32
    %42 = arith.addi %1, %c16_i32_11 : i32
    %c16_i32_12 = arith.constant 16 : i32
    %43 = arith.cmpi slt, %42, %c16_i32_12 : i32
    %c0_i32 = arith.constant 0 : i32
    %44 = vector.broadcast %c0_i32 : i32 to vector<18x1x1xi32>
    %45 = arith.cmpi sgt, %40, %44 : vector<18x1x1xi32>
    %46 = vector.broadcast %41 : i1 to vector<18x1x1xi1>
    %47 = arith.ori %45, %46 : vector<18x1x1xi1>
    %c17_i32 = arith.constant 17 : i32
    %48 = vector.broadcast %c17_i32 : i32 to vector<18x1x1xi32>
    %49 = arith.cmpi slt, %40, %48 : vector<18x1x1xi32>
    %50 = vector.broadcast %43 : i1 to vector<18x1x1xi1>
    %51 = arith.ori %49, %50 : vector<18x1x1xi1>
    %52 = arith.andi %47, %51 : vector<18x1x1xi1>
    %cst_13 = arith.constant 0.000000e+00 : f32
    %53 = vector.shape_cast %52 : vector<18x1x1xi1> to vector<18x1x1xi1>
    %54 = vector.broadcast %53 : vector<18x1x1xi1> to vector<18x16x128xi1>
    %55 = vector.broadcast %cst_13 : f32 to vector<18x16x128xf32>
    %56 = arith.select %54, %39, %55 : vector<18x16x128xi1>, vector<18x16x128xf32>
    %57 = arith.truncf %56 : vector<18x16x128xf32> to vector<18x16x128xbf16>
    %58 = vector.extract_strided_slice %4 {offsets = [2, 1, 0], sizes = [16, 16, 128], strides = [1, 1, 1]} : vector<20x18x128xbf16> to vector<16x16x128xbf16>
    %59 = vector.shape_cast %58 : vector<16x16x128xbf16> to vector<256x128xbf16>
    %c0_14 = arith.constant 0 : index
    %c0_15 = arith.constant 0 : index
    %60 = vector.load %arg6[%c0_14, %c0_15] : memref<128x128xbf16, #tpu.memory_space<vmem>>, vector<128x128xbf16>
    %cst_16 = arith.constant dense<0.000000e+00> : vector<256x128xf32>
    %61 = tpu.matmul %59, %60, %cst_16 {dimension_numbers = #tpu.dot_dimension_numbers<[1], [0], [0], [1], [0, 0, 1, 1], [], []>} : vector<256x128xbf16>, vector<128x128xbf16>, vector<256x128xf32> -> vector<256x128xf32>
    %cst_17 = arith.constant 0.000000e+00 : bf16
    %62 = vector.broadcast %cst_17 : bf16 to vector<18x1x128xbf16>
    %63 = tpu.concatenate %62, %57, %62 in 1 : vector<18x1x128xbf16>, vector<18x16x128xbf16>, vector<18x1x128xbf16> -> vector<18x18x128xbf16>
    %64 = vector.extract_strided_slice %63 {offsets = [0, 0, 0], sizes = [16, 16, 128], strides = [1, 1, 1]} : vector<18x18x128xbf16> to vector<16x16x128xbf16>
    %65 = vector.shape_cast %64 : vector<16x16x128xbf16> to vector<256x128xbf16>
    %66 = vector.extract_strided_slice %63 {offsets = [0, 1, 0], sizes = [16, 16, 128], strides = [1, 1, 1]} : vector<18x18x128xbf16> to vector<16x16x128xbf16>
    %67 = vector.shape_cast %66 : vector<16x16x128xbf16> to vector<256x128xbf16>
    %68 = vector.extract_strided_slice %63 {offsets = [0, 2, 0], sizes = [16, 16, 128], strides = [1, 1, 1]} : vector<18x18x128xbf16> to vector<16x16x128xbf16>
    %69 = vector.shape_cast %68 : vector<16x16x128xbf16> to vector<256x128xbf16>
    %70 = tpu.concatenate %65, %67, %69 in 1 : vector<256x128xbf16>, vector<256x128xbf16>, vector<256x128xbf16> -> vector<256x384xbf16>
    %c0_18 = arith.constant 0 : index
    %c0_19 = arith.constant 0 : index
    %71 = vector.load %arg5[%c0_18, %c0_19] : memref<1152x128xbf16, #tpu.memory_space<vmem>>, vector<384x128xbf16>
    %cst_20 = arith.constant dense<0.000000e+00> : vector<256x128xf32>
    %72 = tpu.matmul %70, %71, %cst_20 {dimension_numbers = #tpu.dot_dimension_numbers<[1], [0], [0], [1], [0, 0, 1, 1], [], []>} : vector<256x384xbf16>, vector<384x128xbf16>, vector<256x128xf32> -> vector<256x128xf32>
    %73 = arith.addf %61, %72 : vector<256x128xf32>
    %74 = vector.extract_strided_slice %63 {offsets = [1, 0, 0], sizes = [16, 16, 128], strides = [1, 1, 1]} : vector<18x18x128xbf16> to vector<16x16x128xbf16>
    %75 = vector.shape_cast %74 : vector<16x16x128xbf16> to vector<256x128xbf16>
    %76 = vector.extract_strided_slice %63 {offsets = [1, 1, 0], sizes = [16, 16, 128], strides = [1, 1, 1]} : vector<18x18x128xbf16> to vector<16x16x128xbf16>
    %77 = vector.shape_cast %76 : vector<16x16x128xbf16> to vector<256x128xbf16>
    %78 = vector.extract_strided_slice %63 {offsets = [1, 2, 0], sizes = [16, 16, 128], strides = [1, 1, 1]} : vector<18x18x128xbf16> to vector<16x16x128xbf16>
    %79 = vector.shape_cast %78 : vector<16x16x128xbf16> to vector<256x128xbf16>
    %80 = tpu.concatenate %75, %77, %79 in 1 : vector<256x128xbf16>, vector<256x128xbf16>, vector<256x128xbf16> -> vector<256x384xbf16>
    %c384_21 = arith.constant 384 : index
    %c0_22 = arith.constant 0 : index
    %81 = vector.load %arg5[%c384_21, %c0_22] : memref<1152x128xbf16, #tpu.memory_space<vmem>>, vector<384x128xbf16>
    %cst_23 = arith.constant dense<0.000000e+00> : vector<256x128xf32>
    %82 = tpu.matmul %80, %81, %cst_23 {dimension_numbers = #tpu.dot_dimension_numbers<[1], [0], [0], [1], [0, 0, 1, 1], [], []>} : vector<256x384xbf16>, vector<384x128xbf16>, vector<256x128xf32> -> vector<256x128xf32>
    %83 = arith.addf %73, %82 : vector<256x128xf32>
    %84 = vector.extract_strided_slice %63 {offsets = [2, 0, 0], sizes = [16, 16, 128], strides = [1, 1, 1]} : vector<18x18x128xbf16> to vector<16x16x128xbf16>
    %85 = vector.shape_cast %84 : vector<16x16x128xbf16> to vector<256x128xbf16>
    %86 = vector.extract_strided_slice %63 {offsets = [2, 1, 0], sizes = [16, 16, 128], strides = [1, 1, 1]} : vector<18x18x128xbf16> to vector<16x16x128xbf16>
    %87 = vector.shape_cast %86 : vector<16x16x128xbf16> to vector<256x128xbf16>
    %88 = vector.extract_strided_slice %63 {offsets = [2, 2, 0], sizes = [16, 16, 128], strides = [1, 1, 1]} : vector<18x18x128xbf16> to vector<16x16x128xbf16>
    %89 = vector.shape_cast %88 : vector<16x16x128xbf16> to vector<256x128xbf16>
    %90 = tpu.concatenate %85, %87, %89 in 1 : vector<256x128xbf16>, vector<256x128xbf16>, vector<256x128xbf16> -> vector<256x384xbf16>
    %c768_24 = arith.constant 768 : index
    %c0_25 = arith.constant 0 : index
    %91 = vector.load %arg5[%c768_24, %c0_25] : memref<1152x128xbf16, #tpu.memory_space<vmem>>, vector<384x128xbf16>
    %cst_26 = arith.constant dense<0.000000e+00> : vector<256x128xf32>
    %92 = tpu.matmul %90, %91, %cst_26 {dimension_numbers = #tpu.dot_dimension_numbers<[1], [0], [0], [1], [0, 0, 1, 1], [], []>} : vector<256x384xbf16>, vector<384x128xbf16>, vector<256x128xf32> -> vector<256x128xf32>
    %93 = arith.addf %83, %92 : vector<256x128xf32>
    %c0_27 = arith.constant 0 : index
    %c0_28 = arith.constant 0 : index
    %94 = vector.load %arg7[%c0_27, %c0_28] : memref<1x128xf32, #tpu.memory_space<vmem>>, vector<1x128xf32>
    %95 = vector.broadcast %94 : vector<1x128xf32> to vector<256x128xf32>
    %96 = arith.addf %93, %95 : vector<256x128xf32>
    %cst_29 = arith.constant 0.000000e+00 : f32
    %97 = vector.broadcast %cst_29 : f32 to vector<256x128xf32>
    %98 = arith.maximumf %96, %97 : vector<256x128xf32>
    %99 = arith.truncf %98 : vector<256x128xf32> to vector<256x128xbf16>
    %100 = vector.shape_cast %99 : vector<256x128xbf16> to vector<1x16x16x128xbf16>
    %c0_30 = arith.constant 0 : index
    %c0_31 = arith.constant 0 : index
    %c0_32 = arith.constant 0 : index
    %c0_33 = arith.constant 0 : index
    %101 = vector.load %arg8[%c0_30, %c0_31, %c0_32, %c0_33] : memref<1x16x16x128xbf16, #tpu.memory_space<vmem>>, vector<1x16x16x128xbf16>
    tpu.vector_store %arg8[%c0_30, %c0_31, %c0_32, %c0_33], %100 {strides = array<i32>} : memref<1x16x16x128xbf16, #tpu.memory_space<vmem>>, vector<1x16x16x128xbf16>,
    return
  }
  func.func @transform_0(%arg0: i32, %arg1: i32) -> (i32, i32, i32, i32) {
    %c0_i32 = arith.constant 0 : i32
    %c0_i32_0 = arith.constant 0 : i32
    %c0_i32_1 = arith.constant 0 : i32
    %c0_i32_2 = arith.constant 0 : i32
    return %arg0, %c0_i32, %c0_i32_0, %c0_i32_1 : i32, i32, i32, i32
  }
  func.func @transform_1(%arg0: i32, %arg1: i32) -> (i32, i32) {
    %c0_i32 = arith.constant 0 : i32
    %c0_i32_0 = arith.constant 0 : i32
    %c0_i32_1 = arith.constant 0 : i32
    return %c0_i32, %c0_i32_0 : i32, i32
  }
  func.func @transform_2(%arg0: i32, %arg1: i32) -> (i32, i32) {
    %c0_i32 = arith.constant 0 : i32
    %c0_i32_0 = arith.constant 0 : i32
    %c0_i32_1 = arith.constant 0 : i32
    return %c0_i32, %c0_i32_0 : i32, i32
  }
  func.func @transform_3(%arg0: i32, %arg1: i32) -> (i32, i32) {
    %c0_i32 = arith.constant 0 : i32
    %c0_i32_0 = arith.constant 0 : i32
    %c0_i32_1 = arith.constant 0 : i32
    return %c0_i32, %c0_i32_0 : i32, i32
  }
  func.func @transform_4(%arg0: i32, %arg1: i32) -> (i32, i32) {
    %c0_i32 = arith.constant 0 : i32
    %c0_i32_0 = arith.constant 0 : i32
    %c0_i32_1 = arith.constant 0 : i32
    return %c0_i32, %c0_i32_0 : i32, i32
  }
  func.func @transform_5(%arg0: i32, %arg1: i32) -> (i32, i32) {
    %c0_i32 = arith.constant 0 : i32
    %c0_i32_0 = arith.constant 0 : i32
    %c0_i32_1 = arith.constant 0 : i32
    return %c0_i32, %c0_i32_0 : i32, i32
  }
  func.func @transform_6(%arg0: i32, %arg1: i32) -> (i32, i32, i32, i32) {
    %c0_i32 = arith.constant 0 : i32
    %c0_i32_0 = arith.constant 0 : i32
    %c0_i32_1 = arith.constant 0 : i32
    return %arg0, %arg1, %c0_i32, %c0_i32_0 : i32, i32, i32, i32
  }
}

module attributes {stable_mosaic.version = 11 : i64} {
  func.func @_block_kernel(%arg0: i32, %arg1: i32, %arg2: memref<1x20x18x128xbf16, #tpu.memory_space<vmem>>, %arg3: memref<1152x128xbf16, #tpu.memory_space<vmem>>, %arg4: memref<1x128xf32, #tpu.memory_space<vmem>>, %arg5: memref<1152x128xbf16, #tpu.memory_space<vmem>>, %arg6: memref<128x128xbf16, #tpu.memory_space<vmem>>, %arg7: memref<1x128xf32, #tpu.memory_space<vmem>>, %arg8: memref<1x16x16x128xbf16, #tpu.memory_space<vmem>>) attributes {dimension_semantics = [#tpu.dimension_semantics<parallel>, #tpu.dimension_semantics<arbitrary>], iteration_bounds = array<i64: 2, 1>, scalar_prefetch = 0 : i64, scratch_operands = 0 : i64, tpu.core_type = #tpu.core_type<tc>, window_params = [{transform_indices = @transform_0, window_bounds = array<i64: 1, 20, 18, 128>}, {pipeline_mode = #tpu.pipeline_mode<synchronous>, transform_indices = @transform_1, window_bounds = array<i64: 1152, 128>}, {pipeline_mode = #tpu.pipeline_mode<synchronous>, transform_indices = @transform_2, window_bounds = array<i64: 1, 128>}, {pipeline_mode = #tpu.pipeline_mode<synchronous>, transform_indices = @transform_3, window_bounds = array<i64: 1152, 128>}, {pipeline_mode = #tpu.pipeline_mode<synchronous>, transform_indices = @transform_4, window_bounds = array<i64: 128, 128>}, {pipeline_mode = #tpu.pipeline_mode<synchronous>, transform_indices = @transform_5, window_bounds = array<i64: 1, 128>}, {transform_indices = @transform_6, window_bounds = array<i64: 1, 16, 16, 128>}]} {
    %c16_i32 = arith.constant 16 : i32
    %0 = arith.muli %arg1, %c16_i32 : i32
    %1 = tpu.assume_multiple %0, 8 : i32
    %c0 = arith.constant 0 : index
    %2 = arith.index_cast %1 : i32 to index
    %c0_0 = arith.constant 0 : index
    %c0_1 = arith.constant 0 : index
    %3 = vector.load %arg2[%c0, %2, %c0_0, %c0_1] : memref<1x20x18x128xbf16, #tpu.memory_space<vmem>>, vector<1x20x18x128xbf16>
    %4 = vector.shape_cast %3 : vector<1x20x18x128xbf16> to vector<20x18x128xbf16>
    %5 = vector.extract_strided_slice %4 {offsets = [0, 0, 0], sizes = [18, 16, 128], strides = [1, 1, 1]} : vector<20x18x128xbf16> to vector<18x16x128xbf16>
    %6 = vector.shape_cast %5 : vector<18x16x128xbf16> to vector<288x128xbf16>
    %7 = vector.extract_strided_slice %4 {offsets = [0, 1, 0], sizes = [18, 16, 128], strides = [1, 1, 1]} : vector<20x18x128xbf16> to vector<18x16x128xbf16>
    %8 = vector.shape_cast %7 : vector<18x16x128xbf16> to vector<288x128xbf16>
    %9 = vector.extract_strided_slice %4 {offsets = [0, 2, 0], sizes = [18, 16, 128], strides = [1, 1, 1]} : vector<20x18x128xbf16> to vector<18x16x128xbf16>
    %10 = vector.shape_cast %9 : vector<18x16x128xbf16> to vector<288x128xbf16>
    %11 = tpu.concatenate %6, %8, %10 in 1 : vector<288x128xbf16>, vector<288x128xbf16>, vector<288x128xbf16> -> vector<288x384xbf16>
    %c0_2 = arith.constant 0 : index
    %c0_3 = arith.constant 0 : index
    %12 = vector.load %arg3[%c0_2, %c0_3] : memref<1152x128xbf16, #tpu.memory_space<vmem>>, vector<384x128xbf16>
    %cst = arith.constant dense<0.000000e+00> : vector<288x128xf32>
    %13 = tpu.matmul %11, %12, %cst {dimension_numbers = #tpu.dot_dimension_numbers<[1], [0], [0], [1], [0, 0, 1, 1], [], []>} : vector<288x384xbf16>, vector<384x128xbf16>, vector<288x128xf32> -> vector<288x128xf32>
    %14 = vector.extract_strided_slice %4 {offsets = [1, 0, 0], sizes = [18, 16, 128], strides = [1, 1, 1]} : vector<20x18x128xbf16> to vector<18x16x128xbf16>
    %15 = vector.shape_cast %14 : vector<18x16x128xbf16> to vector<288x128xbf16>
    %16 = vector.extract_strided_slice %4 {offsets = [1, 1, 0], sizes = [18, 16, 128], strides = [1, 1, 1]} : vector<20x18x128xbf16> to vector<18x16x128xbf16>
    %17 = vector.shape_cast %16 : vector<18x16x128xbf16> to vector<288x128xbf16>
    %18 = vector.extract_strided_slice %4 {offsets = [1, 2, 0], sizes = [18, 16, 128], strides = [1, 1, 1]} : vector<20x18x128xbf16> to vector<18x16x128xbf16>
    %19 = vector.shape_cast %18 : vector<18x16x128xbf16> to vector<288x128xbf16>
    %20 = tpu.concatenate %15, %17, %19 in 1 : vector<288x128xbf16>, vector<288x128xbf16>, vector<288x128xbf16> -> vector<288x384xbf16>
    %c384 = arith.constant 384 : index
    %c0_4 = arith.constant 0 : index
    %21 = vector.load %arg3[%c384, %c0_4] : memref<1152x128xbf16, #tpu.memory_space<vmem>>, vector<384x128xbf16>
    %cst_5 = arith.constant dense<0.000000e+00> : vector<288x128xf32>
    %22 = tpu.matmul %20, %21, %cst_5 {dimension_numbers = #tpu.dot_dimension_numbers<[1], [0], [0], [1], [0, 0, 1, 1], [], []>} : vector<288x384xbf16>, vector<384x128xbf16>, vector<288x128xf32> -> vector<288x128xf32>
    %23 = arith.addf %13, %22 : vector<288x128xf32>
    %24 = vector.extract_strided_slice %4 {offsets = [2, 0, 0], sizes = [18, 16, 128], strides = [1, 1, 1]} : vector<20x18x128xbf16> to vector<18x16x128xbf16>
    %25 = vector.shape_cast %24 : vector<18x16x128xbf16> to vector<288x128xbf16>
    %26 = vector.extract_strided_slice %4 {offsets = [2, 1, 0], sizes = [18, 16, 128], strides = [1, 1, 1]} : vector<20x18x128xbf16> to vector<18x16x128xbf16>
    %27 = vector.shape_cast %26 : vector<18x16x128xbf16> to vector<288x128xbf16>
    %28 = vector.extract_strided_slice %4 {offsets = [2, 2, 0], sizes = [18, 16, 128], strides = [1, 1, 1]} : vector<20x18x128xbf16> to vector<18x16x128xbf16>
    %29 = vector.shape_cast %28 : vector<18x16x128xbf16> to vector<288x128xbf16>
    %30 = tpu.concatenate %25, %27, %29 in 1 : vector<288x128xbf16>, vector<288x128xbf16>, vector<288x128xbf16> -> vector<288x384xbf16>
    %c768 = arith.constant 768 : index
    %c0_6 = arith.constant 0 : index
    %31 = vector.load %arg3[%c768, %c0_6] : memref<1152x128xbf16, #tpu.memory_space<vmem>>, vector<384x128xbf16>
    %cst_7 = arith.constant dense<0.000000e+00> : vector<288x128xf32>
    %32 = tpu.matmul %30, %31, %cst_7 {dimension_numbers = #tpu.dot_dimension_numbers<[1], [0], [0], [1], [0, 0, 1, 1], [], []>} : vector<288x384xbf16>, vector<384x128xbf16>, vector<288x128xf32> -> vector<288x128xf32>
    %33 = arith.addf %23, %32 : vector<288x128xf32>
    %c0_8 = arith.constant 0 : index
    %c0_9 = arith.constant 0 : index
    %34 = vector.load %arg4[%c0_8, %c0_9] : memref<1x128xf32, #tpu.memory_space<vmem>>, vector<1x128xf32>
    %35 = vector.broadcast %34 : vector<1x128xf32> to vector<288x128xf32>
    %36 = arith.addf %33, %35 : vector<288x128xf32>
    %cst_10 = arith.constant 0.000000e+00 : f32
    %37 = vector.broadcast %cst_10 : f32 to vector<288x128xf32>
    %38 = arith.maximumf %36, %37 : vector<288x128xf32>
    %39 = vector.shape_cast %38 : vector<288x128xf32> to vector<18x16x128xf32>
    %40 = tpu.iota {dimensions = array<i32: 0>} : vector<18x1x1xi32>
    %c1_i32 = arith.constant 1 : i32
    %41 = arith.cmpi sge, %1, %c1_i32 : i32
    %c16_i32_11 = arith.constant 16 : i32
    %42 = arith.addi %1, %c16_i32_11 : i32
    %c16_i32_12 = arith.constant 16 : i32
    %43 = arith.cmpi slt, %42, %c16_i32_12 : i32
    %c0_i32 = arith.constant 0 : i32
    %44 = vector.broadcast %c0_i32 : i32 to vector<18x1x1xi32>
    %45 = arith.cmpi sgt, %40, %44 : vector<18x1x1xi32>
    %46 = vector.broadcast %41 : i1 to vector<18x1x1xi1>
    %47 = arith.ori %45, %46 : vector<18x1x1xi1>
    %c17_i32 = arith.constant 17 : i32
    %48 = vector.broadcast %c17_i32 : i32 to vector<18x1x1xi32>
    %49 = arith.cmpi slt, %40, %48 : vector<18x1x1xi32>
    %50 = vector.broadcast %43 : i1 to vector<18x1x1xi1>
    %51 = arith.ori %49, %50 : vector<18x1x1xi1>
    %52 = arith.andi %47, %51 : vector<18x1x1xi1>
    %cst_13 = arith.constant 0.000000e+00 : f32
    %53 = vector.shape_cast %52 : vector<18x1x1xi1> to vector<18x1x1xi1>
    %54 = vector.broadcast %53 : vector<18x1x1xi1> to vector<18x16x128xi1>
    %55 = vector.broadcast %cst_13 : f32 to vector<18x16x128xf32>
    %56 = arith.select %54, %39, %55 : vector<18x16x128xi1>, vector<18x16x128xf32>
    %57 = arith.truncf %56 : vector<18x16x128xf32> to vector<18x16x128xbf16>
    %58 = vector.extract_strided_slice %4 {offsets = [2, 1, 0], sizes = [16, 16, 128], strides = [1, 1, 1]} : vector<20x18x128xbf16> to vector<16x16x128xbf16>
    %59 = vector.shape_cast %58 : vector<16x16x128xbf16> to vector<256x128xbf16>
    %c0_14 = arith.constant 0 : index
    %c0_15 = arith.constant 0 : index
    %60 = vector.load %arg6[%c0_14, %c0_15] : memref<128x128xbf16, #tpu.memory_space<vmem>>, vector<128x128xbf16>
    %cst_16 = arith.constant dense<0.000000e+00> : vector<256x128xf32>
    %61 = tpu.matmul %59, %60, %cst_16 {dimension_numbers = #tpu.dot_dimension_numbers<[1], [0], [0], [1], [0, 0, 1, 1], [], []>} : vector<256x128xbf16>, vector<128x128xbf16>, vector<256x128xf32> -> vector<256x128xf32>
    %cst_17 = arith.constant 0.000000e+00 : bf16
    %62 = vector.broadcast %cst_17 : bf16 to vector<18x1x128xbf16>
    %63 = tpu.concatenate %62, %57, %62 in 1 : vector<18x1x128xbf16>, vector<18x16x128xbf16>, vector<18x1x128xbf16> -> vector<18x18x128xbf16>
    %64 = vector.extract_strided_slice %63 {offsets = [0, 0, 0], sizes = [16, 16, 128], strides = [1, 1, 1]} : vector<18x18x128xbf16> to vector<16x16x128xbf16>
    %65 = vector.shape_cast %64 : vector<16x16x128xbf16> to vector<256x128xbf16>
    %66 = vector.extract_strided_slice %63 {offsets = [0, 1, 0], sizes = [16, 16, 128], strides = [1, 1, 1]} : vector<18x18x128xbf16> to vector<16x16x128xbf16>
    %67 = vector.shape_cast %66 : vector<16x16x128xbf16> to vector<256x128xbf16>
    %68 = vector.extract_strided_slice %63 {offsets = [0, 2, 0], sizes = [16, 16, 128], strides = [1, 1, 1]} : vector<18x18x128xbf16> to vector<16x16x128xbf16>
    %69 = vector.shape_cast %68 : vector<16x16x128xbf16> to vector<256x128xbf16>
    %70 = tpu.concatenate %65, %67, %69 in 1 : vector<256x128xbf16>, vector<256x128xbf16>, vector<256x128xbf16> -> vector<256x384xbf16>
    %c0_18 = arith.constant 0 : index
    %c0_19 = arith.constant 0 : index
    %71 = vector.load %arg5[%c0_18, %c0_19] : memref<1152x128xbf16, #tpu.memory_space<vmem>>, vector<384x128xbf16>
    %cst_20 = arith.constant dense<0.000000e+00> : vector<256x128xf32>
    %72 = tpu.matmul %70, %71, %cst_20 {dimension_numbers = #tpu.dot_dimension_numbers<[1], [0], [0], [1], [0, 0, 1, 1], [], []>} : vector<256x384xbf16>, vector<384x128xbf16>, vector<256x128xf32> -> vector<256x128xf32>
    %73 = arith.addf %61, %72 : vector<256x128xf32>
    %74 = vector.extract_strided_slice %63 {offsets = [1, 0, 0], sizes = [16, 16, 128], strides = [1, 1, 1]} : vector<18x18x128xbf16> to vector<16x16x128xbf16>
    %75 = vector.shape_cast %74 : vector<16x16x128xbf16> to vector<256x128xbf16>
    %76 = vector.extract_strided_slice %63 {offsets = [1, 1, 0], sizes = [16, 16, 128], strides = [1, 1, 1]} : vector<18x18x128xbf16> to vector<16x16x128xbf16>
    %77 = vector.shape_cast %76 : vector<16x16x128xbf16> to vector<256x128xbf16>
    %78 = vector.extract_strided_slice %63 {offsets = [1, 2, 0], sizes = [16, 16, 128], strides = [1, 1, 1]} : vector<18x18x128xbf16> to vector<16x16x128xbf16>
    %79 = vector.shape_cast %78 : vector<16x16x128xbf16> to vector<256x128xbf16>
    %80 = tpu.concatenate %75, %77, %79 in 1 : vector<256x128xbf16>, vector<256x128xbf16>, vector<256x128xbf16> -> vector<256x384xbf16>
    %c384_21 = arith.constant 384 : index
    %c0_22 = arith.constant 0 : index
    %81 = vector.load %arg5[%c384_21, %c0_22] : memref<1152x128xbf16, #tpu.memory_space<vmem>>, vector<384x128xbf16>
    %cst_23 = arith.constant dense<0.000000e+00> : vector<256x128xf32>
    %82 = tpu.matmul %80, %81, %cst_23 {dimension_numbers = #tpu.dot_dimension_numbers<[1], [0], [0], [1], [0, 0, 1, 1], [], []>} : vector<256x384xbf16>, vector<384x128xbf16>, vector<256x128xf32> -> vector<256x128xf32>
    %83 = arith.addf %73, %82 : vector<256x128xf32>
    %84 = vector.extract_strided_slice %63 {offsets = [2, 0, 0], sizes = [16, 16, 128], strides = [1, 1, 1]} : vector<18x18x128xbf16> to vector<16x16x128xbf16>
    %85 = vector.shape_cast %84 : vector<16x16x128xbf16> to vector<256x128xbf16>
    %86 = vector.extract_strided_slice %63 {offsets = [2, 1, 0], sizes = [16, 16, 128], strides = [1, 1, 1]} : vector<18x18x128xbf16> to vector<16x16x128xbf16>
    %87 = vector.shape_cast %86 : vector<16x16x128xbf16> to vector<256x128xbf16>
    %88 = vector.extract_strided_slice %63 {offsets = [2, 2, 0], sizes = [16, 16, 128], strides = [1, 1, 1]} : vector<18x18x128xbf16> to vector<16x16x128xbf16>
    %89 = vector.shape_cast %88 : vector<16x16x128xbf16> to vector<256x128xbf16>
    %90 = tpu.concatenate %85, %87, %89 in 1 : vector<256x128xbf16>, vector<256x128xbf16>, vector<256x128xbf16> -> vector<256x384xbf16>
    %c768_24 = arith.constant 768 : index
    %c0_25 = arith.constant 0 : index
    %91 = vector.load %arg5[%c768_24, %c0_25] : memref<1152x128xbf16, #tpu.memory_space<vmem>>, vector<384x128xbf16>
    %cst_26 = arith.constant dense<0.000000e+00> : vector<256x128xf32>
    %92 = tpu.matmul %90, %91, %cst_26 {dimension_numbers = #tpu.dot_dimension_numbers<[1], [0], [0], [1], [0, 0, 1, 1], [], []>} : vector<256x384xbf16>, vector<384x128xbf16>, vector<256x128xf32> -> vector<256x128xf32>
    %93 = arith.addf %83, %92 : vector<256x128xf32>
    %c0_27 = arith.constant 0 : index
    %c0_28 = arith.constant 0 : index
    %94 = vector.load %arg7[%c0_27, %c0_28] : memref<1x128xf32, #tpu.memory_space<vmem>>, vector<1x128xf32>
    %95 = vector.broadcast %94 : vector<1x128xf32> to vector<256x128xf32>
    %96 = arith.addf %93, %95 : vector<256x128xf32>
    %cst_29 = arith.constant 0.000000e+00 : f32
    %97 = vector.broadcast %cst_29 : f32 to vector<256x128xf32>
    %98 = arith.maximumf %96, %97 : vector<256x128xf32>
    %99 = arith.truncf %98 : vector<256x128xf32> to vector<256x128xbf16>
    %100 = vector.shape_cast %99 : vector<256x128xbf16> to vector<1x16x16x128xbf16>
    %c0_30 = arith.constant 0 : index
    %c0_31 = arith.constant 0 : index
    %c0_32 = arith.constant 0 : index
    %c0_33 = arith.constant 0 : index
    %101 = vector.load %arg8[%c0_30, %c0_31, %c0_32, %c0_33] : memref<1x16x16x128xbf16, #tpu.memory_space<vmem>>, vector<1x16x16x128xbf16>
    tpu.vector_store %arg8[%c0_30, %c0_31, %c0_32, %c0_33], %100 {strides = array<i32>} : memref<1x16x16x128xbf16, #tpu.memory_space<vmem>>, vector<1x16x16x128xbf16>,
    return
  }
  func.func @transform_0(%arg0: i32, %arg1: i32) -> (i32, i32, i32, i32) {
    %c0_i32 = arith.constant 0 : i32
    %c0_i32_0 = arith.constant 0 : i32
    %c0_i32_1 = arith.constant 0 : i32
    %c0_i32_2 = arith.constant 0 : i32
    return %arg0, %c0_i32, %c0_i32_0, %c0_i32_1 : i32, i32, i32, i32
  }
  func.func @transform_1(%arg0: i32, %arg1: i32) -> (i32, i32) {
    %c0_i32 = arith.constant 0 : i32
    %c0_i32_0 = arith.constant 0 : i32
    %c0_i32_1 = arith.constant 0 : i32
    return %c0_i32, %c0_i32_0 : i32, i32
  }
  func.func @transform_2(%arg0: i32, %arg1: i32) -> (i32, i32) {
    %c0_i32 = arith.constant 0 : i32
    %c0_i32_0 = arith.constant 0 : i32
    %c0_i32_1 = arith.constant 0 : i32
    return %c0_i32, %c0_i32_0 : i32, i32
  }
  func.func @transform_3(%arg0: i32, %arg1: i32) -> (i32, i32) {
    %c0_i32 = arith.constant 0 : i32
    %c0_i32_0 = arith.constant 0 : i32
    %c0_i32_1 = arith.constant 0 : i32
    return %c0_i32, %c0_i32_0 : i32, i32
  }
  func.func @transform_4(%arg0: i32, %arg1: i32) -> (i32, i32) {
    %c0_i32 = arith.constant 0 : i32
    %c0_i32_0 = arith.constant 0 : i32
    %c0_i32_1 = arith.constant 0 : i32
    return %c0_i32, %c0_i32_0 : i32, i32
  }
  func.func @transform_5(%arg0: i32, %arg1: i32) -> (i32, i32) {
    %c0_i32 = arith.constant 0 : i32
    %c0_i32_0 = arith.constant 0 : i32
    %c0_i32_1 = arith.constant 0 : i32
    return %c0_i32, %c0_i32_0 : i32, i32
  }
  func.func @transform_6(%arg0: i32, %arg1: i32) -> (i32, i32, i32, i32) {
    %c0_i32 = arith.constant 0 : i32
    %c0_i32_0 = arith.constant 0 : i32
    %c0_i32_1 = arith.constant 0 : i32
    return %arg0, %arg1, %c0_i32, %c0_i32_0 : i32, i32, i32, i32
  }
}

</mosaic_0001>

<llo_original>
// kernel: tpu_custom_call.1
$region0: #{tpu_custom_call.1}
  #allocation0 [shape = 'u32[]', space=smem, size = 0x4, offset = 0x4, fixed_abs, tag = 'smem constant byte address 0x4 - core index']
  #allocation1 [shape = 'u32[144,128]{1,0:T(1,128)}', space=vmem, size = 0x12000, scoped, tag = 'internal scratch']
  %s0 = inlined_call_operand.vmem [shape: bf16[2,20,18,128], index: 0, kind: input, shape index: {}]
  %s1 = inlined_call_operand.vmem [shape: bf16[1152,128], index: 1, kind: input, shape index: {}]
  %s2 = inlined_call_operand.vmem [shape: f32[1,128], index: 2, kind: input, shape index: {}]
  %s3 = inlined_call_operand.hbm [shape: bf16[1152,128], index: 3, kind: input, shape index: {}]
  %s4 = inlined_call_operand.vmem [shape: bf16[128,128], index: 4, kind: input, shape index: {}]
  %s5 = inlined_call_operand.vmem [shape: f32[1,128], index: 5, kind: input, shape index: {}]
  %s6 = inlined_call_operand.hbm [shape: bf16[2,16,16,128], index: 6, kind: output, shape index: {}]
  %s7 = sld [smem:[#allocation0]]
  $region61: #{tpu_custom_call.1} parent=0
    _
  %s9 = ssub.s32 1, %s7
  %s10 = scalar_select 0, %s9, %s7
  $region1: #{tpu_custom_call.1} parent=0
    #allocation2 [shape = 'u8[294912]{0}', space=vmem, size = 0x48000, scoped, tag = 'input window, operand 3, single buffered']
    #allocation3 [shape = 's32[2]{0}', space=sflag, size = 0x8, scoped, tag = 'scoped memory for tpu_custom_call.1']
    #allocation4 [shape = 's32[2]{0}', space=sflag, size = 0x8, scoped, tag = 'scoped memory for tpu_custom_call.1']
    #allocation5 [shape = 'u8[131072]{0}', space=vmem, size = 0x20000, scoped, tag = 'output window, operand 0']
    %11 = vsyncpa [#allocation3], 0
    %12 = vsyncpa [#allocation4], 0
    %s13 = scalar_lea.sflag [#allocation4], 1
    %14 = vsyncpa %s13, 0
    loop: start=0, step=1, limit=4
    $region2: #{tpu_custom_call.1} parent=1 // loop_pre_header
      _
    $region3: #{tpu_custom_call.1} parent=1 // loop_header
      %s16 = sphi 0, %s20
      %p17 = scmp.ge.s32.totalorder %s16, 4
      %s23 = sphi 0, %s35
      %s24 = sphi 0, %s31
      %s25 = sphi 0, %s23
      %s26 = sphi 0, %s24
      %s27 = sphi 0, %s25
      %s28 = sphi 0, %s26
      %s38 = sphi 0, %s40
      %s41 = sphi 0, %s38
      %s42 = sphi 0, %s41
      %s58 = sphi 0, %s42
      %s62 = sphi 0, %s62
      %s64 = sphi 0, %s62
      %s65 = sphi 0, %s64
      %s79 = sphi 0, %s65
      %s83 = sphi 0, %s83
      %s85 = sphi 0, %s83
      %s86 = sphi 0, %s85
      %s100 = sphi 0, %s86
      %s104 = sphi 0, %s104
      %s106 = sphi 0, %s104
      %s107 = sphi 0, %s106
      %s121 = sphi 0, %s107
      %s125 = sphi 0, %s125
      %s127 = sphi 0, %s125
      %s128 = sphi 0, %s127
      %s142 = sphi 0, %s128
      %s146 = sphi 0, %s146
      %s148 = sphi 0, %s146
      %s149 = sphi 0, %s148
      %s163 = sphi 0, %s149
      %s171 = sphi 0, %s173
      %s174 = sphi 0, %s171
      %s175 = sphi 0, %s174
      %s191 = sphi 0, %s175
    $region4: #{tpu_custom_call.1} parent=1 // loop_header_branch
      %19 = sbr.rel (%p17) target = $region8
    $region5: #{tpu_custom_call.1} parent=1 // loop_body
      %s21 = ssub.s32 %s16, 1
      %s22 = ssub.s32 %s16, 2
      %s29 = sadd.s32 1, %s24
      %p30 = scmp.ge.s32.totalorder %s29, 1
      %s31 = scalar_select %p30, 0, %s29
      %s32 = sadd.s32 1, %s23
      %s33 = scalar_select %p30, %s32, %s23
      %p34 = scmp.ge.s32.totalorder %s33, 2
      %s35 = scalar_select %p34, 0, %s33
      %s36 = ssub.s32 %s23, %s35
      %p37 = scmp.eq.s32.totalorder %s36, 0
      %s39 = sadd.s32 %s38, 1
      %s40 = scalar_select %p37, %s38, %s39
      %p43 = pneg %p37
      %p44 = scmp.eq.s32.totalorder %s16, 1
      %p45 = por %p43, %p44
      %p46 = scmp.ne.s32.totalorder %s38, %s41
      %p47 = scmp.eq.s32.totalorder %s16, 0
      %p48 = por %p46, %p47
      %p49 = scmp.ne.s32.totalorder %s38, %s41
      %p50 = scmp.eq.s32.totalorder %s21, 1
      %p51 = por %p49, %p50
      %p52 = scmp.ne.s32.totalorder %s41, %s42
      %p53 = scmp.eq.s32.totalorder %s21, 0
      %p54 = por %p52, %p53
      %p55 = scmp.ne.s32.totalorder %s41, %s42
      %p56 = scmp.eq.s32.totalorder %s22, 1
      %p57 = por %p55, %p56
      %p59 = scmp.ne.s32.totalorder %s42, %s58
      %p60 = scmp.eq.s32.totalorder %s22, 0
      %p61 = por %p59, %p60
      %s63 = sadd.s32 %s62, 1
      %p66 = scmp.eq.s32.totalorder %s16, 1
      %p67 = scmp.ne.s32.totalorder %s62, %s64
      %p68 = scmp.eq.s32.totalorder %s16, 0
      %p69 = por %p67, %p68
      %p70 = scmp.ne.s32.totalorder %s62, %s64
      %p71 = scmp.eq.s32.totalorder %s21, 1
      %p72 = por %p70, %p71
      %p73 = scmp.ne.s32.totalorder %s64, %s65
      %p74 = scmp.eq.s32.totalorder %s21, 0
      %p75 = por %p73, %p74
      %p76 = scmp.ne.s32.totalorder %s64, %s65
      %p77 = scmp.eq.s32.totalorder %s22, 1
      %p78 = por %p76, %p77
      %p80 = scmp.ne.s32.totalorder %s65, %s79
      %p81 = scmp.eq.s32.totalorder %s22, 0
      %p82 = por %p80, %p81
      %s84 = sadd.s32 %s83, 1
      %p87 = scmp.eq.s32.totalorder %s16, 1
      %p88 = scmp.ne.s32.totalorder %s83, %s85
      %p89 = scmp.eq.s32.totalorder %s16, 0
      %p90 = por %p88, %p89
      %p91 = scmp.ne.s32.totalorder %s83, %s85
      %p92 = scmp.eq.s32.totalorder %s21, 1
      %p93 = por %p91, %p92
      %p94 = scmp.ne.s32.totalorder %s85, %s86
      %p95 = scmp.eq.s32.totalorder %s21, 0
      %p96 = por %p94, %p95
      %p97 = scmp.ne.s32.totalorder %s85, %s86
      %p98 = scmp.eq.s32.totalorder %s22, 1
      %p99 = por %p97, %p98
      %p101 = scmp.ne.s32.totalorder %s86, %s100
      %p102 = scmp.eq.s32.totalorder %s22, 0
      %p103 = por %p101, %p102
      %s105 = sadd.s32 %s104, 1
      %p108 = scmp.eq.s32.totalorder %s16, 1
      %p109 = scmp.ne.s32.totalorder %s104, %s106
      %p110 = scmp.eq.s32.totalorder %s16, 0
      %p111 = por %p109, %p110
      %p112 = scmp.ne.s32.totalorder %s104, %s106
      %p113 = scmp.eq.s32.totalorder %s21, 1
      %p114 = por %p112, %p113
      %p115 = scmp.ne.s32.totalorder %s106, %s107
      %p116 = scmp.eq.s32.totalorder %s21, 0
      %p117 = por %p115, %p116
      %p118 = scmp.ne.s32.totalorder %s106, %s107
      %p119 = scmp.eq.s32.totalorder %s22, 1
      %p120 = por %p118, %p119
      %p122 = scmp.ne.s32.totalorder %s107, %s121
      %p123 = scmp.eq.s32.totalorder %s22, 0
      %p124 = por %p122, %p123
      %s126 = sadd.s32 %s125, 1
      %p129 = scmp.eq.s32.totalorder %s16, 1
      %p130 = scmp.ne.s32.totalorder %s125, %s127
      %p131 = scmp.eq.s32.totalorder %s16, 0
      %p132 = por %p130, %p131
      %p133 = scmp.ne.s32.totalorder %s125, %s127
      %p134 = scmp.eq.s32.totalorder %s21, 1
      %p135 = por %p133, %p134
      %p136 = scmp.ne.s32.totalorder %s127, %s128
      %p137 = scmp.eq.s32.totalorder %s21, 0
      %p138 = por %p136, %p137
      %p139 = scmp.ne.s32.totalorder %s127, %s128
      %p140 = scmp.eq.s32.totalorder %s22, 1
      %p141 = por %p139, %p140
      %p143 = scmp.ne.s32.totalorder %s128, %s142
      %p144 = scmp.eq.s32.totalorder %s22, 0
      %p145 = por %p143, %p144
      %s147 = sadd.s32 %s146, 1
      %p150 = scmp.eq.s32.totalorder %s16, 1
      %p151 = scmp.ne.s32.totalorder %s146, %s148
      %p152 = scmp.eq.s32.totalorder %s16, 0
      %p153 = por %p151, %p152
      %p154 = scmp.ne.s32.totalorder %s146, %s148
      %p155 = scmp.eq.s32.totalorder %s21, 1
      %p156 = por %p154, %p155
      %p157 = scmp.ne.s32.totalorder %s148, %s149
      %p158 = scmp.eq.s32.totalorder %s21, 0
      %p159 = por %p157, %p158
      %p160 = scmp.ne.s32.totalorder %s148, %s149
      %p161 = scmp.eq.s32.totalorder %s22, 1
      %p162 = por %p160, %p161
      %p164 = scmp.ne.s32.totalorder %s149, %s163
      %p165 = scmp.eq.s32.totalorder %s22, 0
      %p166 = por %p164, %p165
      %s167 = ssub.s32 %s23, %s35
      %s168 = ssub.s32 %s24, %s31
      %s169 = sor.u32 %s167, %s168
      %p170 = scmp.eq.s32.totalorder %s169, 0
      %s172 = sadd.s32 %s171, 1
      %s173 = scalar_select %p170, %s171, %s172
      %p176 = pneg %p170
      %p177 = scmp.eq.s32.totalorder %s16, 1
      %p178 = por %p176, %p177
      %p179 = scmp.ne.s32.totalorder %s171, %s174
      %p180 = scmp.eq.s32.totalorder %s16, 0
      %p181 = por %p179, %p180
      %p182 = scmp.ne.s32.totalorder %s171, %s174
      %p183 = scmp.eq.s32.totalorder %s21, 1
      %p184 = por %p182, %p183
      %p185 = scmp.ne.s32.totalorder %s174, %s175
      %p186 = scmp.eq.s32.totalorder %s21, 0
      %p187 = por %p185, %p186
      %p188 = scmp.ne.s32.totalorder %s174, %s175
      %p189 = scmp.eq.s32.totalorder %s22, 1
      %p190 = por %p188, %p189
      %p192 = scmp.ne.s32.totalorder %s175, %s191
      %p193 = scmp.eq.s32.totalorder %s22, 0
      %p194 = por %p192, %p193
      %p195 = scmp.le.s32.totalorder 1, %s16
      %p196 = scmp.lt.s32.totalorder %s16, 3
      %p197 = pnand %p195, %p196
      %p198 = pneg %p197
      // Predicated region
      $region9: #{tpu_custom_call.1} parent=5 // pred_check
        _
      $region10: #{tpu_custom_call.1} parent=5 // pred_check_branch
        %200 = sbr.rel (%p197) target = $region12
      $region11: #{tpu_custom_call.1} parent=5 // pred_region
        %s201 = ssub.s32 %s16, 1
        // Predicated region
        $region13: #{tpu_custom_call.1} parent=11 // pred_check
          %p202 = pneg %p75
        $region14: #{tpu_custom_call.1} parent=11 // pred_check_branch
          %204 = sbr.rel (%p202) target = $region16
        $region15: #{tpu_custom_call.1} parent=11 // pred_region
          _
        $region16: #{tpu_custom_call.1} parent=11 // pred_fallthru
          _
        // Predicated region
        $region17: #{tpu_custom_call.1} parent=11 // pred_check
          %p205 = pneg %p96
        $region18: #{tpu_custom_call.1} parent=11 // pred_check_branch
          %207 = sbr.rel (%p205) target = $region20
        $region19: #{tpu_custom_call.1} parent=11 // pred_region
          _
        $region20: #{tpu_custom_call.1} parent=11 // pred_fallthru
          _
        // Predicated region
        $region21: #{tpu_custom_call.1} parent=11 // pred_check
          %p208 = pneg %p117
        $region22: #{tpu_custom_call.1} parent=11 // pred_check_branch
          %210 = sbr.rel (%p208) target = $region24
        $region23: #{tpu_custom_call.1} parent=11 // pred_region
          %s212 = ssub.s32 9216, 9216
          %213 = vsyncadd [#allocation3], %s212
          %s214 = sshll.u32 [#allocation2], 4
          %s215 = int_to_ptr.vmem [resolvable:$true] %s214
          %220 = dma.hbm_to_vmem [thread:$0]  %s3, 9216, %s215, [#allocation3], 64, 64, 4
        $region24: #{tpu_custom_call.1} parent=11 // pred_fallthru
          _
        // Predicated region
        $region25: #{tpu_custom_call.1} parent=11 // pred_check
          %p221 = pneg %p138
        $region26: #{tpu_custom_call.1} parent=11 // pred_check_branch
          %223 = sbr.rel (%p221) target = $region28
        $region27: #{tpu_custom_call.1} parent=11 // pred_region
          _
        $region28: #{tpu_custom_call.1} parent=11 // pred_fallthru
          _
        // Predicated region
        $region29: #{tpu_custom_call.1} parent=11 // pred_check
          %p224 = pneg %p159
        $region30: #{tpu_custom_call.1} parent=11 // pred_check_branch
          %226 = sbr.rel (%p224) target = $region32
        $region31: #{tpu_custom_call.1} parent=11 // pred_region
          _
        $region32: #{tpu_custom_call.1} parent=11 // pred_fallthru
          _
      $region12: #{tpu_custom_call.1} parent=5 // pred_fallthru
        _
      %p227 = scmp.lt.s32.totalorder %s16, 2
      // Predicated region
      $region33: #{tpu_custom_call.1} parent=5 // pred_check
        %p228 = pneg %p227
      $region34: #{tpu_custom_call.1} parent=5 // pred_check_branch
        %230 = sbr.rel (%p228) target = $region36
      $region35: #{tpu_custom_call.1} parent=5 // pred_region
        // Predicated region
        $region37: #{tpu_custom_call.1} parent=35 // pred_check
          %p231 = pneg %p48
        $region38: #{tpu_custom_call.1} parent=35 // pred_check_branch
          %233 = sbr.rel (%p231) target = $region40
        $region39: #{tpu_custom_call.1} parent=35 // pred_region
          %p234 = scmp.lt.s32.totalorder %s23, 1
          %s235 = scalar_select %p234, %s23, 1
          %s236 = smul.addr %s235, 60
          %s237 = smul.addr %s236, 4
          %s238 = scalar_lea.vmem %s0, %s237
        $region40: #{tpu_custom_call.1} parent=35 // pred_fallthru
          _
      $region36: #{tpu_custom_call.1} parent=5 // pred_fallthru
        _
      %p239 = scmp.le.s32.totalorder 1, %s16
      %p240 = scmp.lt.s32.totalorder %s16, 3
      %p241 = pnand %p239, %p240
      %p242 = pneg %p241
      // Predicated region
      $region41: #{tpu_custom_call.1} parent=5 // pred_check
        _
      $region42: #{tpu_custom_call.1} parent=5 // pred_check_branch
        %244 = sbr.rel (%p241) target = $region44
      $region43: #{tpu_custom_call.1} parent=5 // pred_region
        %s245 = ssub.s32 %s16, 1
        // Predicated region
        $region45: #{tpu_custom_call.1} parent=43 // pred_check
          %p246 = pneg %p117
        $region46: #{tpu_custom_call.1} parent=43 // pred_check_branch
          %248 = sbr.rel (%p246) target = $region48
        $region47: #{tpu_custom_call.1} parent=43 // pred_region
          %249 = dma.done [#allocation3], 9216
        $region48: #{tpu_custom_call.1} parent=43 // pred_fallthru
          _
        %p250 = scmp.lt.s32.totalorder %s25, 1
        %s251 = scalar_select %p250, %s25, 1
        %s252 = smul.addr %s251, 60
        %s253 = smul.addr %s252, 4
        %s254 = scalar_lea.vmem %s0, %s253
        %p255 = pneg %p54
        %p256 = pneg %p51
        %p257 = pneg %p75
        %p258 = pneg %p72
        %p259 = pneg %p96
        %p260 = pneg %p93
        %p261 = pneg %p117
        %p262 = pneg %p114
        %p263 = pneg %p138
        %p264 = pneg %p135
        %p265 = pneg %p159
        %p266 = pneg %p156
        %p267 = pneg %p187
        %p268 = pneg %p184
        %s269 = sand.u32 %s174, 1
        %s270 = scalar_lea.sflag [#allocation4], %s269
        %s271 = sand.u32 %s174, 1
        %s272 = smul.addr %s271, 128
        %s273 = scalar_lea.vmem [#allocation5], %s272
        %p274 = scmp.lt.s32.totalorder %s25, 1
        %s275 = scalar_select %p274, %s25, 1
        %s276 = smul.addr %s275, 60
        %s277 = smul.addr %s276, 4
        %s278 = scalar_lea.vmem %s0, %s277
        %s279 = smul.u32 16, %s26
        %s281 = smul.u32 %s26, 16
        %s282 = smul.u32 %s281, 3
        %s283 = smul.addr %s282, 4
        %s284 = scalar_lea.vmem %s278, %s283
        %v285 = vld [vmem:[%s284] sm:$0xf]
        %v286 = vld [vmem:[%s284 + $0x4] sm:$0xf]
        %v287 = vld [vmem:[%s284 + $0x8] sm:$0x1]
        %v288 = vld [vmem:[%s284 + $0xc] sm:$0xf]
        %v289 = vld [vmem:[%s284 + $0x10] sm:$0xf]
        %v290 = vld [vmem:[%s284 + $0x14] sm:$0x1]
        %v291 = vld [vmem:[%s284 + $0x18] sm:$0xf]
        %v292 = vld [vmem:[%s284 + $0x1c] sm:$0xf]
        %v293 = vld [vmem:[%s284 + $0x20] sm:$0x1]
        %v294 = vld [vmem:[%s284 + $0x24] sm:$0xf]
        %v295 = vld [vmem:[%s284 + $0x28] sm:$0xf]
        %v296 = vld [vmem:[%s284 + $0x2c] sm:$0x1]
        %v297 = vld [vmem:[%s284 + $0x30] sm:$0xf]
        %v298 = vld [vmem:[%s284 + $0x34] sm:$0xf]
        %v299 = vld [vmem:[%s284 + $0x38] sm:$0x1]
        %v300 = vld [vmem:[%s284 + $0x3c] sm:$0xf]
        %v301 = vld [vmem:[%s284 + $0x40] sm:$0xf]
        %v302 = vld [vmem:[%s284 + $0x44] sm:$0x1]
        %v303 = vld [vmem:[%s284 + $0x48] sm:$0xf]
        %v304 = vld [vmem:[%s284 + $0x4c] sm:$0xf]
        %v305 = vld [vmem:[%s284 + $0x50] sm:$0x1]
        %v306 = vld [vmem:[%s284 + $0x54] sm:$0xf]
        %v307 = vld [vmem:[%s284 + $0x58] sm:$0xf]
        %v308 = vld [vmem:[%s284 + $0x5c] sm:$0x1]
        %v309 = vld [vmem:[%s284 + $0x60] sm:$0xf]
        %v310 = vld [vmem:[%s284 + $0x64] sm:$0xf]
        %v311 = vld [vmem:[%s284 + $0x68] sm:$0x1]
        %v312 = vld [vmem:[%s284 + $0x6c] sm:$0xf]
        %v313 = vld [vmem:[%s284 + $0x70] sm:$0xf]
        %v314 = vld [vmem:[%s284 + $0x74] sm:$0x1]
        %v315 = vld [vmem:[%s284 + $0x78] sm:$0xf]
        %v316 = vld [vmem:[%s284 + $0x7c] sm:$0xf]
        %v317 = vld [vmem:[%s284 + $0x80] sm:$0x1]
        %v318 = vld [vmem:[%s284 + $0x84] sm:$0xf]
        %v319 = vld [vmem:[%s284 + $0x88] sm:$0xf]
        %v320 = vld [vmem:[%s284 + $0x8c] sm:$0x1]
        %v321 = vld [vmem:[%s284 + $0x90] sm:$0xf]
        %v322 = vld [vmem:[%s284 + $0x94] sm:$0xf]
        %v323 = vld [vmem:[%s284 + $0x98] sm:$0x1]
        %v324 = vld [vmem:[%s284 + $0x9c] sm:$0xf]
        %v325 = vld [vmem:[%s284 + $0xa0] sm:$0xf]
        %v326 = vld [vmem:[%s284 + $0xa4] sm:$0x1]
        %v327 = vld [vmem:[%s284 + $0xa8] sm:$0xf]
        %v328 = vld [vmem:[%s284 + $0xac] sm:$0xf]
        %v329 = vld [vmem:[%s284 + $0xb0] sm:$0x1]
        %v330 = vld [vmem:[%s284 + $0xb4] sm:$0xf]
        %v331 = vld [vmem:[%s284 + $0xb8] sm:$0xf]
        %v332 = vld [vmem:[%s284 + $0xbc] sm:$0x1]
        %v333 = vld [vmem:[%s284 + $0xc0] sm:$0xf]
        %v334 = vld [vmem:[%s284 + $0xc4] sm:$0xf]
        %v335 = vld [vmem:[%s284 + $0xc8] sm:$0x1]
        %v336 = vld [vmem:[%s284 + $0xcc] sm:$0xf]
        %v337 = vld [vmem:[%s284 + $0xd0] sm:$0xf]
        %v338 = vld [vmem:[%s284 + $0xd4] sm:$0x1]
        %v339 = vld [vmem:[%s284 + $0xd8] sm:$0xf]
        %v340 = vld [vmem:[%s284 + $0xdc] sm:$0xf]
        %v341 = vld [vmem:[%s284 + $0xe0] sm:$0x1]
        %v342 = vld [vmem:[%s284 + $0xe4] sm:$0xf]
        %v343 = vld [vmem:[%s284 + $0xe8] sm:$0xf]
        %v344 = vld [vmem:[%s284 + $0xec] sm:$0x1]
        %vm345 = vsmask.f32 3328
        %vm346 = vsmask.f32 7440
        %vm347 = vmor %vm345, %vm346
        %v349 = vshrl.u32 %v285, 16
        %v351 = vrot.slane %v349, 4
        %v352 = vshll.u32 %v285, 16
        %v354 = vrot.slane %v352, 5
        %v355 = vor.u32 %v351, %v354
        %v356 = vrot.slane %v355, 4
        %v358 = vshll.u32 %v286, 16
        %v360 = vrot.slane %v358, 5
        %v361 = vsel %vm347, %v356, %v360
        %v362 = vshrl.u32 %v286, 16
        %v364 = vrot.slane %v362, 4
        %v365 = vor.u32 %v364, %v360
        %v366 = vrot.slane %v365, 4
        %v368 = vshll.u32 %v287, 16
        %v370 = vrot.slane %v368, 5
        %v371 = vsel %vm347, %v366, %v370
        %v373 = vshrl.u32 %v288, 16
        %v375 = vrot.slane %v373, 4
        %v376 = vshll.u32 %v288, 16
        %v378 = vrot.slane %v376, 5
        %v379 = vor.u32 %v375, %v378
        %v380 = vrot.slane %v379, 4
        %v382 = vshll.u32 %v289, 16
        %v384 = vrot.slane %v382, 5
        %v385 = vsel %vm347, %v380, %v384
        %v386 = vshrl.u32 %v289, 16
        %v388 = vrot.slane %v386, 4
        %v389 = vor.u32 %v388, %v384
        %v390 = vrot.slane %v389, 4
        %v392 = vshll.u32 %v290, 16
        %v394 = vrot.slane %v392, 5
        %v395 = vsel %vm347, %v390, %v394
        %v397 = vshrl.u32 %v291, 16
        %v399 = vrot.slane %v397, 4
        %v400 = vshll.u32 %v291, 16
        %v402 = vrot.slane %v400, 5
        %v403 = vor.u32 %v399, %v402
        %v404 = vrot.slane %v403, 4
        %v406 = vshll.u32 %v292, 16
        %v408 = vrot.slane %v406, 5
        %v409 = vsel %vm347, %v404, %v408
        %v410 = vshrl.u32 %v292, 16
        %v412 = vrot.slane %v410, 4
        %v413 = vor.u32 %v412, %v408
        %v414 = vrot.slane %v413, 4
        %v416 = vshll.u32 %v293, 16
        %v418 = vrot.slane %v416, 5
        %v419 = vsel %vm347, %v414, %v418
        %v421 = vshrl.u32 %v294, 16
        %v423 = vrot.slane %v421, 4
        %v424 = vshll.u32 %v294, 16
        %v426 = vrot.slane %v424, 5
        %v427 = vor.u32 %v423, %v426
        %v428 = vrot.slane %v427, 4
        %v430 = vshll.u32 %v295, 16
        %v432 = vrot.slane %v430, 5
        %v433 = vsel %vm347, %v428, %v432
        %v434 = vshrl.u32 %v295, 16
        %v436 = vrot.slane %v434, 4
        %v437 = vor.u32 %v436, %v432
        %v438 = vrot.slane %v437, 4
        %v440 = vshll.u32 %v296, 16
        %v442 = vrot.slane %v440, 5
        %v443 = vsel %vm347, %v438, %v442
        %v445 = vshrl.u32 %v297, 16
        %v447 = vrot.slane %v445, 4
        %v448 = vshll.u32 %v297, 16
        %v450 = vrot.slane %v448, 5
        %v451 = vor.u32 %v447, %v450
        %v452 = vrot.slane %v451, 4
        %v454 = vshll.u32 %v298, 16
        %v456 = vrot.slane %v454, 5
        %v457 = vsel %vm347, %v452, %v456
        %v458 = vshrl.u32 %v298, 16
        %v460 = vrot.slane %v458, 4
        %v461 = vor.u32 %v460, %v456
        %v462 = vrot.slane %v461, 4
        %v464 = vshll.u32 %v299, 16
        %v466 = vrot.slane %v464, 5
        %v467 = vsel %vm347, %v462, %v466
        %v469 = vshrl.u32 %v300, 16
        %v471 = vrot.slane %v469, 4
        %v472 = vshll.u32 %v300, 16
        %v474 = vrot.slane %v472, 5
        %v475 = vor.u32 %v471, %v474
        %v476 = vrot.slane %v475, 4
        %v478 = vshll.u32 %v301, 16
        %v480 = vrot.slane %v478, 5
        %v481 = vsel %vm347, %v476, %v480
        %v482 = vshrl.u32 %v301, 16
        %v484 = vrot.slane %v482, 4
        %v485 = vor.u32 %v484, %v480
        %v486 = vrot.slane %v485, 4
        %v488 = vshll.u32 %v302, 16
        %v490 = vrot.slane %v488, 5
        %v491 = vsel %vm347, %v486, %v490
        %v493 = vshrl.u32 %v303, 16
        %v495 = vrot.slane %v493, 4
        %v496 = vshll.u32 %v303, 16
        %v498 = vrot.slane %v496, 5
        %v499 = vor.u32 %v495, %v498
        %v500 = vrot.slane %v499, 4
        %v502 = vshll.u32 %v304, 16
        %v504 = vrot.slane %v502, 5
        %v505 = vsel %vm347, %v500, %v504
        %v506 = vshrl.u32 %v304, 16
        %v508 = vrot.slane %v506, 4
        %v509 = vor.u32 %v508, %v504
        %v510 = vrot.slane %v509, 4
        %v512 = vshll.u32 %v305, 16
        %v514 = vrot.slane %v512, 5
        %v515 = vsel %vm347, %v510, %v514
        %v517 = vshrl.u32 %v306, 16
        %v519 = vrot.slane %v517, 4
        %v520 = vshll.u32 %v306, 16
        %v522 = vrot.slane %v520, 5
        %v523 = vor.u32 %v519, %v522
        %v524 = vrot.slane %v523, 4
        %v526 = vshll.u32 %v307, 16
        %v528 = vrot.slane %v526, 5
        %v529 = vsel %vm347, %v524, %v528
        %v530 = vshrl.u32 %v307, 16
        %v532 = vrot.slane %v530, 4
        %v533 = vor.u32 %v532, %v528
        %v534 = vrot.slane %v533, 4
        %v536 = vshll.u32 %v308, 16
        %v538 = vrot.slane %v536, 5
        %v539 = vsel %vm347, %v534, %v538
        %v541 = vshrl.u32 %v309, 16
        %v543 = vrot.slane %v541, 4
        %v544 = vshll.u32 %v309, 16
        %v546 = vrot.slane %v544, 5
        %v547 = vor.u32 %v543, %v546
        %v548 = vrot.slane %v547, 4
        %v550 = vshll.u32 %v310, 16
        %v552 = vrot.slane %v550, 5
        %v553 = vsel %vm347, %v548, %v552
        %v554 = vshrl.u32 %v310, 16
        %v556 = vrot.slane %v554, 4
        %v557 = vor.u32 %v556, %v552
        %v558 = vrot.slane %v557, 4
        %v560 = vshll.u32 %v311, 16
        %v562 = vrot.slane %v560, 5
        %v563 = vsel %vm347, %v558, %v562
        %v565 = vshrl.u32 %v312, 16
        %v567 = vrot.slane %v565, 4
        %v568 = vshll.u32 %v312, 16
        %v570 = vrot.slane %v568, 5
        %v571 = vor.u32 %v567, %v570
        %v572 = vrot.slane %v571, 4
        %v574 = vshll.u32 %v313, 16
        %v576 = vrot.slane %v574, 5
        %v577 = vsel %vm347, %v572, %v576
        %v578 = vshrl.u32 %v313, 16
        %v580 = vrot.slane %v578, 4
        %v581 = vor.u32 %v580, %v576
        %v582 = vrot.slane %v581, 4
        %v584 = vshll.u32 %v314, 16
        %v586 = vrot.slane %v584, 5
        %v587 = vsel %vm347, %v582, %v586
        %v589 = vshrl.u32 %v315, 16
        %v591 = vrot.slane %v589, 4
        %v592 = vshll.u32 %v315, 16
        %v594 = vrot.slane %v592, 5
        %v595 = vor.u32 %v591, %v594
        %v596 = vrot.slane %v595, 4
        %v598 = vshll.u32 %v316, 16
        %v600 = vrot.slane %v598, 5
        %v601 = vsel %vm347, %v596, %v600
        %v602 = vshrl.u32 %v316, 16
        %v604 = vrot.slane %v602, 4
        %v605 = vor.u32 %v604, %v600
        %v606 = vrot.slane %v605, 4
        %v608 = vshll.u32 %v317, 16
        %v610 = vrot.slane %v608, 5
        %v611 = vsel %vm347, %v606, %v610
        %v613 = vshrl.u32 %v318, 16
        %v615 = vrot.slane %v613, 4
        %v616 = vshll.u32 %v318, 16
        %v618 = vrot.slane %v616, 5
        %v619 = vor.u32 %v615, %v618
        %v620 = vrot.slane %v619, 4
        %v622 = vshll.u32 %v319, 16
        %v624 = vrot.slane %v622, 5
        %v625 = vsel %vm347, %v620, %v624
        %v626 = vshrl.u32 %v319, 16
        %v628 = vrot.slane %v626, 4
        %v629 = vor.u32 %v628, %v624
        %v630 = vrot.slane %v629, 4
        %v632 = vshll.u32 %v320, 16
        %v634 = vrot.slane %v632, 5
        %v635 = vsel %vm347, %v630, %v634
        %v637 = vshrl.u32 %v321, 16
        %v639 = vrot.slane %v637, 4
        %v640 = vshll.u32 %v321, 16
        %v642 = vrot.slane %v640, 5
        %v643 = vor.u32 %v639, %v642
        %v644 = vrot.slane %v643, 4
        %v646 = vshll.u32 %v322, 16
        %v648 = vrot.slane %v646, 5
        %v649 = vsel %vm347, %v644, %v648
        %v650 = vshrl.u32 %v322, 16
        %v652 = vrot.slane %v650, 4
        %v653 = vor.u32 %v652, %v648
        %v654 = vrot.slane %v653, 4
        %v656 = vshll.u32 %v323, 16
        %v658 = vrot.slane %v656, 5
        %v659 = vsel %vm347, %v654, %v658
        %v661 = vshrl.u32 %v324, 16
        %v663 = vrot.slane %v661, 4
        %v664 = vshll.u32 %v324, 16
        %v666 = vrot.slane %v664, 5
        %v667 = vor.u32 %v663, %v666
        %v668 = vrot.slane %v667, 4
        %v670 = vshll.u32 %v325, 16
        %v672 = vrot.slane %v670, 5
        %v673 = vsel %vm347, %v668, %v672
        %v674 = vshrl.u32 %v325, 16
        %v676 = vrot.slane %v674, 4
        %v677 = vor.u32 %v676, %v672
        %v678 = vrot.slane %v677, 4
        %v680 = vshll.u32 %v326, 16
        %v682 = vrot.slane %v680, 5
        %v683 = vsel %vm347, %v678, %v682
        %v685 = vshrl.u32 %v327, 16
        %v687 = vrot.slane %v685, 4
        %v688 = vshll.u32 %v327, 16
        %v690 = vrot.slane %v688, 5
        %v691 = vor.u32 %v687, %v690
        %v692 = vrot.slane %v691, 4
        %v694 = vshll.u32 %v328, 16
        %v696 = vrot.slane %v694, 5
        %v697 = vsel %vm347, %v692, %v696
        %v698 = vshrl.u32 %v328, 16
        %v700 = vrot.slane %v698, 4
        %v701 = vor.u32 %v700, %v696
        %v702 = vrot.slane %v701, 4
        %v704 = vshll.u32 %v329, 16
        %v706 = vrot.slane %v704, 5
        %v707 = vsel %vm347, %v702, %v706
        %v709 = vshrl.u32 %v330, 16
        %v711 = vrot.slane %v709, 4
        %v712 = vshll.u32 %v330, 16
        %v714 = vrot.slane %v712, 5
        %v715 = vor.u32 %v711, %v714
        %v716 = vrot.slane %v715, 4
        %v718 = vshll.u32 %v331, 16
        %v720 = vrot.slane %v718, 5
        %v721 = vsel %vm347, %v716, %v720
        %v722 = vshrl.u32 %v331, 16
        %v724 = vrot.slane %v722, 4
        %v725 = vor.u32 %v724, %v720
        %v726 = vrot.slane %v725, 4
        %v728 = vshll.u32 %v332, 16
        %v730 = vrot.slane %v728, 5
        %v731 = vsel %vm347, %v726, %v730
        %v733 = vshrl.u32 %v333, 16
        %v735 = vrot.slane %v733, 4
        %v736 = vshll.u32 %v333, 16
        %v738 = vrot.slane %v736, 5
        %v739 = vor.u32 %v735, %v738
        %v740 = vrot.slane %v739, 4
        %v742 = vshll.u32 %v334, 16
        %v744 = vrot.slane %v742, 5
        %v745 = vsel %vm347, %v740, %v744
        %v746 = vshrl.u32 %v334, 16
        %v748 = vrot.slane %v746, 4
        %v749 = vor.u32 %v748, %v744
        %v750 = vrot.slane %v749, 4
        %v752 = vshll.u32 %v335, 16
        %v754 = vrot.slane %v752, 5
        %v755 = vsel %vm347, %v750, %v754
        %v757 = vshrl.u32 %v336, 16
        %v759 = vrot.slane %v757, 4
        %v760 = vshll.u32 %v336, 16
        %v762 = vrot.slane %v760, 5
        %v763 = vor.u32 %v759, %v762
        %v764 = vrot.slane %v763, 4
        %v766 = vshll.u32 %v337, 16
        %v768 = vrot.slane %v766, 5
        %v769 = vsel %vm347, %v764, %v768
        %v770 = vshrl.u32 %v337, 16
        %v772 = vrot.slane %v770, 4
        %v773 = vor.u32 %v772, %v768
        %v774 = vrot.slane %v773, 4
        %v776 = vshll.u32 %v338, 16
        %v778 = vrot.slane %v776, 5
        %v779 = vsel %vm347, %v774, %v778
        %vm834 = vcmask 1042432
        %vm835 = vcmask 1046532
        %vm836 = vmor %vm834, %vm835
        %v837 = vrot.slane %v285, 5
        %v838 = vrot.slane %v837, 4
        %v839 = vrot.slane %v286, 5
        %v840 = vsel %vm836, %v838, %v839
        %v841 = vrot.slane %v839, 4
        %v842 = vrot.slane %v287, 5
        %v843 = vsel %vm836, %v841, %v842
        %v844 = vrot.slane %v288, 5
        %v845 = vrot.slane %v844, 4
        %v846 = vrot.slane %v289, 5
        %v847 = vsel %vm836, %v845, %v846
        %v848 = vrot.slane %v846, 4
        %v849 = vrot.slane %v290, 5
        %v850 = vsel %vm836, %v848, %v849
        %v851 = vrot.slane %v291, 5
        %v852 = vrot.slane %v851, 4
        %v853 = vrot.slane %v292, 5
        %v854 = vsel %vm836, %v852, %v853
        %v855 = vrot.slane %v853, 4
        %v856 = vrot.slane %v293, 5
        %v857 = vsel %vm836, %v855, %v856
        %v858 = vrot.slane %v294, 5
        %v859 = vrot.slane %v858, 4
        %v860 = vrot.slane %v295, 5
        %v861 = vsel %vm836, %v859, %v860
        %v862 = vrot.slane %v860, 4
        %v863 = vrot.slane %v296, 5
        %v864 = vsel %vm836, %v862, %v863
        %v865 = vrot.slane %v297, 5
        %v866 = vrot.slane %v865, 4
        %v867 = vrot.slane %v298, 5
        %v868 = vsel %vm836, %v866, %v867
        %v869 = vrot.slane %v867, 4
        %v870 = vrot.slane %v299, 5
        %v871 = vsel %vm836, %v869, %v870
        %v872 = vrot.slane %v300, 5
        %v873 = vrot.slane %v872, 4
        %v874 = vrot.slane %v301, 5
        %v875 = vsel %vm836, %v873, %v874
        %v876 = vrot.slane %v874, 4
        %v877 = vrot.slane %v302, 5
        %v878 = vsel %vm836, %v876, %v877
        %v879 = vrot.slane %v303, 5
        %v880 = vrot.slane %v879, 4
        %v881 = vrot.slane %v304, 5
        %v882 = vsel %vm836, %v880, %v881
        %v883 = vrot.slane %v881, 4
        %v884 = vrot.slane %v305, 5
        %v885 = vsel %vm836, %v883, %v884
        %v886 = vrot.slane %v306, 5
        %v887 = vrot.slane %v886, 4
        %v888 = vrot.slane %v307, 5
        %v889 = vsel %vm836, %v887, %v888
        %v890 = vrot.slane %v888, 4
        %v891 = vrot.slane %v308, 5
        %v892 = vsel %vm836, %v890, %v891
        %v893 = vrot.slane %v309, 5
        %v894 = vrot.slane %v893, 4
        %v895 = vrot.slane %v310, 5
        %v896 = vsel %vm836, %v894, %v895
        %v897 = vrot.slane %v895, 4
        %v898 = vrot.slane %v311, 5
        %v899 = vsel %vm836, %v897, %v898
        %v900 = vrot.slane %v312, 5
        %v901 = vrot.slane %v900, 4
        %v902 = vrot.slane %v313, 5
        %v903 = vsel %vm836, %v901, %v902
        %v904 = vrot.slane %v902, 4
        %v905 = vrot.slane %v314, 5
        %v906 = vsel %vm836, %v904, %v905
        %v907 = vrot.slane %v315, 5
        %v908 = vrot.slane %v907, 4
        %v909 = vrot.slane %v316, 5
        %v910 = vsel %vm836, %v908, %v909
        %v911 = vrot.slane %v909, 4
        %v912 = vrot.slane %v317, 5
        %v913 = vsel %vm836, %v911, %v912
        %v914 = vrot.slane %v318, 5
        %v915 = vrot.slane %v914, 4
        %v916 = vrot.slane %v319, 5
        %v917 = vsel %vm836, %v915, %v916
        %v918 = vrot.slane %v916, 4
        %v919 = vrot.slane %v320, 5
        %v920 = vsel %vm836, %v918, %v919
        %v921 = vrot.slane %v321, 5
        %v922 = vrot.slane %v921, 4
        %v923 = vrot.slane %v322, 5
        %v924 = vsel %vm836, %v922, %v923
        %v925 = vrot.slane %v923, 4
        %v926 = vrot.slane %v323, 5
        %v927 = vsel %vm836, %v925, %v926
        %v928 = vrot.slane %v324, 5
        %v929 = vrot.slane %v928, 4
        %v930 = vrot.slane %v325, 5
        %v931 = vsel %vm836, %v929, %v930
        %v932 = vrot.slane %v930, 4
        %v933 = vrot.slane %v326, 5
        %v934 = vsel %vm836, %v932, %v933
        %v935 = vrot.slane %v327, 5
        %v936 = vrot.slane %v935, 4
        %v937 = vrot.slane %v328, 5
        %v938 = vsel %vm836, %v936, %v937
        %v939 = vrot.slane %v937, 4
        %v940 = vrot.slane %v329, 5
        %v941 = vsel %vm836, %v939, %v940
        %v942 = vrot.slane %v330, 5
        %v943 = vrot.slane %v942, 4
        %v944 = vrot.slane %v331, 5
        %v945 = vsel %vm836, %v943, %v944
        %v946 = vrot.slane %v944, 4
        %v947 = vrot.slane %v332, 5
        %v948 = vsel %vm836, %v946, %v947
        %v949 = vrot.slane %v333, 5
        %v950 = vrot.slane %v949, 4
        %v951 = vrot.slane %v334, 5
        %v952 = vsel %vm836, %v950, %v951
        %v953 = vrot.slane %v951, 4
        %v954 = vrot.slane %v335, 5
        %v955 = vsel %vm836, %v953, %v954
        %v956 = vrot.slane %v336, 5
        %v957 = vrot.slane %v956, 4
        %v958 = vrot.slane %v337, 5
        %v959 = vsel %vm836, %v957, %v958
        %v960 = vrot.slane %v958, 4
        %v961 = vrot.slane %v338, 5
        %v962 = vsel %vm836, %v960, %v961
        %v963 = vunpack.c.l.b16 %v285
        %v964 = vunpack.c.l.b16 %v286
        %v965 = vunpack.c.l.b16 %v288
        %v966 = vunpack.c.l.b16 %v289
        %v967 = vunpack.c.l.b16 %v291
        %v968 = vunpack.c.l.b16 %v292
        %v969 = vunpack.c.l.b16 %v294
        %v970 = vunpack.c.l.b16 %v295
        %v971 = vunpack.c.l.b16 %v297
        %v972 = vunpack.c.l.b16 %v298
        %v973 = vunpack.c.l.b16 %v300
        %v974 = vunpack.c.l.b16 %v301
        %v975 = vunpack.c.l.b16 %v303
        %v976 = vunpack.c.l.b16 %v304
        %v977 = vunpack.c.l.b16 %v306
        %v978 = vunpack.c.l.b16 %v307
        %v979 = vunpack.c.l.b16 %v309
        %v980 = vunpack.c.l.b16 %v310
        %v981 = vunpack.c.l.b16 %v312
        %v982 = vunpack.c.l.b16 %v313
        %v983 = vunpack.c.l.b16 %v315
        %v984 = vunpack.c.l.b16 %v316
        %v985 = vunpack.c.l.b16 %v318
        %v986 = vunpack.c.l.b16 %v319
        %v987 = vunpack.c.l.b16 %v321
        %v988 = vunpack.c.l.b16 %v322
        %v989 = vunpack.c.l.b16 %v324
        %v990 = vunpack.c.l.b16 %v325
        %v991 = vunpack.c.l.b16 %v327
        %v992 = vunpack.c.l.b16 %v328
        %v993 = vunpack.c.l.b16 %v330
        %v994 = vunpack.c.l.b16 %v331
        %v995 = vunpack.c.l.b16 %v333
        %v996 = vunpack.c.l.b16 %v334
        %v997 = vunpack.c.l.b16 %v336
        %v998 = vunpack.c.l.b16 %v337
        %v999 = vpack.c.b16 %v964, %v963
        %v1000 = vpack.c.b16 %v966, %v965
        %v1001 = vpack.c.b16 %v968, %v967
        %v1002 = vpack.c.b16 %v970, %v969
        %v1003 = vpack.c.b16 %v972, %v971
        %v1004 = vpack.c.b16 %v974, %v973
        %v1005 = vpack.c.b16 %v976, %v975
        %v1006 = vpack.c.b16 %v978, %v977
        %v1007 = vpack.c.b16 %v980, %v979
        %v1008 = vpack.c.b16 %v982, %v981
        %v1009 = vpack.c.b16 %v984, %v983
        %v1010 = vpack.c.b16 %v986, %v985
        %v1011 = vpack.c.b16 %v988, %v987
        %v1012 = vpack.c.b16 %v990, %v989
        %v1013 = vpack.c.b16 %v992, %v991
        %v1014 = vpack.c.b16 %v994, %v993
        %v1015 = vpack.c.b16 %v996, %v995
        %v1016 = vpack.c.b16 %v998, %v997
        %v1035 = vunpack.c.l.b16 %v361
        %v1036 = vunpack.c.l.b16 %v371
        %v1037 = vunpack.c.l.b16 %v385
        %v1038 = vunpack.c.l.b16 %v395
        %v1039 = vunpack.c.l.b16 %v409
        %v1040 = vunpack.c.l.b16 %v419
        %v1041 = vunpack.c.l.b16 %v433
        %v1042 = vunpack.c.l.b16 %v443
        %v1043 = vunpack.c.l.b16 %v457
        %v1044 = vunpack.c.l.b16 %v467
        %v1045 = vunpack.c.l.b16 %v481
        %v1046 = vunpack.c.l.b16 %v491
        %v1047 = vunpack.c.l.b16 %v505
        %v1048 = vunpack.c.l.b16 %v515
        %v1049 = vunpack.c.l.b16 %v529
        %v1050 = vunpack.c.l.b16 %v539
        %v1051 = vunpack.c.l.b16 %v553
        %v1052 = vunpack.c.l.b16 %v563
        %v1053 = vunpack.c.l.b16 %v577
        %v1054 = vunpack.c.l.b16 %v587
        %v1055 = vunpack.c.l.b16 %v601
        %v1056 = vunpack.c.l.b16 %v611
        %v1057 = vunpack.c.l.b16 %v625
        %v1058 = vunpack.c.l.b16 %v635
        %v1059 = vunpack.c.l.b16 %v649
        %v1060 = vunpack.c.l.b16 %v659
        %v1061 = vunpack.c.l.b16 %v673
        %v1062 = vunpack.c.l.b16 %v683
        %v1063 = vunpack.c.l.b16 %v697
        %v1064 = vunpack.c.l.b16 %v707
        %v1065 = vunpack.c.l.b16 %v721
        %v1066 = vunpack.c.l.b16 %v731
        %v1067 = vunpack.c.l.b16 %v745
        %v1068 = vunpack.c.l.b16 %v755
        %v1069 = vunpack.c.l.b16 %v769
        %v1070 = vunpack.c.l.b16 %v779
        %v1071 = vpack.c.b16 %v1036, %v1035
        %v1072 = vpack.c.b16 %v1038, %v1037
        %v1073 = vpack.c.b16 %v1040, %v1039
        %v1074 = vpack.c.b16 %v1042, %v1041
        %v1075 = vpack.c.b16 %v1044, %v1043
        %v1076 = vpack.c.b16 %v1046, %v1045
        %v1077 = vpack.c.b16 %v1048, %v1047
        %v1078 = vpack.c.b16 %v1050, %v1049
        %v1079 = vpack.c.b16 %v1052, %v1051
        %v1080 = vpack.c.b16 %v1054, %v1053
        %v1081 = vpack.c.b16 %v1056, %v1055
        %v1082 = vpack.c.b16 %v1058, %v1057
        %v1083 = vpack.c.b16 %v1060, %v1059
        %v1084 = vpack.c.b16 %v1062, %v1061
        %v1085 = vpack.c.b16 %v1064, %v1063
        %v1086 = vpack.c.b16 %v1066, %v1065
        %v1087 = vpack.c.b16 %v1068, %v1067
        %v1088 = vpack.c.b16 %v1070, %v1069
        %v1107 = vunpack.c.l.b16 %v840
        %v1108 = vunpack.c.l.b16 %v843
        %v1109 = vunpack.c.l.b16 %v847
        %v1110 = vunpack.c.l.b16 %v850
        %v1111 = vunpack.c.l.b16 %v854
        %v1112 = vunpack.c.l.b16 %v857
        %v1113 = vunpack.c.l.b16 %v861
        %v1114 = vunpack.c.l.b16 %v864
        %v1115 = vunpack.c.l.b16 %v868
        %v1116 = vunpack.c.l.b16 %v871
        %v1117 = vunpack.c.l.b16 %v875
        %v1118 = vunpack.c.l.b16 %v878
        %v1119 = vunpack.c.l.b16 %v882
        %v1120 = vunpack.c.l.b16 %v885
        %v1121 = vunpack.c.l.b16 %v889
        %v1122 = vunpack.c.l.b16 %v892
        %v1123 = vunpack.c.l.b16 %v896
        %v1124 = vunpack.c.l.b16 %v899
        %v1125 = vunpack.c.l.b16 %v903
        %v1126 = vunpack.c.l.b16 %v906
        %v1127 = vunpack.c.l.b16 %v910
        %v1128 = vunpack.c.l.b16 %v913
        %v1129 = vunpack.c.l.b16 %v917
        %v1130 = vunpack.c.l.b16 %v920
        %v1131 = vunpack.c.l.b16 %v924
        %v1132 = vunpack.c.l.b16 %v927
        %v1133 = vunpack.c.l.b16 %v931
        %v1134 = vunpack.c.l.b16 %v934
        %v1135 = vunpack.c.l.b16 %v938
        %v1136 = vunpack.c.l.b16 %v941
        %v1137 = vunpack.c.l.b16 %v945
        %v1138 = vunpack.c.l.b16 %v948
        %v1139 = vunpack.c.l.b16 %v952
        %v1140 = vunpack.c.l.b16 %v955
        %v1141 = vunpack.c.l.b16 %v959
        %v1142 = vunpack.c.l.b16 %v962
        %v1143 = vpack.c.b16 %v1108, %v1107
        %v1144 = vpack.c.b16 %v1110, %v1109
        %v1145 = vpack.c.b16 %v1112, %v1111
        %v1146 = vpack.c.b16 %v1114, %v1113
        %v1147 = vpack.c.b16 %v1116, %v1115
        %v1148 = vpack.c.b16 %v1118, %v1117
        %v1149 = vpack.c.b16 %v1120, %v1119
        %v1150 = vpack.c.b16 %v1122, %v1121
        %v1151 = vpack.c.b16 %v1124, %v1123
        %v1152 = vpack.c.b16 %v1126, %v1125
        %v1153 = vpack.c.b16 %v1128, %v1127
        %v1154 = vpack.c.b16 %v1130, %v1129
        %v1155 = vpack.c.b16 %v1132, %v1131
        %v1156 = vpack.c.b16 %v1134, %v1133
        %v1157 = vpack.c.b16 %v1136, %v1135
        %v1158 = vpack.c.b16 %v1138, %v1137
        %v1159 = vpack.c.b16 %v1140, %v1139
        %v1160 = vpack.c.b16 %v1142, %v1141
        %v1179 = vld [vmem:[%s1] sm:$0xf]
        %v1180 = vld [vmem:[%s1 + $0x4] sm:$0xf]
        %v1181 = vld [vmem:[%s1 + $0x8] sm:$0xf]
        %v1182 = vld [vmem:[%s1 + $0xc] sm:$0xf]
        %v1183 = vld [vmem:[%s1 + $0x10] sm:$0xf]
        %v1184 = vld [vmem:[%s1 + $0x14] sm:$0xf]
        %v1185 = vld [vmem:[%s1 + $0x18] sm:$0xf]
        %v1186 = vld [vmem:[%s1 + $0x1c] sm:$0xf]
        %v1187 = vld [vmem:[%s1 + $0x20] sm:$0xf]
        %v1188 = vld [vmem:[%s1 + $0x24] sm:$0xf]
        %v1189 = vld [vmem:[%s1 + $0x28] sm:$0xf]
        %v1190 = vld [vmem:[%s1 + $0x2c] sm:$0xf]
        %v1191 = vld [vmem:[%s1 + $0x30] sm:$0xf]
        %v1192 = vld [vmem:[%s1 + $0x34] sm:$0xf]
        %v1193 = vld [vmem:[%s1 + $0x38] sm:$0xf]
        %v1194 = vld [vmem:[%s1 + $0x3c] sm:$0xf]
        %v1195 = vld [vmem:[%s1 + $0x40] sm:$0xf]
        %v1196 = vld [vmem:[%s1 + $0x44] sm:$0xf]
        %v1197 = vld [vmem:[%s1 + $0x48] sm:$0xf]
        %v1198 = vld [vmem:[%s1 + $0x4c] sm:$0xf]
        %v1199 = vld [vmem:[%s1 + $0x50] sm:$0xf]
        %v1200 = vld [vmem:[%s1 + $0x54] sm:$0xf]
        %v1201 = vld [vmem:[%s1 + $0x58] sm:$0xf]
        %v1202 = vld [vmem:[%s1 + $0x5c] sm:$0xf]
        %v1203 = vld [vmem:[%s1 + $0x60] sm:$0xf]
        %v1204 = vld [vmem:[%s1 + $0x64] sm:$0xf]
        %v1205 = vld [vmem:[%s1 + $0x68] sm:$0xf]
        %v1206 = vld [vmem:[%s1 + $0x6c] sm:$0xf]
        %v1207 = vld [vmem:[%s1 + $0x70] sm:$0xf]
        %v1208 = vld [vmem:[%s1 + $0x74] sm:$0xf]
        %v1209 = vld [vmem:[%s1 + $0x78] sm:$0xf]
        %v1210 = vld [vmem:[%s1 + $0x7c] sm:$0xf]
        %v1211 = vld [vmem:[%s1 + $0x80] sm:$0xf]
        %v1212 = vld [vmem:[%s1 + $0x84] sm:$0xf]
        %v1213 = vld [vmem:[%s1 + $0x88] sm:$0xf]
        %v1214 = vld [vmem:[%s1 + $0x8c] sm:$0xf]
        %v1215 = vld [vmem:[%s1 + $0x90] sm:$0xf]
        %v1216 = vld [vmem:[%s1 + $0x94] sm:$0xf]
        %v1217 = vld [vmem:[%s1 + $0x98] sm:$0xf]
        %v1218 = vld [vmem:[%s1 + $0x9c] sm:$0xf]
        %v1219 = vld [vmem:[%s1 + $0xa0] sm:$0xf]
        %v1220 = vld [vmem:[%s1 + $0xa4] sm:$0xf]
        %v1221 = vld [vmem:[%s1 + $0xa8] sm:$0xf]
        %v1222 = vld [vmem:[%s1 + $0xac] sm:$0xf]
        %v1223 = vld [vmem:[%s1 + $0xb0] sm:$0xf]
        %v1224 = vld [vmem:[%s1 + $0xb4] sm:$0xf]
        %v1225 = vld [vmem:[%s1 + $0xb8] sm:$0xf]
        %v1226 = vld [vmem:[%s1 + $0xbc] sm:$0xf]
        %v1228 = vshrl.u32 %v339, 16
        %v1230 = vrot.slane %v1228, 4
        %v1231 = vshll.u32 %v339, 16
        %v1233 = vrot.slane %v1231, 5
        %v1234 = vor.u32 %v1230, %v1233
        %v1235 = vrot.slane %v1234, 4
        %v1237 = vshll.u32 %v340, 16
        %v1239 = vrot.slane %v1237, 5
        %v1240 = vsel %vm347, %v1235, %v1239
        %v1241 = vshrl.u32 %v340, 16
        %v1243 = vrot.slane %v1241, 4
        %v1244 = vor.u32 %v1243, %v1239
        %v1245 = vrot.slane %v1244, 4
        %v1247 = vshll.u32 %v341, 16
        %v1249 = vrot.slane %v1247, 5
        %v1250 = vsel %vm347, %v1245, %v1249
        %v1254 = vrot.slane %v339, 5
        %v1255 = vrot.slane %v1254, 4
        %v1256 = vrot.slane %v340, 5
        %v1257 = vsel %vm836, %v1255, %v1256
        %v1258 = vrot.slane %v1256, 4
        %v1259 = vrot.slane %v341, 5
        %v1260 = vsel %vm836, %v1258, %v1259
        %v1261 = vunpack.c.l.b16 %v339
        %v1262 = vunpack.c.l.b16 %v340
        %v1263 = vpack.c.b16 %v1262, %v1261
        %v1265 = vunpack.c.l.b16 %v1240
        %v1266 = vunpack.c.l.b16 %v1250
        %v1267 = vpack.c.b16 %v1266, %v1265
        %v1269 = vunpack.c.l.b16 %v1257
        %v1270 = vunpack.c.l.b16 %v1260
        %v1271 = vpack.c.b16 %v1270, %v1269
        %v1273 = vld [vmem:[%s1 + $0xc0] sm:$0xf]
        %v1274 = vld [vmem:[%s1 + $0xc4] sm:$0xf]
        %v1275 = vld [vmem:[%s1 + $0xc8] sm:$0xf]
        %v1276 = vld [vmem:[%s1 + $0xcc] sm:$0xf]
        %v1277 = vld [vmem:[%s1 + $0xd0] sm:$0xf]
        %v1278 = vld [vmem:[%s1 + $0xd4] sm:$0xf]
        %v1279 = vld [vmem:[%s1 + $0xd8] sm:$0xf]
        %v1280 = vld [vmem:[%s1 + $0xdc] sm:$0xf]
        %v1281 = vld [vmem:[%s1 + $0xe0] sm:$0xf]
        %v1282 = vld [vmem:[%s1 + $0xe4] sm:$0xf]
        %v1283 = vld [vmem:[%s1 + $0xe8] sm:$0xf]
        %v1284 = vld [vmem:[%s1 + $0xec] sm:$0xf]
        %v1285 = vld [vmem:[%s1 + $0xf0] sm:$0xf]
        %v1286 = vld [vmem:[%s1 + $0xf4] sm:$0xf]
        %v1287 = vld [vmem:[%s1 + $0xf8] sm:$0xf]
        %v1288 = vld [vmem:[%s1 + $0xfc] sm:$0xf]
        %v1289 = vld [vmem:[%s1 + $0x100] sm:$0xf]
        %v1290 = vld [vmem:[%s1 + $0x104] sm:$0xf]
        %v1291 = vld [vmem:[%s1 + $0x108] sm:$0xf]
        %v1292 = vld [vmem:[%s1 + $0x10c] sm:$0xf]
        %v1293 = vld [vmem:[%s1 + $0x110] sm:$0xf]
        %v1294 = vld [vmem:[%s1 + $0x114] sm:$0xf]
        %v1295 = vld [vmem:[%s1 + $0x118] sm:$0xf]
        %v1296 = vld [vmem:[%s1 + $0x11c] sm:$0xf]
        %v1297 = vld [vmem:[%s1 + $0x120] sm:$0xf]
        %v1298 = vld [vmem:[%s1 + $0x124] sm:$0xf]
        %v1299 = vld [vmem:[%s1 + $0x128] sm:$0xf]
        %v1300 = vld [vmem:[%s1 + $0x12c] sm:$0xf]
        %v1301 = vld [vmem:[%s1 + $0x130] sm:$0xf]
        %v1302 = vld [vmem:[%s1 + $0x134] sm:$0xf]
        %v1303 = vld [vmem:[%s1 + $0x138] sm:$0xf]
        %v1304 = vld [vmem:[%s1 + $0x13c] sm:$0xf]
        %v1305 = vld [vmem:[%s1 + $0x140] sm:$0xf]
        %v1306 = vld [vmem:[%s1 + $0x144] sm:$0xf]
        %v1307 = vld [vmem:[%s1 + $0x148] sm:$0xf]
        %v1308 = vld [vmem:[%s1 + $0x14c] sm:$0xf]
        %v1309 = vld [vmem:[%s1 + $0x150] sm:$0xf]
        %v1310 = vld [vmem:[%s1 + $0x154] sm:$0xf]
        %v1311 = vld [vmem:[%s1 + $0x158] sm:$0xf]
        %v1312 = vld [vmem:[%s1 + $0x15c] sm:$0xf]
        %v1313 = vld [vmem:[%s1 + $0x160] sm:$0xf]
        %v1314 = vld [vmem:[%s1 + $0x164] sm:$0xf]
        %v1315 = vld [vmem:[%s1 + $0x168] sm:$0xf]
        %v1316 = vld [vmem:[%s1 + $0x16c] sm:$0xf]
        %v1317 = vld [vmem:[%s1 + $0x170] sm:$0xf]
        %v1318 = vld [vmem:[%s1 + $0x174] sm:$0xf]
        %v1319 = vld [vmem:[%s1 + $0x178] sm:$0xf]
        %v1320 = vld [vmem:[%s1 + $0x17c] sm:$0xf]
        %v1369 = vunpack.c.l.b16 %v1273
        %v1370 = vunpack.c.l.b16 %v1274
        %v1371 = vunpack.c.l.b16 %v1275
        %v1372 = vunpack.c.l.b16 %v1276
        %v1373 = vunpack.c.l.b16 %v1277
        %v1374 = vunpack.c.l.b16 %v1278
        %v1375 = vunpack.c.l.b16 %v1279
        %v1376 = vunpack.c.l.b16 %v1280
        %v1377 = vunpack.c.l.b16 %v1281
        %v1378 = vunpack.c.l.b16 %v1282
        %v1379 = vunpack.c.l.b16 %v1283
        %v1380 = vunpack.c.l.b16 %v1284
        %v1381 = vunpack.c.l.b16 %v1285
        %v1382 = vunpack.c.l.b16 %v1286
        %v1383 = vunpack.c.l.b16 %v1287
        %v1384 = vunpack.c.l.b16 %v1288
        %v1385 = vunpack.c.l.b16 %v1289
        %v1386 = vunpack.c.l.b16 %v1290
        %v1387 = vunpack.c.l.b16 %v1291
        %v1388 = vunpack.c.l.b16 %v1292
        %v1389 = vunpack.c.l.b16 %v1293
        %v1390 = vunpack.c.l.b16 %v1294
        %v1391 = vunpack.c.l.b16 %v1295
        %v1392 = vunpack.c.l.b16 %v1296
        %v1393 = vunpack.c.l.b16 %v1297
        %v1394 = vunpack.c.l.b16 %v1298
        %v1395 = vunpack.c.l.b16 %v1299
        %v1396 = vunpack.c.l.b16 %v1300
        %v1397 = vunpack.c.l.b16 %v1301
        %v1398 = vunpack.c.l.b16 %v1302
        %v1399 = vunpack.c.l.b16 %v1303
        %v1400 = vunpack.c.l.b16 %v1304
        %v1401 = vunpack.c.l.b16 %v1305
        %v1402 = vunpack.c.l.b16 %v1306
        %v1403 = vunpack.c.l.b16 %v1307
        %v1404 = vunpack.c.l.b16 %v1308
        %v1405 = vunpack.c.l.b16 %v1309
        %v1406 = vunpack.c.l.b16 %v1310
        %v1407 = vunpack.c.l.b16 %v1311
        %v1408 = vunpack.c.l.b16 %v1312
        %v1409 = vunpack.c.l.b16 %v1313
        %v1410 = vunpack.c.l.b16 %v1314
        %v1411 = vunpack.c.l.b16 %v1315
        %v1412 = vunpack.c.l.b16 %v1316
        %v1413 = vunpack.c.l.b16 %v1317
        %v1414 = vunpack.c.l.b16 %v1318
        %v1415 = vunpack.c.l.b16 %v1319
        %v1416 = vunpack.c.l.b16 %v1320
        %v1417 = vpack.c.b16 %v1370, %v1369
        %v1418 = vpack.c.b16 %v1372, %v1371
        %v1419 = vpack.c.b16 %v1374, %v1373
        %v1420 = vpack.c.b16 %v1376, %v1375
        %v1421 = vpack.c.b16 %v1378, %v1377
        %v1422 = vpack.c.b16 %v1380, %v1379
        %v1423 = vpack.c.b16 %v1382, %v1381
        %v1424 = vpack.c.b16 %v1384, %v1383
        %v1425 = vpack.c.b16 %v1386, %v1385
        %v1426 = vpack.c.b16 %v1388, %v1387
        %v1427 = vpack.c.b16 %v1390, %v1389
        %v1428 = vpack.c.b16 %v1392, %v1391
        %v1429 = vpack.c.b16 %v1394, %v1393
        %v1430 = vpack.c.b16 %v1396, %v1395
        %v1431 = vpack.c.b16 %v1398, %v1397
        %v1432 = vpack.c.b16 %v1400, %v1399
        %v1433 = vpack.c.b16 %v1402, %v1401
        %v1434 = vpack.c.b16 %v1404, %v1403
        %v1435 = vpack.c.b16 %v1406, %v1405
        %v1436 = vpack.c.b16 %v1408, %v1407
        %v1437 = vpack.c.b16 %v1410, %v1409
        %v1438 = vpack.c.b16 %v1412, %v1411
        %v1439 = vpack.c.b16 %v1414, %v1413
        %v1440 = vpack.c.b16 %v1416, %v1415
        %1465 = vmatprep.subr.bf16.mxu0 0
        %1466 = vmatpush1.bf16.msra.mxu0 %v1424
        %1467 = vmatprep.subr.bf16.mxu0 0
        %1468 = vmatpush1.bf16.msra.mxu0 %v1423
        %1469 = vmatprep.subr.bf16.mxu0 0
        %1470 = vmatpush1.bf16.msra.mxu0 %v1422
        %1471 = vmatprep.subr.bf16.mxu0 0
        %1472 = vmatpush1.bf16.msra.mxu0 %v1421
        %1473 = vmatprep.subr.bf16.mxu0 0
        %1474 = vmatpush1.bf16.msra.mxu0 %v1420
        %1475 = vmatprep.subr.bf16.mxu0 0
        %1476 = vmatpush1.bf16.msra.mxu0 %v1419
        %1477 = vmatprep.subr.bf16.mxu0 0
        %1478 = vmatpush1.bf16.msra.mxu0 %v1418
        %1479 = vmatprep.subr.bf16.mxu0 0
        %1480 = vmatpush1.bf16.msra.mxu0 %v1417
        %1481 = vmatprep.subr.bf16.mxu0 0
        %1482 = vmatpush2.bf16.msra.mxu0 %v1432
        %1483 = vmatprep.subr.bf16.mxu0 0
        %1484 = vmatpush2.bf16.msra.mxu0 %v1431
        %1485 = vmatprep.subr.bf16.mxu0 0
        %1486 = vmatpush2.bf16.msra.mxu0 %v1430
        %1487 = vmatprep.subr.bf16.mxu0 0
        %1488 = vmatpush2.bf16.msra.mxu0 %v1429
        %1489 = vmatprep.subr.bf16.mxu0 0
        %1490 = vmatpush2.bf16.msra.mxu0 %v1428
        %1491 = vmatprep.subr.bf16.mxu0 0
        %1492 = vmatpush2.bf16.msra.mxu0 %v1427
        %1493 = vmatprep.subr.bf16.mxu0 0
        %1494 = vmatpush2.bf16.msra.mxu0 %v1426
        %1495 = vmatprep.subr.bf16.mxu0 0
        %1496 = vmatpush2.bf16.msra.mxu0 %v1425
        %1497 = vmatprep.mubr.bf16.mxu0 %v1072
        %1498 = vmatmul.mubr.bf16.gmra.mxu0 %v1000
        %v1499 = vpop.f32.mrf.mxu0
        %v1500 = vadd.f32 0.0, %v1499
        %v1501 = vpop.f32.mrf.mxu0
        %v1502 = vpop.f32.mrf.mxu0
        %v1503 = vadd.f32 0.0, %v1502
        %v1504 = vpop.f32.mrf.mxu0
        %1505 = vmatprep.mubr.bf16.mxu0 %v1073
        %1506 = vmatmul.mubr.bf16.gmra.mxu0 %v1001
        %v1507 = vpop.f32.mrf.mxu0
        %v1508 = vadd.f32 0.0, %v1507
        %v1509 = vpop.f32.mrf.mxu0
        %v1510 = vpop.f32.mrf.mxu0
        %v1511 = vadd.f32 0.0, %v1510
        %v1512 = vpop.f32.mrf.mxu0
        %1513 = vmatprep.mubr.bf16.mxu0 %v1074
        %1514 = vmatmul.mubr.bf16.gmra.mxu0 %v1002
        %v1515 = vpop.f32.mrf.mxu0
        %v1516 = vadd.f32 0.0, %v1515
        %v1517 = vpop.f32.mrf.mxu0
        %v1518 = vpop.f32.mrf.mxu0
        %v1519 = vadd.f32 0.0, %v1518
        %v1520 = vpop.f32.mrf.mxu0
        %1521 = vmatprep.mubr.bf16.mxu0 %v1075
        %1522 = vmatmul.mubr.bf16.gmra.mxu0 %v1003
        %v1523 = vpop.f32.mrf.mxu0
        %v1524 = vadd.f32 0.0, %v1523
        %v1525 = vpop.f32.mrf.mxu0
        %v1526 = vpop.f32.mrf.mxu0
        %v1527 = vadd.f32 0.0, %v1526
        %v1528 = vpop.f32.mrf.mxu0
        %1529 = vmatprep.mubr.bf16.mxu0 %v1076
        %1530 = vmatmul.mubr.bf16.gmra.mxu0 %v1004
        %v1531 = vpop.f32.mrf.mxu0
        %v1532 = vadd.f32 0.0, %v1531
        %v1533 = vpop.f32.mrf.mxu0
        %v1534 = vpop.f32.mrf.mxu0
        %v1535 = vadd.f32 0.0, %v1534
        %v1536 = vpop.f32.mrf.mxu0
        %1537 = vmatprep.mubr.bf16.mxu0 %v1077
        %1538 = vmatmul.mubr.bf16.gmra.mxu0 %v1005
        %v1539 = vpop.f32.mrf.mxu0
        %v1540 = vadd.f32 0.0, %v1539
        %v1541 = vpop.f32.mrf.mxu0
        %v1542 = vpop.f32.mrf.mxu0
        %v1543 = vadd.f32 0.0, %v1542
        %v1544 = vpop.f32.mrf.mxu0
        %1545 = vmatprep.mubr.bf16.mxu0 %v1078
        %1546 = vmatmul.mubr.bf16.gmra.mxu0 %v1006
        %v1547 = vpop.f32.mrf.mxu0
        %v1548 = vadd.f32 0.0, %v1547
        %v1549 = vpop.f32.mrf.mxu0
        %v1550 = vpop.f32.mrf.mxu0
        %v1551 = vadd.f32 0.0, %v1550
        %v1552 = vpop.f32.mrf.mxu0
        %1553 = vmatprep.mubr.bf16.mxu0 %v1079
        %1554 = vmatmul.mubr.bf16.gmra.mxu0 %v1007
        %v1555 = vpop.f32.mrf.mxu0
        %v1556 = vadd.f32 0.0, %v1555
        %v1557 = vpop.f32.mrf.mxu0
        %v1558 = vpop.f32.mrf.mxu0
        %v1559 = vadd.f32 0.0, %v1558
        %v1560 = vpop.f32.mrf.mxu0
        %1561 = vmatprep.mubr.bf16.mxu0 %v1080
        %1562 = vmatmul.mubr.bf16.gmra.mxu0 %v1008
        %v1563 = vpop.f32.mrf.mxu0
        %v1564 = vadd.f32 0.0, %v1563
        %v1565 = vpop.f32.mrf.mxu0
        %v1566 = vpop.f32.mrf.mxu0
        %v1567 = vadd.f32 0.0, %v1566
        %v1568 = vpop.f32.mrf.mxu0
        %1569 = vmatprep.mubr.bf16.mxu0 %v1081
        %1570 = vmatmul.mubr.bf16.gmra.mxu0 %v1009
        %v1571 = vpop.f32.mrf.mxu0
        %v1572 = vadd.f32 0.0, %v1571
        %v1573 = vpop.f32.mrf.mxu0
        %v1574 = vpop.f32.mrf.mxu0
        %v1575 = vadd.f32 0.0, %v1574
        %v1576 = vpop.f32.mrf.mxu0
        %1577 = vmatprep.mubr.bf16.mxu0 %v1082
        %1578 = vmatmul.mubr.bf16.gmra.mxu0 %v1010
        %v1579 = vpop.f32.mrf.mxu0
        %v1580 = vadd.f32 0.0, %v1579
        %v1581 = vpop.f32.mrf.mxu0
        %v1582 = vpop.f32.mrf.mxu0
        %v1583 = vadd.f32 0.0, %v1582
        %v1584 = vpop.f32.mrf.mxu0
        %1585 = vmatprep.mubr.bf16.mxu0 %v1083
        %1586 = vmatmul.mubr.bf16.gmra.mxu0 %v1011
        %v1587 = vpop.f32.mrf.mxu0
        %v1588 = vadd.f32 0.0, %v1587
        %v1589 = vpop.f32.mrf.mxu0
        %v1590 = vpop.f32.mrf.mxu0
        %v1591 = vadd.f32 0.0, %v1590
        %v1592 = vpop.f32.mrf.mxu0
        %1593 = vmatprep.mubr.bf16.mxu0 %v1084
        %1594 = vmatmul.mubr.bf16.gmra.mxu0 %v1012
        %v1595 = vpop.f32.mrf.mxu0
        %v1596 = vadd.f32 0.0, %v1595
        %v1597 = vpop.f32.mrf.mxu0
        %v1598 = vpop.f32.mrf.mxu0
        %v1599 = vadd.f32 0.0, %v1598
        %v1600 = vpop.f32.mrf.mxu0
        %1601 = vmatprep.mubr.bf16.mxu0 %v1085
        %1602 = vmatmul.mubr.bf16.gmra.mxu0 %v1013
        %v1603 = vpop.f32.mrf.mxu0
        %v1604 = vadd.f32 0.0, %v1603
        %v1605 = vpop.f32.mrf.mxu0
        %v1606 = vpop.f32.mrf.mxu0
        %v1607 = vadd.f32 0.0, %v1606
        %v1608 = vpop.f32.mrf.mxu0
        %1609 = vmatprep.mubr.bf16.mxu0 %v1086
        %1610 = vmatmul.mubr.bf16.gmra.mxu0 %v1014
        %v1611 = vpop.f32.mrf.mxu0
        %v1612 = vadd.f32 0.0, %v1611
        %v1613 = vpop.f32.mrf.mxu0
        %v1614 = vpop.f32.mrf.mxu0
        %v1615 = vadd.f32 0.0, %v1614
        %v1616 = vpop.f32.mrf.mxu0
        %1617 = vmatprep.mubr.bf16.mxu0 %v1087
        %1618 = vmatmul.mubr.bf16.gmra.mxu0 %v1015
        %v1619 = vpop.f32.mrf.mxu0
        %v1620 = vadd.f32 0.0, %v1619
        %v1621 = vpop.f32.mrf.mxu0
        %v1622 = vpop.f32.mrf.mxu0
        %v1623 = vadd.f32 0.0, %v1622
        %v1624 = vpop.f32.mrf.mxu0
        %1625 = vmatprep.mubr.bf16.mxu0 %v1088
        %1626 = vmatmul.mubr.bf16.gmra.mxu0 %v1016
        %v1627 = vpop.f32.mrf.mxu0
        %v1628 = vadd.f32 0.0, %v1627
        %v1629 = vpop.f32.mrf.mxu0
        %v1630 = vpop.f32.mrf.mxu0
        %v1631 = vadd.f32 0.0, %v1630
        %v1632 = vpop.f32.mrf.mxu0
        %1633 = vmatprep.mubr.bf16.mxu0 %v1267
        %1634 = vmatmul.mubr.bf16.gmra.mxu0 %v1263
        %v1635 = vpop.f32.mrf.mxu0
        %v1636 = vadd.f32 0.0, %v1635
        %v1637 = vpop.f32.mrf.mxu0
        %v1638 = vpop.f32.mrf.mxu0
        %v1639 = vadd.f32 0.0, %v1638
        %v1640 = vpop.f32.mrf.mxu0
        %1641 = vdwg.mxu0
        %1642 = vmatprep.subr.bf16.mxu0 0
        %1643 = vmatpush1.bf16.msra.mxu0 %v1440
        %1644 = vmatprep.subr.bf16.mxu0 0
        %1645 = vmatpush1.bf16.msra.mxu0 %v1439
        %1646 = vmatprep.subr.bf16.mxu0 0
        %1647 = vmatpush1.bf16.msra.mxu0 %v1438
        %1648 = vmatprep.subr.bf16.mxu0 0
        %1649 = vmatpush1.bf16.msra.mxu0 %v1437
        %1650 = vmatprep.subr.bf16.mxu0 0
        %1651 = vmatpush1.bf16.msra.mxu0 %v1436
        %1652 = vmatprep.subr.bf16.mxu0 0
        %1653 = vmatpush1.bf16.msra.mxu0 %v1435
        %1654 = vmatprep.subr.bf16.mxu0 0
        %1655 = vmatpush1.bf16.msra.mxu0 %v1434
        %1656 = vmatprep.subr.bf16.mxu0 0
        %1657 = vmatpush1.bf16.msra.mxu0 %v1433
        %1658 = vmatprep.subr.bf16.mxu0 0
        %1659 = vmatpush2.bf16.msra.mxu0 0
        %1660 = vmatprep.subr.bf16.mxu0 0
        %1661 = vmatpush2.bf16.msra.mxu0 0
        %1662 = vmatprep.subr.bf16.mxu0 0
        %1663 = vmatpush2.bf16.msra.mxu0 0
        %1664 = vmatprep.subr.bf16.mxu0 0
        %1665 = vmatpush2.bf16.msra.mxu0 0
        %1666 = vmatprep.subr.bf16.mxu0 0
        %1667 = vmatpush2.bf16.msra.mxu0 0
        %1668 = vmatprep.subr.bf16.mxu0 0
        %1669 = vmatpush2.bf16.msra.mxu0 0
        %1670 = vmatprep.subr.bf16.mxu0 0
        %1671 = vmatpush2.bf16.msra.mxu0 0
        %1672 = vmatprep.subr.bf16.mxu0 0
        %1673 = vmatpush2.bf16.msra.mxu0 0
        %1674 = vmatprep.mubr.bf16.mxu0 0
        %1675 = vmatmul.mubr.bf16.gmra.mxu0 %v1144
        %v1676 = vpop.f32.mrf.mxu0
        %v1677 = vadd.f32 %v1500, %v1676
        %v1678 = vpop.f32.mrf.mxu0
        %v1679 = vpop.f32.mrf.mxu0
        %v1680 = vadd.f32 %v1503, %v1679
        %v1681 = vpop.f32.mrf.mxu0
        %1682 = vmatprep.mubr.bf16.mxu0 0
        %1683 = vmatmul.mubr.bf16.gmra.mxu0 %v1145
        %v1684 = vpop.f32.mrf.mxu0
        %v1685 = vadd.f32 %v1508, %v1684
        %v1686 = vpop.f32.mrf.mxu0
        %v1687 = vpop.f32.mrf.mxu0
        %v1688 = vadd.f32 %v1511, %v1687
        %v1689 = vpop.f32.mrf.mxu0
        %1690 = vmatprep.mubr.bf16.mxu0 0
        %1691 = vmatmul.mubr.bf16.gmra.mxu0 %v1146
        %v1692 = vpop.f32.mrf.mxu0
        %v1693 = vadd.f32 %v1516, %v1692
        %v1694 = vpop.f32.mrf.mxu0
        %v1695 = vpop.f32.mrf.mxu0
        %v1696 = vadd.f32 %v1519, %v1695
        %v1697 = vpop.f32.mrf.mxu0
        %1698 = vmatprep.mubr.bf16.mxu0 0
        %1699 = vmatmul.mubr.bf16.gmra.mxu0 %v1147
        %v1700 = vpop.f32.mrf.mxu0
        %v1701 = vadd.f32 %v1524, %v1700
        %v1702 = vpop.f32.mrf.mxu0
        %v1703 = vpop.f32.mrf.mxu0
        %v1704 = vadd.f32 %v1527, %v1703
        %v1705 = vpop.f32.mrf.mxu0
        %1706 = vmatprep.mubr.bf16.mxu0 0
        %1707 = vmatmul.mubr.bf16.gmra.mxu0 %v1148
        %v1708 = vpop.f32.mrf.mxu0
        %v1709 = vadd.f32 %v1532, %v1708
        %v1710 = vpop.f32.mrf.mxu0
        %v1711 = vpop.f32.mrf.mxu0
        %v1712 = vadd.f32 %v1535, %v1711
        %v1713 = vpop.f32.mrf.mxu0
        %1714 = vmatprep.mubr.bf16.mxu0 0
        %1715 = vmatmul.mubr.bf16.gmra.mxu0 %v1149
        %v1716 = vpop.f32.mrf.mxu0
        %v1717 = vadd.f32 %v1540, %v1716
        %v1718 = vpop.f32.mrf.mxu0
        %v1719 = vpop.f32.mrf.mxu0
        %v1720 = vadd.f32 %v1543, %v1719
        %v1721 = vpop.f32.mrf.mxu0
        %1722 = vmatprep.mubr.bf16.mxu0 0
        %1723 = vmatmul.mubr.bf16.gmra.mxu0 %v1150
        %v1724 = vpop.f32.mrf.mxu0
        %v1725 = vadd.f32 %v1548, %v1724
        %v1726 = vpop.f32.mrf.mxu0
        %v1727 = vpop.f32.mrf.mxu0
        %v1728 = vadd.f32 %v1551, %v1727
        %v1729 = vpop.f32.mrf.mxu0
        %1730 = vmatprep.mubr.bf16.mxu0 0
        %1731 = vmatmul.mubr.bf16.gmra.mxu0 %v1151
        %v1732 = vpop.f32.mrf.mxu0
        %v1733 = vadd.f32 %v1556, %v1732
        %v1734 = vpop.f32.mrf.mxu0
        %v1735 = vpop.f32.mrf.mxu0
        %v1736 = vadd.f32 %v1559, %v1735
        %v1737 = vpop.f32.mrf.mxu0
        %1738 = vmatprep.mubr.bf16.mxu0 0
        %1739 = vmatmul.mubr.bf16.gmra.mxu0 %v1152
        %v1740 = vpop.f32.mrf.mxu0
        %v1741 = vadd.f32 %v1564, %v1740
        %v1742 = vpop.f32.mrf.mxu0
        %v1743 = vpop.f32.mrf.mxu0
        %v1744 = vadd.f32 %v1567, %v1743
        %v1745 = vpop.f32.mrf.mxu0
        %1746 = vmatprep.mubr.bf16.mxu0 0
        %1747 = vmatmul.mubr.bf16.gmra.mxu0 %v1153
        %v1748 = vpop.f32.mrf.mxu0
        %v1749 = vadd.f32 %v1572, %v1748
        %v1750 = vpop.f32.mrf.mxu0
        %v1751 = vpop.f32.mrf.mxu0
        %v1752 = vadd.f32 %v1575, %v1751
        %v1753 = vpop.f32.mrf.mxu0
        %1754 = vmatprep.mubr.bf16.mxu0 0
        %1755 = vmatmul.mubr.bf16.gmra.mxu0 %v1154
        %v1756 = vpop.f32.mrf.mxu0
        %v1757 = vadd.f32 %v1580, %v1756
        %v1758 = vpop.f32.mrf.mxu0
        %v1759 = vpop.f32.mrf.mxu0
        %v1760 = vadd.f32 %v1583, %v1759
        %v1761 = vpop.f32.mrf.mxu0
        %1762 = vmatprep.mubr.bf16.mxu0 0
        %1763 = vmatmul.mubr.bf16.gmra.mxu0 %v1155
        %v1764 = vpop.f32.mrf.mxu0
        %v1765 = vadd.f32 %v1588, %v1764
        %v1766 = vpop.f32.mrf.mxu0
        %v1767 = vpop.f32.mrf.mxu0
        %v1768 = vadd.f32 %v1591, %v1767
        %v1769 = vpop.f32.mrf.mxu0
        %1770 = vmatprep.mubr.bf16.mxu0 0
        %1771 = vmatmul.mubr.bf16.gmra.mxu0 %v1156
        %v1772 = vpop.f32.mrf.mxu0
        %v1773 = vadd.f32 %v1596, %v1772
        %v1774 = vpop.f32.mrf.mxu0
        %v1775 = vpop.f32.mrf.mxu0
        %v1776 = vadd.f32 %v1599, %v1775
        %v1777 = vpop.f32.mrf.mxu0
        %1778 = vmatprep.mubr.bf16.mxu0 0
        %1779 = vmatmul.mubr.bf16.gmra.mxu0 %v1157
        %v1780 = vpop.f32.mrf.mxu0
        %v1781 = vadd.f32 %v1604, %v1780
        %v1782 = vpop.f32.mrf.mxu0
        %v1783 = vpop.f32.mrf.mxu0
        %v1784 = vadd.f32 %v1607, %v1783
        %v1785 = vpop.f32.mrf.mxu0
        %1786 = vmatprep.mubr.bf16.mxu0 0
        %1787 = vmatmul.mubr.bf16.gmra.mxu0 %v1158
        %v1788 = vpop.f32.mrf.mxu0
        %v1789 = vadd.f32 %v1612, %v1788
        %v1790 = vpop.f32.mrf.mxu0
        %v1791 = vpop.f32.mrf.mxu0
        %v1792 = vadd.f32 %v1615, %v1791
        %v1793 = vpop.f32.mrf.mxu0
        %1794 = vmatprep.mubr.bf16.mxu0 0
        %1795 = vmatmul.mubr.bf16.gmra.mxu0 %v1159
        %v1796 = vpop.f32.mrf.mxu0
        %v1797 = vadd.f32 %v1620, %v1796
        %v1798 = vpop.f32.mrf.mxu0
        %v1799 = vpop.f32.mrf.mxu0
        %v1800 = vadd.f32 %v1623, %v1799
        %v1801 = vpop.f32.mrf.mxu0
        %1802 = vmatprep.mubr.bf16.mxu0 0
        %1803 = vmatmul.mubr.bf16.gmra.mxu0 %v1160
        %v1804 = vpop.f32.mrf.mxu0
        %v1805 = vadd.f32 %v1628, %v1804
        %v1806 = vpop.f32.mrf.mxu0
        %v1807 = vpop.f32.mrf.mxu0
        %v1808 = vadd.f32 %v1631, %v1807
        %v1809 = vpop.f32.mrf.mxu0
        %1810 = vmatprep.mubr.bf16.mxu0 0
        %1811 = vmatmul.mubr.bf16.gmra.mxu0 %v1271
        %v1812 = vpop.f32.mrf.mxu0
        %v1813 = vadd.f32 %v1636, %v1812
        %v1814 = vpop.f32.mrf.mxu0
        %v1815 = vpop.f32.mrf.mxu0
        %v1816 = vadd.f32 %v1639, %v1815
        %v1817 = vpop.f32.mrf.mxu0
        %1818 = vdwg.mxu0
        %v1867 = vunpack.c.l.b16 %v1179
        %v1868 = vunpack.c.l.b16 %v1180
        %v1869 = vunpack.c.l.b16 %v1181
        %v1870 = vunpack.c.l.b16 %v1182
        %v1871 = vunpack.c.l.b16 %v1183
        %v1872 = vunpack.c.l.b16 %v1184
        %v1873 = vunpack.c.l.b16 %v1185
        %v1874 = vunpack.c.l.b16 %v1186
        %v1875 = vunpack.c.l.b16 %v1187
        %v1876 = vunpack.c.l.b16 %v1188
        %v1877 = vunpack.c.l.b16 %v1189
        %v1878 = vunpack.c.l.b16 %v1190
        %v1879 = vunpack.c.l.b16 %v1191
        %v1880 = vunpack.c.l.b16 %v1192
        %v1881 = vunpack.c.l.b16 %v1193
        %v1882 = vunpack.c.l.b16 %v1194
        %v1883 = vunpack.c.l.b16 %v1195
        %v1884 = vunpack.c.l.b16 %v1196
        %v1885 = vunpack.c.l.b16 %v1197
        %v1886 = vunpack.c.l.b16 %v1198
        %v1887 = vunpack.c.l.b16 %v1199
        %v1888 = vunpack.c.l.b16 %v1200
        %v1889 = vunpack.c.l.b16 %v1201
        %v1890 = vunpack.c.l.b16 %v1202
        %v1891 = vunpack.c.l.b16 %v1203
        %v1892 = vunpack.c.l.b16 %v1204
        %v1893 = vunpack.c.l.b16 %v1205
        %v1894 = vunpack.c.l.b16 %v1206
        %v1895 = vunpack.c.l.b16 %v1207
        %v1896 = vunpack.c.l.b16 %v1208
        %v1897 = vunpack.c.l.b16 %v1209
        %v1898 = vunpack.c.l.b16 %v1210
        %v1899 = vunpack.c.l.b16 %v1211
        %v1900 = vunpack.c.l.b16 %v1212
        %v1901 = vunpack.c.l.b16 %v1213
        %v1902 = vunpack.c.l.b16 %v1214
        %v1903 = vunpack.c.l.b16 %v1215
        %v1904 = vunpack.c.l.b16 %v1216
        %v1905 = vunpack.c.l.b16 %v1217
        %v1906 = vunpack.c.l.b16 %v1218
        %v1907 = vunpack.c.l.b16 %v1219
        %v1908 = vunpack.c.l.b16 %v1220
        %v1909 = vunpack.c.l.b16 %v1221
        %v1910 = vunpack.c.l.b16 %v1222
        %v1911 = vunpack.c.l.b16 %v1223
        %v1912 = vunpack.c.l.b16 %v1224
        %v1913 = vunpack.c.l.b16 %v1225
        %v1914 = vunpack.c.l.b16 %v1226
        %v1915 = vpack.c.b16 %v1868, %v1867
        %v1916 = vpack.c.b16 %v1870, %v1869
        %v1917 = vpack.c.b16 %v1872, %v1871
        %v1918 = vpack.c.b16 %v1874, %v1873
        %v1919 = vpack.c.b16 %v1876, %v1875
        %v1920 = vpack.c.b16 %v1878, %v1877
        %v1921 = vpack.c.b16 %v1880, %v1879
        %v1922 = vpack.c.b16 %v1882, %v1881
        %v1923 = vpack.c.b16 %v1884, %v1883
        %v1924 = vpack.c.b16 %v1886, %v1885
        %v1925 = vpack.c.b16 %v1888, %v1887
        %v1926 = vpack.c.b16 %v1890, %v1889
        %v1927 = vpack.c.b16 %v1892, %v1891
        %v1928 = vpack.c.b16 %v1894, %v1893
        %v1929 = vpack.c.b16 %v1896, %v1895
        %v1930 = vpack.c.b16 %v1898, %v1897
        %v1931 = vpack.c.b16 %v1900, %v1899
        %v1932 = vpack.c.b16 %v1902, %v1901
        %v1933 = vpack.c.b16 %v1904, %v1903
        %v1934 = vpack.c.b16 %v1906, %v1905
        %v1935 = vpack.c.b16 %v1908, %v1907
        %v1936 = vpack.c.b16 %v1910, %v1909
        %v1937 = vpack.c.b16 %v1912, %v1911
        %v1938 = vpack.c.b16 %v1914, %v1913
        %1963 = vmatprep.subr.bf16.mxu0 0
        %1964 = vmatpush1.bf16.msra.mxu0 %v1922
        %1965 = vmatprep.subr.bf16.mxu0 0
        %1966 = vmatpush1.bf16.msra.mxu0 %v1921
        %1967 = vmatprep.subr.bf16.mxu0 0
        %1968 = vmatpush1.bf16.msra.mxu0 %v1920
        %1969 = vmatprep.subr.bf16.mxu0 0
        %1970 = vmatpush1.bf16.msra.mxu0 %v1919
        %1971 = vmatprep.subr.bf16.mxu0 0
        %1972 = vmatpush1.bf16.msra.mxu0 %v1918
        %1973 = vmatprep.subr.bf16.mxu0 0
        %1974 = vmatpush1.bf16.msra.mxu0 %v1917
        %1975 = vmatprep.subr.bf16.mxu0 0
        %1976 = vmatpush1.bf16.msra.mxu0 %v1916
        %1977 = vmatprep.subr.bf16.mxu0 0
        %1978 = vmatpush1.bf16.msra.mxu0 %v1915
        %1979 = vmatprep.subr.bf16.mxu0 0
        %1980 = vmatpush2.bf16.msra.mxu0 %v1930
        %1981 = vmatprep.subr.bf16.mxu0 0
        %1982 = vmatpush2.bf16.msra.mxu0 %v1929
        %1983 = vmatprep.subr.bf16.mxu0 0
        %1984 = vmatpush2.bf16.msra.mxu0 %v1928
        %1985 = vmatprep.subr.bf16.mxu0 0
        %1986 = vmatpush2.bf16.msra.mxu0 %v1927
        %1987 = vmatprep.subr.bf16.mxu0 0
        %1988 = vmatpush2.bf16.msra.mxu0 %v1926
        %1989 = vmatprep.subr.bf16.mxu0 0
        %1990 = vmatpush2.bf16.msra.mxu0 %v1925
        %1991 = vmatprep.subr.bf16.mxu0 0
        %1992 = vmatpush2.bf16.msra.mxu0 %v1924
        %1993 = vmatprep.subr.bf16.mxu0 0
        %1994 = vmatpush2.bf16.msra.mxu0 %v1923
        %1995 = vmatprep.mubr.bf16.mxu0 %v1071
        %1996 = vmatmul.mubr.bf16.gmra.mxu0 %v999
        %v1997 = vpop.f32.mrf.mxu0
        %v1998 = vadd.f32 %v1677, %v1997
        %v1999 = vpop.f32.mrf.mxu0
        %v2000 = vpop.f32.mrf.mxu0
        %v2001 = vadd.f32 %v1680, %v2000
        %v2002 = vpop.f32.mrf.mxu0
        %2003 = vmatprep.mubr.bf16.mxu0 %v1072
        %2004 = vmatmul.mubr.bf16.gmra.mxu0 %v1000
        %v2005 = vpop.f32.mrf.mxu0
        %v2006 = vadd.f32 %v1685, %v2005
        %v2007 = vpop.f32.mrf.mxu0
        %v2008 = vpop.f32.mrf.mxu0
        %v2009 = vadd.f32 %v1688, %v2008
        %v2010 = vpop.f32.mrf.mxu0
        %2011 = vmatprep.mubr.bf16.mxu0 %v1073
        %2012 = vmatmul.mubr.bf16.gmra.mxu0 %v1001
        %v2013 = vpop.f32.mrf.mxu0
        %v2014 = vadd.f32 %v1693, %v2013
        %v2015 = vpop.f32.mrf.mxu0
        %v2016 = vpop.f32.mrf.mxu0
        %v2017 = vadd.f32 %v1696, %v2016
        %v2018 = vpop.f32.mrf.mxu0
        %2019 = vmatprep.mubr.bf16.mxu0 %v1074
        %2020 = vmatmul.mubr.bf16.gmra.mxu0 %v1002
        %v2021 = vpop.f32.mrf.mxu0
        %v2022 = vadd.f32 %v1701, %v2021
        %v2023 = vpop.f32.mrf.mxu0
        %v2024 = vpop.f32.mrf.mxu0
        %v2025 = vadd.f32 %v1704, %v2024
        %v2026 = vpop.f32.mrf.mxu0
        %2027 = vmatprep.mubr.bf16.mxu0 %v1075
        %2028 = vmatmul.mubr.bf16.gmra.mxu0 %v1003
        %v2029 = vpop.f32.mrf.mxu0
        %v2030 = vadd.f32 %v1709, %v2029
        %v2031 = vpop.f32.mrf.mxu0
        %v2032 = vpop.f32.mrf.mxu0
        %v2033 = vadd.f32 %v1712, %v2032
        %v2034 = vpop.f32.mrf.mxu0
        %2035 = vmatprep.mubr.bf16.mxu0 %v1076
        %2036 = vmatmul.mubr.bf16.gmra.mxu0 %v1004
        %v2037 = vpop.f32.mrf.mxu0
        %v2038 = vadd.f32 %v1717, %v2037
        %v2039 = vpop.f32.mrf.mxu0
        %v2040 = vpop.f32.mrf.mxu0
        %v2041 = vadd.f32 %v1720, %v2040
        %v2042 = vpop.f32.mrf.mxu0
        %2043 = vmatprep.mubr.bf16.mxu0 %v1077
        %2044 = vmatmul.mubr.bf16.gmra.mxu0 %v1005
        %v2045 = vpop.f32.mrf.mxu0
        %v2046 = vadd.f32 %v1725, %v2045
        %v2047 = vpop.f32.mrf.mxu0
        %v2048 = vpop.f32.mrf.mxu0
        %v2049 = vadd.f32 %v1728, %v2048
        %v2050 = vpop.f32.mrf.mxu0
        %2051 = vmatprep.mubr.bf16.mxu0 %v1078
        %2052 = vmatmul.mubr.bf16.gmra.mxu0 %v1006
        %v2053 = vpop.f32.mrf.mxu0
        %v2054 = vadd.f32 %v1733, %v2053
        %v2055 = vpop.f32.mrf.mxu0
        %v2056 = vpop.f32.mrf.mxu0
        %v2057 = vadd.f32 %v1736, %v2056
        %v2058 = vpop.f32.mrf.mxu0
        %2059 = vmatprep.mubr.bf16.mxu0 %v1079
        %2060 = vmatmul.mubr.bf16.gmra.mxu0 %v1007
        %v2061 = vpop.f32.mrf.mxu0
        %v2062 = vadd.f32 %v1741, %v2061
        %v2063 = vpop.f32.mrf.mxu0
        %v2064 = vpop.f32.mrf.mxu0
        %v2065 = vadd.f32 %v1744, %v2064
        %v2066 = vpop.f32.mrf.mxu0
        %2067 = vmatprep.mubr.bf16.mxu0 %v1080
        %2068 = vmatmul.mubr.bf16.gmra.mxu0 %v1008
        %v2069 = vpop.f32.mrf.mxu0
        %v2070 = vadd.f32 %v1749, %v2069
        %v2071 = vpop.f32.mrf.mxu0
        %v2072 = vpop.f32.mrf.mxu0
        %v2073 = vadd.f32 %v1752, %v2072
        %v2074 = vpop.f32.mrf.mxu0
        %2075 = vmatprep.mubr.bf16.mxu0 %v1081
        %2076 = vmatmul.mubr.bf16.gmra.mxu0 %v1009
        %v2077 = vpop.f32.mrf.mxu0
        %v2078 = vadd.f32 %v1757, %v2077
        %v2079 = vpop.f32.mrf.mxu0
        %v2080 = vpop.f32.mrf.mxu0
        %v2081 = vadd.f32 %v1760, %v2080
        %v2082 = vpop.f32.mrf.mxu0
        %2083 = vmatprep.mubr.bf16.mxu0 %v1082
        %2084 = vmatmul.mubr.bf16.gmra.mxu0 %v1010
        %v2085 = vpop.f32.mrf.mxu0
        %v2086 = vadd.f32 %v1765, %v2085
        %v2087 = vpop.f32.mrf.mxu0
        %v2088 = vpop.f32.mrf.mxu0
        %v2089 = vadd.f32 %v1768, %v2088
        %v2090 = vpop.f32.mrf.mxu0
        %2091 = vmatprep.mubr.bf16.mxu0 %v1083
        %2092 = vmatmul.mubr.bf16.gmra.mxu0 %v1011
        %v2093 = vpop.f32.mrf.mxu0
        %v2094 = vadd.f32 %v1773, %v2093
        %v2095 = vpop.f32.mrf.mxu0
        %v2096 = vpop.f32.mrf.mxu0
        %v2097 = vadd.f32 %v1776, %v2096
        %v2098 = vpop.f32.mrf.mxu0
        %2099 = vmatprep.mubr.bf16.mxu0 %v1084
        %2100 = vmatmul.mubr.bf16.gmra.mxu0 %v1012
        %v2101 = vpop.f32.mrf.mxu0
        %v2102 = vadd.f32 %v1781, %v2101
        %v2103 = vpop.f32.mrf.mxu0
        %v2104 = vpop.f32.mrf.mxu0
        %v2105 = vadd.f32 %v1784, %v2104
        %v2106 = vpop.f32.mrf.mxu0
        %2107 = vmatprep.mubr.bf16.mxu0 %v1085
        %2108 = vmatmul.mubr.bf16.gmra.mxu0 %v1013
        %v2109 = vpop.f32.mrf.mxu0
        %v2110 = vadd.f32 %v1789, %v2109
        %v2111 = vpop.f32.mrf.mxu0
        %v2112 = vpop.f32.mrf.mxu0
        %v2113 = vadd.f32 %v1792, %v2112
        %v2114 = vpop.f32.mrf.mxu0
        %2115 = vmatprep.mubr.bf16.mxu0 %v1086
        %2116 = vmatmul.mubr.bf16.gmra.mxu0 %v1014
        %v2117 = vpop.f32.mrf.mxu0
        %v2118 = vadd.f32 %v1797, %v2117
        %v2119 = vpop.f32.mrf.mxu0
        %v2120 = vpop.f32.mrf.mxu0
        %v2121 = vadd.f32 %v1800, %v2120
        %v2122 = vpop.f32.mrf.mxu0
        %2123 = vmatprep.mubr.bf16.mxu0 %v1087
        %2124 = vmatmul.mubr.bf16.gmra.mxu0 %v1015
        %v2125 = vpop.f32.mrf.mxu0
        %v2126 = vadd.f32 %v1805, %v2125
        %v2127 = vpop.f32.mrf.mxu0
        %v2128 = vpop.f32.mrf.mxu0
        %v2129 = vadd.f32 %v1808, %v2128
        %v2130 = vpop.f32.mrf.mxu0
        %2131 = vmatprep.mubr.bf16.mxu0 %v1088
        %2132 = vmatmul.mubr.bf16.gmra.mxu0 %v1016
        %v2133 = vpop.f32.mrf.mxu0
        %v2134 = vadd.f32 %v1813, %v2133
        %v2135 = vpop.f32.mrf.mxu0
        %v2136 = vpop.f32.mrf.mxu0
        %v2137 = vadd.f32 %v1816, %v2136
        %v2138 = vpop.f32.mrf.mxu0
        %2139 = vdwg.mxu0
        %2140 = vmatprep.subr.bf16.mxu0 0
        %2141 = vmatpush1.bf16.msra.mxu0 %v1938
        %2142 = vmatprep.subr.bf16.mxu0 0
        %2143 = vmatpush1.bf16.msra.mxu0 %v1937
        %2144 = vmatprep.subr.bf16.mxu0 0
        %2145 = vmatpush1.bf16.msra.mxu0 %v1936
        %2146 = vmatprep.subr.bf16.mxu0 0
        %2147 = vmatpush1.bf16.msra.mxu0 %v1935
        %2148 = vmatprep.subr.bf16.mxu0 0
        %2149 = vmatpush1.bf16.msra.mxu0 %v1934
        %2150 = vmatprep.subr.bf16.mxu0 0
        %2151 = vmatpush1.bf16.msra.mxu0 %v1933
        %2152 = vmatprep.subr.bf16.mxu0 0
        %2153 = vmatpush1.bf16.msra.mxu0 %v1932
        %2154 = vmatprep.subr.bf16.mxu0 0
        %2155 = vmatpush1.bf16.msra.mxu0 %v1931
        %2156 = vmatprep.subr.bf16.mxu0 0
        %2157 = vmatpush2.bf16.msra.mxu0 0
        %2158 = vmatprep.subr.bf16.mxu0 0
        %2159 = vmatpush2.bf16.msra.mxu0 0
        %2160 = vmatprep.subr.bf16.mxu0 0
        %2161 = vmatpush2.bf16.msra.mxu0 0
        %2162 = vmatprep.subr.bf16.mxu0 0
        %2163 = vmatpush2.bf16.msra.mxu0 0
        %2164 = vmatprep.subr.bf16.mxu0 0
        %2165 = vmatpush2.bf16.msra.mxu0 0
        %2166 = vmatprep.subr.bf16.mxu0 0
        %2167 = vmatpush2.bf16.msra.mxu0 0
        %2168 = vmatprep.subr.bf16.mxu0 0
        %2169 = vmatpush2.bf16.msra.mxu0 0
        %2170 = vmatprep.subr.bf16.mxu0 0
        %2171 = vmatpush2.bf16.msra.mxu0 0
        %2172 = vmatprep.mubr.bf16.mxu0 0
        %2173 = vmatmul.mubr.bf16.gmra.mxu0 %v1143
        %v2174 = vpop.f32.mrf.mxu0
        %v2175 = vadd.f32 %v1998, %v2174
        %v2176 = vpop.f32.mrf.mxu0
        %v2177 = vpop.f32.mrf.mxu0
        %v2178 = vadd.f32 %v2001, %v2177
        %v2179 = vpop.f32.mrf.mxu0
        %2180 = vmatprep.mubr.bf16.mxu0 0
        %2181 = vmatmul.mubr.bf16.gmra.mxu0 %v1144
        %v2182 = vpop.f32.mrf.mxu0
        %v2183 = vadd.f32 %v2006, %v2182
        %v2184 = vpop.f32.mrf.mxu0
        %v2185 = vpop.f32.mrf.mxu0
        %v2186 = vadd.f32 %v2009, %v2185
        %v2187 = vpop.f32.mrf.mxu0
        %2188 = vmatprep.mubr.bf16.mxu0 0
        %2189 = vmatmul.mubr.bf16.gmra.mxu0 %v1145
        %v2190 = vpop.f32.mrf.mxu0
        %v2191 = vadd.f32 %v2014, %v2190
        %v2192 = vpop.f32.mrf.mxu0
        %v2193 = vpop.f32.mrf.mxu0
        %v2194 = vadd.f32 %v2017, %v2193
        %v2195 = vpop.f32.mrf.mxu0
        %2196 = vmatprep.mubr.bf16.mxu0 0
        %2197 = vmatmul.mubr.bf16.gmra.mxu0 %v1146
        %v2198 = vpop.f32.mrf.mxu0
        %v2199 = vadd.f32 %v2022, %v2198
        %v2200 = vpop.f32.mrf.mxu0
        %v2201 = vpop.f32.mrf.mxu0
        %v2202 = vadd.f32 %v2025, %v2201
        %v2203 = vpop.f32.mrf.mxu0
        %2204 = vmatprep.mubr.bf16.mxu0 0
        %2205 = vmatmul.mubr.bf16.gmra.mxu0 %v1147
        %v2206 = vpop.f32.mrf.mxu0
        %v2207 = vadd.f32 %v2030, %v2206
        %v2208 = vpop.f32.mrf.mxu0
        %v2209 = vpop.f32.mrf.mxu0
        %v2210 = vadd.f32 %v2033, %v2209
        %v2211 = vpop.f32.mrf.mxu0
        %2212 = vmatprep.mubr.bf16.mxu0 0
        %2213 = vmatmul.mubr.bf16.gmra.mxu0 %v1148
        %v2214 = vpop.f32.mrf.mxu0
        %v2215 = vadd.f32 %v2038, %v2214
        %v2216 = vpop.f32.mrf.mxu0
        %v2217 = vpop.f32.mrf.mxu0
        %v2218 = vadd.f32 %v2041, %v2217
        %v2219 = vpop.f32.mrf.mxu0
        %2220 = vmatprep.mubr.bf16.mxu0 0
        %2221 = vmatmul.mubr.bf16.gmra.mxu0 %v1149
        %v2222 = vpop.f32.mrf.mxu0
        %v2223 = vadd.f32 %v2046, %v2222
        %v2224 = vpop.f32.mrf.mxu0
        %v2225 = vpop.f32.mrf.mxu0
        %v2226 = vadd.f32 %v2049, %v2225
        %v2227 = vpop.f32.mrf.mxu0
        %2228 = vmatprep.mubr.bf16.mxu0 0
        %2229 = vmatmul.mubr.bf16.gmra.mxu0 %v1150
        %v2230 = vpop.f32.mrf.mxu0
        %v2231 = vadd.f32 %v2054, %v2230
        %v2232 = vpop.f32.mrf.mxu0
        %v2233 = vpop.f32.mrf.mxu0
        %v2234 = vadd.f32 %v2057, %v2233
        %v2235 = vpop.f32.mrf.mxu0
        %2236 = vmatprep.mubr.bf16.mxu0 0
        %2237 = vmatmul.mubr.bf16.gmra.mxu0 %v1151
        %v2238 = vpop.f32.mrf.mxu0
        %v2239 = vadd.f32 %v2062, %v2238
        %v2240 = vpop.f32.mrf.mxu0
        %v2241 = vpop.f32.mrf.mxu0
        %v2242 = vadd.f32 %v2065, %v2241
        %v2243 = vpop.f32.mrf.mxu0
        %2244 = vmatprep.mubr.bf16.mxu0 0
        %2245 = vmatmul.mubr.bf16.gmra.mxu0 %v1152
        %v2246 = vpop.f32.mrf.mxu0
        %v2247 = vadd.f32 %v2070, %v2246
        %v2248 = vpop.f32.mrf.mxu0
        %v2249 = vpop.f32.mrf.mxu0
        %v2250 = vadd.f32 %v2073, %v2249
        %v2251 = vpop.f32.mrf.mxu0
        %2252 = vmatprep.mubr.bf16.mxu0 0
        %2253 = vmatmul.mubr.bf16.gmra.mxu0 %v1153
        %v2254 = vpop.f32.mrf.mxu0
        %v2255 = vadd.f32 %v2078, %v2254
        %v2256 = vpop.f32.mrf.mxu0
        %v2257 = vpop.f32.mrf.mxu0
        %v2258 = vadd.f32 %v2081, %v2257
        %v2259 = vpop.f32.mrf.mxu0
        %2260 = vmatprep.mubr.bf16.mxu0 0
        %2261 = vmatmul.mubr.bf16.gmra.mxu0 %v1154
        %v2262 = vpop.f32.mrf.mxu0
        %v2263 = vadd.f32 %v2086, %v2262
        %v2264 = vpop.f32.mrf.mxu0
        %v2265 = vpop.f32.mrf.mxu0
        %v2266 = vadd.f32 %v2089, %v2265
        %v2267 = vpop.f32.mrf.mxu0
        %2268 = vmatprep.mubr.bf16.mxu0 0
        %2269 = vmatmul.mubr.bf16.gmra.mxu0 %v1155
        %v2270 = vpop.f32.mrf.mxu0
        %v2271 = vadd.f32 %v2094, %v2270
        %v2272 = vpop.f32.mrf.mxu0
        %v2273 = vpop.f32.mrf.mxu0
        %v2274 = vadd.f32 %v2097, %v2273
        %v2275 = vpop.f32.mrf.mxu0
        %2276 = vmatprep.mubr.bf16.mxu0 0
        %2277 = vmatmul.mubr.bf16.gmra.mxu0 %v1156
        %v2278 = vpop.f32.mrf.mxu0
        %v2279 = vadd.f32 %v2102, %v2278
        %v2280 = vpop.f32.mrf.mxu0
        %v2281 = vpop.f32.mrf.mxu0
        %v2282 = vadd.f32 %v2105, %v2281
        %v2283 = vpop.f32.mrf.mxu0
        %2284 = vmatprep.mubr.bf16.mxu0 0
        %2285 = vmatmul.mubr.bf16.gmra.mxu0 %v1157
        %v2286 = vpop.f32.mrf.mxu0
        %v2287 = vadd.f32 %v2110, %v2286
        %v2288 = vpop.f32.mrf.mxu0
        %v2289 = vpop.f32.mrf.mxu0
        %v2290 = vadd.f32 %v2113, %v2289
        %v2291 = vpop.f32.mrf.mxu0
        %2292 = vmatprep.mubr.bf16.mxu0 0
        %2293 = vmatmul.mubr.bf16.gmra.mxu0 %v1158
        %v2294 = vpop.f32.mrf.mxu0
        %v2295 = vadd.f32 %v2118, %v2294
        %v2296 = vpop.f32.mrf.mxu0
        %v2297 = vpop.f32.mrf.mxu0
        %v2298 = vadd.f32 %v2121, %v2297
        %v2299 = vpop.f32.mrf.mxu0
        %2300 = vmatprep.mubr.bf16.mxu0 0
        %2301 = vmatmul.mubr.bf16.gmra.mxu0 %v1159
        %v2302 = vpop.f32.mrf.mxu0
        %v2303 = vadd.f32 %v2126, %v2302
        %v2304 = vpop.f32.mrf.mxu0
        %v2305 = vpop.f32.mrf.mxu0
        %v2306 = vadd.f32 %v2129, %v2305
        %v2307 = vpop.f32.mrf.mxu0
        %2308 = vmatprep.mubr.bf16.mxu0 0
        %2309 = vmatmul.mubr.bf16.gmra.mxu0 %v1160
        %v2310 = vpop.f32.mrf.mxu0
        %v2311 = vadd.f32 %v2134, %v2310
        %v2312 = vpop.f32.mrf.mxu0
        %v2313 = vpop.f32.mrf.mxu0
        %v2314 = vadd.f32 %v2137, %v2313
        %v2315 = vpop.f32.mrf.mxu0
        %2316 = vdwg.mxu0
        %v2318 = vshrl.u32 %v342, 16
        %v2320 = vrot.slane %v2318, 4
        %v2321 = vshll.u32 %v342, 16
        %v2323 = vrot.slane %v2321, 5
        %v2324 = vor.u32 %v2320, %v2323
        %v2325 = vrot.slane %v2324, 4
        %v2327 = vshll.u32 %v343, 16
        %v2329 = vrot.slane %v2327, 5
        %v2330 = vsel %vm347, %v2325, %v2329
        %v2331 = vshrl.u32 %v343, 16
        %v2333 = vrot.slane %v2331, 4
        %v2334 = vor.u32 %v2333, %v2329
        %v2335 = vrot.slane %v2334, 4
        %v2337 = vshll.u32 %v344, 16
        %v2339 = vrot.slane %v2337, 5
        %v2340 = vsel %vm347, %v2335, %v2339
        %v2344 = vrot.slane %v342, 5
        %v2345 = vrot.slane %v2344, 4
        %v2346 = vrot.slane %v343, 5
        %v2347 = vsel %vm836, %v2345, %v2346
        %v2348 = vrot.slane %v2346, 4
        %v2349 = vrot.slane %v344, 5
        %v2350 = vsel %vm836, %v2348, %v2349
        %v2351 = vunpack.c.l.b16 %v342
        %v2352 = vunpack.c.l.b16 %v343
        %v2353 = vpack.c.b16 %v2352, %v2351
        %v2355 = vunpack.c.l.b16 %v2330
        %v2356 = vunpack.c.l.b16 %v2340
        %v2357 = vpack.c.b16 %v2356, %v2355
        %v2359 = vunpack.c.l.b16 %v2347
        %v2360 = vunpack.c.l.b16 %v2350
        %v2361 = vpack.c.b16 %v2360, %v2359
        %v2363 = vld [vmem:[%s1 + $0x180] sm:$0xf]
        %v2364 = vld [vmem:[%s1 + $0x184] sm:$0xf]
        %v2365 = vld [vmem:[%s1 + $0x188] sm:$0xf]
        %v2366 = vld [vmem:[%s1 + $0x18c] sm:$0xf]
        %v2367 = vld [vmem:[%s1 + $0x190] sm:$0xf]
        %v2368 = vld [vmem:[%s1 + $0x194] sm:$0xf]
        %v2369 = vld [vmem:[%s1 + $0x198] sm:$0xf]
        %v2370 = vld [vmem:[%s1 + $0x19c] sm:$0xf]
        %v2371 = vld [vmem:[%s1 + $0x1a0] sm:$0xf]
        %v2372 = vld [vmem:[%s1 + $0x1a4] sm:$0xf]
        %v2373 = vld [vmem:[%s1 + $0x1a8] sm:$0xf]
        %v2374 = vld [vmem:[%s1 + $0x1ac] sm:$0xf]
        %v2375 = vld [vmem:[%s1 + $0x1b0] sm:$0xf]
        %v2376 = vld [vmem:[%s1 + $0x1b4] sm:$0xf]
        %v2377 = vld [vmem:[%s1 + $0x1b8] sm:$0xf]
        %v2378 = vld [vmem:[%s1 + $0x1bc] sm:$0xf]
        %v2379 = vld [vmem:[%s1 + $0x1c0] sm:$0xf]
        %v2380 = vld [vmem:[%s1 + $0x1c4] sm:$0xf]
        %v2381 = vld [vmem:[%s1 + $0x1c8] sm:$0xf]
        %v2382 = vld [vmem:[%s1 + $0x1cc] sm:$0xf]
        %v2383 = vld [vmem:[%s1 + $0x1d0] sm:$0xf]
        %v2384 = vld [vmem:[%s1 + $0x1d4] sm:$0xf]
        %v2385 = vld [vmem:[%s1 + $0x1d8] sm:$0xf]
        %v2386 = vld [vmem:[%s1 + $0x1dc] sm:$0xf]
        %v2387 = vld [vmem:[%s1 + $0x1e0] sm:$0xf]
        %v2388 = vld [vmem:[%s1 + $0x1e4] sm:$0xf]
        %v2389 = vld [vmem:[%s1 + $0x1e8] sm:$0xf]
        %v2390 = vld [vmem:[%s1 + $0x1ec] sm:$0xf]
        %v2391 = vld [vmem:[%s1 + $0x1f0] sm:$0xf]
        %v2392 = vld [vmem:[%s1 + $0x1f4] sm:$0xf]
        %v2393 = vld [vmem:[%s1 + $0x1f8] sm:$0xf]
        %v2394 = vld [vmem:[%s1 + $0x1fc] sm:$0xf]
        %v2395 = vld [vmem:[%s1 + $0x200] sm:$0xf]
        %v2396 = vld [vmem:[%s1 + $0x204] sm:$0xf]
        %v2397 = vld [vmem:[%s1 + $0x208] sm:$0xf]
        %v2398 = vld [vmem:[%s1 + $0x20c] sm:$0xf]
        %v2399 = vld [vmem:[%s1 + $0x210] sm:$0xf]
        %v2400 = vld [vmem:[%s1 + $0x214] sm:$0xf]
        %v2401 = vld [vmem:[%s1 + $0x218] sm:$0xf]
        %v2402 = vld [vmem:[%s1 + $0x21c] sm:$0xf]
        %v2403 = vld [vmem:[%s1 + $0x220] sm:$0xf]
        %v2404 = vld [vmem:[%s1 + $0x224] sm:$0xf]
        %v2405 = vld [vmem:[%s1 + $0x228] sm:$0xf]
        %v2406 = vld [vmem:[%s1 + $0x22c] sm:$0xf]
        %v2407 = vld [vmem:[%s1 + $0x230] sm:$0xf]
        %v2408 = vld [vmem:[%s1 + $0x234] sm:$0xf]
        %v2409 = vld [vmem:[%s1 + $0x238] sm:$0xf]
        %v2410 = vld [vmem:[%s1 + $0x23c] sm:$0xf]
        %v2459 = vunpack.c.l.b16 %v2363
        %v2460 = vunpack.c.l.b16 %v2364
        %v2461 = vunpack.c.l.b16 %v2365
        %v2462 = vunpack.c.l.b16 %v2366
        %v2463 = vunpack.c.l.b16 %v2367
        %v2464 = vunpack.c.l.b16 %v2368
        %v2465 = vunpack.c.l.b16 %v2369
        %v2466 = vunpack.c.l.b16 %v2370
        %v2467 = vunpack.c.l.b16 %v2371
        %v2468 = vunpack.c.l.b16 %v2372
        %v2469 = vunpack.c.l.b16 %v2373
        %v2470 = vunpack.c.l.b16 %v2374
        %v2471 = vunpack.c.l.b16 %v2375
        %v2472 = vunpack.c.l.b16 %v2376
        %v2473 = vunpack.c.l.b16 %v2377
        %v2474 = vunpack.c.l.b16 %v2378
        %v2475 = vunpack.c.l.b16 %v2379
        %v2476 = vunpack.c.l.b16 %v2380
        %v2477 = vunpack.c.l.b16 %v2381
        %v2478 = vunpack.c.l.b16 %v2382
        %v2479 = vunpack.c.l.b16 %v2383
        %v2480 = vunpack.c.l.b16 %v2384
        %v2481 = vunpack.c.l.b16 %v2385
        %v2482 = vunpack.c.l.b16 %v2386
        %v2483 = vunpack.c.l.b16 %v2387
        %v2484 = vunpack.c.l.b16 %v2388
        %v2485 = vunpack.c.l.b16 %v2389
        %v2486 = vunpack.c.l.b16 %v2390
        %v2487 = vunpack.c.l.b16 %v2391
        %v2488 = vunpack.c.l.b16 %v2392
        %v2489 = vunpack.c.l.b16 %v2393
        %v2490 = vunpack.c.l.b16 %v2394
        %v2491 = vunpack.c.l.b16 %v2395
        %v2492 = vunpack.c.l.b16 %v2396
        %v2493 = vunpack.c.l.b16 %v2397
        %v2494 = vunpack.c.l.b16 %v2398
        %v2495 = vunpack.c.l.b16 %v2399
        %v2496 = vunpack.c.l.b16 %v2400
        %v2497 = vunpack.c.l.b16 %v2401
        %v2498 = vunpack.c.l.b16 %v2402
        %v2499 = vunpack.c.l.b16 %v2403
        %v2500 = vunpack.c.l.b16 %v2404
        %v2501 = vunpack.c.l.b16 %v2405
        %v2502 = vunpack.c.l.b16 %v2406
        %v2503 = vunpack.c.l.b16 %v2407
        %v2504 = vunpack.c.l.b16 %v2408
        %v2505 = vunpack.c.l.b16 %v2409
        %v2506 = vunpack.c.l.b16 %v2410
        %v2507 = vpack.c.b16 %v2460, %v2459
        %v2508 = vpack.c.b16 %v2462, %v2461
        %v2509 = vpack.c.b16 %v2464, %v2463
        %v2510 = vpack.c.b16 %v2466, %v2465
        %v2511 = vpack.c.b16 %v2468, %v2467
        %v2512 = vpack.c.b16 %v2470, %v2469
        %v2513 = vpack.c.b16 %v2472, %v2471
        %v2514 = vpack.c.b16 %v2474, %v2473
        %v2515 = vpack.c.b16 %v2476, %v2475
        %v2516 = vpack.c.b16 %v2478, %v2477
        %v2517 = vpack.c.b16 %v2480, %v2479
        %v2518 = vpack.c.b16 %v2482, %v2481
        %v2519 = vpack.c.b16 %v2484, %v2483
        %v2520 = vpack.c.b16 %v2486, %v2485
        %v2521 = vpack.c.b16 %v2488, %v2487
        %v2522 = vpack.c.b16 %v2490, %v2489
        %v2523 = vpack.c.b16 %v2492, %v2491
        %v2524 = vpack.c.b16 %v2494, %v2493
        %v2525 = vpack.c.b16 %v2496, %v2495
        %v2526 = vpack.c.b16 %v2498, %v2497
        %v2527 = vpack.c.b16 %v2500, %v2499
        %v2528 = vpack.c.b16 %v2502, %v2501
        %v2529 = vpack.c.b16 %v2504, %v2503
        %v2530 = vpack.c.b16 %v2506, %v2505
        %2555 = vmatprep.subr.bf16.mxu0 0
        %2556 = vmatpush1.bf16.msra.mxu0 %v2514
        %2557 = vmatprep.subr.bf16.mxu0 0
        %2558 = vmatpush1.bf16.msra.mxu0 %v2513
        %2559 = vmatprep.subr.bf16.mxu0 0
        %2560 = vmatpush1.bf16.msra.mxu0 %v2512
        %2561 = vmatprep.subr.bf16.mxu0 0
        %2562 = vmatpush1.bf16.msra.mxu0 %v2511
        %2563 = vmatprep.subr.bf16.mxu0 0
        %2564 = vmatpush1.bf16.msra.mxu0 %v2510
        %2565 = vmatprep.subr.bf16.mxu0 0
        %2566 = vmatpush1.bf16.msra.mxu0 %v2509
        %2567 = vmatprep.subr.bf16.mxu0 0
        %2568 = vmatpush1.bf16.msra.mxu0 %v2508
        %2569 = vmatprep.subr.bf16.mxu0 0
        %2570 = vmatpush1.bf16.msra.mxu0 %v2507
        %2571 = vmatprep.subr.bf16.mxu0 0
        %2572 = vmatpush2.bf16.msra.mxu0 %v2522
        %2573 = vmatprep.subr.bf16.mxu0 0
        %2574 = vmatpush2.bf16.msra.mxu0 %v2521
        %2575 = vmatprep.subr.bf16.mxu0 0
        %2576 = vmatpush2.bf16.msra.mxu0 %v2520
        %2577 = vmatprep.subr.bf16.mxu0 0
        %2578 = vmatpush2.bf16.msra.mxu0 %v2519
        %2579 = vmatprep.subr.bf16.mxu0 0
        %2580 = vmatpush2.bf16.msra.mxu0 %v2518
        %2581 = vmatprep.subr.bf16.mxu0 0
        %2582 = vmatpush2.bf16.msra.mxu0 %v2517
        %2583 = vmatprep.subr.bf16.mxu0 0
        %2584 = vmatpush2.bf16.msra.mxu0 %v2516
        %2585 = vmatprep.subr.bf16.mxu0 0
        %2586 = vmatpush2.bf16.msra.mxu0 %v2515
        %2587 = vmatprep.mubr.bf16.mxu0 %v1073
        %2588 = vmatmul.mubr.bf16.gmra.mxu0 %v1001
        %v2589 = vpop.f32.mrf.mxu0
        %v2590 = vadd.f32 0.0, %v2589
        %v2591 = vpop.f32.mrf.mxu0
        %v2592 = vpop.f32.mrf.mxu0
        %v2593 = vadd.f32 0.0, %v2592
        %v2594 = vpop.f32.mrf.mxu0
        %2595 = vmatprep.mubr.bf16.mxu0 %v1074
        %2596 = vmatmul.mubr.bf16.gmra.mxu0 %v1002
        %v2597 = vpop.f32.mrf.mxu0
        %v2598 = vadd.f32 0.0, %v2597
        %v2599 = vpop.f32.mrf.mxu0
        %v2600 = vpop.f32.mrf.mxu0
        %v2601 = vadd.f32 0.0, %v2600
        %v2602 = vpop.f32.mrf.mxu0
        %2603 = vmatprep.mubr.bf16.mxu0 %v1075
        %2604 = vmatmul.mubr.bf16.gmra.mxu0 %v1003
        %v2605 = vpop.f32.mrf.mxu0
        %v2606 = vadd.f32 0.0, %v2605
        %v2607 = vpop.f32.mrf.mxu0
        %v2608 = vpop.f32.mrf.mxu0
        %v2609 = vadd.f32 0.0, %v2608
        %v2610 = vpop.f32.mrf.mxu0
        %2611 = vmatprep.mubr.bf16.mxu0 %v1076
        %2612 = vmatmul.mubr.bf16.gmra.mxu0 %v1004
        %v2613 = vpop.f32.mrf.mxu0
        %v2614 = vadd.f32 0.0, %v2613
        %v2615 = vpop.f32.mrf.mxu0
        %v2616 = vpop.f32.mrf.mxu0
        %v2617 = vadd.f32 0.0, %v2616
        %v2618 = vpop.f32.mrf.mxu0
        %2619 = vmatprep.mubr.bf16.mxu0 %v1077
        %2620 = vmatmul.mubr.bf16.gmra.mxu0 %v1005
        %v2621 = vpop.f32.mrf.mxu0
        %v2622 = vadd.f32 0.0, %v2621
        %v2623 = vpop.f32.mrf.mxu0
        %v2624 = vpop.f32.mrf.mxu0
        %v2625 = vadd.f32 0.0, %v2624
        %v2626 = vpop.f32.mrf.mxu0
        %2627 = vmatprep.mubr.bf16.mxu0 %v1078
        %2628 = vmatmul.mubr.bf16.gmra.mxu0 %v1006
        %v2629 = vpop.f32.mrf.mxu0
        %v2630 = vadd.f32 0.0, %v2629
        %v2631 = vpop.f32.mrf.mxu0
        %v2632 = vpop.f32.mrf.mxu0
        %v2633 = vadd.f32 0.0, %v2632
        %v2634 = vpop.f32.mrf.mxu0
        %2635 = vmatprep.mubr.bf16.mxu0 %v1079
        %2636 = vmatmul.mubr.bf16.gmra.mxu0 %v1007
        %v2637 = vpop.f32.mrf.mxu0
        %v2638 = vadd.f32 0.0, %v2637
        %v2639 = vpop.f32.mrf.mxu0
        %v2640 = vpop.f32.mrf.mxu0
        %v2641 = vadd.f32 0.0, %v2640
        %v2642 = vpop.f32.mrf.mxu0
        %2643 = vmatprep.mubr.bf16.mxu0 %v1080
        %2644 = vmatmul.mubr.bf16.gmra.mxu0 %v1008
        %v2645 = vpop.f32.mrf.mxu0
        %v2646 = vadd.f32 0.0, %v2645
        %v2647 = vpop.f32.mrf.mxu0
        %v2648 = vpop.f32.mrf.mxu0
        %v2649 = vadd.f32 0.0, %v2648
        %v2650 = vpop.f32.mrf.mxu0
        %2651 = vmatprep.mubr.bf16.mxu0 %v1081
        %2652 = vmatmul.mubr.bf16.gmra.mxu0 %v1009
        %v2653 = vpop.f32.mrf.mxu0
        %v2654 = vadd.f32 0.0, %v2653
        %v2655 = vpop.f32.mrf.mxu0
        %v2656 = vpop.f32.mrf.mxu0
        %v2657 = vadd.f32 0.0, %v2656
        %v2658 = vpop.f32.mrf.mxu0
        %2659 = vmatprep.mubr.bf16.mxu0 %v1082
        %2660 = vmatmul.mubr.bf16.gmra.mxu0 %v1010
        %v2661 = vpop.f32.mrf.mxu0
        %v2662 = vadd.f32 0.0, %v2661
        %v2663 = vpop.f32.mrf.mxu0
        %v2664 = vpop.f32.mrf.mxu0
        %v2665 = vadd.f32 0.0, %v2664
        %v2666 = vpop.f32.mrf.mxu0
        %2667 = vmatprep.mubr.bf16.mxu0 %v1083
        %2668 = vmatmul.mubr.bf16.gmra.mxu0 %v1011
        %v2669 = vpop.f32.mrf.mxu0
        %v2670 = vadd.f32 0.0, %v2669
        %v2671 = vpop.f32.mrf.mxu0
        %v2672 = vpop.f32.mrf.mxu0
        %v2673 = vadd.f32 0.0, %v2672
        %v2674 = vpop.f32.mrf.mxu0
        %2675 = vmatprep.mubr.bf16.mxu0 %v1084
        %2676 = vmatmul.mubr.bf16.gmra.mxu0 %v1012
        %v2677 = vpop.f32.mrf.mxu0
        %v2678 = vadd.f32 0.0, %v2677
        %v2679 = vpop.f32.mrf.mxu0
        %v2680 = vpop.f32.mrf.mxu0
        %v2681 = vadd.f32 0.0, %v2680
        %v2682 = vpop.f32.mrf.mxu0
        %2683 = vmatprep.mubr.bf16.mxu0 %v1085
        %2684 = vmatmul.mubr.bf16.gmra.mxu0 %v1013
        %v2685 = vpop.f32.mrf.mxu0
        %v2686 = vadd.f32 0.0, %v2685
        %v2687 = vpop.f32.mrf.mxu0
        %v2688 = vpop.f32.mrf.mxu0
        %v2689 = vadd.f32 0.0, %v2688
        %v2690 = vpop.f32.mrf.mxu0
        %2691 = vmatprep.mubr.bf16.mxu0 %v1086
        %2692 = vmatmul.mubr.bf16.gmra.mxu0 %v1014
        %v2693 = vpop.f32.mrf.mxu0
        %v2694 = vadd.f32 0.0, %v2693
        %v2695 = vpop.f32.mrf.mxu0
        %v2696 = vpop.f32.mrf.mxu0
        %v2697 = vadd.f32 0.0, %v2696
        %v2698 = vpop.f32.mrf.mxu0
        %2699 = vmatprep.mubr.bf16.mxu0 %v1087
        %2700 = vmatmul.mubr.bf16.gmra.mxu0 %v1015
        %v2701 = vpop.f32.mrf.mxu0
        %v2702 = vadd.f32 0.0, %v2701
        %v2703 = vpop.f32.mrf.mxu0
        %v2704 = vpop.f32.mrf.mxu0
        %v2705 = vadd.f32 0.0, %v2704
        %v2706 = vpop.f32.mrf.mxu0
        %2707 = vmatprep.mubr.bf16.mxu0 %v1088
        %2708 = vmatmul.mubr.bf16.gmra.mxu0 %v1016
        %v2709 = vpop.f32.mrf.mxu0
        %v2710 = vadd.f32 0.0, %v2709
        %v2711 = vpop.f32.mrf.mxu0
        %v2712 = vpop.f32.mrf.mxu0
        %v2713 = vadd.f32 0.0, %v2712
        %v2714 = vpop.f32.mrf.mxu0
        %2715 = vmatprep.mubr.bf16.mxu0 %v1267
        %2716 = vmatmul.mubr.bf16.gmra.mxu0 %v1263
        %v2717 = vpop.f32.mrf.mxu0
        %v2718 = vadd.f32 0.0, %v2717
        %v2719 = vpop.f32.mrf.mxu0
        %v2720 = vpop.f32.mrf.mxu0
        %v2721 = vadd.f32 0.0, %v2720
        %v2722 = vpop.f32.mrf.mxu0
        %2723 = vmatprep.mubr.bf16.mxu0 %v2357
        %2724 = vmatmul.mubr.bf16.gmra.mxu0 %v2353
        %v2725 = vpop.f32.mrf.mxu0
        %v2726 = vadd.f32 0.0, %v2725
        %v2727 = vpop.f32.mrf.mxu0
        %v2728 = vpop.f32.mrf.mxu0
        %v2729 = vadd.f32 0.0, %v2728
        %v2730 = vpop.f32.mrf.mxu0
        %2731 = vdwg.mxu0
        %2732 = vmatprep.subr.bf16.mxu0 0
        %2733 = vmatpush1.bf16.msra.mxu0 %v2530
        %2734 = vmatprep.subr.bf16.mxu0 0
        %2735 = vmatpush1.bf16.msra.mxu0 %v2529
        %2736 = vmatprep.subr.bf16.mxu0 0
        %2737 = vmatpush1.bf16.msra.mxu0 %v2528
        %2738 = vmatprep.subr.bf16.mxu0 0
        %2739 = vmatpush1.bf16.msra.mxu0 %v2527
        %2740 = vmatprep.subr.bf16.mxu0 0
        %2741 = vmatpush1.bf16.msra.mxu0 %v2526
        %2742 = vmatprep.subr.bf16.mxu0 0
        %2743 = vmatpush1.bf16.msra.mxu0 %v2525
        %2744 = vmatprep.subr.bf16.mxu0 0
        %2745 = vmatpush1.bf16.msra.mxu0 %v2524
        %2746 = vmatprep.subr.bf16.mxu0 0
        %2747 = vmatpush1.bf16.msra.mxu0 %v2523
        %2748 = vmatprep.subr.bf16.mxu0 0
        %2749 = vmatpush2.bf16.msra.mxu0 0
        %2750 = vmatprep.subr.bf16.mxu0 0
        %2751 = vmatpush2.bf16.msra.mxu0 0
        %2752 = vmatprep.subr.bf16.mxu0 0
        %2753 = vmatpush2.bf16.msra.mxu0 0
        %2754 = vmatprep.subr.bf16.mxu0 0
        %2755 = vmatpush2.bf16.msra.mxu0 0
        %2756 = vmatprep.subr.bf16.mxu0 0
        %2757 = vmatpush2.bf16.msra.mxu0 0
        %2758 = vmatprep.subr.bf16.mxu0 0
        %2759 = vmatpush2.bf16.msra.mxu0 0
        %2760 = vmatprep.subr.bf16.mxu0 0
        %2761 = vmatpush2.bf16.msra.mxu0 0
        %2762 = vmatprep.subr.bf16.mxu0 0
        %2763 = vmatpush2.bf16.msra.mxu0 0
        %2764 = vmatprep.mubr.bf16.mxu0 0
        %2765 = vmatmul.mubr.bf16.gmra.mxu0 %v1145
        %v2766 = vpop.f32.mrf.mxu0
        %v2767 = vadd.f32 %v2590, %v2766
        %v2768 = vpop.f32.mrf.mxu0
        %v2769 = vpop.f32.mrf.mxu0
        %v2770 = vadd.f32 %v2593, %v2769
        %v2771 = vpop.f32.mrf.mxu0
        %2772 = vmatprep.mubr.bf16.mxu0 0
        %2773 = vmatmul.mubr.bf16.gmra.mxu0 %v1146
        %v2774 = vpop.f32.mrf.mxu0
        %v2775 = vadd.f32 %v2598, %v2774
        %v2776 = vpop.f32.mrf.mxu0
        %v2777 = vpop.f32.mrf.mxu0
        %v2778 = vadd.f32 %v2601, %v2777
        %v2779 = vpop.f32.mrf.mxu0
        %2780 = vmatprep.mubr.bf16.mxu0 0
        %2781 = vmatmul.mubr.bf16.gmra.mxu0 %v1147
        %v2782 = vpop.f32.mrf.mxu0
        %v2783 = vadd.f32 %v2606, %v2782
        %v2784 = vpop.f32.mrf.mxu0
        %v2785 = vpop.f32.mrf.mxu0
        %v2786 = vadd.f32 %v2609, %v2785
        %v2787 = vpop.f32.mrf.mxu0
        %2788 = vmatprep.mubr.bf16.mxu0 0
        %2789 = vmatmul.mubr.bf16.gmra.mxu0 %v1148
        %v2790 = vpop.f32.mrf.mxu0
        %v2791 = vadd.f32 %v2614, %v2790
        %v2792 = vpop.f32.mrf.mxu0
        %v2793 = vpop.f32.mrf.mxu0
        %v2794 = vadd.f32 %v2617, %v2793
        %v2795 = vpop.f32.mrf.mxu0
        %2796 = vmatprep.mubr.bf16.mxu0 0
        %2797 = vmatmul.mubr.bf16.gmra.mxu0 %v1149
        %v2798 = vpop.f32.mrf.mxu0
        %v2799 = vadd.f32 %v2622, %v2798
        %v2800 = vpop.f32.mrf.mxu0
        %v2801 = vpop.f32.mrf.mxu0
        %v2802 = vadd.f32 %v2625, %v2801
        %v2803 = vpop.f32.mrf.mxu0
        %2804 = vmatprep.mubr.bf16.mxu0 0
        %2805 = vmatmul.mubr.bf16.gmra.mxu0 %v1150
        %v2806 = vpop.f32.mrf.mxu0
        %v2807 = vadd.f32 %v2630, %v2806
        %v2808 = vpop.f32.mrf.mxu0
        %v2809 = vpop.f32.mrf.mxu0
        %v2810 = vadd.f32 %v2633, %v2809
        %v2811 = vpop.f32.mrf.mxu0
        %2812 = vmatprep.mubr.bf16.mxu0 0
        %2813 = vmatmul.mubr.bf16.gmra.mxu0 %v1151
        %v2814 = vpop.f32.mrf.mxu0
        %v2815 = vadd.f32 %v2638, %v2814
        %v2816 = vpop.f32.mrf.mxu0
        %v2817 = vpop.f32.mrf.mxu0
        %v2818 = vadd.f32 %v2641, %v2817
        %v2819 = vpop.f32.mrf.mxu0
        %2820 = vmatprep.mubr.bf16.mxu0 0
        %2821 = vmatmul.mubr.bf16.gmra.mxu0 %v1152
        %v2822 = vpop.f32.mrf.mxu0
        %v2823 = vadd.f32 %v2646, %v2822
        %v2824 = vpop.f32.mrf.mxu0
        %v2825 = vpop.f32.mrf.mxu0
        %v2826 = vadd.f32 %v2649, %v2825
        %v2827 = vpop.f32.mrf.mxu0
        %2828 = vmatprep.mubr.bf16.mxu0 0
        %2829 = vmatmul.mubr.bf16.gmra.mxu0 %v1153
        %v2830 = vpop.f32.mrf.mxu0
        %v2831 = vadd.f32 %v2654, %v2830
        %v2832 = vpop.f32.mrf.mxu0
        %v2833 = vpop.f32.mrf.mxu0
        %v2834 = vadd.f32 %v2657, %v2833
        %v2835 = vpop.f32.mrf.mxu0
        %2836 = vmatprep.mubr.bf16.mxu0 0
        %2837 = vmatmul.mubr.bf16.gmra.mxu0 %v1154
        %v2838 = vpop.f32.mrf.mxu0
        %v2839 = vadd.f32 %v2662, %v2838
        %v2840 = vpop.f32.mrf.mxu0
        %v2841 = vpop.f32.mrf.mxu0
        %v2842 = vadd.f32 %v2665, %v2841
        %v2843 = vpop.f32.mrf.mxu0
        %2844 = vmatprep.mubr.bf16.mxu0 0
        %2845 = vmatmul.mubr.bf16.gmra.mxu0 %v1155
        %v2846 = vpop.f32.mrf.mxu0
        %v2847 = vadd.f32 %v2670, %v2846
        %v2848 = vpop.f32.mrf.mxu0
        %v2849 = vpop.f32.mrf.mxu0
        %v2850 = vadd.f32 %v2673, %v2849
        %v2851 = vpop.f32.mrf.mxu0
        %2852 = vmatprep.mubr.bf16.mxu0 0
        %2853 = vmatmul.mubr.bf16.gmra.mxu0 %v1156
        %v2854 = vpop.f32.mrf.mxu0
        %v2855 = vadd.f32 %v2678, %v2854
        %v2856 = vpop.f32.mrf.mxu0
        %v2857 = vpop.f32.mrf.mxu0
        %v2858 = vadd.f32 %v2681, %v2857
        %v2859 = vpop.f32.mrf.mxu0
        %2860 = vmatprep.mubr.bf16.mxu0 0
        %2861 = vmatmul.mubr.bf16.gmra.mxu0 %v1157
        %v2862 = vpop.f32.mrf.mxu0
        %v2863 = vadd.f32 %v2686, %v2862
        %v2864 = vpop.f32.mrf.mxu0
        %v2865 = vpop.f32.mrf.mxu0
        %v2866 = vadd.f32 %v2689, %v2865
        %v2867 = vpop.f32.mrf.mxu0
        %2868 = vmatprep.mubr.bf16.mxu0 0
        %2869 = vmatmul.mubr.bf16.gmra.mxu0 %v1158
        %v2870 = vpop.f32.mrf.mxu0
        %v2871 = vadd.f32 %v2694, %v2870
        %v2872 = vpop.f32.mrf.mxu0
        %v2873 = vpop.f32.mrf.mxu0
        %v2874 = vadd.f32 %v2697, %v2873
        %v2875 = vpop.f32.mrf.mxu0
        %2876 = vmatprep.mubr.bf16.mxu0 0
        %2877 = vmatmul.mubr.bf16.gmra.mxu0 %v1159
        %v2878 = vpop.f32.mrf.mxu0
        %v2879 = vadd.f32 %v2702, %v2878
        %v2880 = vpop.f32.mrf.mxu0
        %v2881 = vpop.f32.mrf.mxu0
        %v2882 = vadd.f32 %v2705, %v2881
        %v2883 = vpop.f32.mrf.mxu0
        %2884 = vmatprep.mubr.bf16.mxu0 0
        %2885 = vmatmul.mubr.bf16.gmra.mxu0 %v1160
        %v2886 = vpop.f32.mrf.mxu0
        %v2887 = vadd.f32 %v2710, %v2886
        %v2888 = vpop.f32.mrf.mxu0
        %v2889 = vpop.f32.mrf.mxu0
        %v2890 = vadd.f32 %v2713, %v2889
        %v2891 = vpop.f32.mrf.mxu0
        %2892 = vmatprep.mubr.bf16.mxu0 0
        %2893 = vmatmul.mubr.bf16.gmra.mxu0 %v1271
        %v2894 = vpop.f32.mrf.mxu0
        %v2895 = vadd.f32 %v2718, %v2894
        %v2896 = vpop.f32.mrf.mxu0
        %v2897 = vpop.f32.mrf.mxu0
        %v2898 = vadd.f32 %v2721, %v2897
        %v2899 = vpop.f32.mrf.mxu0
        %2900 = vmatprep.mubr.bf16.mxu0 0
        %2901 = vmatmul.mubr.bf16.gmra.mxu0 %v2361
        %v2902 = vpop.f32.mrf.mxu0
        %v2903 = vadd.f32 %v2726, %v2902
        %v2904 = vpop.f32.mrf.mxu0
        %v2905 = vpop.f32.mrf.mxu0
        %v2906 = vadd.f32 %v2729, %v2905
        %v2907 = vpop.f32.mrf.mxu0
        %2908 = vdwg.mxu0
        %v2909 = vadd.f32 %v2175, %v2767
        %v2910 = vadd.f32 %v2178, %v2770
        %v2911 = vadd.f32 %v2183, %v2775
        %v2912 = vadd.f32 %v2186, %v2778
        %v2913 = vadd.f32 %v2191, %v2783
        %v2914 = vadd.f32 %v2194, %v2786
        %v2915 = vadd.f32 %v2199, %v2791
        %v2916 = vadd.f32 %v2202, %v2794
        %v2917 = vadd.f32 %v2207, %v2799
        %v2918 = vadd.f32 %v2210, %v2802
        %v2919 = vadd.f32 %v2215, %v2807
        %v2920 = vadd.f32 %v2218, %v2810
        %v2921 = vadd.f32 %v2223, %v2815
        %v2922 = vadd.f32 %v2226, %v2818
        %v2923 = vadd.f32 %v2231, %v2823
        %v2924 = vadd.f32 %v2234, %v2826
        %v2925 = vadd.f32 %v2239, %v2831
        %v2926 = vadd.f32 %v2242, %v2834
        %v2927 = vadd.f32 %v2247, %v2839
        %v2928 = vadd.f32 %v2250, %v2842
        %v2929 = vadd.f32 %v2255, %v2847
        %v2930 = vadd.f32 %v2258, %v2850
        %v2931 = vadd.f32 %v2263, %v2855
        %v2932 = vadd.f32 %v2266, %v2858
        %v2933 = vadd.f32 %v2271, %v2863
        %v2934 = vadd.f32 %v2274, %v2866
        %v2935 = vadd.f32 %v2279, %v2871
        %v2936 = vadd.f32 %v2282, %v2874
        %v2937 = vadd.f32 %v2287, %v2879
        %v2938 = vadd.f32 %v2290, %v2882
        %v2939 = vadd.f32 %v2295, %v2887
        %v2940 = vadd.f32 %v2298, %v2890
        %v2941 = vadd.f32 %v2303, %v2895
        %v2942 = vadd.f32 %v2306, %v2898
        %v2943 = vadd.f32 %v2311, %v2903
        %v2944 = vadd.f32 %v2314, %v2906
        %v2945 = vld [vmem:[%s2] sm:$0x1]
        %v2947 = vlaneseq
        %v2948 = vshrl.u32 %v2947, 7
        %v2949 = vsub.s32 0, %v2948
        %v2950 = vrot.slane %v2945, %v2949
        %v2952 = vadd.f32 %v2909, %v2950
        %v2953 = vadd.f32 %v2910, %v2950
        %v2954 = vadd.f32 %v2911, %v2950
        %v2955 = vadd.f32 %v2912, %v2950
        %v2956 = vadd.f32 %v2913, %v2950
        %v2957 = vadd.f32 %v2914, %v2950
        %v2958 = vadd.f32 %v2915, %v2950
        %v2959 = vadd.f32 %v2916, %v2950
        %v2960 = vadd.f32 %v2917, %v2950
        %v2961 = vadd.f32 %v2918, %v2950
        %v2962 = vadd.f32 %v2919, %v2950
        %v2963 = vadd.f32 %v2920, %v2950
        %v2964 = vadd.f32 %v2921, %v2950
        %v2965 = vadd.f32 %v2922, %v2950
        %v2966 = vadd.f32 %v2923, %v2950
        %v2967 = vadd.f32 %v2924, %v2950
        %v2968 = vadd.f32 %v2925, %v2950
        %v2969 = vadd.f32 %v2926, %v2950
        %v2970 = vadd.f32 %v2927, %v2950
        %v2971 = vadd.f32 %v2928, %v2950
        %v2972 = vadd.f32 %v2929, %v2950
        %v2973 = vadd.f32 %v2930, %v2950
        %v2974 = vadd.f32 %v2931, %v2950
        %v2975 = vadd.f32 %v2932, %v2950
        %v2976 = vadd.f32 %v2933, %v2950
        %v2977 = vadd.f32 %v2934, %v2950
        %v2978 = vadd.f32 %v2935, %v2950
        %v2979 = vadd.f32 %v2936, %v2950
        %v2980 = vadd.f32 %v2937, %v2950
        %v2981 = vadd.f32 %v2938, %v2950
        %v2982 = vadd.f32 %v2939, %v2950
        %v2983 = vadd.f32 %v2940, %v2950
        %v2984 = vadd.f32 %v2941, %v2950
        %v2985 = vadd.f32 %v2942, %v2950
        %v2986 = vadd.f32 %v2943, %v2950
        %v2987 = vadd.f32 %v2944, %v2950
        %v2988 = vmax.f32 %v2952, 0.0
        %v2989 = vmax.f32 %v2953, 0.0
        %v2990 = vmax.f32 %v2954, 0.0
        %v2991 = vmax.f32 %v2955, 0.0
        %v2992 = vmax.f32 %v2956, 0.0
        %v2993 = vmax.f32 %v2957, 0.0
        %v2994 = vmax.f32 %v2958, 0.0
        %v2995 = vmax.f32 %v2959, 0.0
        %v2996 = vmax.f32 %v2960, 0.0
        %v2997 = vmax.f32 %v2961, 0.0
        %v2998 = vmax.f32 %v2962, 0.0
        %v2999 = vmax.f32 %v2963, 0.0
        %v3000 = vmax.f32 %v2964, 0.0
        %v3001 = vmax.f32 %v2965, 0.0
        %v3002 = vmax.f32 %v2966, 0.0
        %v3003 = vmax.f32 %v2967, 0.0
        %v3004 = vmax.f32 %v2968, 0.0
        %v3005 = vmax.f32 %v2969, 0.0
        %v3006 = vmax.f32 %v2970, 0.0
        %v3007 = vmax.f32 %v2971, 0.0
        %v3008 = vmax.f32 %v2972, 0.0
        %v3009 = vmax.f32 %v2973, 0.0
        %v3010 = vmax.f32 %v2974, 0.0
        %v3011 = vmax.f32 %v2975, 0.0
        %v3012 = vmax.f32 %v2976, 0.0
        %v3013 = vmax.f32 %v2977, 0.0
        %v3014 = vmax.f32 %v2978, 0.0
        %v3015 = vmax.f32 %v2979, 0.0
        %v3016 = vmax.f32 %v2980, 0.0
        %v3017 = vmax.f32 %v2981, 0.0
        %v3018 = vmax.f32 %v2982, 0.0
        %v3019 = vmax.f32 %v2983, 0.0
        %v3020 = vmax.f32 %v2984, 0.0
        %v3021 = vmax.f32 %v2985, 0.0
        %v3022 = vmax.f32 %v2986, 0.0
        %v3023 = vmax.f32 %v2987, 0.0
        %p3024 = scmp.ge.s32.totalorder %s281, 1
        %s3025 = sadd.s32 %s281, 16
        %p3026 = scmp.lt.s32.totalorder %s3025, 16
        %s3027 = scalar_select %p3024, 1, 0
        %v3028 = vstv %s3027
        %vm3029 = vcmp.eq.s32.totalorder %v3028, 1
        %s3030 = scalar_select %p3026, 1, 0
        %v3031 = vstv %s3030
        %vm3032 = vcmp.eq.s32.totalorder %v3031, 1
        %v3033 = vsel %vm3029, 1, 0
        %v3034 = vsel %vm3032, 1, 0
        %vm3035 = vcmp.eq.s32.totalorder %v3033, 1
        %vm3036 = vcmp.eq.s32.totalorder %v3034, 1
        %v3037 = vsel %vm3035, %v2988, 0.0
        %v3038 = vsel %vm3035, %v2989, 0.0
        %v3039 = vsel 1, %v2990, 0.0
        %v3040 = vsel 1, %v2991, 0.0
        %v3041 = vsel 1, %v2992, 0.0
        %v3042 = vsel 1, %v2993, 0.0
        %v3043 = vsel 1, %v2994, 0.0
        %v3044 = vsel 1, %v2995, 0.0
        %v3045 = vsel 1, %v2996, 0.0
        %v3046 = vsel 1, %v2997, 0.0
        %v3047 = vsel 1, %v2998, 0.0
        %v3048 = vsel 1, %v2999, 0.0
        %v3049 = vsel 1, %v3000, 0.0
        %v3050 = vsel 1, %v3001, 0.0
        %v3051 = vsel 1, %v3002, 0.0
        %v3052 = vsel 1, %v3003, 0.0
        %v3053 = vsel 1, %v3004, 0.0
        %v3054 = vsel 1, %v3005, 0.0
        %v3055 = vsel 1, %v3006, 0.0
        %v3056 = vsel 1, %v3007, 0.0
        %v3057 = vsel 1, %v3008, 0.0
        %v3058 = vsel 1, %v3009, 0.0
        %v3059 = vsel 1, %v3010, 0.0
        %v3060 = vsel 1, %v3011, 0.0
        %v3061 = vsel 1, %v3012, 0.0
        %v3062 = vsel 1, %v3013, 0.0
        %v3063 = vsel 1, %v3014, 0.0
        %v3064 = vsel 1, %v3015, 0.0
        %v3065 = vsel 1, %v3016, 0.0
        %v3066 = vsel 1, %v3017, 0.0
        %v3067 = vsel 1, %v3018, 0.0
        %v3068 = vsel 1, %v3019, 0.0
        %v3069 = vsel 1, %v3020, 0.0
        %v3070 = vsel 1, %v3021, 0.0
        %v3071 = vsel %vm3036, %v3022, 0.0
        %v3072 = vsel %vm3036, %v3023, 0.0
        %v3073 = vpack.c.bf16 %v3038, %v3037
        %v3074 = vpack.c.bf16 %v3040, %v3039
        %v3075 = vpack.c.bf16 %v3042, %v3041
        %v3076 = vpack.c.bf16 %v3044, %v3043
        %v3077 = vpack.c.bf16 %v3046, %v3045
        %v3078 = vpack.c.bf16 %v3048, %v3047
        %v3079 = vpack.c.bf16 %v3050, %v3049
        %v3080 = vpack.c.bf16 %v3052, %v3051
        %v3081 = vpack.c.bf16 %v3054, %v3053
        %v3082 = vpack.c.bf16 %v3056, %v3055
        %v3083 = vpack.c.bf16 %v3058, %v3057
        %v3084 = vpack.c.bf16 %v3060, %v3059
        %v3085 = vpack.c.bf16 %v3062, %v3061
        %v3086 = vpack.c.bf16 %v3064, %v3063
        %v3087 = vpack.c.bf16 %v3066, %v3065
        %v3088 = vpack.c.bf16 %v3068, %v3067
        %v3089 = vpack.c.bf16 %v3070, %v3069
        %v3090 = vpack.c.bf16 %v3072, %v3071
        %v3091 = vld [vmem:[%s4] sm:$0xf]
        %v3092 = vld [vmem:[%s4 + $0x4] sm:$0xf]
        %v3093 = vld [vmem:[%s4 + $0x8] sm:$0xf]
        %v3094 = vld [vmem:[%s4 + $0xc] sm:$0xf]
        %v3095 = vld [vmem:[%s4 + $0x10] sm:$0xf]
        %v3096 = vld [vmem:[%s4 + $0x14] sm:$0xf]
        %v3097 = vld [vmem:[%s4 + $0x18] sm:$0xf]
        %v3098 = vld [vmem:[%s4 + $0x1c] sm:$0xf]
        %v3099 = vld [vmem:[%s4 + $0x20] sm:$0xf]
        %v3100 = vld [vmem:[%s4 + $0x24] sm:$0xf]
        %v3101 = vld [vmem:[%s4 + $0x28] sm:$0xf]
        %v3102 = vld [vmem:[%s4 + $0x2c] sm:$0xf]
        %v3103 = vld [vmem:[%s4 + $0x30] sm:$0xf]
        %v3104 = vld [vmem:[%s4 + $0x34] sm:$0xf]
        %v3105 = vld [vmem:[%s4 + $0x38] sm:$0xf]
        %v3106 = vld [vmem:[%s4 + $0x3c] sm:$0xf]
        %v3108 = vshrl.u32 %v3073, 16
        %v3110 = vrot.slane %v3108, 7
        %v3111 = vshll.u32 %v3073, 16
        %v3113 = vor.u32 %v3110, %v3111
        %v3115 = vshrl.u32 %v3074, 16
        %v3117 = vrot.slane %v3115, 7
        %v3118 = vshll.u32 %v3074, 16
        %v3120 = vor.u32 %v3117, %v3118
        %v3122 = vshrl.u32 %v3075, 16
        %v3124 = vrot.slane %v3122, 7
        %v3125 = vshll.u32 %v3075, 16
        %v3127 = vor.u32 %v3124, %v3125
        %v3129 = vshrl.u32 %v3076, 16
        %v3131 = vrot.slane %v3129, 7
        %v3132 = vshll.u32 %v3076, 16
        %v3134 = vor.u32 %v3131, %v3132
        %v3136 = vshrl.u32 %v3077, 16
        %v3138 = vrot.slane %v3136, 7
        %v3139 = vshll.u32 %v3077, 16
        %v3141 = vor.u32 %v3138, %v3139
        %v3143 = vshrl.u32 %v3078, 16
        %v3145 = vrot.slane %v3143, 7
        %v3146 = vshll.u32 %v3078, 16
        %v3148 = vor.u32 %v3145, %v3146
        %v3150 = vshrl.u32 %v3079, 16
        %v3152 = vrot.slane %v3150, 7
        %v3153 = vshll.u32 %v3079, 16
        %v3155 = vor.u32 %v3152, %v3153
        %v3157 = vshrl.u32 %v3080, 16
        %v3159 = vrot.slane %v3157, 7
        %v3160 = vshll.u32 %v3080, 16
        %v3162 = vor.u32 %v3159, %v3160
        %v3164 = vshrl.u32 %v3081, 16
        %v3166 = vrot.slane %v3164, 7
        %v3167 = vshll.u32 %v3081, 16
        %v3169 = vor.u32 %v3166, %v3167
        %v3171 = vshrl.u32 %v3082, 16
        %v3173 = vrot.slane %v3171, 7
        %v3174 = vshll.u32 %v3082, 16
        %v3176 = vor.u32 %v3173, %v3174
        %v3178 = vshrl.u32 %v3083, 16
        %v3180 = vrot.slane %v3178, 7
        %v3181 = vshll.u32 %v3083, 16
        %v3183 = vor.u32 %v3180, %v3181
        %v3185 = vshrl.u32 %v3084, 16
        %v3187 = vrot.slane %v3185, 7
        %v3188 = vshll.u32 %v3084, 16
        %v3190 = vor.u32 %v3187, %v3188
        %v3192 = vshrl.u32 %v3085, 16
        %v3194 = vrot.slane %v3192, 7
        %v3195 = vshll.u32 %v3085, 16
        %v3197 = vor.u32 %v3194, %v3195
        %v3199 = vshrl.u32 %v3086, 16
        %v3201 = vrot.slane %v3199, 7
        %v3202 = vshll.u32 %v3086, 16
        %v3204 = vor.u32 %v3201, %v3202
        %v3206 = vshrl.u32 %v3087, 16
        %v3208 = vrot.slane %v3206, 7
        %v3209 = vshll.u32 %v3087, 16
        %v3211 = vor.u32 %v3208, %v3209
        %v3213 = vshrl.u32 %v3088, 16
        %v3215 = vrot.slane %v3213, 7
        %v3216 = vshll.u32 %v3088, 16
        %v3218 = vor.u32 %v3215, %v3216
        %v3220 = vshrl.u32 %v3089, 16
        %v3222 = vrot.slane %v3220, 7
        %v3223 = vshll.u32 %v3089, 16
        %v3225 = vor.u32 %v3222, %v3223
        %v3227 = vshrl.u32 %v3090, 16
        %v3229 = vrot.slane %v3227, 7
        %v3230 = vshll.u32 %v3090, 16
        %v3232 = vor.u32 %v3229, %v3230
        %vm3269 = vcmask 1040384
        %vm3270 = vsmask.f32 256
        %vm3271 = vmand %vm3269, %vm3270
        %v3272 = vsel %vm3271, 0, %v3113
        %v3273 = vsel %vm3271, 0, %v3120
        %v3274 = vsel %vm3271, 0, %v3127
        %v3275 = vsel %vm3271, 0, %v3134
        %v3276 = vsel %vm3271, 0, %v3141
        %v3277 = vsel %vm3271, 0, %v3148
        %v3278 = vsel %vm3271, 0, %v3155
        %v3279 = vsel %vm3271, 0, %v3162
        %v3280 = vsel %vm3271, 0, %v3169
        %v3281 = vsel %vm3271, 0, %v3176
        %v3282 = vsel %vm3271, 0, %v3183
        %v3283 = vsel %vm3271, 0, %v3190
        %v3284 = vsel %vm3271, 0, %v3197
        %v3285 = vsel %vm3271, 0, %v3204
        %v3286 = vsel %vm3271, 0, %v3211
        %v3287 = vsel %vm3271, 0, %v3218
        %v3288 = vsel %vm3271, 0, %v3225
        %v3289 = vsel %vm3271, 0, %v3232
        %v3290 = vsel %vm3271, %v3110, 0
        %v3291 = vsel %vm3271, %v3117, 0
        %v3292 = vsel %vm3271, %v3124, 0
        %v3293 = vsel %vm3271, %v3131, 0
        %v3294 = vsel %vm3271, %v3138, 0
        %v3295 = vsel %vm3271, %v3145, 0
        %v3296 = vsel %vm3271, %v3152, 0
        %v3297 = vsel %vm3271, %v3159, 0
        %v3298 = vsel %vm3271, %v3166, 0
        %v3299 = vsel %vm3271, %v3173, 0
        %v3300 = vsel %vm3271, %v3180, 0
        %v3301 = vsel %vm3271, %v3187, 0
        %v3302 = vsel %vm3271, %v3194, 0
        %v3303 = vsel %vm3271, %v3201, 0
        %v3304 = vsel %vm3271, %v3208, 0
        %v3305 = vsel %vm3271, %v3215, 0
        %v3306 = vsel %vm3271, %v3222, 0
        %v3307 = vsel %vm3271, %v3229, 0
        %vm3308 = vsmask.f32 7424
        %v3310 = vshrl.u32 %v3272, 16
        %v3312 = vshll.u32 %v3272, 16
        %v3314 = vrot.slane %v3312, 1
        %v3315 = vor.u32 %v3310, %v3314
        %v3317 = vshll.u32 %v3290, 16
        %v3319 = vrot.slane %v3317, 1
        %v3320 = vsel %vm3308, %v3315, %v3319
        %v3322 = vshrl.u32 %v3273, 16
        %v3324 = vshll.u32 %v3273, 16
        %v3326 = vrot.slane %v3324, 1
        %v3327 = vor.u32 %v3322, %v3326
        %v3329 = vshll.u32 %v3291, 16
        %v3331 = vrot.slane %v3329, 1
        %v3332 = vsel %vm3308, %v3327, %v3331
        %v3334 = vshrl.u32 %v3274, 16
        %v3336 = vshll.u32 %v3274, 16
        %v3338 = vrot.slane %v3336, 1
        %v3339 = vor.u32 %v3334, %v3338
        %v3341 = vshll.u32 %v3292, 16
        %v3343 = vrot.slane %v3341, 1
        %v3344 = vsel %vm3308, %v3339, %v3343
        %v3346 = vshrl.u32 %v3275, 16
        %v3348 = vshll.u32 %v3275, 16
        %v3350 = vrot.slane %v3348, 1
        %v3351 = vor.u32 %v3346, %v3350
        %v3353 = vshll.u32 %v3293, 16
        %v3355 = vrot.slane %v3353, 1
        %v3356 = vsel %vm3308, %v3351, %v3355
        %v3358 = vshrl.u32 %v3276, 16
        %v3360 = vshll.u32 %v3276, 16
        %v3362 = vrot.slane %v3360, 1
        %v3363 = vor.u32 %v3358, %v3362
        %v3365 = vshll.u32 %v3294, 16
        %v3367 = vrot.slane %v3365, 1
        %v3368 = vsel %vm3308, %v3363, %v3367
        %v3370 = vshrl.u32 %v3277, 16
        %v3372 = vshll.u32 %v3277, 16
        %v3374 = vrot.slane %v3372, 1
        %v3375 = vor.u32 %v3370, %v3374
        %v3377 = vshll.u32 %v3295, 16
        %v3379 = vrot.slane %v3377, 1
        %v3380 = vsel %vm3308, %v3375, %v3379
        %v3382 = vshrl.u32 %v3278, 16
        %v3384 = vshll.u32 %v3278, 16
        %v3386 = vrot.slane %v3384, 1
        %v3387 = vor.u32 %v3382, %v3386
        %v3389 = vshll.u32 %v3296, 16
        %v3391 = vrot.slane %v3389, 1
        %v3392 = vsel %vm3308, %v3387, %v3391
        %v3394 = vshrl.u32 %v3279, 16
        %v3396 = vshll.u32 %v3279, 16
        %v3398 = vrot.slane %v3396, 1
        %v3399 = vor.u32 %v3394, %v3398
        %v3401 = vshll.u32 %v3297, 16
        %v3403 = vrot.slane %v3401, 1
        %v3404 = vsel %vm3308, %v3399, %v3403
        %v3406 = vshrl.u32 %v3280, 16
        %v3408 = vshll.u32 %v3280, 16
        %v3410 = vrot.slane %v3408, 1
        %v3411 = vor.u32 %v3406, %v3410
        %v3413 = vshll.u32 %v3298, 16
        %v3415 = vrot.slane %v3413, 1
        %v3416 = vsel %vm3308, %v3411, %v3415
        %v3418 = vshrl.u32 %v3281, 16
        %v3420 = vshll.u32 %v3281, 16
        %v3422 = vrot.slane %v3420, 1
        %v3423 = vor.u32 %v3418, %v3422
        %v3425 = vshll.u32 %v3299, 16
        %v3427 = vrot.slane %v3425, 1
        %v3428 = vsel %vm3308, %v3423, %v3427
        %v3430 = vshrl.u32 %v3282, 16
        %v3432 = vshll.u32 %v3282, 16
        %v3434 = vrot.slane %v3432, 1
        %v3435 = vor.u32 %v3430, %v3434
        %v3437 = vshll.u32 %v3300, 16
        %v3439 = vrot.slane %v3437, 1
        %v3440 = vsel %vm3308, %v3435, %v3439
        %v3442 = vshrl.u32 %v3283, 16
        %v3444 = vshll.u32 %v3283, 16
        %v3446 = vrot.slane %v3444, 1
        %v3447 = vor.u32 %v3442, %v3446
        %v3449 = vshll.u32 %v3301, 16
        %v3451 = vrot.slane %v3449, 1
        %v3452 = vsel %vm3308, %v3447, %v3451
        %v3454 = vshrl.u32 %v3284, 16
        %v3456 = vshll.u32 %v3284, 16
        %v3458 = vrot.slane %v3456, 1
        %v3459 = vor.u32 %v3454, %v3458
        %v3461 = vshll.u32 %v3302, 16
        %v3463 = vrot.slane %v3461, 1
        %v3464 = vsel %vm3308, %v3459, %v3463
        %v3466 = vshrl.u32 %v3285, 16
        %v3468 = vshll.u32 %v3285, 16
        %v3470 = vrot.slane %v3468, 1
        %v3471 = vor.u32 %v3466, %v3470
        %v3473 = vshll.u32 %v3303, 16
        %v3475 = vrot.slane %v3473, 1
        %v3476 = vsel %vm3308, %v3471, %v3475
        %v3478 = vshrl.u32 %v3286, 16
        %v3480 = vshll.u32 %v3286, 16
        %v3482 = vrot.slane %v3480, 1
        %v3483 = vor.u32 %v3478, %v3482
        %v3485 = vshll.u32 %v3304, 16
        %v3487 = vrot.slane %v3485, 1
        %v3488 = vsel %vm3308, %v3483, %v3487
        %v3490 = vshrl.u32 %v3287, 16
        %v3492 = vshll.u32 %v3287, 16
        %v3494 = vrot.slane %v3492, 1
        %v3495 = vor.u32 %v3490, %v3494
        %v3497 = vshll.u32 %v3305, 16
        %v3499 = vrot.slane %v3497, 1
        %v3500 = vsel %vm3308, %v3495, %v3499
        %vm3549 = vcmask 1046528
        %v3550 = vrot.slane %v3272, 1
        %v3551 = vrot.slane %v3290, 1
        %v3552 = vsel %vm3549, %v3550, %v3551
        %v3553 = vrot.slane %v3273, 1
        %v3554 = vrot.slane %v3291, 1
        %v3555 = vsel %vm3549, %v3553, %v3554
        %v3556 = vrot.slane %v3274, 1
        %v3557 = vrot.slane %v3292, 1
        %v3558 = vsel %vm3549, %v3556, %v3557
        %v3559 = vrot.slane %v3275, 1
        %v3560 = vrot.slane %v3293, 1
        %v3561 = vsel %vm3549, %v3559, %v3560
        %v3562 = vrot.slane %v3276, 1
        %v3563 = vrot.slane %v3294, 1
        %v3564 = vsel %vm3549, %v3562, %v3563
        %v3565 = vrot.slane %v3277, 1
        %v3566 = vrot.slane %v3295, 1
        %v3567 = vsel %vm3549, %v3565, %v3566
        %v3568 = vrot.slane %v3278, 1
        %v3569 = vrot.slane %v3296, 1
        %v3570 = vsel %vm3549, %v3568, %v3569
        %v3571 = vrot.slane %v3279, 1
        %v3572 = vrot.slane %v3297, 1
        %v3573 = vsel %vm3549, %v3571, %v3572
        %v3574 = vrot.slane %v3280, 1
        %v3575 = vrot.slane %v3298, 1
        %v3576 = vsel %vm3549, %v3574, %v3575
        %v3577 = vrot.slane %v3281, 1
        %v3578 = vrot.slane %v3299, 1
        %v3579 = vsel %vm3549, %v3577, %v3578
        %v3580 = vrot.slane %v3282, 1
        %v3581 = vrot.slane %v3300, 1
        %v3582 = vsel %vm3549, %v3580, %v3581
        %v3583 = vrot.slane %v3283, 1
        %v3584 = vrot.slane %v3301, 1
        %v3585 = vsel %vm3549, %v3583, %v3584
        %v3586 = vrot.slane %v3284, 1
        %v3587 = vrot.slane %v3302, 1
        %v3588 = vsel %vm3549, %v3586, %v3587
        %v3589 = vrot.slane %v3285, 1
        %v3590 = vrot.slane %v3303, 1
        %v3591 = vsel %vm3549, %v3589, %v3590
        %v3592 = vrot.slane %v3286, 1
        %v3593 = vrot.slane %v3304, 1
        %v3594 = vsel %vm3549, %v3592, %v3593
        %v3595 = vrot.slane %v3287, 1
        %v3596 = vrot.slane %v3305, 1
        %v3597 = vsel %vm3549, %v3595, %v3596
        %v3614 = vld [vmem:[#allocation2] sm:$0xf]
        %v3615 = vld [vmem:[#allocation2 + $0x4] sm:$0xf]
        %v3616 = vld [vmem:[#allocation2 + $0x8] sm:$0xf]
        %v3617 = vld [vmem:[#allocation2 + $0xc] sm:$0xf]
        %v3618 = vld [vmem:[#allocation2 + $0x10] sm:$0xf]
        %v3619 = vld [vmem:[#allocation2 + $0x14] sm:$0xf]
        %v3620 = vld [vmem:[#allocation2 + $0x18] sm:$0xf]
        %v3621 = vld [vmem:[#allocation2 + $0x1c] sm:$0xf]
        %v3622 = vld [vmem:[#allocation2 + $0x20] sm:$0xf]
        %v3623 = vld [vmem:[#allocation2 + $0x24] sm:$0xf]
        %v3624 = vld [vmem:[#allocation2 + $0x28] sm:$0xf]
        %v3625 = vld [vmem:[#allocation2 + $0x2c] sm:$0xf]
        %v3626 = vld [vmem:[#allocation2 + $0x30] sm:$0xf]
        %v3627 = vld [vmem:[#allocation2 + $0x34] sm:$0xf]
        %v3628 = vld [vmem:[#allocation2 + $0x38] sm:$0xf]
        %v3629 = vld [vmem:[#allocation2 + $0x3c] sm:$0xf]
        %v3630 = vld [vmem:[#allocation2 + $0x40] sm:$0xf]
        %v3631 = vld [vmem:[#allocation2 + $0x44] sm:$0xf]
        %v3632 = vld [vmem:[#allocation2 + $0x48] sm:$0xf]
        %v3633 = vld [vmem:[#allocation2 + $0x4c] sm:$0xf]
        %v3634 = vld [vmem:[#allocation2 + $0x50] sm:$0xf]
        %v3635 = vld [vmem:[#allocation2 + $0x54] sm:$0xf]
        %v3636 = vld [vmem:[#allocation2 + $0x58] sm:$0xf]
        %v3637 = vld [vmem:[#allocation2 + $0x5c] sm:$0xf]
        %v3638 = vld [vmem:[#allocation2 + $0x60] sm:$0xf]
        %v3639 = vld [vmem:[#allocation2 + $0x64] sm:$0xf]
        %v3640 = vld [vmem:[#allocation2 + $0x68] sm:$0xf]
        %v3641 = vld [vmem:[#allocation2 + $0x6c] sm:$0xf]
        %v3642 = vld [vmem:[#allocation2 + $0x70] sm:$0xf]
        %v3643 = vld [vmem:[#allocation2 + $0x74] sm:$0xf]
        %v3644 = vld [vmem:[#allocation2 + $0x78] sm:$0xf]
        %v3645 = vld [vmem:[#allocation2 + $0x7c] sm:$0xf]
        %v3646 = vld [vmem:[#allocation2 + $0x80] sm:$0xf]
        %v3647 = vld [vmem:[#allocation2 + $0x84] sm:$0xf]
        %v3648 = vld [vmem:[#allocation2 + $0x88] sm:$0xf]
        %v3649 = vld [vmem:[#allocation2 + $0x8c] sm:$0xf]
        %v3650 = vld [vmem:[#allocation2 + $0x90] sm:$0xf]
        %v3651 = vld [vmem:[#allocation2 + $0x94] sm:$0xf]
        %v3652 = vld [vmem:[#allocation2 + $0x98] sm:$0xf]
        %v3653 = vld [vmem:[#allocation2 + $0x9c] sm:$0xf]
        %v3654 = vld [vmem:[#allocation2 + $0xa0] sm:$0xf]
        %v3655 = vld [vmem:[#allocation2 + $0xa4] sm:$0xf]
        %v3656 = vld [vmem:[#allocation2 + $0xa8] sm:$0xf]
        %v3657 = vld [vmem:[#allocation2 + $0xac] sm:$0xf]
        %v3658 = vld [vmem:[#allocation2 + $0xb0] sm:$0xf]
        %v3659 = vld [vmem:[#allocation2 + $0xb4] sm:$0xf]
        %v3660 = vld [vmem:[#allocation2 + $0xb8] sm:$0xf]
        %v3661 = vld [vmem:[#allocation2 + $0xbc] sm:$0xf]
        %v3710 = vunpack.c.l.b16 %v3614
        %v3711 = vunpack.c.l.b16 %v3615
        %v3712 = vunpack.c.l.b16 %v3616
        %v3713 = vunpack.c.l.b16 %v3617
        %v3714 = vunpack.c.l.b16 %v3618
        %v3715 = vunpack.c.l.b16 %v3619
        %v3716 = vunpack.c.l.b16 %v3620
        %v3717 = vunpack.c.l.b16 %v3621
        %v3718 = vunpack.c.l.b16 %v3622
        %v3719 = vunpack.c.l.b16 %v3623
        %v3720 = vunpack.c.l.b16 %v3624
        %v3721 = vunpack.c.l.b16 %v3625
        %v3722 = vunpack.c.l.b16 %v3626
        %v3723 = vunpack.c.l.b16 %v3627
        %v3724 = vunpack.c.l.b16 %v3628
        %v3725 = vunpack.c.l.b16 %v3629
        %v3726 = vunpack.c.l.b16 %v3630
        %v3727 = vunpack.c.l.b16 %v3631
        %v3728 = vunpack.c.l.b16 %v3632
        %v3729 = vunpack.c.l.b16 %v3633
        %v3730 = vunpack.c.l.b16 %v3634
        %v3731 = vunpack.c.l.b16 %v3635
        %v3732 = vunpack.c.l.b16 %v3636
        %v3733 = vunpack.c.l.b16 %v3637
        %v3734 = vunpack.c.l.b16 %v3638
        %v3735 = vunpack.c.l.b16 %v3639
        %v3736 = vunpack.c.l.b16 %v3640
        %v3737 = vunpack.c.l.b16 %v3641
        %v3738 = vunpack.c.l.b16 %v3642
        %v3739 = vunpack.c.l.b16 %v3643
        %v3740 = vunpack.c.l.b16 %v3644
        %v3741 = vunpack.c.l.b16 %v3645
        %v3742 = vunpack.c.l.b16 %v3646
        %v3743 = vunpack.c.l.b16 %v3647
        %v3744 = vunpack.c.l.b16 %v3648
        %v3745 = vunpack.c.l.b16 %v3649
        %v3746 = vunpack.c.l.b16 %v3650
        %v3747 = vunpack.c.l.b16 %v3651
        %v3748 = vunpack.c.l.b16 %v3652
        %v3749 = vunpack.c.l.b16 %v3653
        %v3750 = vunpack.c.l.b16 %v3654
        %v3751 = vunpack.c.l.b16 %v3655
        %v3752 = vunpack.c.l.b16 %v3656
        %v3753 = vunpack.c.l.b16 %v3657
        %v3754 = vunpack.c.l.b16 %v3658
        %v3755 = vunpack.c.l.b16 %v3659
        %v3756 = vunpack.c.l.b16 %v3660
        %v3757 = vunpack.c.l.b16 %v3661
        %v3758 = vpack.c.b16 %v3711, %v3710
        %v3759 = vpack.c.b16 %v3713, %v3712
        %v3760 = vpack.c.b16 %v3715, %v3714
        %v3761 = vpack.c.b16 %v3717, %v3716
        %v3762 = vpack.c.b16 %v3719, %v3718
        %v3763 = vpack.c.b16 %v3721, %v3720
        %v3764 = vpack.c.b16 %v3723, %v3722
        %v3765 = vpack.c.b16 %v3725, %v3724
        %v3766 = vpack.c.b16 %v3727, %v3726
        %v3767 = vpack.c.b16 %v3729, %v3728
        %v3768 = vpack.c.b16 %v3731, %v3730
        %v3769 = vpack.c.b16 %v3733, %v3732
        %v3770 = vpack.c.b16 %v3735, %v3734
        %v3771 = vpack.c.b16 %v3737, %v3736
        %v3772 = vpack.c.b16 %v3739, %v3738
        %v3773 = vpack.c.b16 %v3741, %v3740
        %v3774 = vpack.c.b16 %v3743, %v3742
        %v3775 = vpack.c.b16 %v3745, %v3744
        %v3776 = vpack.c.b16 %v3747, %v3746
        %v3777 = vpack.c.b16 %v3749, %v3748
        %v3778 = vpack.c.b16 %v3751, %v3750
        %v3779 = vpack.c.b16 %v3753, %v3752
        %v3780 = vpack.c.b16 %v3755, %v3754
        %v3781 = vpack.c.b16 %v3757, %v3756
        %3806 = vmatprep.subr.bf16.mxu0 0
        %3807 = vmatpush1.bf16.msra.mxu0 %v3765
        %3808 = vmatprep.subr.bf16.mxu0 0
        %3809 = vmatpush1.bf16.msra.mxu0 %v3764
        %3810 = vmatprep.subr.bf16.mxu0 0
        %3811 = vmatpush1.bf16.msra.mxu0 %v3763
        %3812 = vmatprep.subr.bf16.mxu0 0
        %3813 = vmatpush1.bf16.msra.mxu0 %v3762
        %3814 = vmatprep.subr.bf16.mxu0 0
        %3815 = vmatpush1.bf16.msra.mxu0 %v3761
        %3816 = vmatprep.subr.bf16.mxu0 0
        %3817 = vmatpush1.bf16.msra.mxu0 %v3760
        %3818 = vmatprep.subr.bf16.mxu0 0
        %3819 = vmatpush1.bf16.msra.mxu0 %v3759
        %3820 = vmatprep.subr.bf16.mxu0 0
        %3821 = vmatpush1.bf16.msra.mxu0 %v3758
        %3822 = vmatprep.subr.bf16.mxu0 0
        %3823 = vmatpush2.bf16.msra.mxu0 %v3773
        %3824 = vmatprep.subr.bf16.mxu0 0
        %3825 = vmatpush2.bf16.msra.mxu0 %v3772
        %3826 = vmatprep.subr.bf16.mxu0 0
        %3827 = vmatpush2.bf16.msra.mxu0 %v3771
        %3828 = vmatprep.subr.bf16.mxu0 0
        %3829 = vmatpush2.bf16.msra.mxu0 %v3770
        %3830 = vmatprep.subr.bf16.mxu0 0
        %3831 = vmatpush2.bf16.msra.mxu0 %v3769
        %3832 = vmatprep.subr.bf16.mxu0 0
        %3833 = vmatpush2.bf16.msra.mxu0 %v3768
        %3834 = vmatprep.subr.bf16.mxu0 0
        %3835 = vmatpush2.bf16.msra.mxu0 %v3767
        %3836 = vmatprep.subr.bf16.mxu0 0
        %3837 = vmatpush2.bf16.msra.mxu0 %v3766
        %3838 = vmatprep.mubr.bf16.mxu0 %v3320
        %3839 = vmatmul.mubr.bf16.gmra.mxu0 %v3272
        %v3840 = vpop.f32.mrf.mxu0
        %v3841 = vadd.f32 0.0, %v3840
        %v3842 = vpop.f32.mrf.mxu0
        %v3843 = vpop.f32.mrf.mxu0
        %v3844 = vadd.f32 0.0, %v3843
        %v3845 = vpop.f32.mrf.mxu0
        %3846 = vmatprep.mubr.bf16.mxu0 %v3332
        %3847 = vmatmul.mubr.bf16.gmra.mxu0 %v3273
        %v3848 = vpop.f32.mrf.mxu0
        %v3849 = vadd.f32 0.0, %v3848
        %v3850 = vpop.f32.mrf.mxu0
        %v3851 = vpop.f32.mrf.mxu0
        %v3852 = vadd.f32 0.0, %v3851
        %v3853 = vpop.f32.mrf.mxu0
        %3854 = vmatprep.mubr.bf16.mxu0 %v3344
        %3855 = vmatmul.mubr.bf16.gmra.mxu0 %v3274
        %v3856 = vpop.f32.mrf.mxu0
        %v3857 = vadd.f32 0.0, %v3856
        %v3858 = vpop.f32.mrf.mxu0
        %v3859 = vpop.f32.mrf.mxu0
        %v3860 = vadd.f32 0.0, %v3859
        %v3861 = vpop.f32.mrf.mxu0
        %3862 = vmatprep.mubr.bf16.mxu0 %v3356
        %3863 = vmatmul.mubr.bf16.gmra.mxu0 %v3275
        %v3864 = vpop.f32.mrf.mxu0
        %v3865 = vadd.f32 0.0, %v3864
        %v3866 = vpop.f32.mrf.mxu0
        %v3867 = vpop.f32.mrf.mxu0
        %v3868 = vadd.f32 0.0, %v3867
        %v3869 = vpop.f32.mrf.mxu0
        %3870 = vmatprep.mubr.bf16.mxu0 %v3368
        %3871 = vmatmul.mubr.bf16.gmra.mxu0 %v3276
        %v3872 = vpop.f32.mrf.mxu0
        %v3873 = vadd.f32 0.0, %v3872
        %v3874 = vpop.f32.mrf.mxu0
        %v3875 = vpop.f32.mrf.mxu0
        %v3876 = vadd.f32 0.0, %v3875
        %v3877 = vpop.f32.mrf.mxu0
        %3878 = vmatprep.mubr.bf16.mxu0 %v3380
        %3879 = vmatmul.mubr.bf16.gmra.mxu0 %v3277
        %v3880 = vpop.f32.mrf.mxu0
        %v3881 = vadd.f32 0.0, %v3880
        %v3882 = vpop.f32.mrf.mxu0
        %v3883 = vpop.f32.mrf.mxu0
        %v3884 = vadd.f32 0.0, %v3883
        %v3885 = vpop.f32.mrf.mxu0
        %3886 = vmatprep.mubr.bf16.mxu0 %v3392
        %3887 = vmatmul.mubr.bf16.gmra.mxu0 %v3278
        %v3888 = vpop.f32.mrf.mxu0
        %v3889 = vadd.f32 0.0, %v3888
        %v3890 = vpop.f32.mrf.mxu0
        %v3891 = vpop.f32.mrf.mxu0
        %v3892 = vadd.f32 0.0, %v3891
        %v3893 = vpop.f32.mrf.mxu0
        %3894 = vmatprep.mubr.bf16.mxu0 %v3404
        %3895 = vmatmul.mubr.bf16.gmra.mxu0 %v3279
        %v3896 = vpop.f32.mrf.mxu0
        %v3897 = vadd.f32 0.0, %v3896
        %v3898 = vpop.f32.mrf.mxu0
        %v3899 = vpop.f32.mrf.mxu0
        %v3900 = vadd.f32 0.0, %v3899
        %v3901 = vpop.f32.mrf.mxu0
        %3902 = vmatprep.mubr.bf16.mxu0 %v3416
        %3903 = vmatmul.mubr.bf16.gmra.mxu0 %v3280
        %v3904 = vpop.f32.mrf.mxu0
        %v3905 = vadd.f32 0.0, %v3904
        %v3906 = vpop.f32.mrf.mxu0
        %v3907 = vpop.f32.mrf.mxu0
        %v3908 = vadd.f32 0.0, %v3907
        %v3909 = vpop.f32.mrf.mxu0
        %3910 = vmatprep.mubr.bf16.mxu0 %v3428
        %3911 = vmatmul.mubr.bf16.gmra.mxu0 %v3281
        %v3912 = vpop.f32.mrf.mxu0
        %v3913 = vadd.f32 0.0, %v3912
        %v3914 = vpop.f32.mrf.mxu0
        %v3915 = vpop.f32.mrf.mxu0
        %v3916 = vadd.f32 0.0, %v3915
        %v3917 = vpop.f32.mrf.mxu0
        %3918 = vmatprep.mubr.bf16.mxu0 %v3440
        %3919 = vmatmul.mubr.bf16.gmra.mxu0 %v3282
        %v3920 = vpop.f32.mrf.mxu0
        %v3921 = vadd.f32 0.0, %v3920
        %v3922 = vpop.f32.mrf.mxu0
        %v3923 = vpop.f32.mrf.mxu0
        %v3924 = vadd.f32 0.0, %v3923
        %v3925 = vpop.f32.mrf.mxu0
        %3926 = vmatprep.mubr.bf16.mxu0 %v3452
        %3927 = vmatmul.mubr.bf16.gmra.mxu0 %v3283
        %v3928 = vpop.f32.mrf.mxu0
        %v3929 = vadd.f32 0.0, %v3928
        %v3930 = vpop.f32.mrf.mxu0
        %v3931 = vpop.f32.mrf.mxu0
        %v3932 = vadd.f32 0.0, %v3931
        %v3933 = vpop.f32.mrf.mxu0
        %3934 = vmatprep.mubr.bf16.mxu0 %v3464
        %3935 = vmatmul.mubr.bf16.gmra.mxu0 %v3284
        %v3936 = vpop.f32.mrf.mxu0
        %v3937 = vadd.f32 0.0, %v3936
        %v3938 = vpop.f32.mrf.mxu0
        %v3939 = vpop.f32.mrf.mxu0
        %v3940 = vadd.f32 0.0, %v3939
        %v3941 = vpop.f32.mrf.mxu0
        %3942 = vmatprep.mubr.bf16.mxu0 %v3476
        %3943 = vmatmul.mubr.bf16.gmra.mxu0 %v3285
        %v3944 = vpop.f32.mrf.mxu0
        %v3945 = vadd.f32 0.0, %v3944
        %v3946 = vpop.f32.mrf.mxu0
        %v3947 = vpop.f32.mrf.mxu0
        %v3948 = vadd.f32 0.0, %v3947
        %v3949 = vpop.f32.mrf.mxu0
        %3950 = vmatprep.mubr.bf16.mxu0 %v3488
        %3951 = vmatmul.mubr.bf16.gmra.mxu0 %v3286
        %v3952 = vpop.f32.mrf.mxu0
        %v3953 = vadd.f32 0.0, %v3952
        %v3954 = vpop.f32.mrf.mxu0
        %v3955 = vpop.f32.mrf.mxu0
        %v3956 = vadd.f32 0.0, %v3955
        %v3957 = vpop.f32.mrf.mxu0
        %3958 = vmatprep.mubr.bf16.mxu0 %v3500
        %3959 = vmatmul.mubr.bf16.gmra.mxu0 %v3287
        %v3960 = vpop.f32.mrf.mxu0
        %v3961 = vadd.f32 0.0, %v3960
        %v3962 = vpop.f32.mrf.mxu0
        %v3963 = vpop.f32.mrf.mxu0
        %v3964 = vadd.f32 0.0, %v3963
        %v3965 = vpop.f32.mrf.mxu0
        %3966 = vdwg.mxu0
        %3967 = vmatprep.subr.bf16.mxu0 0
        %3968 = vmatpush1.bf16.msra.mxu0 %v3781
        %3969 = vmatprep.subr.bf16.mxu0 0
        %3970 = vmatpush1.bf16.msra.mxu0 %v3780
        %3971 = vmatprep.subr.bf16.mxu0 0
        %3972 = vmatpush1.bf16.msra.mxu0 %v3779
        %3973 = vmatprep.subr.bf16.mxu0 0
        %3974 = vmatpush1.bf16.msra.mxu0 %v3778
        %3975 = vmatprep.subr.bf16.mxu0 0
        %3976 = vmatpush1.bf16.msra.mxu0 %v3777
        %3977 = vmatprep.subr.bf16.mxu0 0
        %3978 = vmatpush1.bf16.msra.mxu0 %v3776
        %3979 = vmatprep.subr.bf16.mxu0 0
        %3980 = vmatpush1.bf16.msra.mxu0 %v3775
        %3981 = vmatprep.subr.bf16.mxu0 0
        %3982 = vmatpush1.bf16.msra.mxu0 %v3774
        %3983 = vmatprep.subr.bf16.mxu0 0
        %3984 = vmatpush2.bf16.msra.mxu0 0
        %3985 = vmatprep.subr.bf16.mxu0 0
        %3986 = vmatpush2.bf16.msra.mxu0 0
        %3987 = vmatprep.subr.bf16.mxu0 0
        %3988 = vmatpush2.bf16.msra.mxu0 0
        %3989 = vmatprep.subr.bf16.mxu0 0
        %3990 = vmatpush2.bf16.msra.mxu0 0
        %3991 = vmatprep.subr.bf16.mxu0 0
        %3992 = vmatpush2.bf16.msra.mxu0 0
        %3993 = vmatprep.subr.bf16.mxu0 0
        %3994 = vmatpush2.bf16.msra.mxu0 0
        %3995 = vmatprep.subr.bf16.mxu0 0
        %3996 = vmatpush2.bf16.msra.mxu0 0
        %3997 = vmatprep.subr.bf16.mxu0 0
        %3998 = vmatpush2.bf16.msra.mxu0 0
        %3999 = vmatprep.mubr.bf16.mxu0 0
        %4000 = vmatmul.mubr.bf16.gmra.mxu0 %v3552
        %v4001 = vpop.f32.mrf.mxu0
        %v4002 = vadd.f32 %v3841, %v4001
        %v4003 = vpop.f32.mrf.mxu0
        %v4004 = vpop.f32.mrf.mxu0
        %v4005 = vadd.f32 %v3844, %v4004
        %v4006 = vpop.f32.mrf.mxu0
        %4007 = vmatprep.mubr.bf16.mxu0 0
        %4008 = vmatmul.mubr.bf16.gmra.mxu0 %v3555
        %v4009 = vpop.f32.mrf.mxu0
        %v4010 = vadd.f32 %v3849, %v4009
        %v4011 = vpop.f32.mrf.mxu0
        %v4012 = vpop.f32.mrf.mxu0
        %v4013 = vadd.f32 %v3852, %v4012
        %v4014 = vpop.f32.mrf.mxu0
        %4015 = vmatprep.mubr.bf16.mxu0 0
        %4016 = vmatmul.mubr.bf16.gmra.mxu0 %v3558
        %v4017 = vpop.f32.mrf.mxu0
        %v4018 = vadd.f32 %v3857, %v4017
        %v4019 = vpop.f32.mrf.mxu0
        %v4020 = vpop.f32.mrf.mxu0
        %v4021 = vadd.f32 %v3860, %v4020
        %v4022 = vpop.f32.mrf.mxu0
        %4023 = vmatprep.mubr.bf16.mxu0 0
        %4024 = vmatmul.mubr.bf16.gmra.mxu0 %v3561
        %v4025 = vpop.f32.mrf.mxu0
        %v4026 = vadd.f32 %v3865, %v4025
        %v4027 = vpop.f32.mrf.mxu0
        %v4028 = vpop.f32.mrf.mxu0
        %v4029 = vadd.f32 %v3868, %v4028
        %v4030 = vpop.f32.mrf.mxu0
        %4031 = vmatprep.mubr.bf16.mxu0 0
        %4032 = vmatmul.mubr.bf16.gmra.mxu0 %v3564
        %v4033 = vpop.f32.mrf.mxu0
        %v4034 = vadd.f32 %v3873, %v4033
        %v4035 = vpop.f32.mrf.mxu0
        %v4036 = vpop.f32.mrf.mxu0
        %v4037 = vadd.f32 %v3876, %v4036
        %v4038 = vpop.f32.mrf.mxu0
        %4039 = vmatprep.mubr.bf16.mxu0 0
        %4040 = vmatmul.mubr.bf16.gmra.mxu0 %v3567
        %v4041 = vpop.f32.mrf.mxu0
        %v4042 = vadd.f32 %v3881, %v4041
        %v4043 = vpop.f32.mrf.mxu0
        %v4044 = vpop.f32.mrf.mxu0
        %v4045 = vadd.f32 %v3884, %v4044
        %v4046 = vpop.f32.mrf.mxu0
        %4047 = vmatprep.mubr.bf16.mxu0 0
        %4048 = vmatmul.mubr.bf16.gmra.mxu0 %v3570
        %v4049 = vpop.f32.mrf.mxu0
        %v4050 = vadd.f32 %v3889, %v4049
        %v4051 = vpop.f32.mrf.mxu0
        %v4052 = vpop.f32.mrf.mxu0
        %v4053 = vadd.f32 %v3892, %v4052
        %v4054 = vpop.f32.mrf.mxu0
        %4055 = vmatprep.mubr.bf16.mxu0 0
        %4056 = vmatmul.mubr.bf16.gmra.mxu0 %v3573
        %v4057 = vpop.f32.mrf.mxu0
        %v4058 = vadd.f32 %v3897, %v4057
        %v4059 = vpop.f32.mrf.mxu0
        %v4060 = vpop.f32.mrf.mxu0
        %v4061 = vadd.f32 %v3900, %v4060
        %v4062 = vpop.f32.mrf.mxu0
        %4063 = vmatprep.mubr.bf16.mxu0 0
        %4064 = vmatmul.mubr.bf16.gmra.mxu0 %v3576
        %v4065 = vpop.f32.mrf.mxu0
        %v4066 = vadd.f32 %v3905, %v4065
        %v4067 = vpop.f32.mrf.mxu0
        %v4068 = vpop.f32.mrf.mxu0
        %v4069 = vadd.f32 %v3908, %v4068
        %v4070 = vpop.f32.mrf.mxu0
        %4071 = vmatprep.mubr.bf16.mxu0 0
        %4072 = vmatmul.mubr.bf16.gmra.mxu0 %v3579
        %v4073 = vpop.f32.mrf.mxu0
        %v4074 = vadd.f32 %v3913, %v4073
        %v4075 = vpop.f32.mrf.mxu0
        %v4076 = vpop.f32.mrf.mxu0
        %v4077 = vadd.f32 %v3916, %v4076
        %v4078 = vpop.f32.mrf.mxu0
        %4079 = vmatprep.mubr.bf16.mxu0 0
        %4080 = vmatmul.mubr.bf16.gmra.mxu0 %v3582
        %v4081 = vpop.f32.mrf.mxu0
        %v4082 = vadd.f32 %v3921, %v4081
        %v4083 = vpop.f32.mrf.mxu0
        %v4084 = vpop.f32.mrf.mxu0
        %v4085 = vadd.f32 %v3924, %v4084
        %v4086 = vpop.f32.mrf.mxu0
        %4087 = vmatprep.mubr.bf16.mxu0 0
        %4088 = vmatmul.mubr.bf16.gmra.mxu0 %v3585
        %v4089 = vpop.f32.mrf.mxu0
        %v4090 = vadd.f32 %v3929, %v4089
        %v4091 = vpop.f32.mrf.mxu0
        %v4092 = vpop.f32.mrf.mxu0
        %v4093 = vadd.f32 %v3932, %v4092
        %v4094 = vpop.f32.mrf.mxu0
        %4095 = vmatprep.mubr.bf16.mxu0 0
        %4096 = vmatmul.mubr.bf16.gmra.mxu0 %v3588
        %v4097 = vpop.f32.mrf.mxu0
        %v4098 = vadd.f32 %v3937, %v4097
        %v4099 = vpop.f32.mrf.mxu0
        %v4100 = vpop.f32.mrf.mxu0
        %v4101 = vadd.f32 %v3940, %v4100
        %v4102 = vpop.f32.mrf.mxu0
        %4103 = vmatprep.mubr.bf16.mxu0 0
        %4104 = vmatmul.mubr.bf16.gmra.mxu0 %v3591
        %v4105 = vpop.f32.mrf.mxu0
        %v4106 = vadd.f32 %v3945, %v4105
        %v4107 = vpop.f32.mrf.mxu0
        %v4108 = vpop.f32.mrf.mxu0
        %v4109 = vadd.f32 %v3948, %v4108
        %v4110 = vpop.f32.mrf.mxu0
        %4111 = vmatprep.mubr.bf16.mxu0 0
        %4112 = vmatmul.mubr.bf16.gmra.mxu0 %v3594
        %v4113 = vpop.f32.mrf.mxu0
        %v4114 = vadd.f32 %v3953, %v4113
        %v4115 = vpop.f32.mrf.mxu0
        %v4116 = vpop.f32.mrf.mxu0
        %v4117 = vadd.f32 %v3956, %v4116
        %v4118 = vpop.f32.mrf.mxu0
        %4119 = vmatprep.mubr.bf16.mxu0 0
        %4120 = vmatmul.mubr.bf16.gmra.mxu0 %v3597
        %v4121 = vpop.f32.mrf.mxu0
        %v4122 = vadd.f32 %v3961, %v4121
        %v4123 = vpop.f32.mrf.mxu0
        %v4124 = vpop.f32.mrf.mxu0
        %v4125 = vadd.f32 %v3964, %v4124
        %v4126 = vpop.f32.mrf.mxu0
        %4127 = vdwg.mxu0
        %v4144 = vunpack.c.l.b16 %v3091
        %v4145 = vunpack.c.l.b16 %v3092
        %v4146 = vunpack.c.l.b16 %v3093
        %v4147 = vunpack.c.l.b16 %v3094
        %v4148 = vunpack.c.l.b16 %v3095
        %v4149 = vunpack.c.l.b16 %v3096
        %v4150 = vunpack.c.l.b16 %v3097
        %v4151 = vunpack.c.l.b16 %v3098
        %v4152 = vunpack.c.l.b16 %v3099
        %v4153 = vunpack.c.l.b16 %v3100
        %v4154 = vunpack.c.l.b16 %v3101
        %v4155 = vunpack.c.l.b16 %v3102
        %v4156 = vunpack.c.l.b16 %v3103
        %v4157 = vunpack.c.l.b16 %v3104
        %v4158 = vunpack.c.l.b16 %v3105
        %v4159 = vunpack.c.l.b16 %v3106
        %v4160 = vpack.c.b16 %v4145, %v4144
        %v4161 = vpack.c.b16 %v4147, %v4146
        %v4162 = vpack.c.b16 %v4149, %v4148
        %v4163 = vpack.c.b16 %v4151, %v4150
        %v4164 = vpack.c.b16 %v4153, %v4152
        %v4165 = vpack.c.b16 %v4155, %v4154
        %v4166 = vpack.c.b16 %v4157, %v4156
        %v4167 = vpack.c.b16 %v4159, %v4158
        %4176 = vmatprep.subr.bf16.mxu0 0
        %4177 = vmatpush1.bf16.msra.mxu0 %v4167
        %4178 = vmatprep.subr.bf16.mxu0 0
        %4179 = vmatpush1.bf16.msra.mxu0 %v4166
        %4180 = vmatprep.subr.bf16.mxu0 0
        %4181 = vmatpush1.bf16.msra.mxu0 %v4165
        %4182 = vmatprep.subr.bf16.mxu0 0
        %4183 = vmatpush1.bf16.msra.mxu0 %v4164
        %4184 = vmatprep.subr.bf16.mxu0 0
        %4185 = vmatpush1.bf16.msra.mxu0 %v4163
        %4186 = vmatprep.subr.bf16.mxu0 0
        %4187 = vmatpush1.bf16.msra.mxu0 %v4162
        %4188 = vmatprep.subr.bf16.mxu0 0
        %4189 = vmatpush1.bf16.msra.mxu0 %v4161
        %4190 = vmatprep.subr.bf16.mxu0 0
        %4191 = vmatpush1.bf16.msra.mxu0 %v4160
        %4192 = vmatprep.subr.bf16.mxu0 0
        %4193 = vmatpush2.bf16.msra.mxu0 0
        %4194 = vmatprep.subr.bf16.mxu0 0
        %4195 = vmatpush2.bf16.msra.mxu0 0
        %4196 = vmatprep.subr.bf16.mxu0 0
        %4197 = vmatpush2.bf16.msra.mxu0 0
        %4198 = vmatprep.subr.bf16.mxu0 0
        %4199 = vmatpush2.bf16.msra.mxu0 0
        %4200 = vmatprep.subr.bf16.mxu0 0
        %4201 = vmatpush2.bf16.msra.mxu0 0
        %4202 = vmatprep.subr.bf16.mxu0 0
        %4203 = vmatpush2.bf16.msra.mxu0 0
        %4204 = vmatprep.subr.bf16.mxu0 0
        %4205 = vmatpush2.bf16.msra.mxu0 0
        %4206 = vmatprep.subr.bf16.mxu0 0
        %4207 = vmatpush2.bf16.msra.mxu0 0
        %4208 = vmatprep.mubr.bf16.mxu0 0
        %4209 = vmatmul.mubr.bf16.gmra.mxu0 %v1073
        %v4210 = vpop.f32.mrf.mxu0
        %v4211 = vadd.f32 %v4002, %v4210
        %v4212 = vpop.f32.mrf.mxu0
        %v4213 = vpop.f32.mrf.mxu0
        %v4214 = vadd.f32 %v4005, %v4213
        %v4215 = vpop.f32.mrf.mxu0
        %4216 = vmatprep.mubr.bf16.mxu0 0
        %4217 = vmatmul.mubr.bf16.gmra.mxu0 %v1074
        %v4218 = vpop.f32.mrf.mxu0
        %v4219 = vadd.f32 %v4010, %v4218
        %v4220 = vpop.f32.mrf.mxu0
        %v4221 = vpop.f32.mrf.mxu0
        %v4222 = vadd.f32 %v4013, %v4221
        %v4223 = vpop.f32.mrf.mxu0
        %4224 = vmatprep.mubr.bf16.mxu0 0
        %4225 = vmatmul.mubr.bf16.gmra.mxu0 %v1075
        %v4226 = vpop.f32.mrf.mxu0
        %v4227 = vadd.f32 %v4018, %v4226
        %v4228 = vpop.f32.mrf.mxu0
        %v4229 = vpop.f32.mrf.mxu0
        %v4230 = vadd.f32 %v4021, %v4229
        %v4231 = vpop.f32.mrf.mxu0
        %4232 = vmatprep.mubr.bf16.mxu0 0
        %4233 = vmatmul.mubr.bf16.gmra.mxu0 %v1076
        %v4234 = vpop.f32.mrf.mxu0
        %v4235 = vadd.f32 %v4026, %v4234
        %v4236 = vpop.f32.mrf.mxu0
        %v4237 = vpop.f32.mrf.mxu0
        %v4238 = vadd.f32 %v4029, %v4237
        %v4239 = vpop.f32.mrf.mxu0
        %4240 = vmatprep.mubr.bf16.mxu0 0
        %4241 = vmatmul.mubr.bf16.gmra.mxu0 %v1077
        %v4242 = vpop.f32.mrf.mxu0
        %v4243 = vadd.f32 %v4034, %v4242
        %v4244 = vpop.f32.mrf.mxu0
        %v4245 = vpop.f32.mrf.mxu0
        %v4246 = vadd.f32 %v4037, %v4245
        %v4247 = vpop.f32.mrf.mxu0
        %4248 = vmatprep.mubr.bf16.mxu0 0
        %4249 = vmatmul.mubr.bf16.gmra.mxu0 %v1078
        %v4250 = vpop.f32.mrf.mxu0
        %v4251 = vadd.f32 %v4042, %v4250
        %v4252 = vpop.f32.mrf.mxu0
        %v4253 = vpop.f32.mrf.mxu0
        %v4254 = vadd.f32 %v4045, %v4253
        %v4255 = vpop.f32.mrf.mxu0
        %4256 = vmatprep.mubr.bf16.mxu0 0
        %4257 = vmatmul.mubr.bf16.gmra.mxu0 %v1079
        %v4258 = vpop.f32.mrf.mxu0
        %v4259 = vadd.f32 %v4050, %v4258
        %v4260 = vpop.f32.mrf.mxu0
        %v4261 = vpop.f32.mrf.mxu0
        %v4262 = vadd.f32 %v4053, %v4261
        %v4263 = vpop.f32.mrf.mxu0
        %4264 = vmatprep.mubr.bf16.mxu0 0
        %4265 = vmatmul.mubr.bf16.gmra.mxu0 %v1080
        %v4266 = vpop.f32.mrf.mxu0
        %v4267 = vadd.f32 %v4058, %v4266
        %v4268 = vpop.f32.mrf.mxu0
        %v4269 = vpop.f32.mrf.mxu0
        %v4270 = vadd.f32 %v4061, %v4269
        %v4271 = vpop.f32.mrf.mxu0
        %4272 = vmatprep.mubr.bf16.mxu0 0
        %4273 = vmatmul.mubr.bf16.gmra.mxu0 %v1081
        %v4274 = vpop.f32.mrf.mxu0
        %v4275 = vadd.f32 %v4066, %v4274
        %v4276 = vpop.f32.mrf.mxu0
        %v4277 = vpop.f32.mrf.mxu0
        %v4278 = vadd.f32 %v4069, %v4277
        %v4279 = vpop.f32.mrf.mxu0
        %4280 = vmatprep.mubr.bf16.mxu0 0
        %4281 = vmatmul.mubr.bf16.gmra.mxu0 %v1082
        %v4282 = vpop.f32.mrf.mxu0
        %v4283 = vadd.f32 %v4074, %v4282
        %v4284 = vpop.f32.mrf.mxu0
        %v4285 = vpop.f32.mrf.mxu0
        %v4286 = vadd.f32 %v4077, %v4285
        %v4287 = vpop.f32.mrf.mxu0
        %4288 = vmatprep.mubr.bf16.mxu0 0
        %4289 = vmatmul.mubr.bf16.gmra.mxu0 %v1083
        %v4290 = vpop.f32.mrf.mxu0
        %v4291 = vadd.f32 %v4082, %v4290
        %v4292 = vpop.f32.mrf.mxu0
        %v4293 = vpop.f32.mrf.mxu0
        %v4294 = vadd.f32 %v4085, %v4293
        %v4295 = vpop.f32.mrf.mxu0
        %4296 = vmatprep.mubr.bf16.mxu0 0
        %4297 = vmatmul.mubr.bf16.gmra.mxu0 %v1084
        %v4298 = vpop.f32.mrf.mxu0
        %v4299 = vadd.f32 %v4090, %v4298
        %v4300 = vpop.f32.mrf.mxu0
        %v4301 = vpop.f32.mrf.mxu0
        %v4302 = vadd.f32 %v4093, %v4301
        %v4303 = vpop.f32.mrf.mxu0
        %4304 = vmatprep.mubr.bf16.mxu0 0
        %4305 = vmatmul.mubr.bf16.gmra.mxu0 %v1085
        %v4306 = vpop.f32.mrf.mxu0
        %v4307 = vadd.f32 %v4098, %v4306
        %v4308 = vpop.f32.mrf.mxu0
        %v4309 = vpop.f32.mrf.mxu0
        %v4310 = vadd.f32 %v4101, %v4309
        %v4311 = vpop.f32.mrf.mxu0
        %4312 = vmatprep.mubr.bf16.mxu0 0
        %4313 = vmatmul.mubr.bf16.gmra.mxu0 %v1086
        %v4314 = vpop.f32.mrf.mxu0
        %v4315 = vadd.f32 %v4106, %v4314
        %v4316 = vpop.f32.mrf.mxu0
        %v4317 = vpop.f32.mrf.mxu0
        %v4318 = vadd.f32 %v4109, %v4317
        %v4319 = vpop.f32.mrf.mxu0
        %4320 = vmatprep.mubr.bf16.mxu0 0
        %4321 = vmatmul.mubr.bf16.gmra.mxu0 %v1087
        %v4322 = vpop.f32.mrf.mxu0
        %v4323 = vadd.f32 %v4114, %v4322
        %v4324 = vpop.f32.mrf.mxu0
        %v4325 = vpop.f32.mrf.mxu0
        %v4326 = vadd.f32 %v4117, %v4325
        %v4327 = vpop.f32.mrf.mxu0
        %4328 = vmatprep.mubr.bf16.mxu0 0
        %4329 = vmatmul.mubr.bf16.gmra.mxu0 %v1088
        %v4330 = vpop.f32.mrf.mxu0
        %v4331 = vadd.f32 %v4122, %v4330
        %v4332 = vpop.f32.mrf.mxu0
        %v4333 = vpop.f32.mrf.mxu0
        %v4334 = vadd.f32 %v4125, %v4333
        %v4335 = vpop.f32.mrf.mxu0
        %4336 = vdwg.mxu0
        %v4338 = vshrl.u32 %v3288, 16
        %v4340 = vshll.u32 %v3288, 16
        %v4342 = vrot.slane %v4340, 1
        %v4343 = vor.u32 %v4338, %v4342
        %v4345 = vshll.u32 %v3306, 16
        %v4347 = vrot.slane %v4345, 1
        %v4348 = vsel %vm3308, %v4343, %v4347
        %v4352 = vrot.slane %v3288, 1
        %v4353 = vrot.slane %v3306, 1
        %v4354 = vsel %vm3549, %v4352, %v4353
        %v4356 = vld [vmem:[#allocation2 + $0xc0] sm:$0xf]
        %v4357 = vld [vmem:[#allocation2 + $0xc4] sm:$0xf]
        %v4358 = vld [vmem:[#allocation2 + $0xc8] sm:$0xf]
        %v4359 = vld [vmem:[#allocation2 + $0xcc] sm:$0xf]
        %v4360 = vld [vmem:[#allocation2 + $0xd0] sm:$0xf]
        %v4361 = vld [vmem:[#allocation2 + $0xd4] sm:$0xf]
        %v4362 = vld [vmem:[#allocation2 + $0xd8] sm:$0xf]
        %v4363 = vld [vmem:[#allocation2 + $0xdc] sm:$0xf]
        %v4364 = vld [vmem:[#allocation2 + $0xe0] sm:$0xf]
        %v4365 = vld [vmem:[#allocation2 + $0xe4] sm:$0xf]
        %v4366 = vld [vmem:[#allocation2 + $0xe8] sm:$0xf]
        %v4367 = vld [vmem:[#allocation2 + $0xec] sm:$0xf]
        %v4368 = vld [vmem:[#allocation2 + $0xf0] sm:$0xf]
        %v4369 = vld [vmem:[#allocation2 + $0xf4] sm:$0xf]
        %v4370 = vld [vmem:[#allocation2 + $0xf8] sm:$0xf]
        %v4371 = vld [vmem:[#allocation2 + $0xfc] sm:$0xf]
        %v4372 = vld [vmem:[#allocation2 + $0x100] sm:$0xf]
        %v4373 = vld [vmem:[#allocation2 + $0x104] sm:$0xf]
        %v4374 = vld [vmem:[#allocation2 + $0x108] sm:$0xf]
        %v4375 = vld [vmem:[#allocation2 + $0x10c] sm:$0xf]
        %v4376 = vld [vmem:[#allocation2 + $0x110] sm:$0xf]
        %v4377 = vld [vmem:[#allocation2 + $0x114] sm:$0xf]
        %v4378 = vld [vmem:[#allocation2 + $0x118] sm:$0xf]
        %v4379 = vld [vmem:[#allocation2 + $0x11c] sm:$0xf]
        %v4380 = vld [vmem:[#allocation2 + $0x120] sm:$0xf]
        %v4381 = vld [vmem:[#allocation2 + $0x124] sm:$0xf]
        %v4382 = vld [vmem:[#allocation2 + $0x128] sm:$0xf]
        %v4383 = vld [vmem:[#allocation2 + $0x12c] sm:$0xf]
        %v4384 = vld [vmem:[#allocation2 + $0x130] sm:$0xf]
        %v4385 = vld [vmem:[#allocation2 + $0x134] sm:$0xf]
        %v4386 = vld [vmem:[#allocation2 + $0x138] sm:$0xf]
        %v4387 = vld [vmem:[#allocation2 + $0x13c] sm:$0xf]
        %v4388 = vld [vmem:[#allocation2 + $0x140] sm:$0xf]
        %v4389 = vld [vmem:[#allocation2 + $0x144] sm:$0xf]
        %v4390 = vld [vmem:[#allocation2 + $0x148] sm:$0xf]
        %v4391 = vld [vmem:[#allocation2 + $0x14c] sm:$0xf]
        %v4392 = vld [vmem:[#allocation2 + $0x150] sm:$0xf]
        %v4393 = vld [vmem:[#allocation2 + $0x154] sm:$0xf]
        %v4394 = vld [vmem:[#allocation2 + $0x158] sm:$0xf]
        %v4395 = vld [vmem:[#allocation2 + $0x15c] sm:$0xf]
        %v4396 = vld [vmem:[#allocation2 + $0x160] sm:$0xf]
        %v4397 = vld [vmem:[#allocation2 + $0x164] sm:$0xf]
        %v4398 = vld [vmem:[#allocation2 + $0x168] sm:$0xf]
        %v4399 = vld [vmem:[#allocation2 + $0x16c] sm:$0xf]
        %v4400 = vld [vmem:[#allocation2 + $0x170] sm:$0xf]
        %v4401 = vld [vmem:[#allocation2 + $0x174] sm:$0xf]
        %v4402 = vld [vmem:[#allocation2 + $0x178] sm:$0xf]
        %v4403 = vld [vmem:[#allocation2 + $0x17c] sm:$0xf]
        %v4452 = vunpack.c.l.b16 %v4356
        %v4453 = vunpack.c.l.b16 %v4357
        %v4454 = vunpack.c.l.b16 %v4358
        %v4455 = vunpack.c.l.b16 %v4359
        %v4456 = vunpack.c.l.b16 %v4360
        %v4457 = vunpack.c.l.b16 %v4361
        %v4458 = vunpack.c.l.b16 %v4362
        %v4459 = vunpack.c.l.b16 %v4363
        %v4460 = vunpack.c.l.b16 %v4364
        %v4461 = vunpack.c.l.b16 %v4365
        %v4462 = vunpack.c.l.b16 %v4366
        %v4463 = vunpack.c.l.b16 %v4367
        %v4464 = vunpack.c.l.b16 %v4368
        %v4465 = vunpack.c.l.b16 %v4369
        %v4466 = vunpack.c.l.b16 %v4370
        %v4467 = vunpack.c.l.b16 %v4371
        %v4468 = vunpack.c.l.b16 %v4372
        %v4469 = vunpack.c.l.b16 %v4373
        %v4470 = vunpack.c.l.b16 %v4374
        %v4471 = vunpack.c.l.b16 %v4375
        %v4472 = vunpack.c.l.b16 %v4376
        %v4473 = vunpack.c.l.b16 %v4377
        %v4474 = vunpack.c.l.b16 %v4378
        %v4475 = vunpack.c.l.b16 %v4379
        %v4476 = vunpack.c.l.b16 %v4380
        %v4477 = vunpack.c.l.b16 %v4381
        %v4478 = vunpack.c.l.b16 %v4382
        %v4479 = vunpack.c.l.b16 %v4383
        %v4480 = vunpack.c.l.b16 %v4384
        %v4481 = vunpack.c.l.b16 %v4385
        %v4482 = vunpack.c.l.b16 %v4386
        %v4483 = vunpack.c.l.b16 %v4387
        %v4484 = vunpack.c.l.b16 %v4388
        %v4485 = vunpack.c.l.b16 %v4389
        %v4486 = vunpack.c.l.b16 %v4390
        %v4487 = vunpack.c.l.b16 %v4391
        %v4488 = vunpack.c.l.b16 %v4392
        %v4489 = vunpack.c.l.b16 %v4393
        %v4490 = vunpack.c.l.b16 %v4394
        %v4491 = vunpack.c.l.b16 %v4395
        %v4492 = vunpack.c.l.b16 %v4396
        %v4493 = vunpack.c.l.b16 %v4397
        %v4494 = vunpack.c.l.b16 %v4398
        %v4495 = vunpack.c.l.b16 %v4399
        %v4496 = vunpack.c.l.b16 %v4400
        %v4497 = vunpack.c.l.b16 %v4401
        %v4498 = vunpack.c.l.b16 %v4402
        %v4499 = vunpack.c.l.b16 %v4403
        %v4500 = vpack.c.b16 %v4453, %v4452
        %v4501 = vpack.c.b16 %v4455, %v4454
        %v4502 = vpack.c.b16 %v4457, %v4456
        %v4503 = vpack.c.b16 %v4459, %v4458
        %v4504 = vpack.c.b16 %v4461, %v4460
        %v4505 = vpack.c.b16 %v4463, %v4462
        %v4506 = vpack.c.b16 %v4465, %v4464
        %v4507 = vpack.c.b16 %v4467, %v4466
        %v4508 = vpack.c.b16 %v4469, %v4468
        %v4509 = vpack.c.b16 %v4471, %v4470
        %v4510 = vpack.c.b16 %v4473, %v4472
        %v4511 = vpack.c.b16 %v4475, %v4474
        %v4512 = vpack.c.b16 %v4477, %v4476
        %v4513 = vpack.c.b16 %v4479, %v4478
        %v4514 = vpack.c.b16 %v4481, %v4480
        %v4515 = vpack.c.b16 %v4483, %v4482
        %v4516 = vpack.c.b16 %v4485, %v4484
        %v4517 = vpack.c.b16 %v4487, %v4486
        %v4518 = vpack.c.b16 %v4489, %v4488
        %v4519 = vpack.c.b16 %v4491, %v4490
        %v4520 = vpack.c.b16 %v4493, %v4492
        %v4521 = vpack.c.b16 %v4495, %v4494
        %v4522 = vpack.c.b16 %v4497, %v4496
        %v4523 = vpack.c.b16 %v4499, %v4498
        %4548 = vmatprep.subr.bf16.mxu0 0
        %4549 = vmatpush1.bf16.msra.mxu0 %v4507
        %4550 = vmatprep.subr.bf16.mxu0 0
        %4551 = vmatpush1.bf16.msra.mxu0 %v4506
        %4552 = vmatprep.subr.bf16.mxu0 0
        %4553 = vmatpush1.bf16.msra.mxu0 %v4505
        %4554 = vmatprep.subr.bf16.mxu0 0
        %4555 = vmatpush1.bf16.msra.mxu0 %v4504
        %4556 = vmatprep.subr.bf16.mxu0 0
        %4557 = vmatpush1.bf16.msra.mxu0 %v4503
        %4558 = vmatprep.subr.bf16.mxu0 0
        %4559 = vmatpush1.bf16.msra.mxu0 %v4502
        %4560 = vmatprep.subr.bf16.mxu0 0
        %4561 = vmatpush1.bf16.msra.mxu0 %v4501
        %4562 = vmatprep.subr.bf16.mxu0 0
        %4563 = vmatpush1.bf16.msra.mxu0 %v4500
        %4564 = vmatprep.subr.bf16.mxu0 0
        %4565 = vmatpush2.bf16.msra.mxu0 %v4515
        %4566 = vmatprep.subr.bf16.mxu0 0
        %4567 = vmatpush2.bf16.msra.mxu0 %v4514
        %4568 = vmatprep.subr.bf16.mxu0 0
        %4569 = vmatpush2.bf16.msra.mxu0 %v4513
        %4570 = vmatprep.subr.bf16.mxu0 0
        %4571 = vmatpush2.bf16.msra.mxu0 %v4512
        %4572 = vmatprep.subr.bf16.mxu0 0
        %4573 = vmatpush2.bf16.msra.mxu0 %v4511
        %4574 = vmatprep.subr.bf16.mxu0 0
        %4575 = vmatpush2.bf16.msra.mxu0 %v4510
        %4576 = vmatprep.subr.bf16.mxu0 0
        %4577 = vmatpush2.bf16.msra.mxu0 %v4509
        %4578 = vmatprep.subr.bf16.mxu0 0
        %4579 = vmatpush2.bf16.msra.mxu0 %v4508
        %4580 = vmatprep.mubr.bf16.mxu0 %v3332
        %4581 = vmatmul.mubr.bf16.gmra.mxu0 %v3273
        %v4582 = vpop.f32.mrf.mxu0
        %v4583 = vadd.f32 0.0, %v4582
        %v4584 = vpop.f32.mrf.mxu0
        %v4585 = vpop.f32.mrf.mxu0
        %v4586 = vadd.f32 0.0, %v4585
        %v4587 = vpop.f32.mrf.mxu0
        %4588 = vmatprep.mubr.bf16.mxu0 %v3344
        %4589 = vmatmul.mubr.bf16.gmra.mxu0 %v3274
        %v4590 = vpop.f32.mrf.mxu0
        %v4591 = vadd.f32 0.0, %v4590
        %v4592 = vpop.f32.mrf.mxu0
        %v4593 = vpop.f32.mrf.mxu0
        %v4594 = vadd.f32 0.0, %v4593
        %v4595 = vpop.f32.mrf.mxu0
        %4596 = vmatprep.mubr.bf16.mxu0 %v3356
        %4597 = vmatmul.mubr.bf16.gmra.mxu0 %v3275
        %v4598 = vpop.f32.mrf.mxu0
        %v4599 = vadd.f32 0.0, %v4598
        %v4600 = vpop.f32.mrf.mxu0
        %v4601 = vpop.f32.mrf.mxu0
        %v4602 = vadd.f32 0.0, %v4601
        %v4603 = vpop.f32.mrf.mxu0
        %4604 = vmatprep.mubr.bf16.mxu0 %v3368
        %4605 = vmatmul.mubr.bf16.gmra.mxu0 %v3276
        %v4606 = vpop.f32.mrf.mxu0
        %v4607 = vadd.f32 0.0, %v4606
        %v4608 = vpop.f32.mrf.mxu0
        %v4609 = vpop.f32.mrf.mxu0
        %v4610 = vadd.f32 0.0, %v4609
        %v4611 = vpop.f32.mrf.mxu0
        %4612 = vmatprep.mubr.bf16.mxu0 %v3380
        %4613 = vmatmul.mubr.bf16.gmra.mxu0 %v3277
        %v4614 = vpop.f32.mrf.mxu0
        %v4615 = vadd.f32 0.0, %v4614
        %v4616 = vpop.f32.mrf.mxu0
        %v4617 = vpop.f32.mrf.mxu0
        %v4618 = vadd.f32 0.0, %v4617
        %v4619 = vpop.f32.mrf.mxu0
        %4620 = vmatprep.mubr.bf16.mxu0 %v3392
        %4621 = vmatmul.mubr.bf16.gmra.mxu0 %v3278
        %v4622 = vpop.f32.mrf.mxu0
        %v4623 = vadd.f32 0.0, %v4622
        %v4624 = vpop.f32.mrf.mxu0
        %v4625 = vpop.f32.mrf.mxu0
        %v4626 = vadd.f32 0.0, %v4625
        %v4627 = vpop.f32.mrf.mxu0
        %4628 = vmatprep.mubr.bf16.mxu0 %v3404
        %4629 = vmatmul.mubr.bf16.gmra.mxu0 %v3279
        %v4630 = vpop.f32.mrf.mxu0
        %v4631 = vadd.f32 0.0, %v4630
        %v4632 = vpop.f32.mrf.mxu0
        %v4633 = vpop.f32.mrf.mxu0
        %v4634 = vadd.f32 0.0, %v4633
        %v4635 = vpop.f32.mrf.mxu0
        %4636 = vmatprep.mubr.bf16.mxu0 %v3416
        %4637 = vmatmul.mubr.bf16.gmra.mxu0 %v3280
        %v4638 = vpop.f32.mrf.mxu0
        %v4639 = vadd.f32 0.0, %v4638
        %v4640 = vpop.f32.mrf.mxu0
        %v4641 = vpop.f32.mrf.mxu0
        %v4642 = vadd.f32 0.0, %v4641
        %v4643 = vpop.f32.mrf.mxu0
        %4644 = vmatprep.mubr.bf16.mxu0 %v3428
        %4645 = vmatmul.mubr.bf16.gmra.mxu0 %v3281
        %v4646 = vpop.f32.mrf.mxu0
        %v4647 = vadd.f32 0.0, %v4646
        %v4648 = vpop.f32.mrf.mxu0
        %v4649 = vpop.f32.mrf.mxu0
        %v4650 = vadd.f32 0.0, %v4649
        %v4651 = vpop.f32.mrf.mxu0
        %4652 = vmatprep.mubr.bf16.mxu0 %v3440
        %4653 = vmatmul.mubr.bf16.gmra.mxu0 %v3282
        %v4654 = vpop.f32.mrf.mxu0
        %v4655 = vadd.f32 0.0, %v4654
        %v4656 = vpop.f32.mrf.mxu0
        %v4657 = vpop.f32.mrf.mxu0
        %v4658 = vadd.f32 0.0, %v4657
        %v4659 = vpop.f32.mrf.mxu0
        %4660 = vmatprep.mubr.bf16.mxu0 %v3452
        %4661 = vmatmul.mubr.bf16.gmra.mxu0 %v3283
        %v4662 = vpop.f32.mrf.mxu0
        %v4663 = vadd.f32 0.0, %v4662
        %v4664 = vpop.f32.mrf.mxu0
        %v4665 = vpop.f32.mrf.mxu0
        %v4666 = vadd.f32 0.0, %v4665
        %v4667 = vpop.f32.mrf.mxu0
        %4668 = vmatprep.mubr.bf16.mxu0 %v3464
        %4669 = vmatmul.mubr.bf16.gmra.mxu0 %v3284
        %v4670 = vpop.f32.mrf.mxu0
        %v4671 = vadd.f32 0.0, %v4670
        %v4672 = vpop.f32.mrf.mxu0
        %v4673 = vpop.f32.mrf.mxu0
        %v4674 = vadd.f32 0.0, %v4673
        %v4675 = vpop.f32.mrf.mxu0
        %4676 = vmatprep.mubr.bf16.mxu0 %v3476
        %4677 = vmatmul.mubr.bf16.gmra.mxu0 %v3285
        %v4678 = vpop.f32.mrf.mxu0
        %v4679 = vadd.f32 0.0, %v4678
        %v4680 = vpop.f32.mrf.mxu0
        %v4681 = vpop.f32.mrf.mxu0
        %v4682 = vadd.f32 0.0, %v4681
        %v4683 = vpop.f32.mrf.mxu0
        %4684 = vmatprep.mubr.bf16.mxu0 %v3488
        %4685 = vmatmul.mubr.bf16.gmra.mxu0 %v3286
        %v4686 = vpop.f32.mrf.mxu0
        %v4687 = vadd.f32 0.0, %v4686
        %v4688 = vpop.f32.mrf.mxu0
        %v4689 = vpop.f32.mrf.mxu0
        %v4690 = vadd.f32 0.0, %v4689
        %v4691 = vpop.f32.mrf.mxu0
        %4692 = vmatprep.mubr.bf16.mxu0 %v3500
        %4693 = vmatmul.mubr.bf16.gmra.mxu0 %v3287
        %v4694 = vpop.f32.mrf.mxu0
        %v4695 = vadd.f32 0.0, %v4694
        %v4696 = vpop.f32.mrf.mxu0
        %v4697 = vpop.f32.mrf.mxu0
        %v4698 = vadd.f32 0.0, %v4697
        %v4699 = vpop.f32.mrf.mxu0
        %4700 = vmatprep.mubr.bf16.mxu0 %v4348
        %4701 = vmatmul.mubr.bf16.gmra.mxu0 %v3288
        %v4702 = vpop.f32.mrf.mxu0
        %v4703 = vadd.f32 0.0, %v4702
        %v4704 = vpop.f32.mrf.mxu0
        %v4705 = vpop.f32.mrf.mxu0
        %v4706 = vadd.f32 0.0, %v4705
        %v4707 = vpop.f32.mrf.mxu0
        %4708 = vdwg.mxu0
        %4709 = vmatprep.subr.bf16.mxu0 0
        %4710 = vmatpush1.bf16.msra.mxu0 %v4523
        %4711 = vmatprep.subr.bf16.mxu0 0
        %4712 = vmatpush1.bf16.msra.mxu0 %v4522
        %4713 = vmatprep.subr.bf16.mxu0 0
        %4714 = vmatpush1.bf16.msra.mxu0 %v4521
        %4715 = vmatprep.subr.bf16.mxu0 0
        %4716 = vmatpush1.bf16.msra.mxu0 %v4520
        %4717 = vmatprep.subr.bf16.mxu0 0
        %4718 = vmatpush1.bf16.msra.mxu0 %v4519
        %4719 = vmatprep.subr.bf16.mxu0 0
        %4720 = vmatpush1.bf16.msra.mxu0 %v4518
        %4721 = vmatprep.subr.bf16.mxu0 0
        %4722 = vmatpush1.bf16.msra.mxu0 %v4517
        %4723 = vmatprep.subr.bf16.mxu0 0
        %4724 = vmatpush1.bf16.msra.mxu0 %v4516
        %4725 = vmatprep.subr.bf16.mxu0 0
        %4726 = vmatpush2.bf16.msra.mxu0 0
        %4727 = vmatprep.subr.bf16.mxu0 0
        %4728 = vmatpush2.bf16.msra.mxu0 0
        %4729 = vmatprep.subr.bf16.mxu0 0
        %4730 = vmatpush2.bf16.msra.mxu0 0
        %4731 = vmatprep.subr.bf16.mxu0 0
        %4732 = vmatpush2.bf16.msra.mxu0 0
        %4733 = vmatprep.subr.bf16.mxu0 0
        %4734 = vmatpush2.bf16.msra.mxu0 0
        %4735 = vmatprep.subr.bf16.mxu0 0
        %4736 = vmatpush2.bf16.msra.mxu0 0
        %4737 = vmatprep.subr.bf16.mxu0 0
        %4738 = vmatpush2.bf16.msra.mxu0 0
        %4739 = vmatprep.subr.bf16.mxu0 0
        %4740 = vmatpush2.bf16.msra.mxu0 0
        %4741 = vmatprep.mubr.bf16.mxu0 0
        %4742 = vmatmul.mubr.bf16.gmra.mxu0 %v3555
        %v4743 = vpop.f32.mrf.mxu0
        %v4744 = vadd.f32 %v4583, %v4743
        %v4745 = vpop.f32.mrf.mxu0
        %v4746 = vpop.f32.mrf.mxu0
        %v4747 = vadd.f32 %v4586, %v4746
        %v4748 = vpop.f32.mrf.mxu0
        %4749 = vmatprep.mubr.bf16.mxu0 0
        %4750 = vmatmul.mubr.bf16.gmra.mxu0 %v3558
        %v4751 = vpop.f32.mrf.mxu0
        %v4752 = vadd.f32 %v4591, %v4751
        %v4753 = vpop.f32.mrf.mxu0
        %v4754 = vpop.f32.mrf.mxu0
        %v4755 = vadd.f32 %v4594, %v4754
        %v4756 = vpop.f32.mrf.mxu0
        %4757 = vmatprep.mubr.bf16.mxu0 0
        %4758 = vmatmul.mubr.bf16.gmra.mxu0 %v3561
        %v4759 = vpop.f32.mrf.mxu0
        %v4760 = vadd.f32 %v4599, %v4759
        %v4761 = vpop.f32.mrf.mxu0
        %v4762 = vpop.f32.mrf.mxu0
        %v4763 = vadd.f32 %v4602, %v4762
        %v4764 = vpop.f32.mrf.mxu0
        %4765 = vmatprep.mubr.bf16.mxu0 0
        %4766 = vmatmul.mubr.bf16.gmra.mxu0 %v3564
        %v4767 = vpop.f32.mrf.mxu0
        %v4768 = vadd.f32 %v4607, %v4767
        %v4769 = vpop.f32.mrf.mxu0
        %v4770 = vpop.f32.mrf.mxu0
        %v4771 = vadd.f32 %v4610, %v4770
        %v4772 = vpop.f32.mrf.mxu0
        %4773 = vmatprep.mubr.bf16.mxu0 0
        %4774 = vmatmul.mubr.bf16.gmra.mxu0 %v3567
        %v4775 = vpop.f32.mrf.mxu0
        %v4776 = vadd.f32 %v4615, %v4775
        %v4777 = vpop.f32.mrf.mxu0
        %v4778 = vpop.f32.mrf.mxu0
        %v4779 = vadd.f32 %v4618, %v4778
        %v4780 = vpop.f32.mrf.mxu0
        %4781 = vmatprep.mubr.bf16.mxu0 0
        %4782 = vmatmul.mubr.bf16.gmra.mxu0 %v3570
        %v4783 = vpop.f32.mrf.mxu0
        %v4784 = vadd.f32 %v4623, %v4783
        %v4785 = vpop.f32.mrf.mxu0
        %v4786 = vpop.f32.mrf.mxu0
        %v4787 = vadd.f32 %v4626, %v4786
        %v4788 = vpop.f32.mrf.mxu0
        %4789 = vmatprep.mubr.bf16.mxu0 0
        %4790 = vmatmul.mubr.bf16.gmra.mxu0 %v3573
        %v4791 = vpop.f32.mrf.mxu0
        %v4792 = vadd.f32 %v4631, %v4791
        %v4793 = vpop.f32.mrf.mxu0
        %v4794 = vpop.f32.mrf.mxu0
        %v4795 = vadd.f32 %v4634, %v4794
        %v4796 = vpop.f32.mrf.mxu0
        %4797 = vmatprep.mubr.bf16.mxu0 0
        %4798 = vmatmul.mubr.bf16.gmra.mxu0 %v3576
        %v4799 = vpop.f32.mrf.mxu0
        %v4800 = vadd.f32 %v4639, %v4799
        %v4801 = vpop.f32.mrf.mxu0
        %v4802 = vpop.f32.mrf.mxu0
        %v4803 = vadd.f32 %v4642, %v4802
        %v4804 = vpop.f32.mrf.mxu0
        %4805 = vmatprep.mubr.bf16.mxu0 0
        %4806 = vmatmul.mubr.bf16.gmra.mxu0 %v3579
        %v4807 = vpop.f32.mrf.mxu0
        %v4808 = vadd.f32 %v4647, %v4807
        %v4809 = vpop.f32.mrf.mxu0
        %v4810 = vpop.f32.mrf.mxu0
        %v4811 = vadd.f32 %v4650, %v4810
        %v4812 = vpop.f32.mrf.mxu0
        %4813 = vmatprep.mubr.bf16.mxu0 0
        %4814 = vmatmul.mubr.bf16.gmra.mxu0 %v3582
        %v4815 = vpop.f32.mrf.mxu0
        %v4816 = vadd.f32 %v4655, %v4815
        %v4817 = vpop.f32.mrf.mxu0
        %v4818 = vpop.f32.mrf.mxu0
        %v4819 = vadd.f32 %v4658, %v4818
        %v4820 = vpop.f32.mrf.mxu0
        %4821 = vmatprep.mubr.bf16.mxu0 0
        %4822 = vmatmul.mubr.bf16.gmra.mxu0 %v3585
        %v4823 = vpop.f32.mrf.mxu0
        %v4824 = vadd.f32 %v4663, %v4823
        %v4825 = vpop.f32.mrf.mxu0
        %v4826 = vpop.f32.mrf.mxu0
        %v4827 = vadd.f32 %v4666, %v4826
        %v4828 = vpop.f32.mrf.mxu0
        %4829 = vmatprep.mubr.bf16.mxu0 0
        %4830 = vmatmul.mubr.bf16.gmra.mxu0 %v3588
        %v4831 = vpop.f32.mrf.mxu0
        %v4832 = vadd.f32 %v4671, %v4831
        %v4833 = vpop.f32.mrf.mxu0
        %v4834 = vpop.f32.mrf.mxu0
        %v4835 = vadd.f32 %v4674, %v4834
        %v4836 = vpop.f32.mrf.mxu0
        %4837 = vmatprep.mubr.bf16.mxu0 0
        %4838 = vmatmul.mubr.bf16.gmra.mxu0 %v3591
        %v4839 = vpop.f32.mrf.mxu0
        %v4840 = vadd.f32 %v4679, %v4839
        %v4841 = vpop.f32.mrf.mxu0
        %v4842 = vpop.f32.mrf.mxu0
        %v4843 = vadd.f32 %v4682, %v4842
        %v4844 = vpop.f32.mrf.mxu0
        %4845 = vmatprep.mubr.bf16.mxu0 0
        %4846 = vmatmul.mubr.bf16.gmra.mxu0 %v3594
        %v4847 = vpop.f32.mrf.mxu0
        %v4848 = vadd.f32 %v4687, %v4847
        %v4849 = vpop.f32.mrf.mxu0
        %v4850 = vpop.f32.mrf.mxu0
        %v4851 = vadd.f32 %v4690, %v4850
        %v4852 = vpop.f32.mrf.mxu0
        %4853 = vmatprep.mubr.bf16.mxu0 0
        %4854 = vmatmul.mubr.bf16.gmra.mxu0 %v3597
        %v4855 = vpop.f32.mrf.mxu0
        %v4856 = vadd.f32 %v4695, %v4855
        %v4857 = vpop.f32.mrf.mxu0
        %v4858 = vpop.f32.mrf.mxu0
        %v4859 = vadd.f32 %v4698, %v4858
        %v4860 = vpop.f32.mrf.mxu0
        %4861 = vmatprep.mubr.bf16.mxu0 0
        %4862 = vmatmul.mubr.bf16.gmra.mxu0 %v4354
        %v4863 = vpop.f32.mrf.mxu0
        %v4864 = vadd.f32 %v4703, %v4863
        %v4865 = vpop.f32.mrf.mxu0
        %v4866 = vpop.f32.mrf.mxu0
        %v4867 = vadd.f32 %v4706, %v4866
        %v4868 = vpop.f32.mrf.mxu0
        %4869 = vdwg.mxu0
        %v4870 = vadd.f32 %v4211, %v4744
        %v4871 = vadd.f32 %v4214, %v4747
        %v4872 = vadd.f32 %v4219, %v4752
        %v4873 = vadd.f32 %v4222, %v4755
        %v4874 = vadd.f32 %v4227, %v4760
        %v4875 = vadd.f32 %v4230, %v4763
        %v4876 = vadd.f32 %v4235, %v4768
        %v4877 = vadd.f32 %v4238, %v4771
        %v4878 = vadd.f32 %v4243, %v4776
        %v4879 = vadd.f32 %v4246, %v4779
        %v4880 = vadd.f32 %v4251, %v4784
        %v4881 = vadd.f32 %v4254, %v4787
        %v4882 = vadd.f32 %v4259, %v4792
        %v4883 = vadd.f32 %v4262, %v4795
        %v4884 = vadd.f32 %v4267, %v4800
        %v4885 = vadd.f32 %v4270, %v4803
        %v4886 = vadd.f32 %v4275, %v4808
        %v4887 = vadd.f32 %v4278, %v4811
        %v4888 = vadd.f32 %v4283, %v4816
        %v4889 = vadd.f32 %v4286, %v4819
        %v4890 = vadd.f32 %v4291, %v4824
        %v4891 = vadd.f32 %v4294, %v4827
        %v4892 = vadd.f32 %v4299, %v4832
        %v4893 = vadd.f32 %v4302, %v4835
        %v4894 = vadd.f32 %v4307, %v4840
        %v4895 = vadd.f32 %v4310, %v4843
        %v4896 = vadd.f32 %v4315, %v4848
        %v4897 = vadd.f32 %v4318, %v4851
        %v4898 = vadd.f32 %v4323, %v4856
        %v4899 = vadd.f32 %v4326, %v4859
        %v4900 = vadd.f32 %v4331, %v4864
        %v4901 = vadd.f32 %v4334, %v4867
        %v4903 = vshrl.u32 %v3289, 16
        %v4905 = vshll.u32 %v3289, 16
        %v4907 = vrot.slane %v4905, 1
        %v4908 = vor.u32 %v4903, %v4907
        %v4910 = vshll.u32 %v3307, 16
        %v4912 = vrot.slane %v4910, 1
        %v4913 = vsel %vm3308, %v4908, %v4912
        %v4917 = vrot.slane %v3289, 1
        %v4918 = vrot.slane %v3307, 1
        %v4919 = vsel %vm3549, %v4917, %v4918
        %v4921 = vld [vmem:[#allocation2 + $0x180] sm:$0xf]
        %v4922 = vld [vmem:[#allocation2 + $0x184] sm:$0xf]
        %v4923 = vld [vmem:[#allocation2 + $0x188] sm:$0xf]
        %v4924 = vld [vmem:[#allocation2 + $0x18c] sm:$0xf]
        %v4925 = vld [vmem:[#allocation2 + $0x190] sm:$0xf]
        %v4926 = vld [vmem:[#allocation2 + $0x194] sm:$0xf]
        %v4927 = vld [vmem:[#allocation2 + $0x198] sm:$0xf]
        %v4928 = vld [vmem:[#allocation2 + $0x19c] sm:$0xf]
        %v4929 = vld [vmem:[#allocation2 + $0x1a0] sm:$0xf]
        %v4930 = vld [vmem:[#allocation2 + $0x1a4] sm:$0xf]
        %v4931 = vld [vmem:[#allocation2 + $0x1a8] sm:$0xf]
        %v4932 = vld [vmem:[#allocation2 + $0x1ac] sm:$0xf]
        %v4933 = vld [vmem:[#allocation2 + $0x1b0] sm:$0xf]
        %v4934 = vld [vmem:[#allocation2 + $0x1b4] sm:$0xf]
        %v4935 = vld [vmem:[#allocation2 + $0x1b8] sm:$0xf]
        %v4936 = vld [vmem:[#allocation2 + $0x1bc] sm:$0xf]
        %v4937 = vld [vmem:[#allocation2 + $0x1c0] sm:$0xf]
        %v4938 = vld [vmem:[#allocation2 + $0x1c4] sm:$0xf]
        %v4939 = vld [vmem:[#allocation2 + $0x1c8] sm:$0xf]
        %v4940 = vld [vmem:[#allocation2 + $0x1cc] sm:$0xf]
        %v4941 = vld [vmem:[#allocation2 + $0x1d0] sm:$0xf]
        %v4942 = vld [vmem:[#allocation2 + $0x1d4] sm:$0xf]
        %v4943 = vld [vmem:[#allocation2 + $0x1d8] sm:$0xf]
        %v4944 = vld [vmem:[#allocation2 + $0x1dc] sm:$0xf]
        %v4945 = vld [vmem:[#allocation2 + $0x1e0] sm:$0xf]
        %v4946 = vld [vmem:[#allocation2 + $0x1e4] sm:$0xf]
        %v4947 = vld [vmem:[#allocation2 + $0x1e8] sm:$0xf]
        %v4948 = vld [vmem:[#allocation2 + $0x1ec] sm:$0xf]
        %v4949 = vld [vmem:[#allocation2 + $0x1f0] sm:$0xf]
        %v4950 = vld [vmem:[#allocation2 + $0x1f4] sm:$0xf]
        %v4951 = vld [vmem:[#allocation2 + $0x1f8] sm:$0xf]
        %v4952 = vld [vmem:[#allocation2 + $0x1fc] sm:$0xf]
        %v4953 = vld [vmem:[#allocation2 + $0x200] sm:$0xf]
        %v4954 = vld [vmem:[#allocation2 + $0x204] sm:$0xf]
        %v4955 = vld [vmem:[#allocation2 + $0x208] sm:$0xf]
        %v4956 = vld [vmem:[#allocation2 + $0x20c] sm:$0xf]
        %v4957 = vld [vmem:[#allocation2 + $0x210] sm:$0xf]
        %v4958 = vld [vmem:[#allocation2 + $0x214] sm:$0xf]
        %v4959 = vld [vmem:[#allocation2 + $0x218] sm:$0xf]
        %v4960 = vld [vmem:[#allocation2 + $0x21c] sm:$0xf]
        %v4961 = vld [vmem:[#allocation2 + $0x220] sm:$0xf]
        %v4962 = vld [vmem:[#allocation2 + $0x224] sm:$0xf]
        %v4963 = vld [vmem:[#allocation2 + $0x228] sm:$0xf]
        %v4964 = vld [vmem:[#allocation2 + $0x22c] sm:$0xf]
        %v4965 = vld [vmem:[#allocation2 + $0x230] sm:$0xf]
        %v4966 = vld [vmem:[#allocation2 + $0x234] sm:$0xf]
        %v4967 = vld [vmem:[#allocation2 + $0x238] sm:$0xf]
        %v4968 = vld [vmem:[#allocation2 + $0x23c] sm:$0xf]
        %v5017 = vunpack.c.l.b16 %v4921
        %v5018 = vunpack.c.l.b16 %v4922
        %v5019 = vunpack.c.l.b16 %v4923
        %v5020 = vunpack.c.l.b16 %v4924
        %v5021 = vunpack.c.l.b16 %v4925
        %v5022 = vunpack.c.l.b16 %v4926
        %v5023 = vunpack.c.l.b16 %v4927
        %v5024 = vunpack.c.l.b16 %v4928
        %v5025 = vunpack.c.l.b16 %v4929
        %v5026 = vunpack.c.l.b16 %v4930
        %v5027 = vunpack.c.l.b16 %v4931
        %v5028 = vunpack.c.l.b16 %v4932
        %v5029 = vunpack.c.l.b16 %v4933
        %v5030 = vunpack.c.l.b16 %v4934
        %v5031 = vunpack.c.l.b16 %v4935
        %v5032 = vunpack.c.l.b16 %v4936
        %v5033 = vunpack.c.l.b16 %v4937
        %v5034 = vunpack.c.l.b16 %v4938
        %v5035 = vunpack.c.l.b16 %v4939
        %v5036 = vunpack.c.l.b16 %v4940
        %v5037 = vunpack.c.l.b16 %v4941
        %v5038 = vunpack.c.l.b16 %v4942
        %v5039 = vunpack.c.l.b16 %v4943
        %v5040 = vunpack.c.l.b16 %v4944
        %v5041 = vunpack.c.l.b16 %v4945
        %v5042 = vunpack.c.l.b16 %v4946
        %v5043 = vunpack.c.l.b16 %v4947
        %v5044 = vunpack.c.l.b16 %v4948
        %v5045 = vunpack.c.l.b16 %v4949
        %v5046 = vunpack.c.l.b16 %v4950
        %v5047 = vunpack.c.l.b16 %v4951
        %v5048 = vunpack.c.l.b16 %v4952
        %v5049 = vunpack.c.l.b16 %v4953
        %v5050 = vunpack.c.l.b16 %v4954
        %v5051 = vunpack.c.l.b16 %v4955
        %v5052 = vunpack.c.l.b16 %v4956
        %v5053 = vunpack.c.l.b16 %v4957
        %v5054 = vunpack.c.l.b16 %v4958
        %v5055 = vunpack.c.l.b16 %v4959
        %v5056 = vunpack.c.l.b16 %v4960
        %v5057 = vunpack.c.l.b16 %v4961
        %v5058 = vunpack.c.l.b16 %v4962
        %v5059 = vunpack.c.l.b16 %v4963
        %v5060 = vunpack.c.l.b16 %v4964
        %v5061 = vunpack.c.l.b16 %v4965
        %v5062 = vunpack.c.l.b16 %v4966
        %v5063 = vunpack.c.l.b16 %v4967
        %v5064 = vunpack.c.l.b16 %v4968
        %v5065 = vpack.c.b16 %v5018, %v5017
        %v5066 = vpack.c.b16 %v5020, %v5019
        %v5067 = vpack.c.b16 %v5022, %v5021
        %v5068 = vpack.c.b16 %v5024, %v5023
        %v5069 = vpack.c.b16 %v5026, %v5025
        %v5070 = vpack.c.b16 %v5028, %v5027
        %v5071 = vpack.c.b16 %v5030, %v5029
        %v5072 = vpack.c.b16 %v5032, %v5031
        %v5073 = vpack.c.b16 %v5034, %v5033
        %v5074 = vpack.c.b16 %v5036, %v5035
        %v5075 = vpack.c.b16 %v5038, %v5037
        %v5076 = vpack.c.b16 %v5040, %v5039
        %v5077 = vpack.c.b16 %v5042, %v5041
        %v5078 = vpack.c.b16 %v5044, %v5043
        %v5079 = vpack.c.b16 %v5046, %v5045
        %v5080 = vpack.c.b16 %v5048, %v5047
        %v5081 = vpack.c.b16 %v5050, %v5049
        %v5082 = vpack.c.b16 %v5052, %v5051
        %v5083 = vpack.c.b16 %v5054, %v5053
        %v5084 = vpack.c.b16 %v5056, %v5055
        %v5085 = vpack.c.b16 %v5058, %v5057
        %v5086 = vpack.c.b16 %v5060, %v5059
        %v5087 = vpack.c.b16 %v5062, %v5061
        %v5088 = vpack.c.b16 %v5064, %v5063
        %5113 = vmatprep.subr.bf16.mxu0 0
        %5114 = vmatpush1.bf16.msra.mxu0 %v5072
        %5115 = vmatprep.subr.bf16.mxu0 0
        %5116 = vmatpush1.bf16.msra.mxu0 %v5071
        %5117 = vmatprep.subr.bf16.mxu0 0
        %5118 = vmatpush1.bf16.msra.mxu0 %v5070
        %5119 = vmatprep.subr.bf16.mxu0 0
        %5120 = vmatpush1.bf16.msra.mxu0 %v5069
        %5121 = vmatprep.subr.bf16.mxu0 0
        %5122 = vmatpush1.bf16.msra.mxu0 %v5068
        %5123 = vmatprep.subr.bf16.mxu0 0
        %5124 = vmatpush1.bf16.msra.mxu0 %v5067
        %5125 = vmatprep.subr.bf16.mxu0 0
        %5126 = vmatpush1.bf16.msra.mxu0 %v5066
        %5127 = vmatprep.subr.bf16.mxu0 0
        %5128 = vmatpush1.bf16.msra.mxu0 %v5065
        %5129 = vmatprep.subr.bf16.mxu0 0
        %5130 = vmatpush2.bf16.msra.mxu0 %v5080
        %5131 = vmatprep.subr.bf16.mxu0 0
        %5132 = vmatpush2.bf16.msra.mxu0 %v5079
        %5133 = vmatprep.subr.bf16.mxu0 0
        %5134 = vmatpush2.bf16.msra.mxu0 %v5078
        %5135 = vmatprep.subr.bf16.mxu0 0
        %5136 = vmatpush2.bf16.msra.mxu0 %v5077
        %5137 = vmatprep.subr.bf16.mxu0 0
        %5138 = vmatpush2.bf16.msra.mxu0 %v5076
        %5139 = vmatprep.subr.bf16.mxu0 0
        %5140 = vmatpush2.bf16.msra.mxu0 %v5075
        %5141 = vmatprep.subr.bf16.mxu0 0
        %5142 = vmatpush2.bf16.msra.mxu0 %v5074
        %5143 = vmatprep.subr.bf16.mxu0 0
        %5144 = vmatpush2.bf16.msra.mxu0 %v5073
        %5145 = vmatprep.mubr.bf16.mxu0 %v3344
        %5146 = vmatmul.mubr.bf16.gmra.mxu0 %v3274
        %v5147 = vpop.f32.mrf.mxu0
        %v5148 = vadd.f32 0.0, %v5147
        %v5149 = vpop.f32.mrf.mxu0
        %v5150 = vpop.f32.mrf.mxu0
        %v5151 = vadd.f32 0.0, %v5150
        %v5152 = vpop.f32.mrf.mxu0
        %5153 = vmatprep.mubr.bf16.mxu0 %v3356
        %5154 = vmatmul.mubr.bf16.gmra.mxu0 %v3275
        %v5155 = vpop.f32.mrf.mxu0
        %v5156 = vadd.f32 0.0, %v5155
        %v5157 = vpop.f32.mrf.mxu0
        %v5158 = vpop.f32.mrf.mxu0
        %v5159 = vadd.f32 0.0, %v5158
        %v5160 = vpop.f32.mrf.mxu0
        %5161 = vmatprep.mubr.bf16.mxu0 %v3368
        %5162 = vmatmul.mubr.bf16.gmra.mxu0 %v3276
        %v5163 = vpop.f32.mrf.mxu0
        %v5164 = vadd.f32 0.0, %v5163
        %v5165 = vpop.f32.mrf.mxu0
        %v5166 = vpop.f32.mrf.mxu0
        %v5167 = vadd.f32 0.0, %v5166
        %v5168 = vpop.f32.mrf.mxu0
        %5169 = vmatprep.mubr.bf16.mxu0 %v3380
        %5170 = vmatmul.mubr.bf16.gmra.mxu0 %v3277
        %v5171 = vpop.f32.mrf.mxu0
        %v5172 = vadd.f32 0.0, %v5171
        %v5173 = vpop.f32.mrf.mxu0
        %v5174 = vpop.f32.mrf.mxu0
        %v5175 = vadd.f32 0.0, %v5174
        %v5176 = vpop.f32.mrf.mxu0
        %5177 = vmatprep.mubr.bf16.mxu0 %v3392
        %5178 = vmatmul.mubr.bf16.gmra.mxu0 %v3278
        %v5179 = vpop.f32.mrf.mxu0
        %v5180 = vadd.f32 0.0, %v5179
        %v5181 = vpop.f32.mrf.mxu0
        %v5182 = vpop.f32.mrf.mxu0
        %v5183 = vadd.f32 0.0, %v5182
        %v5184 = vpop.f32.mrf.mxu0
        %5185 = vmatprep.mubr.bf16.mxu0 %v3404
        %5186 = vmatmul.mubr.bf16.gmra.mxu0 %v3279
        %v5187 = vpop.f32.mrf.mxu0
        %v5188 = vadd.f32 0.0, %v5187
        %v5189 = vpop.f32.mrf.mxu0
        %v5190 = vpop.f32.mrf.mxu0
        %v5191 = vadd.f32 0.0, %v5190
        %v5192 = vpop.f32.mrf.mxu0
        %5193 = vmatprep.mubr.bf16.mxu0 %v3416
        %5194 = vmatmul.mubr.bf16.gmra.mxu0 %v3280
        %v5195 = vpop.f32.mrf.mxu0
        %v5196 = vadd.f32 0.0, %v5195
        %v5197 = vpop.f32.mrf.mxu0
        %v5198 = vpop.f32.mrf.mxu0
        %v5199 = vadd.f32 0.0, %v5198
        %v5200 = vpop.f32.mrf.mxu0
        %5201 = vmatprep.mubr.bf16.mxu0 %v3428
        %5202 = vmatmul.mubr.bf16.gmra.mxu0 %v3281
        %v5203 = vpop.f32.mrf.mxu0
        %v5204 = vadd.f32 0.0, %v5203
        %v5205 = vpop.f32.mrf.mxu0
        %v5206 = vpop.f32.mrf.mxu0
        %v5207 = vadd.f32 0.0, %v5206
        %v5208 = vpop.f32.mrf.mxu0
        %5209 = vmatprep.mubr.bf16.mxu0 %v3440
        %5210 = vmatmul.mubr.bf16.gmra.mxu0 %v3282
        %v5211 = vpop.f32.mrf.mxu0
        %v5212 = vadd.f32 0.0, %v5211
        %v5213 = vpop.f32.mrf.mxu0
        %v5214 = vpop.f32.mrf.mxu0
        %v5215 = vadd.f32 0.0, %v5214
        %v5216 = vpop.f32.mrf.mxu0
        %5217 = vmatprep.mubr.bf16.mxu0 %v3452
        %5218 = vmatmul.mubr.bf16.gmra.mxu0 %v3283
        %v5219 = vpop.f32.mrf.mxu0
        %v5220 = vadd.f32 0.0, %v5219
        %v5221 = vpop.f32.mrf.mxu0
        %v5222 = vpop.f32.mrf.mxu0
        %v5223 = vadd.f32 0.0, %v5222
        %v5224 = vpop.f32.mrf.mxu0
        %5225 = vmatprep.mubr.bf16.mxu0 %v3464
        %5226 = vmatmul.mubr.bf16.gmra.mxu0 %v3284
        %v5227 = vpop.f32.mrf.mxu0
        %v5228 = vadd.f32 0.0, %v5227
        %v5229 = vpop.f32.mrf.mxu0
        %v5230 = vpop.f32.mrf.mxu0
        %v5231 = vadd.f32 0.0, %v5230
        %v5232 = vpop.f32.mrf.mxu0
        %5233 = vmatprep.mubr.bf16.mxu0 %v3476
        %5234 = vmatmul.mubr.bf16.gmra.mxu0 %v3285
        %v5235 = vpop.f32.mrf.mxu0
        %v5236 = vadd.f32 0.0, %v5235
        %v5237 = vpop.f32.mrf.mxu0
        %v5238 = vpop.f32.mrf.mxu0
        %v5239 = vadd.f32 0.0, %v5238
        %v5240 = vpop.f32.mrf.mxu0
        %5241 = vmatprep.mubr.bf16.mxu0 %v3488
        %5242 = vmatmul.mubr.bf16.gmra.mxu0 %v3286
        %v5243 = vpop.f32.mrf.mxu0
        %v5244 = vadd.f32 0.0, %v5243
        %v5245 = vpop.f32.mrf.mxu0
        %v5246 = vpop.f32.mrf.mxu0
        %v5247 = vadd.f32 0.0, %v5246
        %v5248 = vpop.f32.mrf.mxu0
        %5249 = vmatprep.mubr.bf16.mxu0 %v3500
        %5250 = vmatmul.mubr.bf16.gmra.mxu0 %v3287
        %v5251 = vpop.f32.mrf.mxu0
        %v5252 = vadd.f32 0.0, %v5251
        %v5253 = vpop.f32.mrf.mxu0
        %v5254 = vpop.f32.mrf.mxu0
        %v5255 = vadd.f32 0.0, %v5254
        %v5256 = vpop.f32.mrf.mxu0
        %5257 = vmatprep.mubr.bf16.mxu0 %v4348
        %5258 = vmatmul.mubr.bf16.gmra.mxu0 %v3288
        %v5259 = vpop.f32.mrf.mxu0
        %v5260 = vadd.f32 0.0, %v5259
        %v5261 = vpop.f32.mrf.mxu0
        %v5262 = vpop.f32.mrf.mxu0
        %v5263 = vadd.f32 0.0, %v5262
        %v5264 = vpop.f32.mrf.mxu0
        %5265 = vmatprep.mubr.bf16.mxu0 %v4913
        %5266 = vmatmul.mubr.bf16.gmra.mxu0 %v3289
        %v5267 = vpop.f32.mrf.mxu0
        %v5268 = vadd.f32 0.0, %v5267
        %v5269 = vpop.f32.mrf.mxu0
        %v5270 = vpop.f32.mrf.mxu0
        %v5271 = vadd.f32 0.0, %v5270
        %v5272 = vpop.f32.mrf.mxu0
        %5273 = vdwg.mxu0
        %5274 = vmatprep.subr.bf16.mxu0 0
        %5275 = vmatpush1.bf16.msra.mxu0 %v5088
        %5276 = vmatprep.subr.bf16.mxu0 0
        %5277 = vmatpush1.bf16.msra.mxu0 %v5087
        %5278 = vmatprep.subr.bf16.mxu0 0
        %5279 = vmatpush1.bf16.msra.mxu0 %v5086
        %5280 = vmatprep.subr.bf16.mxu0 0
        %5281 = vmatpush1.bf16.msra.mxu0 %v5085
        %5282 = vmatprep.subr.bf16.mxu0 0
        %5283 = vmatpush1.bf16.msra.mxu0 %v5084
        %5284 = vmatprep.subr.bf16.mxu0 0
        %5285 = vmatpush1.bf16.msra.mxu0 %v5083
        %5286 = vmatprep.subr.bf16.mxu0 0
        %5287 = vmatpush1.bf16.msra.mxu0 %v5082
        %5288 = vmatprep.subr.bf16.mxu0 0
        %5289 = vmatpush1.bf16.msra.mxu0 %v5081
        %5290 = vmatprep.subr.bf16.mxu0 0
        %5291 = vmatpush2.bf16.msra.mxu0 0
        %5292 = vmatprep.subr.bf16.mxu0 0
        %5293 = vmatpush2.bf16.msra.mxu0 0
        %5294 = vmatprep.subr.bf16.mxu0 0
        %5295 = vmatpush2.bf16.msra.mxu0 0
        %5296 = vmatprep.subr.bf16.mxu0 0
        %5297 = vmatpush2.bf16.msra.mxu0 0
        %5298 = vmatprep.subr.bf16.mxu0 0
        %5299 = vmatpush2.bf16.msra.mxu0 0
        %5300 = vmatprep.subr.bf16.mxu0 0
        %5301 = vmatpush2.bf16.msra.mxu0 0
        %5302 = vmatprep.subr.bf16.mxu0 0
        %5303 = vmatpush2.bf16.msra.mxu0 0
        %5304 = vmatprep.subr.bf16.mxu0 0
        %5305 = vmatpush2.bf16.msra.mxu0 0
        %5306 = vmatprep.mubr.bf16.mxu0 0
        %5307 = vmatmul.mubr.bf16.gmra.mxu0 %v3558
        %v5308 = vpop.f32.mrf.mxu0
        %v5309 = vadd.f32 %v5148, %v5308
        %v5310 = vpop.f32.mrf.mxu0
        %v5311 = vpop.f32.mrf.mxu0
        %v5312 = vadd.f32 %v5151, %v5311
        %v5313 = vpop.f32.mrf.mxu0
        %5314 = vmatprep.mubr.bf16.mxu0 0
        %5315 = vmatmul.mubr.bf16.gmra.mxu0 %v3561
        %v5316 = vpop.f32.mrf.mxu0
        %v5317 = vadd.f32 %v5156, %v5316
        %v5318 = vpop.f32.mrf.mxu0
        %v5319 = vpop.f32.mrf.mxu0
        %v5320 = vadd.f32 %v5159, %v5319
        %v5321 = vpop.f32.mrf.mxu0
        %5322 = vmatprep.mubr.bf16.mxu0 0
        %5323 = vmatmul.mubr.bf16.gmra.mxu0 %v3564
        %v5324 = vpop.f32.mrf.mxu0
        %v5325 = vadd.f32 %v5164, %v5324
        %v5326 = vpop.f32.mrf.mxu0
        %v5327 = vpop.f32.mrf.mxu0
        %v5328 = vadd.f32 %v5167, %v5327
        %v5329 = vpop.f32.mrf.mxu0
        %5330 = vmatprep.mubr.bf16.mxu0 0
        %5331 = vmatmul.mubr.bf16.gmra.mxu0 %v3567
        %v5332 = vpop.f32.mrf.mxu0
        %v5333 = vadd.f32 %v5172, %v5332
        %v5334 = vpop.f32.mrf.mxu0
        %v5335 = vpop.f32.mrf.mxu0
        %v5336 = vadd.f32 %v5175, %v5335
        %v5337 = vpop.f32.mrf.mxu0
        %5338 = vmatprep.mubr.bf16.mxu0 0
        %5339 = vmatmul.mubr.bf16.gmra.mxu0 %v3570
        %v5340 = vpop.f32.mrf.mxu0
        %v5341 = vadd.f32 %v5180, %v5340
        %v5342 = vpop.f32.mrf.mxu0
        %v5343 = vpop.f32.mrf.mxu0
        %v5344 = vadd.f32 %v5183, %v5343
        %v5345 = vpop.f32.mrf.mxu0
        %5346 = vmatprep.mubr.bf16.mxu0 0
        %5347 = vmatmul.mubr.bf16.gmra.mxu0 %v3573
        %v5348 = vpop.f32.mrf.mxu0
        %v5349 = vadd.f32 %v5188, %v5348
        %v5350 = vpop.f32.mrf.mxu0
        %v5351 = vpop.f32.mrf.mxu0
        %v5352 = vadd.f32 %v5191, %v5351
        %v5353 = vpop.f32.mrf.mxu0
        %5354 = vmatprep.mubr.bf16.mxu0 0
        %5355 = vmatmul.mubr.bf16.gmra.mxu0 %v3576
        %v5356 = vpop.f32.mrf.mxu0
        %v5357 = vadd.f32 %v5196, %v5356
        %v5358 = vpop.f32.mrf.mxu0
        %v5359 = vpop.f32.mrf.mxu0
        %v5360 = vadd.f32 %v5199, %v5359
        %v5361 = vpop.f32.mrf.mxu0
        %5362 = vmatprep.mubr.bf16.mxu0 0
        %5363 = vmatmul.mubr.bf16.gmra.mxu0 %v3579
        %v5364 = vpop.f32.mrf.mxu0
        %v5365 = vadd.f32 %v5204, %v5364
        %v5366 = vpop.f32.mrf.mxu0
        %v5367 = vpop.f32.mrf.mxu0
        %v5368 = vadd.f32 %v5207, %v5367
        %v5369 = vpop.f32.mrf.mxu0
        %5370 = vmatprep.mubr.bf16.mxu0 0
        %5371 = vmatmul.mubr.bf16.gmra.mxu0 %v3582
        %v5372 = vpop.f32.mrf.mxu0
        %v5373 = vadd.f32 %v5212, %v5372
        %v5374 = vpop.f32.mrf.mxu0
        %v5375 = vpop.f32.mrf.mxu0
        %v5376 = vadd.f32 %v5215, %v5375
        %v5377 = vpop.f32.mrf.mxu0
        %5378 = vmatprep.mubr.bf16.mxu0 0
        %5379 = vmatmul.mubr.bf16.gmra.mxu0 %v3585
        %v5380 = vpop.f32.mrf.mxu0
        %v5381 = vadd.f32 %v5220, %v5380
        %v5382 = vpop.f32.mrf.mxu0
        %v5383 = vpop.f32.mrf.mxu0
        %v5384 = vadd.f32 %v5223, %v5383
        %v5385 = vpop.f32.mrf.mxu0
        %5386 = vmatprep.mubr.bf16.mxu0 0
        %5387 = vmatmul.mubr.bf16.gmra.mxu0 %v3588
        %v5388 = vpop.f32.mrf.mxu0
        %v5389 = vadd.f32 %v5228, %v5388
        %v5390 = vpop.f32.mrf.mxu0
        %v5391 = vpop.f32.mrf.mxu0
        %v5392 = vadd.f32 %v5231, %v5391
        %v5393 = vpop.f32.mrf.mxu0
        %5394 = vmatprep.mubr.bf16.mxu0 0
        %5395 = vmatmul.mubr.bf16.gmra.mxu0 %v3591
        %v5396 = vpop.f32.mrf.mxu0
        %v5397 = vadd.f32 %v5236, %v5396
        %v5398 = vpop.f32.mrf.mxu0
        %v5399 = vpop.f32.mrf.mxu0
        %v5400 = vadd.f32 %v5239, %v5399
        %v5401 = vpop.f32.mrf.mxu0
        %5402 = vmatprep.mubr.bf16.mxu0 0
        %5403 = vmatmul.mubr.bf16.gmra.mxu0 %v3594
        %v5404 = vpop.f32.mrf.mxu0
        %v5405 = vadd.f32 %v5244, %v5404
        %v5406 = vpop.f32.mrf.mxu0
        %v5407 = vpop.f32.mrf.mxu0
        %v5408 = vadd.f32 %v5247, %v5407
        %v5409 = vpop.f32.mrf.mxu0
        %5410 = vmatprep.mubr.bf16.mxu0 0
        %5411 = vmatmul.mubr.bf16.gmra.mxu0 %v3597
        %v5412 = vpop.f32.mrf.mxu0
        %v5413 = vadd.f32 %v5252, %v5412
        %v5414 = vpop.f32.mrf.mxu0
        %v5415 = vpop.f32.mrf.mxu0
        %v5416 = vadd.f32 %v5255, %v5415
        %v5417 = vpop.f32.mrf.mxu0
        %5418 = vmatprep.mubr.bf16.mxu0 0
        %5419 = vmatmul.mubr.bf16.gmra.mxu0 %v4354
        %v5420 = vpop.f32.mrf.mxu0
        %v5421 = vadd.f32 %v5260, %v5420
        %v5422 = vpop.f32.mrf.mxu0
        %v5423 = vpop.f32.mrf.mxu0
        %v5424 = vadd.f32 %v5263, %v5423
        %v5425 = vpop.f32.mrf.mxu0
        %5426 = vmatprep.mubr.bf16.mxu0 0
        %5427 = vmatmul.mubr.bf16.gmra.mxu0 %v4919
        %v5428 = vpop.f32.mrf.mxu0
        %v5429 = vadd.f32 %v5268, %v5428
        %v5430 = vpop.f32.mrf.mxu0
        %v5431 = vpop.f32.mrf.mxu0
        %v5432 = vadd.f32 %v5271, %v5431
        %v5433 = vpop.f32.mrf.mxu0
        %5434 = vdwg.mxu0
        %v5435 = vadd.f32 %v4870, %v5309
        %v5436 = vadd.f32 %v4871, %v5312
        %v5437 = vadd.f32 %v4872, %v5317
        %v5438 = vadd.f32 %v4873, %v5320
        %v5439 = vadd.f32 %v4874, %v5325
        %v5440 = vadd.f32 %v4875, %v5328
        %v5441 = vadd.f32 %v4876, %v5333
        %v5442 = vadd.f32 %v4877, %v5336
        %v5443 = vadd.f32 %v4878, %v5341
        %v5444 = vadd.f32 %v4879, %v5344
        %v5445 = vadd.f32 %v4880, %v5349
        %v5446 = vadd.f32 %v4881, %v5352
        %v5447 = vadd.f32 %v4882, %v5357
        %v5448 = vadd.f32 %v4883, %v5360
        %v5449 = vadd.f32 %v4884, %v5365
        %v5450 = vadd.f32 %v4885, %v5368
        %v5451 = vadd.f32 %v4886, %v5373
        %v5452 = vadd.f32 %v4887, %v5376
        %v5453 = vadd.f32 %v4888, %v5381
        %v5454 = vadd.f32 %v4889, %v5384
        %v5455 = vadd.f32 %v4890, %v5389
        %v5456 = vadd.f32 %v4891, %v5392
        %v5457 = vadd.f32 %v4892, %v5397
        %v5458 = vadd.f32 %v4893, %v5400
        %v5459 = vadd.f32 %v4894, %v5405
        %v5460 = vadd.f32 %v4895, %v5408
        %v5461 = vadd.f32 %v4896, %v5413
        %v5462 = vadd.f32 %v4897, %v5416
        %v5463 = vadd.f32 %v4898, %v5421
        %v5464 = vadd.f32 %v4899, %v5424
        %v5465 = vadd.f32 %v4900, %v5429
        %v5466 = vadd.f32 %v4901, %v5432
        %v5467 = vld [vmem:[%s5] sm:$0x1]
        %v5469 = vlaneseq
        %v5470 = vshrl.u32 %v5469, 7
        %v5471 = vsub.s32 0, %v5470
        %v5472 = vrot.slane %v5467, %v5471
        %v5474 = vadd.f32 %v5435, %v5472
        %v5475 = vadd.f32 %v5436, %v5472
        %v5476 = vadd.f32 %v5437, %v5472
        %v5477 = vadd.f32 %v5438, %v5472
        %v5478 = vadd.f32 %v5439, %v5472
        %v5479 = vadd.f32 %v5440, %v5472
        %v5480 = vadd.f32 %v5441, %v5472
        %v5481 = vadd.f32 %v5442, %v5472
        %v5482 = vadd.f32 %v5443, %v5472
        %v5483 = vadd.f32 %v5444, %v5472
        %v5484 = vadd.f32 %v5445, %v5472
        %v5485 = vadd.f32 %v5446, %v5472
        %v5486 = vadd.f32 %v5447, %v5472
        %v5487 = vadd.f32 %v5448, %v5472
        %v5488 = vadd.f32 %v5449, %v5472
        %v5489 = vadd.f32 %v5450, %v5472
        %v5490 = vadd.f32 %v5451, %v5472
        %v5491 = vadd.f32 %v5452, %v5472
        %v5492 = vadd.f32 %v5453, %v5472
        %v5493 = vadd.f32 %v5454, %v5472
        %v5494 = vadd.f32 %v5455, %v5472
        %v5495 = vadd.f32 %v5456, %v5472
        %v5496 = vadd.f32 %v5457, %v5472
        %v5497 = vadd.f32 %v5458, %v5472
        %v5498 = vadd.f32 %v5459, %v5472
        %v5499 = vadd.f32 %v5460, %v5472
        %v5500 = vadd.f32 %v5461, %v5472
        %v5501 = vadd.f32 %v5462, %v5472
        %v5502 = vadd.f32 %v5463, %v5472
        %v5503 = vadd.f32 %v5464, %v5472
        %v5504 = vadd.f32 %v5465, %v5472
        %v5505 = vadd.f32 %v5466, %v5472
        %v5506 = vmax.f32 %v5474, 0.0
        %v5507 = vmax.f32 %v5475, 0.0
        %v5508 = vmax.f32 %v5476, 0.0
        %v5509 = vmax.f32 %v5477, 0.0
        %v5510 = vmax.f32 %v5478, 0.0
        %v5511 = vmax.f32 %v5479, 0.0
        %v5512 = vmax.f32 %v5480, 0.0
        %v5513 = vmax.f32 %v5481, 0.0
        %v5514 = vmax.f32 %v5482, 0.0
        %v5515 = vmax.f32 %v5483, 0.0
        %v5516 = vmax.f32 %v5484, 0.0
        %v5517 = vmax.f32 %v5485, 0.0
        %v5518 = vmax.f32 %v5486, 0.0
        %v5519 = vmax.f32 %v5487, 0.0
        %v5520 = vmax.f32 %v5488, 0.0
        %v5521 = vmax.f32 %v5489, 0.0
        %v5522 = vmax.f32 %v5490, 0.0
        %v5523 = vmax.f32 %v5491, 0.0
        %v5524 = vmax.f32 %v5492, 0.0
        %v5525 = vmax.f32 %v5493, 0.0
        %v5526 = vmax.f32 %v5494, 0.0
        %v5527 = vmax.f32 %v5495, 0.0
        %v5528 = vmax.f32 %v5496, 0.0
        %v5529 = vmax.f32 %v5497, 0.0
        %v5530 = vmax.f32 %v5498, 0.0
        %v5531 = vmax.f32 %v5499, 0.0
        %v5532 = vmax.f32 %v5500, 0.0
        %v5533 = vmax.f32 %v5501, 0.0
        %v5534 = vmax.f32 %v5502, 0.0
        %v5535 = vmax.f32 %v5503, 0.0
        %v5536 = vmax.f32 %v5504, 0.0
        %v5537 = vmax.f32 %v5505, 0.0
        %v5538 = vpack.c.bf16 %v5507, %v5506
        %v5539 = vpack.c.bf16 %v5509, %v5508
        %v5540 = vpack.c.bf16 %v5511, %v5510
        %v5541 = vpack.c.bf16 %v5513, %v5512
        %v5542 = vpack.c.bf16 %v5515, %v5514
        %v5543 = vpack.c.bf16 %v5517, %v5516
        %v5544 = vpack.c.bf16 %v5519, %v5518
        %v5545 = vpack.c.bf16 %v5521, %v5520
        %v5546 = vpack.c.bf16 %v5523, %v5522
        %v5547 = vpack.c.bf16 %v5525, %v5524
        %v5548 = vpack.c.bf16 %v5527, %v5526
        %v5549 = vpack.c.bf16 %v5529, %v5528
        %v5550 = vpack.c.bf16 %v5531, %v5530
        %v5551 = vpack.c.bf16 %v5533, %v5532
        %v5552 = vpack.c.bf16 %v5535, %v5534
        %v5553 = vpack.c.bf16 %v5537, %v5536
        %v5570 = vunpack.c.l.b16 %v5538
        %v5571 = vunpack.c.h.b16 %v5538
        %v5572 = vunpack.c.l.b16 %v5539
        %v5573 = vunpack.c.h.b16 %v5539
        %v5574 = vunpack.c.l.b16 %v5540
        %v5575 = vunpack.c.h.b16 %v5540
        %v5576 = vunpack.c.l.b16 %v5541
        %v5577 = vunpack.c.h.b16 %v5541
        %v5578 = vunpack.c.l.b16 %v5542
        %v5579 = vunpack.c.h.b16 %v5542
        %v5580 = vunpack.c.l.b16 %v5543
        %v5581 = vunpack.c.h.b16 %v5543
        %v5582 = vunpack.c.l.b16 %v5544
        %v5583 = vunpack.c.h.b16 %v5544
        %v5584 = vunpack.c.l.b16 %v5545
        %v5585 = vunpack.c.h.b16 %v5545
        %v5586 = vunpack.c.l.b16 %v5546
        %v5587 = vunpack.c.h.b16 %v5546
        %v5588 = vunpack.c.l.b16 %v5547
        %v5589 = vunpack.c.h.b16 %v5547
        %v5590 = vunpack.c.l.b16 %v5548
        %v5591 = vunpack.c.h.b16 %v5548
        %v5592 = vunpack.c.l.b16 %v5549
        %v5593 = vunpack.c.h.b16 %v5549
        %v5594 = vunpack.c.l.b16 %v5550
        %v5595 = vunpack.c.h.b16 %v5550
        %v5596 = vunpack.c.l.b16 %v5551
        %v5597 = vunpack.c.h.b16 %v5551
        %v5598 = vunpack.c.l.b16 %v5552
        %v5599 = vunpack.c.h.b16 %v5552
        %v5600 = vunpack.c.l.b16 %v5553
        %v5601 = vunpack.c.h.b16 %v5553
        %v5602 = vpack.c.b16 %v5570, %v5570
        %v5603 = vpack.c.b16 %v5571, %v5571
        %v5604 = vpack.c.b16 %v5572, %v5572
        %v5605 = vpack.c.b16 %v5573, %v5573
        %v5606 = vpack.c.b16 %v5574, %v5574
        %v5607 = vpack.c.b16 %v5575, %v5575
        %v5608 = vpack.c.b16 %v5576, %v5576
        %v5609 = vpack.c.b16 %v5577, %v5577
        %v5610 = vpack.c.b16 %v5578, %v5578
        %v5611 = vpack.c.b16 %v5579, %v5579
        %v5612 = vpack.c.b16 %v5580, %v5580
        %v5613 = vpack.c.b16 %v5581, %v5581
        %v5614 = vpack.c.b16 %v5582, %v5582
        %v5615 = vpack.c.b16 %v5583, %v5583
        %v5616 = vpack.c.b16 %v5584, %v5584
        %v5617 = vpack.c.b16 %v5585, %v5585
        %v5618 = vpack.c.b16 %v5586, %v5586
        %v5619 = vpack.c.b16 %v5587, %v5587
        %v5620 = vpack.c.b16 %v5588, %v5588
        %v5621 = vpack.c.b16 %v5589, %v5589
        %v5622 = vpack.c.b16 %v5590, %v5590
        %v5623 = vpack.c.b16 %v5591, %v5591
        %v5624 = vpack.c.b16 %v5592, %v5592
        %v5625 = vpack.c.b16 %v5593, %v5593
        %v5626 = vpack.c.b16 %v5594, %v5594
        %v5627 = vpack.c.b16 %v5595, %v5595
        %v5628 = vpack.c.b16 %v5596, %v5596
        %v5629 = vpack.c.b16 %v5597, %v5597
        %v5630 = vpack.c.b16 %v5598, %v5598
        %v5631 = vpack.c.b16 %v5599, %v5599
        %v5632 = vpack.c.b16 %v5600, %v5600
        %v5633 = vpack.c.b16 %v5601, %v5601
        %5666 = vst [vmem:[%s273] sm:$0xf] %v5602
        %5667 = vst [vmem:[%s273 + $0x4] sm:$0xf] %v5603
        %5668 = vst [vmem:[%s273 + $0x8] sm:$0xf] %v5604
        %5669 = vst [vmem:[%s273 + $0xc] sm:$0xf] %v5605
        %5670 = vst [vmem:[%s273 + $0x10] sm:$0xf] %v5606
        %5671 = vst [vmem:[%s273 + $0x14] sm:$0xf] %v5607
        %5672 = vst [vmem:[%s273 + $0x18] sm:$0xf] %v5608
        %5673 = vst [vmem:[%s273 + $0x1c] sm:$0xf] %v5609
        %5674 = vst [vmem:[%s273 + $0x20] sm:$0xf] %v5610
        %5675 = vst [vmem:[%s273 + $0x24] sm:$0xf] %v5611
        %5676 = vst [vmem:[%s273 + $0x28] sm:$0xf] %v5612
        %5677 = vst [vmem:[%s273 + $0x2c] sm:$0xf] %v5613
        %5678 = vst [vmem:[%s273 + $0x30] sm:$0xf] %v5614
        %5679 = vst [vmem:[%s273 + $0x34] sm:$0xf] %v5615
        %5680 = vst [vmem:[%s273 + $0x38] sm:$0xf] %v5616
        %5681 = vst [vmem:[%s273 + $0x3c] sm:$0xf] %v5617
        %5682 = vst [vmem:[%s273 + $0x40] sm:$0xf] %v5618
        %5683 = vst [vmem:[%s273 + $0x44] sm:$0xf] %v5619
        %5684 = vst [vmem:[%s273 + $0x48] sm:$0xf] %v5620
        %5685 = vst [vmem:[%s273 + $0x4c] sm:$0xf] %v5621
        %5686 = vst [vmem:[%s273 + $0x50] sm:$0xf] %v5622
        %5687 = vst [vmem:[%s273 + $0x54] sm:$0xf] %v5623
        %5688 = vst [vmem:[%s273 + $0x58] sm:$0xf] %v5624
        %5689 = vst [vmem:[%s273 + $0x5c] sm:$0xf] %v5625
        %5690 = vst [vmem:[%s273 + $0x60] sm:$0xf] %v5626
        %5691 = vst [vmem:[%s273 + $0x64] sm:$0xf] %v5627
        %5692 = vst [vmem:[%s273 + $0x68] sm:$0xf] %v5628
        %5693 = vst [vmem:[%s273 + $0x6c] sm:$0xf] %v5629
        %5694 = vst [vmem:[%s273 + $0x70] sm:$0xf] %v5630
        %5695 = vst [vmem:[%s273 + $0x74] sm:$0xf] %v5631
        %5696 = vst [vmem:[%s273 + $0x78] sm:$0xf] %v5632
        %5697 = vst [vmem:[%s273 + $0x7c] sm:$0xf] %v5633
        %s5698 = sand.u32 %s174, 1
        %s5699 = scalar_lea.sflag [#allocation4], %s5698
        %s5700 = sand.u32 %s174, 1
        %s5701 = smul.addr %s5700, 128
        %s5702 = scalar_lea.vmem [#allocation5], %s5701
        // Predicated region
        $region49: #{tpu_custom_call.1} parent=43 // pred_check
          %p5703 = pneg %p184
        $region50: #{tpu_custom_call.1} parent=43 // pred_check_branch
          %5705 = sbr.rel (%p5703) target = $region52
        $region51: #{tpu_custom_call.1} parent=43 // pred_region
          %s5706 = smul.u32 16, %s26
          %s5708 = ssub.s32 2048, 2048
          %5709 = vsyncadd %s5699, %s5708
          %s5710 = smul.addr %s5706, 2
          %s5711 = smul.addr %s25, 32
          %s5712 = sadd.s32 %s5710, %s5711
          %s5713 = smul.addr %s5712, 64
          %s5714 = scalar_lea.hbm %s6, %s5713
          %s5715 = sshll.u32 %s5702, 4
          %s5716 = int_to_ptr.vmem [resolvable:$true] %s5715
          %5721 = dma.vmem_to_hbm [thread:$0]  %s5716, 2048, %s5714, %s5699, 64, 64, 4
        $region52: #{tpu_custom_call.1} parent=43 // pred_fallthru
          _
      $region44: #{tpu_custom_call.1} parent=5 // pred_fallthru
        _
      %p5722 = scmp.le.s32.totalorder 2, %s16
      // Predicated region
      $region53: #{tpu_custom_call.1} parent=5 // pred_check
        %p5723 = pneg %p5722
      $region54: #{tpu_custom_call.1} parent=5 // pred_check_branch
        %5725 = sbr.rel (%p5723) target = $region56
      $region55: #{tpu_custom_call.1} parent=5 // pred_region
        %s5726 = ssub.s32 %s16, 2
        // Predicated region
        $region57: #{tpu_custom_call.1} parent=55 // pred_check
          %p5727 = pneg %p190
        $region58: #{tpu_custom_call.1} parent=55 // pred_check_branch
          %5729 = sbr.rel (%p5727) target = $region60
        $region59: #{tpu_custom_call.1} parent=55 // pred_region
          %s5730 = sand.u32 %s175, 1
          %s5731 = scalar_lea.sflag [#allocation4], %s5730
          %s5732 = sand.u32 %s175, 1
          %s5733 = smul.addr %s5732, 128
          %s5734 = scalar_lea.vmem [#allocation5], %s5733
          %5735 = dma.done %s5731, 2048
        $region60: #{tpu_custom_call.1} parent=55 // pred_fallthru
          _
      $region56: #{tpu_custom_call.1} parent=5 // pred_fallthru
        _
    $region6: #{tpu_custom_call.1} parent=1 // loop_footer
      %s20 = sadd.s32 1, %s16
    $region7: #{tpu_custom_call.1} parent=1 // loop_footer_branch
      %15 = sbr.rel target = $region3
    $region8: #{tpu_custom_call.1} parent=1 // loop_exit
      _
    %5736 = vsyncpa [#allocation3], 1
    %s5737 = scalar_lea.sflag [#allocation3], 1
    %5738 = vsyncpa %s5737, 1
    %5739 = vsyncpa [#allocation4], 1
    %s5740 = scalar_lea.sflag [#allocation4], 1
    %5741 = vsyncpa %s5740, 1

// kernel: tpu_custom_call.1
$region0: #{tpu_custom_call.1}
  #allocation0 [shape = 'u32[]', space=smem, size = 0x4, offset = 0x4, fixed_abs, tag = 'smem constant byte address 0x4 - core index']
  #allocation1 [shape = 'u32[144,128]{1,0:T(1,128)}', space=vmem, size = 0x12000, scoped, tag = 'internal scratch']
  %s0 = inlined_call_operand.vmem [shape: bf16[2,20,18,128], index: 0, kind: input, shape index: {}]
  %s1 = inlined_call_operand.vmem [shape: bf16[1152,128], index: 1, kind: input, shape index: {}]
  %s2 = inlined_call_operand.vmem [shape: f32[1,128], index: 2, kind: input, shape index: {}]
  %s3 = inlined_call_operand.hbm [shape: bf16[1152,128], index: 3, kind: input, shape index: {}]
  %s4 = inlined_call_operand.vmem [shape: bf16[128,128], index: 4, kind: input, shape index: {}]
  %s5 = inlined_call_operand.vmem [shape: f32[1,128], index: 5, kind: input, shape index: {}]
  %s6 = inlined_call_operand.hbm [shape: bf16[2,16,16,128], index: 6, kind: output, shape index: {}]
  %s7 = sld [smem:[#allocation0]]
  $region61: #{tpu_custom_call.1} parent=0
    _
  %s9 = ssub.s32 1, %s7
  %s10 = scalar_select 0, %s9, %s7
  $region1: #{tpu_custom_call.1} parent=0
    #allocation2 [shape = 'u8[294912]{0}', space=vmem, size = 0x48000, scoped, tag = 'input window, operand 3, single buffered']
    #allocation3 [shape = 's32[2]{0}', space=sflag, size = 0x8, scoped, tag = 'scoped memory for tpu_custom_call.1']
    #allocation4 [shape = 's32[2]{0}', space=sflag, size = 0x8, scoped, tag = 'scoped memory for tpu_custom_call.1']
    #allocation5 [shape = 'u8[131072]{0}', space=vmem, size = 0x20000, scoped, tag = 'output window, operand 0']
    %11 = vsyncpa [#allocation3], 0
    %12 = vsyncpa [#allocation4], 0
    %s13 = scalar_lea.sflag [#allocation4], 1
    %14 = vsyncpa %s13, 0
    loop: start=0, step=1, limit=4
    $region2: #{tpu_custom_call.1} parent=1 // loop_pre_header
      _
    $region3: #{tpu_custom_call.1} parent=1 // loop_header
      %s16 = sphi 0, %s20
      %p17 = scmp.ge.s32.totalorder %s16, 4
      %s23 = sphi 0, %s35
      %s24 = sphi 0, %s31
      %s25 = sphi 0, %s23
      %s26 = sphi 0, %s24
      %s27 = sphi 0, %s25
      %s28 = sphi 0, %s26
      %s38 = sphi 0, %s40
      %s41 = sphi 0, %s38
      %s42 = sphi 0, %s41
      %s58 = sphi 0, %s42
      %s62 = sphi 0, %s62
      %s64 = sphi 0, %s62
      %s65 = sphi 0, %s64
      %s79 = sphi 0, %s65
      %s83 = sphi 0, %s83
      %s85 = sphi 0, %s83
      %s86 = sphi 0, %s85
      %s100 = sphi 0, %s86
      %s104 = sphi 0, %s104
      %s106 = sphi 0, %s104
      %s107 = sphi 0, %s106
      %s121 = sphi 0, %s107
      %s125 = sphi 0, %s125
      %s127 = sphi 0, %s125
      %s128 = sphi 0, %s127
      %s142 = sphi 0, %s128
      %s146 = sphi 0, %s146
      %s148 = sphi 0, %s146
      %s149 = sphi 0, %s148
      %s163 = sphi 0, %s149
      %s171 = sphi 0, %s173
      %s174 = sphi 0, %s171
      %s175 = sphi 0, %s174
      %s191 = sphi 0, %s175
    $region4: #{tpu_custom_call.1} parent=1 // loop_header_branch
      %19 = sbr.rel (%p17) target = $region8
    $region5: #{tpu_custom_call.1} parent=1 // loop_body
      %s21 = ssub.s32 %s16, 1
      %s22 = ssub.s32 %s16, 2
      %s29 = sadd.s32 1, %s24
      %p30 = scmp.ge.s32.totalorder %s29, 1
      %s31 = scalar_select %p30, 0, %s29
      %s32 = sadd.s32 1, %s23
      %s33 = scalar_select %p30, %s32, %s23
      %p34 = scmp.ge.s32.totalorder %s33, 2
      %s35 = scalar_select %p34, 0, %s33
      %s36 = ssub.s32 %s23, %s35
      %p37 = scmp.eq.s32.totalorder %s36, 0
      %s39 = sadd.s32 %s38, 1
      %s40 = scalar_select %p37, %s38, %s39
      %p43 = pneg %p37
      %p44 = scmp.eq.s32.totalorder %s16, 1
      %p45 = por %p43, %p44
      %p46 = scmp.ne.s32.totalorder %s38, %s41
      %p47 = scmp.eq.s32.totalorder %s16, 0
      %p48 = por %p46, %p47
      %p49 = scmp.ne.s32.totalorder %s38, %s41
      %p50 = scmp.eq.s32.totalorder %s21, 1
      %p51 = por %p49, %p50
      %p52 = scmp.ne.s32.totalorder %s41, %s42
      %p53 = scmp.eq.s32.totalorder %s21, 0
      %p54 = por %p52, %p53
      %p55 = scmp.ne.s32.totalorder %s41, %s42
      %p56 = scmp.eq.s32.totalorder %s22, 1
      %p57 = por %p55, %p56
      %p59 = scmp.ne.s32.totalorder %s42, %s58
      %p60 = scmp.eq.s32.totalorder %s22, 0
      %p61 = por %p59, %p60
      %s63 = sadd.s32 %s62, 1
      %p66 = scmp.eq.s32.totalorder %s16, 1
      %p67 = scmp.ne.s32.totalorder %s62, %s64
      %p68 = scmp.eq.s32.totalorder %s16, 0
      %p69 = por %p67, %p68
      %p70 = scmp.ne.s32.totalorder %s62, %s64
      %p71 = scmp.eq.s32.totalorder %s21, 1
      %p72 = por %p70, %p71
      %p73 = scmp.ne.s32.totalorder %s64, %s65
      %p74 = scmp.eq.s32.totalorder %s21, 0
      %p75 = por %p73, %p74
      %p76 = scmp.ne.s32.totalorder %s64, %s65
      %p77 = scmp.eq.s32.totalorder %s22, 1
      %p78 = por %p76, %p77
      %p80 = scmp.ne.s32.totalorder %s65, %s79
      %p81 = scmp.eq.s32.totalorder %s22, 0
      %p82 = por %p80, %p81
      %s84 = sadd.s32 %s83, 1
      %p87 = scmp.eq.s32.totalorder %s16, 1
      %p88 = scmp.ne.s32.totalorder %s83, %s85
      %p89 = scmp.eq.s32.totalorder %s16, 0
      %p90 = por %p88, %p89
      %p91 = scmp.ne.s32.totalorder %s83, %s85
      %p92 = scmp.eq.s32.totalorder %s21, 1
      %p93 = por %p91, %p92
      %p94 = scmp.ne.s32.totalorder %s85, %s86
      %p95 = scmp.eq.s32.totalorder %s21, 0
      %p96 = por %p94, %p95
      %p97 = scmp.ne.s32.totalorder %s85, %s86
      %p98 = scmp.eq.s32.totalorder %s22, 1
      %p99 = por %p97, %p98
      %p101 = scmp.ne.s32.totalorder %s86, %s100
      %p102 = scmp.eq.s32.totalorder %s22, 0
      %p103 = por %p101, %p102
      %s105 = sadd.s32 %s104, 1
      %p108 = scmp.eq.s32.totalorder %s16, 1
      %p109 = scmp.ne.s32.totalorder %s104, %s106
      %p110 = scmp.eq.s32.totalorder %s16, 0
      %p111 = por %p109, %p110
      %p112 = scmp.ne.s32.totalorder %s104, %s106
      %p113 = scmp.eq.s32.totalorder %s21, 1
      %p114 = por %p112, %p113
      %p115 = scmp.ne.s32.totalorder %s106, %s107
      %p116 = scmp.eq.s32.totalorder %s21, 0
      %p117 = por %p115, %p116
      %p118 = scmp.ne.s32.totalorder %s106, %s107
      %p119 = scmp.eq.s32.totalorder %s22, 1
      %p120 = por %p118, %p119
      %p122 = scmp.ne.s32.totalorder %s107, %s121
      %p123 = scmp.eq.s32.totalorder %s22, 0
      %p124 = por %p122, %p123
      %s126 = sadd.s32 %s125, 1
      %p129 = scmp.eq.s32.totalorder %s16, 1
      %p130 = scmp.ne.s32.totalorder %s125, %s127
      %p131 = scmp.eq.s32.totalorder %s16, 0
      %p132 = por %p130, %p131
      %p133 = scmp.ne.s32.totalorder %s125, %s127
      %p134 = scmp.eq.s32.totalorder %s21, 1
      %p135 = por %p133, %p134
      %p136 = scmp.ne.s32.totalorder %s127, %s128
      %p137 = scmp.eq.s32.totalorder %s21, 0
      %p138 = por %p136, %p137
      %p139 = scmp.ne.s32.totalorder %s127, %s128
      %p140 = scmp.eq.s32.totalorder %s22, 1
      %p141 = por %p139, %p140
      %p143 = scmp.ne.s32.totalorder %s128, %s142
      %p144 = scmp.eq.s32.totalorder %s22, 0
      %p145 = por %p143, %p144
      %s147 = sadd.s32 %s146, 1
      %p150 = scmp.eq.s32.totalorder %s16, 1
      %p151 = scmp.ne.s32.totalorder %s146, %s148
      %p152 = scmp.eq.s32.totalorder %s16, 0
      %p153 = por %p151, %p152
      %p154 = scmp.ne.s32.totalorder %s146, %s148
      %p155 = scmp.eq.s32.totalorder %s21, 1
      %p156 = por %p154, %p155
      %p157 = scmp.ne.s32.totalorder %s148, %s149
      %p158 = scmp.eq.s32.totalorder %s21, 0
      %p159 = por %p157, %p158
      %p160 = scmp.ne.s32.totalorder %s148, %s149
      %p161 = scmp.eq.s32.totalorder %s22, 1
      %p162 = por %p160, %p161
      %p164 = scmp.ne.s32.totalorder %s149, %s163
      %p165 = scmp.eq.s32.totalorder %s22, 0
      %p166 = por %p164, %p165
      %s167 = ssub.s32 %s23, %s35
      %s168 = ssub.s32 %s24, %s31
      %s169 = sor.u32 %s167, %s168
      %p170 = scmp.eq.s32.totalorder %s169, 0
      %s172 = sadd.s32 %s171, 1
      %s173 = scalar_select %p170, %s171, %s172
      %p176 = pneg %p170
      %p177 = scmp.eq.s32.totalorder %s16, 1
      %p178 = por %p176, %p177
      %p179 = scmp.ne.s32.totalorder %s171, %s174
      %p180 = scmp.eq.s32.totalorder %s16, 0
      %p181 = por %p179, %p180
      %p182 = scmp.ne.s32.totalorder %s171, %s174
      %p183 = scmp.eq.s32.totalorder %s21, 1
      %p184 = por %p182, %p183
      %p185 = scmp.ne.s32.totalorder %s174, %s175
      %p186 = scmp.eq.s32.totalorder %s21, 0
      %p187 = por %p185, %p186
      %p188 = scmp.ne.s32.totalorder %s174, %s175
      %p189 = scmp.eq.s32.totalorder %s22, 1
      %p190 = por %p188, %p189
      %p192 = scmp.ne.s32.totalorder %s175, %s191
      %p193 = scmp.eq.s32.totalorder %s22, 0
      %p194 = por %p192, %p193
      %p195 = scmp.le.s32.totalorder 1, %s16
      %p196 = scmp.lt.s32.totalorder %s16, 3
      %p197 = pnand %p195, %p196
      %p198 = pneg %p197
      // Predicated region
      $region9: #{tpu_custom_call.1} parent=5 // pred_check
        _
      $region10: #{tpu_custom_call.1} parent=5 // pred_check_branch
        %200 = sbr.rel (%p197) target = $region12
      $region11: #{tpu_custom_call.1} parent=5 // pred_region
        %s201 = ssub.s32 %s16, 1
        // Predicated region
        $region13: #{tpu_custom_call.1} parent=11 // pred_check
          %p202 = pneg %p75
        $region14: #{tpu_custom_call.1} parent=11 // pred_check_branch
          %204 = sbr.rel (%p202) target = $region16
        $region15: #{tpu_custom_call.1} parent=11 // pred_region
          _
        $region16: #{tpu_custom_call.1} parent=11 // pred_fallthru
          _
        // Predicated region
        $region17: #{tpu_custom_call.1} parent=11 // pred_check
          %p205 = pneg %p96
        $region18: #{tpu_custom_call.1} parent=11 // pred_check_branch
          %207 = sbr.rel (%p205) target = $region20
        $region19: #{tpu_custom_call.1} parent=11 // pred_region
          _
        $region20: #{tpu_custom_call.1} parent=11 // pred_fallthru
          _
        // Predicated region
        $region21: #{tpu_custom_call.1} parent=11 // pred_check
          %p208 = pneg %p117
        $region22: #{tpu_custom_call.1} parent=11 // pred_check_branch
          %210 = sbr.rel (%p208) target = $region24
        $region23: #{tpu_custom_call.1} parent=11 // pred_region
          %s212 = ssub.s32 9216, 9216
          %213 = vsyncadd [#allocation3], %s212
          %s214 = sshll.u32 [#allocation2], 4
          %s215 = int_to_ptr.vmem [resolvable:$true] %s214
          %220 = dma.hbm_to_vmem [thread:$0]  %s3, 9216, %s215, [#allocation3], 64, 64, 4
        $region24: #{tpu_custom_call.1} parent=11 // pred_fallthru
          _
        // Predicated region
        $region25: #{tpu_custom_call.1} parent=11 // pred_check
          %p221 = pneg %p138
        $region26: #{tpu_custom_call.1} parent=11 // pred_check_branch
          %223 = sbr.rel (%p221) target = $region28
        $region27: #{tpu_custom_call.1} parent=11 // pred_region
          _
        $region28: #{tpu_custom_call.1} parent=11 // pred_fallthru
          _
        // Predicated region
        $region29: #{tpu_custom_call.1} parent=11 // pred_check
          %p224 = pneg %p159
        $region30: #{tpu_custom_call.1} parent=11 // pred_check_branch
          %226 = sbr.rel (%p224) target = $region32
        $region31: #{tpu_custom_call.1} parent=11 // pred_region
          _
        $region32: #{tpu_custom_call.1} parent=11 // pred_fallthru
          _
      $region12: #{tpu_custom_call.1} parent=5 // pred_fallthru
        _
      %p227 = scmp.lt.s32.totalorder %s16, 2
      // Predicated region
      $region33: #{tpu_custom_call.1} parent=5 // pred_check
        %p228 = pneg %p227
      $region34: #{tpu_custom_call.1} parent=5 // pred_check_branch
        %230 = sbr.rel (%p228) target = $region36
      $region35: #{tpu_custom_call.1} parent=5 // pred_region
        // Predicated region
        $region37: #{tpu_custom_call.1} parent=35 // pred_check
          %p231 = pneg %p48
        $region38: #{tpu_custom_call.1} parent=35 // pred_check_branch
          %233 = sbr.rel (%p231) target = $region40
        $region39: #{tpu_custom_call.1} parent=35 // pred_region
          %p234 = scmp.lt.s32.totalorder %s23, 1
          %s235 = scalar_select %p234, %s23, 1
          %s236 = smul.addr %s235, 60
          %s237 = smul.addr %s236, 4
          %s238 = scalar_lea.vmem %s0, %s237
        $region40: #{tpu_custom_call.1} parent=35 // pred_fallthru
          _
      $region36: #{tpu_custom_call.1} parent=5 // pred_fallthru
        _
      %p239 = scmp.le.s32.totalorder 1, %s16
      %p240 = scmp.lt.s32.totalorder %s16, 3
      %p241 = pnand %p239, %p240
      %p242 = pneg %p241
      // Predicated region
      $region41: #{tpu_custom_call.1} parent=5 // pred_check
        _
      $region42: #{tpu_custom_call.1} parent=5 // pred_check_branch
        %244 = sbr.rel (%p241) target = $region44
      $region43: #{tpu_custom_call.1} parent=5 // pred_region
        %s245 = ssub.s32 %s16, 1
        // Predicated region
        $region45: #{tpu_custom_call.1} parent=43 // pred_check
          %p246 = pneg %p117
        $region46: #{tpu_custom_call.1} parent=43 // pred_check_branch
          %248 = sbr.rel (%p246) target = $region48
        $region47: #{tpu_custom_call.1} parent=43 // pred_region
          %249 = dma.done [#allocation3], 9216
        $region48: #{tpu_custom_call.1} parent=43 // pred_fallthru
          _
        %p250 = scmp.lt.s32.totalorder %s25, 1
        %s251 = scalar_select %p250, %s25, 1
        %s252 = smul.addr %s251, 60
        %s253 = smul.addr %s252, 4
        %s254 = scalar_lea.vmem %s0, %s253
        %p255 = pneg %p54
        %p256 = pneg %p51
        %p257 = pneg %p75
        %p258 = pneg %p72
        %p259 = pneg %p96
        %p260 = pneg %p93
        %p261 = pneg %p117
        %p262 = pneg %p114
        %p263 = pneg %p138
        %p264 = pneg %p135
        %p265 = pneg %p159
        %p266 = pneg %p156
        %p267 = pneg %p187
        %p268 = pneg %p184
        %s269 = sand.u32 %s174, 1
        %s270 = scalar_lea.sflag [#allocation4], %s269
        %s271 = sand.u32 %s174, 1
        %s272 = smul.addr %s271, 128
        %s273 = scalar_lea.vmem [#allocation5], %s272
        %p274 = scmp.lt.s32.totalorder %s25, 1
        %s275 = scalar_select %p274, %s25, 1
        %s276 = smul.addr %s275, 60
        %s277 = smul.addr %s276, 4
        %s278 = scalar_lea.vmem %s0, %s277
        %s279 = smul.u32 16, %s26
        %s281 = smul.u32 %s26, 16
        %s282 = smul.u32 %s281, 3
        %s283 = smul.addr %s282, 4
        %s284 = scalar_lea.vmem %s278, %s283
        %v285 = vld [vmem:[%s284] sm:$0xf]
        %v286 = vld [vmem:[%s284 + $0x4] sm:$0xf]
        %v287 = vld [vmem:[%s284 + $0x8] sm:$0x1]
        %v288 = vld [vmem:[%s284 + $0xc] sm:$0xf]
        %v289 = vld [vmem:[%s284 + $0x10] sm:$0xf]
        %v290 = vld [vmem:[%s284 + $0x14] sm:$0x1]
        %v291 = vld [vmem:[%s284 + $0x18] sm:$0xf]
        %v292 = vld [vmem:[%s284 + $0x1c] sm:$0xf]
        %v293 = vld [vmem:[%s284 + $0x20] sm:$0x1]
        %v294 = vld [vmem:[%s284 + $0x24] sm:$0xf]
        %v295 = vld [vmem:[%s284 + $0x28] sm:$0xf]
        %v296 = vld [vmem:[%s284 + $0x2c] sm:$0x1]
        %v297 = vld [vmem:[%s284 + $0x30] sm:$0xf]
        %v298 = vld [vmem:[%s284 + $0x34] sm:$0xf]
        %v299 = vld [vmem:[%s284 + $0x38] sm:$0x1]
        %v300 = vld [vmem:[%s284 + $0x3c] sm:$0xf]
        %v301 = vld [vmem:[%s284 + $0x40] sm:$0xf]
        %v302 = vld [vmem:[%s284 + $0x44] sm:$0x1]
        %v303 = vld [vmem:[%s284 + $0x48] sm:$0xf]
        %v304 = vld [vmem:[%s284 + $0x4c] sm:$0xf]
        %v305 = vld [vmem:[%s284 + $0x50] sm:$0x1]
        %v306 = vld [vmem:[%s284 + $0x54] sm:$0xf]
        %v307 = vld [vmem:[%s284 + $0x58] sm:$0xf]
        %v308 = vld [vmem:[%s284 + $0x5c] sm:$0x1]
        %v309 = vld [vmem:[%s284 + $0x60] sm:$0xf]
        %v310 = vld [vmem:[%s284 + $0x64] sm:$0xf]
        %v311 = vld [vmem:[%s284 + $0x68] sm:$0x1]
        %v312 = vld [vmem:[%s284 + $0x6c] sm:$0xf]
        %v313 = vld [vmem:[%s284 + $0x70] sm:$0xf]
        %v314 = vld [vmem:[%s284 + $0x74] sm:$0x1]
        %v315 = vld [vmem:[%s284 + $0x78] sm:$0xf]
        %v316 = vld [vmem:[%s284 + $0x7c] sm:$0xf]
        %v317 = vld [vmem:[%s284 + $0x80] sm:$0x1]
        %v318 = vld [vmem:[%s284 + $0x84] sm:$0xf]
        %v319 = vld [vmem:[%s284 + $0x88] sm:$0xf]
        %v320 = vld [vmem:[%s284 + $0x8c] sm:$0x1]
        %v321 = vld [vmem:[%s284 + $0x90] sm:$0xf]
        %v322 = vld [vmem:[%s284 + $0x94] sm:$0xf]
        %v323 = vld [vmem:[%s284 + $0x98] sm:$0x1]
        %v324 = vld [vmem:[%s284 + $0x9c] sm:$0xf]
        %v325 = vld [vmem:[%s284 + $0xa0] sm:$0xf]
        %v326 = vld [vmem:[%s284 + $0xa4] sm:$0x1]
        %v327 = vld [vmem:[%s284 + $0xa8] sm:$0xf]
        %v328 = vld [vmem:[%s284 + $0xac] sm:$0xf]
        %v329 = vld [vmem:[%s284 + $0xb0] sm:$0x1]
        %v330 = vld [vmem:[%s284 + $0xb4] sm:$0xf]
        %v331 = vld [vmem:[%s284 + $0xb8] sm:$0xf]
        %v332 = vld [vmem:[%s284 + $0xbc] sm:$0x1]
        %v333 = vld [vmem:[%s284 + $0xc0] sm:$0xf]
        %v334 = vld [vmem:[%s284 + $0xc4] sm:$0xf]
        %v335 = vld [vmem:[%s284 + $0xc8] sm:$0x1]
        %v336 = vld [vmem:[%s284 + $0xcc] sm:$0xf]
        %v337 = vld [vmem:[%s284 + $0xd0] sm:$0xf]
        %v338 = vld [vmem:[%s284 + $0xd4] sm:$0x1]
        %v339 = vld [vmem:[%s284 + $0xd8] sm:$0xf]
        %v340 = vld [vmem:[%s284 + $0xdc] sm:$0xf]
        %v341 = vld [vmem:[%s284 + $0xe0] sm:$0x1]
        %v342 = vld [vmem:[%s284 + $0xe4] sm:$0xf]
        %v343 = vld [vmem:[%s284 + $0xe8] sm:$0xf]
        %v344 = vld [vmem:[%s284 + $0xec] sm:$0x1]
        %vm345 = vsmask.f32 3328
        %vm346 = vsmask.f32 7440
        %vm347 = vmor %vm345, %vm346
        %v349 = vshrl.u32 %v285, 16
        %v351 = vrot.slane %v349, 4
        %v352 = vshll.u32 %v285, 16
        %v354 = vrot.slane %v352, 5
        %v355 = vor.u32 %v351, %v354
        %v356 = vrot.slane %v355, 4
        %v358 = vshll.u32 %v286, 16
        %v360 = vrot.slane %v358, 5
        %v361 = vsel %vm347, %v356, %v360
        %v362 = vshrl.u32 %v286, 16
        %v364 = vrot.slane %v362, 4
        %v365 = vor.u32 %v364, %v360
        %v366 = vrot.slane %v365, 4
        %v368 = vshll.u32 %v287, 16
        %v370 = vrot.slane %v368, 5
        %v371 = vsel %vm347, %v366, %v370
        %v373 = vshrl.u32 %v288, 16
        %v375 = vrot.slane %v373, 4
        %v376 = vshll.u32 %v288, 16
        %v378 = vrot.slane %v376, 5
        %v379 = vor.u32 %v375, %v378
        %v380 = vrot.slane %v379, 4
        %v382 = vshll.u32 %v289, 16
        %v384 = vrot.slane %v382, 5
        %v385 = vsel %vm347, %v380, %v384
        %v386 = vshrl.u32 %v289, 16
        %v388 = vrot.slane %v386, 4
        %v389 = vor.u32 %v388, %v384
        %v390 = vrot.slane %v389, 4
        %v392 = vshll.u32 %v290, 16
        %v394 = vrot.slane %v392, 5
        %v395 = vsel %vm347, %v390, %v394
        %v397 = vshrl.u32 %v291, 16
        %v399 = vrot.slane %v397, 4
        %v400 = vshll.u32 %v291, 16
        %v402 = vrot.slane %v400, 5
        %v403 = vor.u32 %v399, %v402
        %v404 = vrot.slane %v403, 4
        %v406 = vshll.u32 %v292, 16
        %v408 = vrot.slane %v406, 5
        %v409 = vsel %vm347, %v404, %v408
        %v410 = vshrl.u32 %v292, 16
        %v412 = vrot.slane %v410, 4
        %v413 = vor.u32 %v412, %v408
        %v414 = vrot.slane %v413, 4
        %v416 = vshll.u32 %v293, 16
        %v418 = vrot.slane %v416, 5
        %v419 = vsel %vm347, %v414, %v418
        %v421 = vshrl.u32 %v294, 16
        %v423 = vrot.slane %v421, 4
        %v424 = vshll.u32 %v294, 16
        %v426 = vrot.slane %v424, 5
        %v427 = vor.u32 %v423, %v426
        %v428 = vrot.slane %v427, 4
        %v430 = vshll.u32 %v295, 16
        %v432 = vrot.slane %v430, 5
        %v433 = vsel %vm347, %v428, %v432
        %v434 = vshrl.u32 %v295, 16
        %v436 = vrot.slane %v434, 4
        %v437 = vor.u32 %v436, %v432
        %v438 = vrot.slane %v437, 4
        %v440 = vshll.u32 %v296, 16
        %v442 = vrot.slane %v440, 5
        %v443 = vsel %vm347, %v438, %v442
        %v445 = vshrl.u32 %v297, 16
        %v447 = vrot.slane %v445, 4
        %v448 = vshll.u32 %v297, 16
        %v450 = vrot.slane %v448, 5
        %v451 = vor.u32 %v447, %v450
        %v452 = vrot.slane %v451, 4
        %v454 = vshll.u32 %v298, 16
        %v456 = vrot.slane %v454, 5
        %v457 = vsel %vm347, %v452, %v456
        %v458 = vshrl.u32 %v298, 16
        %v460 = vrot.slane %v458, 4
        %v461 = vor.u32 %v460, %v456
        %v462 = vrot.slane %v461, 4
        %v464 = vshll.u32 %v299, 16
        %v466 = vrot.slane %v464, 5
        %v467 = vsel %vm347, %v462, %v466
        %v469 = vshrl.u32 %v300, 16
        %v471 = vrot.slane %v469, 4
        %v472 = vshll.u32 %v300, 16
        %v474 = vrot.slane %v472, 5
        %v475 = vor.u32 %v471, %v474
        %v476 = vrot.slane %v475, 4
        %v478 = vshll.u32 %v301, 16
        %v480 = vrot.slane %v478, 5
        %v481 = vsel %vm347, %v476, %v480
        %v482 = vshrl.u32 %v301, 16
        %v484 = vrot.slane %v482, 4
        %v485 = vor.u32 %v484, %v480
        %v486 = vrot.slane %v485, 4
        %v488 = vshll.u32 %v302, 16
        %v490 = vrot.slane %v488, 5
        %v491 = vsel %vm347, %v486, %v490
        %v493 = vshrl.u32 %v303, 16
        %v495 = vrot.slane %v493, 4
        %v496 = vshll.u32 %v303, 16
        %v498 = vrot.slane %v496, 5
        %v499 = vor.u32 %v495, %v498
        %v500 = vrot.slane %v499, 4
        %v502 = vshll.u32 %v304, 16
        %v504 = vrot.slane %v502, 5
        %v505 = vsel %vm347, %v500, %v504
        %v506 = vshrl.u32 %v304, 16
        %v508 = vrot.slane %v506, 4
        %v509 = vor.u32 %v508, %v504
        %v510 = vrot.slane %v509, 4
        %v512 = vshll.u32 %v305, 16
        %v514 = vrot.slane %v512, 5
        %v515 = vsel %vm347, %v510, %v514
        %v517 = vshrl.u32 %v306, 16
        %v519 = vrot.slane %v517, 4
        %v520 = vshll.u32 %v306, 16
        %v522 = vrot.slane %v520, 5
        %v523 = vor.u32 %v519, %v522
        %v524 = vrot.slane %v523, 4
        %v526 = vshll.u32 %v307, 16
        %v528 = vrot.slane %v526, 5
        %v529 = vsel %vm347, %v524, %v528
        %v530 = vshrl.u32 %v307, 16
        %v532 = vrot.slane %v530, 4
        %v533 = vor.u32 %v532, %v528
        %v534 = vrot.slane %v533, 4
        %v536 = vshll.u32 %v308, 16
        %v538 = vrot.slane %v536, 5
        %v539 = vsel %vm347, %v534, %v538
        %v541 = vshrl.u32 %v309, 16
        %v543 = vrot.slane %v541, 4
        %v544 = vshll.u32 %v309, 16
        %v546 = vrot.slane %v544, 5
        %v547 = vor.u32 %v543, %v546
        %v548 = vrot.slane %v547, 4
        %v550 = vshll.u32 %v310, 16
        %v552 = vrot.slane %v550, 5
        %v553 = vsel %vm347, %v548, %v552
        %v554 = vshrl.u32 %v310, 16
        %v556 = vrot.slane %v554, 4
        %v557 = vor.u32 %v556, %v552
        %v558 = vrot.slane %v557, 4
        %v560 = vshll.u32 %v311, 16
        %v562 = vrot.slane %v560, 5
        %v563 = vsel %vm347, %v558, %v562
        %v565 = vshrl.u32 %v312, 16
        %v567 = vrot.slane %v565, 4
        %v568 = vshll.u32 %v312, 16
        %v570 = vrot.slane %v568, 5
        %v571 = vor.u32 %v567, %v570
        %v572 = vrot.slane %v571, 4
        %v574 = vshll.u32 %v313, 16
        %v576 = vrot.slane %v574, 5
        %v577 = vsel %vm347, %v572, %v576
        %v578 = vshrl.u32 %v313, 16
        %v580 = vrot.slane %v578, 4
        %v581 = vor.u32 %v580, %v576
        %v582 = vrot.slane %v581, 4
        %v584 = vshll.u32 %v314, 16
        %v586 = vrot.slane %v584, 5
        %v587 = vsel %vm347, %v582, %v586
        %v589 = vshrl.u32 %v315, 16
        %v591 = vrot.slane %v589, 4
        %v592 = vshll.u32 %v315, 16
        %v594 = vrot.slane %v592, 5
        %v595 = vor.u32 %v591, %v594
        %v596 = vrot.slane %v595, 4
        %v598 = vshll.u32 %v316, 16
        %v600 = vrot.slane %v598, 5
        %v601 = vsel %vm347, %v596, %v600
        %v602 = vshrl.u32 %v316, 16
        %v604 = vrot.slane %v602, 4
        %v605 = vor.u32 %v604, %v600
        %v606 = vrot.slane %v605, 4
        %v608 = vshll.u32 %v317, 16
        %v610 = vrot.slane %v608, 5
        %v611 = vsel %vm347, %v606, %v610
        %v613 = vshrl.u32 %v318, 16
        %v615 = vrot.slane %v613, 4
        %v616 = vshll.u32 %v318, 16
        %v618 = vrot.slane %v616, 5
        %v619 = vor.u32 %v615, %v618
        %v620 = vrot.slane %v619, 4
        %v622 = vshll.u32 %v319, 16
        %v624 = vrot.slane %v622, 5
        %v625 = vsel %vm347, %v620, %v624
        %v626 = vshrl.u32 %v319, 16
        %v628 = vrot.slane %v626, 4
        %v629 = vor.u32 %v628, %v624
        %v630 = vrot.slane %v629, 4
        %v632 = vshll.u32 %v320, 16
        %v634 = vrot.slane %v632, 5
        %v635 = vsel %vm347, %v630, %v634
        %v637 = vshrl.u32 %v321, 16
        %v639 = vrot.slane %v637, 4
        %v640 = vshll.u32 %v321, 16
        %v642 = vrot.slane %v640, 5
        %v643 = vor.u32 %v639, %v642
        %v644 = vrot.slane %v643, 4
        %v646 = vshll.u32 %v322, 16
        %v648 = vrot.slane %v646, 5
        %v649 = vsel %vm347, %v644, %v648
        %v650 = vshrl.u32 %v322, 16
        %v652 = vrot.slane %v650, 4
        %v653 = vor.u32 %v652, %v648
        %v654 = vrot.slane %v653, 4
        %v656 = vshll.u32 %v323, 16
        %v658 = vrot.slane %v656, 5
        %v659 = vsel %vm347, %v654, %v658
        %v661 = vshrl.u32 %v324, 16
        %v663 = vrot.slane %v661, 4
        %v664 = vshll.u32 %v324, 16
        %v666 = vrot.slane %v664, 5
        %v667 = vor.u32 %v663, %v666
        %v668 = vrot.slane %v667, 4
        %v670 = vshll.u32 %v325, 16
        %v672 = vrot.slane %v670, 5
        %v673 = vsel %vm347, %v668, %v672
        %v674 = vshrl.u32 %v325, 16
        %v676 = vrot.slane %v674, 4
        %v677 = vor.u32 %v676, %v672
        %v678 = vrot.slane %v677, 4
        %v680 = vshll.u32 %v326, 16
        %v682 = vrot.slane %v680, 5
        %v683 = vsel %vm347, %v678, %v682
        %v685 = vshrl.u32 %v327, 16
        %v687 = vrot.slane %v685, 4
        %v688 = vshll.u32 %v327, 16
        %v690 = vrot.slane %v688, 5
        %v691 = vor.u32 %v687, %v690
        %v692 = vrot.slane %v691, 4
        %v694 = vshll.u32 %v328, 16
        %v696 = vrot.slane %v694, 5
        %v697 = vsel %vm347, %v692, %v696
        %v698 = vshrl.u32 %v328, 16
        %v700 = vrot.slane %v698, 4
        %v701 = vor.u32 %v700, %v696
        %v702 = vrot.slane %v701, 4
        %v704 = vshll.u32 %v329, 16
        %v706 = vrot.slane %v704, 5
        %v707 = vsel %vm347, %v702, %v706
        %v709 = vshrl.u32 %v330, 16
        %v711 = vrot.slane %v709, 4
        %v712 = vshll.u32 %v330, 16
        %v714 = vrot.slane %v712, 5
        %v715 = vor.u32 %v711, %v714
        %v716 = vrot.slane %v715, 4
        %v718 = vshll.u32 %v331, 16
        %v720 = vrot.slane %v718, 5
        %v721 = vsel %vm347, %v716, %v720
        %v722 = vshrl.u32 %v331, 16
        %v724 = vrot.slane %v722, 4
        %v725 = vor.u32 %v724, %v720
        %v726 = vrot.slane %v725, 4
        %v728 = vshll.u32 %v332, 16
        %v730 = vrot.slane %v728, 5
        %v731 = vsel %vm347, %v726, %v730
        %v733 = vshrl.u32 %v333, 16
        %v735 = vrot.slane %v733, 4
        %v736 = vshll.u32 %v333, 16
        %v738 = vrot.slane %v736, 5
        %v739 = vor.u32 %v735, %v738
        %v740 = vrot.slane %v739, 4
        %v742 = vshll.u32 %v334, 16
        %v744 = vrot.slane %v742, 5
        %v745 = vsel %vm347, %v740, %v744
        %v746 = vshrl.u32 %v334, 16
        %v748 = vrot.slane %v746, 4
        %v749 = vor.u32 %v748, %v744
        %v750 = vrot.slane %v749, 4
        %v752 = vshll.u32 %v335, 16
        %v754 = vrot.slane %v752, 5
        %v755 = vsel %vm347, %v750, %v754
        %v757 = vshrl.u32 %v336, 16
        %v759 = vrot.slane %v757, 4
        %v760 = vshll.u32 %v336, 16
        %v762 = vrot.slane %v760, 5
        %v763 = vor.u32 %v759, %v762
        %v764 = vrot.slane %v763, 4
        %v766 = vshll.u32 %v337, 16
        %v768 = vrot.slane %v766, 5
        %v769 = vsel %vm347, %v764, %v768
        %v770 = vshrl.u32 %v337, 16
        %v772 = vrot.slane %v770, 4
        %v773 = vor.u32 %v772, %v768
        %v774 = vrot.slane %v773, 4
        %v776 = vshll.u32 %v338, 16
        %v778 = vrot.slane %v776, 5
        %v779 = vsel %vm347, %v774, %v778
        %vm834 = vcmask 1042432
        %vm835 = vcmask 1046532
        %vm836 = vmor %vm834, %vm835
        %v837 = vrot.slane %v285, 5
        %v838 = vrot.slane %v837, 4
        %v839 = vrot.slane %v286, 5
        %v840 = vsel %vm836, %v838, %v839
        %v841 = vrot.slane %v839, 4
        %v842 = vrot.slane %v287, 5
        %v843 = vsel %vm836, %v841, %v842
        %v844 = vrot.slane %v288, 5
        %v845 = vrot.slane %v844, 4
        %v846 = vrot.slane %v289, 5
        %v847 = vsel %vm836, %v845, %v846
        %v848 = vrot.slane %v846, 4
        %v849 = vrot.slane %v290, 5
        %v850 = vsel %vm836, %v848, %v849
        %v851 = vrot.slane %v291, 5
        %v852 = vrot.slane %v851, 4
        %v853 = vrot.slane %v292, 5
        %v854 = vsel %vm836, %v852, %v853
        %v855 = vrot.slane %v853, 4
        %v856 = vrot.slane %v293, 5
        %v857 = vsel %vm836, %v855, %v856
        %v858 = vrot.slane %v294, 5
        %v859 = vrot.slane %v858, 4
        %v860 = vrot.slane %v295, 5
        %v861 = vsel %vm836, %v859, %v860
        %v862 = vrot.slane %v860, 4
        %v863 = vrot.slane %v296, 5
        %v864 = vsel %vm836, %v862, %v863
        %v865 = vrot.slane %v297, 5
        %v866 = vrot.slane %v865, 4
        %v867 = vrot.slane %v298, 5
        %v868 = vsel %vm836, %v866, %v867
        %v869 = vrot.slane %v867, 4
        %v870 = vrot.slane %v299, 5
        %v871 = vsel %vm836, %v869, %v870
        %v872 = vrot.slane %v300, 5
        %v873 = vrot.slane %v872, 4
        %v874 = vrot.slane %v301, 5
        %v875 = vsel %vm836, %v873, %v874
        %v876 = vrot.slane %v874, 4
        %v877 = vrot.slane %v302, 5
        %v878 = vsel %vm836, %v876, %v877
        %v879 = vrot.slane %v303, 5
        %v880 = vrot.slane %v879, 4
        %v881 = vrot.slane %v304, 5
        %v882 = vsel %vm836, %v880, %v881
        %v883 = vrot.slane %v881, 4
        %v884 = vrot.slane %v305, 5
        %v885 = vsel %vm836, %v883, %v884
        %v886 = vrot.slane %v306, 5
        %v887 = vrot.slane %v886, 4
        %v888 = vrot.slane %v307, 5
        %v889 = vsel %vm836, %v887, %v888
        %v890 = vrot.slane %v888, 4
        %v891 = vrot.slane %v308, 5
        %v892 = vsel %vm836, %v890, %v891
        %v893 = vrot.slane %v309, 5
        %v894 = vrot.slane %v893, 4
        %v895 = vrot.slane %v310, 5
        %v896 = vsel %vm836, %v894, %v895
        %v897 = vrot.slane %v895, 4
        %v898 = vrot.slane %v311, 5
        %v899 = vsel %vm836, %v897, %v898
        %v900 = vrot.slane %v312, 5
        %v901 = vrot.slane %v900, 4
        %v902 = vrot.slane %v313, 5
        %v903 = vsel %vm836, %v901, %v902
        %v904 = vrot.slane %v902, 4
        %v905 = vrot.slane %v314, 5
        %v906 = vsel %vm836, %v904, %v905
        %v907 = vrot.slane %v315, 5
        %v908 = vrot.slane %v907, 4
        %v909 = vrot.slane %v316, 5
        %v910 = vsel %vm836, %v908, %v909
        %v911 = vrot.slane %v909, 4
        %v912 = vrot.slane %v317, 5
        %v913 = vsel %vm836, %v911, %v912
        %v914 = vrot.slane %v318, 5
        %v915 = vrot.slane %v914, 4
        %v916 = vrot.slane %v319, 5
        %v917 = vsel %vm836, %v915, %v916
        %v918 = vrot.slane %v916, 4
        %v919 = vrot.slane %v320, 5
        %v920 = vsel %vm836, %v918, %v919
        %v921 = vrot.slane %v321, 5
        %v922 = vrot.slane %v921, 4
        %v923 = vrot.slane %v322, 5
        %v924 = vsel %vm836, %v922, %v923
        %v925 = vrot.slane %v923, 4
        %v926 = vrot.slane %v323, 5
        %v927 = vsel %vm836, %v925, %v926
        %v928 = vrot.slane %v324, 5
        %v929 = vrot.slane %v928, 4
        %v930 = vrot.slane %v325, 5
        %v931 = vsel %vm836, %v929, %v930
        %v932 = vrot.slane %v930, 4
        %v933 = vrot.slane %v326, 5
        %v934 = vsel %vm836, %v932, %v933
        %v935 = vrot.slane %v327, 5
        %v936 = vrot.slane %v935, 4
        %v937 = vrot.slane %v328, 5
        %v938 = vsel %vm836, %v936, %v937
        %v939 = vrot.slane %v937, 4
        %v940 = vrot.slane %v329, 5
        %v941 = vsel %vm836, %v939, %v940
        %v942 = vrot.slane %v330, 5
        %v943 = vrot.slane %v942, 4
        %v944 = vrot.slane %v331, 5
        %v945 = vsel %vm836, %v943, %v944
        %v946 = vrot.slane %v944, 4
        %v947 = vrot.slane %v332, 5
        %v948 = vsel %vm836, %v946, %v947
        %v949 = vrot.slane %v333, 5
        %v950 = vrot.slane %v949, 4
        %v951 = vrot.slane %v334, 5
        %v952 = vsel %vm836, %v950, %v951
        %v953 = vrot.slane %v951, 4
        %v954 = vrot.slane %v335, 5
        %v955 = vsel %vm836, %v953, %v954
        %v956 = vrot.slane %v336, 5
        %v957 = vrot.slane %v956, 4
        %v958 = vrot.slane %v337, 5
        %v959 = vsel %vm836, %v957, %v958
        %v960 = vrot.slane %v958, 4
        %v961 = vrot.slane %v338, 5
        %v962 = vsel %vm836, %v960, %v961
        %v963 = vunpack.c.l.b16 %v285
        %v964 = vunpack.c.l.b16 %v286
        %v965 = vunpack.c.l.b16 %v288
        %v966 = vunpack.c.l.b16 %v289
        %v967 = vunpack.c.l.b16 %v291
        %v968 = vunpack.c.l.b16 %v292
        %v969 = vunpack.c.l.b16 %v294
        %v970 = vunpack.c.l.b16 %v295
        %v971 = vunpack.c.l.b16 %v297
        %v972 = vunpack.c.l.b16 %v298
        %v973 = vunpack.c.l.b16 %v300
        %v974 = vunpack.c.l.b16 %v301
        %v975 = vunpack.c.l.b16 %v303
        %v976 = vunpack.c.l.b16 %v304
        %v977 = vunpack.c.l.b16 %v306
        %v978 = vunpack.c.l.b16 %v307
        %v979 = vunpack.c.l.b16 %v309
        %v980 = vunpack.c.l.b16 %v310
        %v981 = vunpack.c.l.b16 %v312
        %v982 = vunpack.c.l.b16 %v313
        %v983 = vunpack.c.l.b16 %v315
        %v984 = vunpack.c.l.b16 %v316
        %v985 = vunpack.c.l.b16 %v318
        %v986 = vunpack.c.l.b16 %v319
        %v987 = vunpack.c.l.b16 %v321
        %v988 = vunpack.c.l.b16 %v322
        %v989 = vunpack.c.l.b16 %v324
        %v990 = vunpack.c.l.b16 %v325
        %v991 = vunpack.c.l.b16 %v327
        %v992 = vunpack.c.l.b16 %v328
        %v993 = vunpack.c.l.b16 %v330
        %v994 = vunpack.c.l.b16 %v331
        %v995 = vunpack.c.l.b16 %v333
        %v996 = vunpack.c.l.b16 %v334
        %v997 = vunpack.c.l.b16 %v336
        %v998 = vunpack.c.l.b16 %v337
        %v999 = vpack.c.b16 %v964, %v963
        %v1000 = vpack.c.b16 %v966, %v965
        %v1001 = vpack.c.b16 %v968, %v967
        %v1002 = vpack.c.b16 %v970, %v969
        %v1003 = vpack.c.b16 %v972, %v971
        %v1004 = vpack.c.b16 %v974, %v973
        %v1005 = vpack.c.b16 %v976, %v975
        %v1006 = vpack.c.b16 %v978, %v977
        %v1007 = vpack.c.b16 %v980, %v979
        %v1008 = vpack.c.b16 %v982, %v981
        %v1009 = vpack.c.b16 %v984, %v983
        %v1010 = vpack.c.b16 %v986, %v985
        %v1011 = vpack.c.b16 %v988, %v987
        %v1012 = vpack.c.b16 %v990, %v989
        %v1013 = vpack.c.b16 %v992, %v991
        %v1014 = vpack.c.b16 %v994, %v993
        %v1015 = vpack.c.b16 %v996, %v995
        %v1016 = vpack.c.b16 %v998, %v997
        %v1035 = vunpack.c.l.b16 %v361
        %v1036 = vunpack.c.l.b16 %v371
        %v1037 = vunpack.c.l.b16 %v385
        %v1038 = vunpack.c.l.b16 %v395
        %v1039 = vunpack.c.l.b16 %v409
        %v1040 = vunpack.c.l.b16 %v419
        %v1041 = vunpack.c.l.b16 %v433
        %v1042 = vunpack.c.l.b16 %v443
        %v1043 = vunpack.c.l.b16 %v457
        %v1044 = vunpack.c.l.b16 %v467
        %v1045 = vunpack.c.l.b16 %v481
        %v1046 = vunpack.c.l.b16 %v491
        %v1047 = vunpack.c.l.b16 %v505
        %v1048 = vunpack.c.l.b16 %v515
        %v1049 = vunpack.c.l.b16 %v529
        %v1050 = vunpack.c.l.b16 %v539
        %v1051 = vunpack.c.l.b16 %v553
        %v1052 = vunpack.c.l.b16 %v563
        %v1053 = vunpack.c.l.b16 %v577
        %v1054 = vunpack.c.l.b16 %v587
        %v1055 = vunpack.c.l.b16 %v601
        %v1056 = vunpack.c.l.b16 %v611
        %v1057 = vunpack.c.l.b16 %v625
        %v1058 = vunpack.c.l.b16 %v635
        %v1059 = vunpack.c.l.b16 %v649
        %v1060 = vunpack.c.l.b16 %v659
        %v1061 = vunpack.c.l.b16 %v673
        %v1062 = vunpack.c.l.b16 %v683
        %v1063 = vunpack.c.l.b16 %v697
        %v1064 = vunpack.c.l.b16 %v707
        %v1065 = vunpack.c.l.b16 %v721
        %v1066 = vunpack.c.l.b16 %v731
        %v1067 = vunpack.c.l.b16 %v745
        %v1068 = vunpack.c.l.b16 %v755
        %v1069 = vunpack.c.l.b16 %v769
        %v1070 = vunpack.c.l.b16 %v779
        %v1071 = vpack.c.b16 %v1036, %v1035
        %v1072 = vpack.c.b16 %v1038, %v1037
        %v1073 = vpack.c.b16 %v1040, %v1039
        %v1074 = vpack.c.b16 %v1042, %v1041
        %v1075 = vpack.c.b16 %v1044, %v1043
        %v1076 = vpack.c.b16 %v1046, %v1045
        %v1077 = vpack.c.b16 %v1048, %v1047
        %v1078 = vpack.c.b16 %v1050, %v1049
        %v1079 = vpack.c.b16 %v1052, %v1051
        %v1080 = vpack.c.b16 %v1054, %v1053
        %v1081 = vpack.c.b16 %v1056, %v1055
        %v1082 = vpack.c.b16 %v1058, %v1057
        %v1083 = vpack.c.b16 %v1060, %v1059
        %v1084 = vpack.c.b16 %v1062, %v1061
        %v1085 = vpack.c.b16 %v1064, %v1063
        %v1086 = vpack.c.b16 %v1066, %v1065
        %v1087 = vpack.c.b16 %v1068, %v1067
        %v1088 = vpack.c.b16 %v1070, %v1069
        %v1107 = vunpack.c.l.b16 %v840
        %v1108 = vunpack.c.l.b16 %v843
        %v1109 = vunpack.c.l.b16 %v847
        %v1110 = vunpack.c.l.b16 %v850
        %v1111 = vunpack.c.l.b16 %v854
        %v1112 = vunpack.c.l.b16 %v857
        %v1113 = vunpack.c.l.b16 %v861
        %v1114 = vunpack.c.l.b16 %v864
        %v1115 = vunpack.c.l.b16 %v868
        %v1116 = vunpack.c.l.b16 %v871
        %v1117 = vunpack.c.l.b16 %v875
        %v1118 = vunpack.c.l.b16 %v878
        %v1119 = vunpack.c.l.b16 %v882
        %v1120 = vunpack.c.l.b16 %v885
        %v1121 = vunpack.c.l.b16 %v889
        %v1122 = vunpack.c.l.b16 %v892
        %v1123 = vunpack.c.l.b16 %v896
        %v1124 = vunpack.c.l.b16 %v899
        %v1125 = vunpack.c.l.b16 %v903
        %v1126 = vunpack.c.l.b16 %v906
        %v1127 = vunpack.c.l.b16 %v910
        %v1128 = vunpack.c.l.b16 %v913
        %v1129 = vunpack.c.l.b16 %v917
        %v1130 = vunpack.c.l.b16 %v920
        %v1131 = vunpack.c.l.b16 %v924
        %v1132 = vunpack.c.l.b16 %v927
        %v1133 = vunpack.c.l.b16 %v931
        %v1134 = vunpack.c.l.b16 %v934
        %v1135 = vunpack.c.l.b16 %v938
        %v1136 = vunpack.c.l.b16 %v941
        %v1137 = vunpack.c.l.b16 %v945
        %v1138 = vunpack.c.l.b16 %v948
        %v1139 = vunpack.c.l.b16 %v952
        %v1140 = vunpack.c.l.b16 %v955
        %v1141 = vunpack.c.l.b16 %v959
        %v1142 = vunpack.c.l.b16 %v962
        %v1143 = vpack.c.b16 %v1108, %v1107
        %v1144 = vpack.c.b16 %v1110, %v1109
        %v1145 = vpack.c.b16 %v1112, %v1111
        %v1146 = vpack.c.b16 %v1114, %v1113
        %v1147 = vpack.c.b16 %v1116, %v1115
        %v1148 = vpack.c.b16 %v1118, %v1117
        %v1149 = vpack.c.b16 %v1120, %v1119
        %v1150 = vpack.c.b16 %v1122, %v1121
        %v1151 = vpack.c.b16 %v1124, %v1123
        %v1152 = vpack.c.b16 %v1126, %v1125
        %v1153 = vpack.c.b16 %v1128, %v1127
        %v1154 = vpack.c.b16 %v1130, %v1129
        %v1155 = vpack.c.b16 %v1132, %v1131
        %v1156 = vpack.c.b16 %v1134, %v1133
        %v1157 = vpack.c.b16 %v1136, %v1135
        %v1158 = vpack.c.b16 %v1138, %v1137
        %v1159 = vpack.c.b16 %v1140, %v1139
        %v1160 = vpack.c.b16 %v1142, %v1141
        %v1179 = vld [vmem:[%s1] sm:$0xf]
        %v1180 = vld [vmem:[%s1 + $0x4] sm:$0xf]
        %v1181 = vld [vmem:[%s1 + $0x8] sm:$0xf]
        %v1182 = vld [vmem:[%s1 + $0xc] sm:$0xf]
        %v1183 = vld [vmem:[%s1 + $0x10] sm:$0xf]
        %v1184 = vld [vmem:[%s1 + $0x14] sm:$0xf]
        %v1185 = vld [vmem:[%s1 + $0x18] sm:$0xf]
        %v1186 = vld [vmem:[%s1 + $0x1c] sm:$0xf]
        %v1187 = vld [vmem:[%s1 + $0x20] sm:$0xf]
        %v1188 = vld [vmem:[%s1 + $0x24] sm:$0xf]
        %v1189 = vld [vmem:[%s1 + $0x28] sm:$0xf]
        %v1190 = vld [vmem:[%s1 + $0x2c] sm:$0xf]
        %v1191 = vld [vmem:[%s1 + $0x30] sm:$0xf]
        %v1192 = vld [vmem:[%s1 + $0x34] sm:$0xf]
        %v1193 = vld [vmem:[%s1 + $0x38] sm:$0xf]
        %v1194 = vld [vmem:[%s1 + $0x3c] sm:$0xf]
        %v1195 = vld [vmem:[%s1 + $0x40] sm:$0xf]
        %v1196 = vld [vmem:[%s1 + $0x44] sm:$0xf]
        %v1197 = vld [vmem:[%s1 + $0x48] sm:$0xf]
        %v1198 = vld [vmem:[%s1 + $0x4c] sm:$0xf]
        %v1199 = vld [vmem:[%s1 + $0x50] sm:$0xf]
        %v1200 = vld [vmem:[%s1 + $0x54] sm:$0xf]
        %v1201 = vld [vmem:[%s1 + $0x58] sm:$0xf]
        %v1202 = vld [vmem:[%s1 + $0x5c] sm:$0xf]
        %v1203 = vld [vmem:[%s1 + $0x60] sm:$0xf]
        %v1204 = vld [vmem:[%s1 + $0x64] sm:$0xf]
        %v1205 = vld [vmem:[%s1 + $0x68] sm:$0xf]
        %v1206 = vld [vmem:[%s1 + $0x6c] sm:$0xf]
        %v1207 = vld [vmem:[%s1 + $0x70] sm:$0xf]
        %v1208 = vld [vmem:[%s1 + $0x74] sm:$0xf]
        %v1209 = vld [vmem:[%s1 + $0x78] sm:$0xf]
        %v1210 = vld [vmem:[%s1 + $0x7c] sm:$0xf]
        %v1211 = vld [vmem:[%s1 + $0x80] sm:$0xf]
        %v1212 = vld [vmem:[%s1 + $0x84] sm:$0xf]
        %v1213 = vld [vmem:[%s1 + $0x88] sm:$0xf]
        %v1214 = vld [vmem:[%s1 + $0x8c] sm:$0xf]
        %v1215 = vld [vmem:[%s1 + $0x90] sm:$0xf]
        %v1216 = vld [vmem:[%s1 + $0x94] sm:$0xf]
        %v1217 = vld [vmem:[%s1 + $0x98] sm:$0xf]
        %v1218 = vld [vmem:[%s1 + $0x9c] sm:$0xf]
        %v1219 = vld [vmem:[%s1 + $0xa0] sm:$0xf]
        %v1220 = vld [vmem:[%s1 + $0xa4] sm:$0xf]
        %v1221 = vld [vmem:[%s1 + $0xa8] sm:$0xf]
        %v1222 = vld [vmem:[%s1 + $0xac] sm:$0xf]
        %v1223 = vld [vmem:[%s1 + $0xb0] sm:$0xf]
        %v1224 = vld [vmem:[%s1 + $0xb4] sm:$0xf]
        %v1225 = vld [vmem:[%s1 + $0xb8] sm:$0xf]
        %v1226 = vld [vmem:[%s1 + $0xbc] sm:$0xf]
        %v1228 = vshrl.u32 %v339, 16
        %v1230 = vrot.slane %v1228, 4
        %v1231 = vshll.u32 %v339, 16
        %v1233 = vrot.slane %v1231, 5
        %v1234 = vor.u32 %v1230, %v1233
        %v1235 = vrot.slane %v1234, 4
        %v1237 = vshll.u32 %v340, 16
        %v1239 = vrot.slane %v1237, 5
        %v1240 = vsel %vm347, %v1235, %v1239
        %v1241 = vshrl.u32 %v340, 16
        %v1243 = vrot.slane %v1241, 4
        %v1244 = vor.u32 %v1243, %v1239
        %v1245 = vrot.slane %v1244, 4
        %v1247 = vshll.u32 %v341, 16
        %v1249 = vrot.slane %v1247, 5
        %v1250 = vsel %vm347, %v1245, %v1249
        %v1254 = vrot.slane %v339, 5
        %v1255 = vrot.slane %v1254, 4
        %v1256 = vrot.slane %v340, 5
        %v1257 = vsel %vm836, %v1255, %v1256
        %v1258 = vrot.slane %v1256, 4
        %v1259 = vrot.slane %v341, 5
        %v1260 = vsel %vm836, %v1258, %v1259
        %v1261 = vunpack.c.l.b16 %v339
        %v1262 = vunpack.c.l.b16 %v340
        %v1263 = vpack.c.b16 %v1262, %v1261
        %v1265 = vunpack.c.l.b16 %v1240
        %v1266 = vunpack.c.l.b16 %v1250
        %v1267 = vpack.c.b16 %v1266, %v1265
        %v1269 = vunpack.c.l.b16 %v1257
        %v1270 = vunpack.c.l.b16 %v1260
        %v1271 = vpack.c.b16 %v1270, %v1269
        %v1273 = vld [vmem:[%s1 + $0xc0] sm:$0xf]
        %v1274 = vld [vmem:[%s1 + $0xc4] sm:$0xf]
        %v1275 = vld [vmem:[%s1 + $0xc8] sm:$0xf]
        %v1276 = vld [vmem:[%s1 + $0xcc] sm:$0xf]
        %v1277 = vld [vmem:[%s1 + $0xd0] sm:$0xf]
        %v1278 = vld [vmem:[%s1 + $0xd4] sm:$0xf]
        %v1279 = vld [vmem:[%s1 + $0xd8] sm:$0xf]
        %v1280 = vld [vmem:[%s1 + $0xdc] sm:$0xf]
        %v1281 = vld [vmem:[%s1 + $0xe0] sm:$0xf]
        %v1282 = vld [vmem:[%s1 + $0xe4] sm:$0xf]
        %v1283 = vld [vmem:[%s1 + $0xe8] sm:$0xf]
        %v1284 = vld [vmem:[%s1 + $0xec] sm:$0xf]
        %v1285 = vld [vmem:[%s1 + $0xf0] sm:$0xf]
        %v1286 = vld [vmem:[%s1 + $0xf4] sm:$0xf]
        %v1287 = vld [vmem:[%s1 + $0xf8] sm:$0xf]
        %v1288 = vld [vmem:[%s1 + $0xfc] sm:$0xf]
        %v1289 = vld [vmem:[%s1 + $0x100] sm:$0xf]
        %v1290 = vld [vmem:[%s1 + $0x104] sm:$0xf]
        %v1291 = vld [vmem:[%s1 + $0x108] sm:$0xf]
        %v1292 = vld [vmem:[%s1 + $0x10c] sm:$0xf]
        %v1293 = vld [vmem:[%s1 + $0x110] sm:$0xf]
        %v1294 = vld [vmem:[%s1 + $0x114] sm:$0xf]
        %v1295 = vld [vmem:[%s1 + $0x118] sm:$0xf]
        %v1296 = vld [vmem:[%s1 + $0x11c] sm:$0xf]
        %v1297 = vld [vmem:[%s1 + $0x120] sm:$0xf]
        %v1298 = vld [vmem:[%s1 + $0x124] sm:$0xf]
        %v1299 = vld [vmem:[%s1 + $0x128] sm:$0xf]
        %v1300 = vld [vmem:[%s1 + $0x12c] sm:$0xf]
        %v1301 = vld [vmem:[%s1 + $0x130] sm:$0xf]
        %v1302 = vld [vmem:[%s1 + $0x134] sm:$0xf]
        %v1303 = vld [vmem:[%s1 + $0x138] sm:$0xf]
        %v1304 = vld [vmem:[%s1 + $0x13c] sm:$0xf]
        %v1305 = vld [vmem:[%s1 + $0x140] sm:$0xf]
        %v1306 = vld [vmem:[%s1 + $0x144] sm:$0xf]
        %v1307 = vld [vmem:[%s1 + $0x148] sm:$0xf]
        %v1308 = vld [vmem:[%s1 + $0x14c] sm:$0xf]
        %v1309 = vld [vmem:[%s1 + $0x150] sm:$0xf]
        %v1310 = vld [vmem:[%s1 + $0x154] sm:$0xf]
        %v1311 = vld [vmem:[%s1 + $0x158] sm:$0xf]
        %v1312 = vld [vmem:[%s1 + $0x15c] sm:$0xf]
        %v1313 = vld [vmem:[%s1 + $0x160] sm:$0xf]
        %v1314 = vld [vmem:[%s1 + $0x164] sm:$0xf]
        %v1315 = vld [vmem:[%s1 + $0x168] sm:$0xf]
        %v1316 = vld [vmem:[%s1 + $0x16c] sm:$0xf]
        %v1317 = vld [vmem:[%s1 + $0x170] sm:$0xf]
        %v1318 = vld [vmem:[%s1 + $0x174] sm:$0xf]
        %v1319 = vld [vmem:[%s1 + $0x178] sm:$0xf]
        %v1320 = vld [vmem:[%s1 + $0x17c] sm:$0xf]
        %v1369 = vunpack.c.l.b16 %v1273
        %v1370 = vunpack.c.l.b16 %v1274
        %v1371 = vunpack.c.l.b16 %v1275
        %v1372 = vunpack.c.l.b16 %v1276
        %v1373 = vunpack.c.l.b16 %v1277
        %v1374 = vunpack.c.l.b16 %v1278
        %v1375 = vunpack.c.l.b16 %v1279
        %v1376 = vunpack.c.l.b16 %v1280
        %v1377 = vunpack.c.l.b16 %v1281
        %v1378 = vunpack.c.l.b16 %v1282
        %v1379 = vunpack.c.l.b16 %v1283
        %v1380 = vunpack.c.l.b16 %v1284
        %v1381 = vunpack.c.l.b16 %v1285
        %v1382 = vunpack.c.l.b16 %v1286
        %v1383 = vunpack.c.l.b16 %v1287
        %v1384 = vunpack.c.l.b16 %v1288
        %v1385 = vunpack.c.l.b16 %v1289
        %v1386 = vunpack.c.l.b16 %v1290
        %v1387 = vunpack.c.l.b16 %v1291
        %v1388 = vunpack.c.l.b16 %v1292
        %v1389 = vunpack.c.l.b16 %v1293
        %v1390 = vunpack.c.l.b16 %v1294
        %v1391 = vunpack.c.l.b16 %v1295
        %v1392 = vunpack.c.l.b16 %v1296
        %v1393 = vunpack.c.l.b16 %v1297
        %v1394 = vunpack.c.l.b16 %v1298
        %v1395 = vunpack.c.l.b16 %v1299
        %v1396 = vunpack.c.l.b16 %v1300
        %v1397 = vunpack.c.l.b16 %v1301
        %v1398 = vunpack.c.l.b16 %v1302
        %v1399 = vunpack.c.l.b16 %v1303
        %v1400 = vunpack.c.l.b16 %v1304
        %v1401 = vunpack.c.l.b16 %v1305
        %v1402 = vunpack.c.l.b16 %v1306
        %v1403 = vunpack.c.l.b16 %v1307
        %v1404 = vunpack.c.l.b16 %v1308
        %v1405 = vunpack.c.l.b16 %v1309
        %v1406 = vunpack.c.l.b16 %v1310
        %v1407 = vunpack.c.l.b16 %v1311
        %v1408 = vunpack.c.l.b16 %v1312
        %v1409 = vunpack.c.l.b16 %v1313
        %v1410 = vunpack.c.l.b16 %v1314
        %v1411 = vunpack.c.l.b16 %v1315
        %v1412 = vunpack.c.l.b16 %v1316
        %v1413 = vunpack.c.l.b16 %v1317
        %v1414 = vunpack.c.l.b16 %v1318
        %v1415 = vunpack.c.l.b16 %v1319
        %v1416 = vunpack.c.l.b16 %v1320
        %v1417 = vpack.c.b16 %v1370, %v1369
        %v1418 = vpack.c.b16 %v1372, %v1371
        %v1419 = vpack.c.b16 %v1374, %v1373
        %v1420 = vpack.c.b16 %v1376, %v1375
        %v1421 = vpack.c.b16 %v1378, %v1377
        %v1422 = vpack.c.b16 %v1380, %v1379
        %v1423 = vpack.c.b16 %v1382, %v1381
        %v1424 = vpack.c.b16 %v1384, %v1383
        %v1425 = vpack.c.b16 %v1386, %v1385
        %v1426 = vpack.c.b16 %v1388, %v1387
        %v1427 = vpack.c.b16 %v1390, %v1389
        %v1428 = vpack.c.b16 %v1392, %v1391
        %v1429 = vpack.c.b16 %v1394, %v1393
        %v1430 = vpack.c.b16 %v1396, %v1395
        %v1431 = vpack.c.b16 %v1398, %v1397
        %v1432 = vpack.c.b16 %v1400, %v1399
        %v1433 = vpack.c.b16 %v1402, %v1401
        %v1434 = vpack.c.b16 %v1404, %v1403
        %v1435 = vpack.c.b16 %v1406, %v1405
        %v1436 = vpack.c.b16 %v1408, %v1407
        %v1437 = vpack.c.b16 %v1410, %v1409
        %v1438 = vpack.c.b16 %v1412, %v1411
        %v1439 = vpack.c.b16 %v1414, %v1413
        %v1440 = vpack.c.b16 %v1416, %v1415
        %1465 = vmatprep.subr.bf16.mxu0 0
        %1466 = vmatpush1.bf16.msra.mxu0 %v1424
        %1467 = vmatprep.subr.bf16.mxu0 0
        %1468 = vmatpush1.bf16.msra.mxu0 %v1423
        %1469 = vmatprep.subr.bf16.mxu0 0
        %1470 = vmatpush1.bf16.msra.mxu0 %v1422
        %1471 = vmatprep.subr.bf16.mxu0 0
        %1472 = vmatpush1.bf16.msra.mxu0 %v1421
        %1473 = vmatprep.subr.bf16.mxu0 0
        %1474 = vmatpush1.bf16.msra.mxu0 %v1420
        %1475 = vmatprep.subr.bf16.mxu0 0
        %1476 = vmatpush1.bf16.msra.mxu0 %v1419
        %1477 = vmatprep.subr.bf16.mxu0 0
        %1478 = vmatpush1.bf16.msra.mxu0 %v1418
        %1479 = vmatprep.subr.bf16.mxu0 0
        %1480 = vmatpush1.bf16.msra.mxu0 %v1417
        %1481 = vmatprep.subr.bf16.mxu0 0
        %1482 = vmatpush2.bf16.msra.mxu0 %v1432
        %1483 = vmatprep.subr.bf16.mxu0 0
        %1484 = vmatpush2.bf16.msra.mxu0 %v1431
        %1485 = vmatprep.subr.bf16.mxu0 0
        %1486 = vmatpush2.bf16.msra.mxu0 %v1430
        %1487 = vmatprep.subr.bf16.mxu0 0
        %1488 = vmatpush2.bf16.msra.mxu0 %v1429
        %1489 = vmatprep.subr.bf16.mxu0 0
        %1490 = vmatpush2.bf16.msra.mxu0 %v1428
        %1491 = vmatprep.subr.bf16.mxu0 0
        %1492 = vmatpush2.bf16.msra.mxu0 %v1427
        %1493 = vmatprep.subr.bf16.mxu0 0
        %1494 = vmatpush2.bf16.msra.mxu0 %v1426
        %1495 = vmatprep.subr.bf16.mxu0 0
        %1496 = vmatpush2.bf16.msra.mxu0 %v1425
        %1497 = vmatprep.mubr.bf16.mxu0 %v1072
        %1498 = vmatmul.mubr.bf16.gmra.mxu0 %v1000
        %v1499 = vpop.f32.mrf.mxu0
        %v1500 = vadd.f32 0.0, %v1499
        %v1501 = vpop.f32.mrf.mxu0
        %v1502 = vpop.f32.mrf.mxu0
        %v1503 = vadd.f32 0.0, %v1502
        %v1504 = vpop.f32.mrf.mxu0
        %1505 = vmatprep.mubr.bf16.mxu0 %v1073
        %1506 = vmatmul.mubr.bf16.gmra.mxu0 %v1001
        %v1507 = vpop.f32.mrf.mxu0
        %v1508 = vadd.f32 0.0, %v1507
        %v1509 = vpop.f32.mrf.mxu0
        %v1510 = vpop.f32.mrf.mxu0
        %v1511 = vadd.f32 0.0, %v1510
        %v1512 = vpop.f32.mrf.mxu0
        %1513 = vmatprep.mubr.bf16.mxu0 %v1074
        %1514 = vmatmul.mubr.bf16.gmra.mxu0 %v1002
        %v1515 = vpop.f32.mrf.mxu0
        %v1516 = vadd.f32 0.0, %v1515
        %v1517 = vpop.f32.mrf.mxu0
        %v1518 = vpop.f32.mrf.mxu0
        %v1519 = vadd.f32 0.0, %v1518
        %v1520 = vpop.f32.mrf.mxu0
        %1521 = vmatprep.mubr.bf16.mxu0 %v1075
        %1522 = vmatmul.mubr.bf16.gmra.mxu0 %v1003
        %v1523 = vpop.f32.mrf.mxu0
        %v1524 = vadd.f32 0.0, %v1523
        %v1525 = vpop.f32.mrf.mxu0
        %v1526 = vpop.f32.mrf.mxu0
        %v1527 = vadd.f32 0.0, %v1526
        %v1528 = vpop.f32.mrf.mxu0
        %1529 = vmatprep.mubr.bf16.mxu0 %v1076
        %1530 = vmatmul.mubr.bf16.gmra.mxu0 %v1004
        %v1531 = vpop.f32.mrf.mxu0
        %v1532 = vadd.f32 0.0, %v1531
        %v1533 = vpop.f32.mrf.mxu0
        %v1534 = vpop.f32.mrf.mxu0
        %v1535 = vadd.f32 0.0, %v1534
        %v1536 = vpop.f32.mrf.mxu0
        %1537 = vmatprep.mubr.bf16.mxu0 %v1077
        %1538 = vmatmul.mubr.bf16.gmra.mxu0 %v1005
        %v1539 = vpop.f32.mrf.mxu0
        %v1540 = vadd.f32 0.0, %v1539
        %v1541 = vpop.f32.mrf.mxu0
        %v1542 = vpop.f32.mrf.mxu0
        %v1543 = vadd.f32 0.0, %v1542
        %v1544 = vpop.f32.mrf.mxu0
        %1545 = vmatprep.mubr.bf16.mxu0 %v1078
        %1546 = vmatmul.mubr.bf16.gmra.mxu0 %v1006
        %v1547 = vpop.f32.mrf.mxu0
        %v1548 = vadd.f32 0.0, %v1547
        %v1549 = vpop.f32.mrf.mxu0
        %v1550 = vpop.f32.mrf.mxu0
        %v1551 = vadd.f32 0.0, %v1550
        %v1552 = vpop.f32.mrf.mxu0
        %1553 = vmatprep.mubr.bf16.mxu0 %v1079
        %1554 = vmatmul.mubr.bf16.gmra.mxu0 %v1007
        %v1555 = vpop.f32.mrf.mxu0
        %v1556 = vadd.f32 0.0, %v1555
        %v1557 = vpop.f32.mrf.mxu0
        %v1558 = vpop.f32.mrf.mxu0
        %v1559 = vadd.f32 0.0, %v1558
        %v1560 = vpop.f32.mrf.mxu0
        %1561 = vmatprep.mubr.bf16.mxu0 %v1080
        %1562 = vmatmul.mubr.bf16.gmra.mxu0 %v1008
        %v1563 = vpop.f32.mrf.mxu0
        %v1564 = vadd.f32 0.0, %v1563
        %v1565 = vpop.f32.mrf.mxu0
        %v1566 = vpop.f32.mrf.mxu0
        %v1567 = vadd.f32 0.0, %v1566
        %v1568 = vpop.f32.mrf.mxu0
        %1569 = vmatprep.mubr.bf16.mxu0 %v1081
        %1570 = vmatmul.mubr.bf16.gmra.mxu0 %v1009
        %v1571 = vpop.f32.mrf.mxu0
        %v1572 = vadd.f32 0.0, %v1571
        %v1573 = vpop.f32.mrf.mxu0
        %v1574 = vpop.f32.mrf.mxu0
        %v1575 = vadd.f32 0.0, %v1574
        %v1576 = vpop.f32.mrf.mxu0
        %1577 = vmatprep.mubr.bf16.mxu0 %v1082
        %1578 = vmatmul.mubr.bf16.gmra.mxu0 %v1010
        %v1579 = vpop.f32.mrf.mxu0
        %v1580 = vadd.f32 0.0, %v1579
        %v1581 = vpop.f32.mrf.mxu0
        %v1582 = vpop.f32.mrf.mxu0
        %v1583 = vadd.f32 0.0, %v1582
        %v1584 = vpop.f32.mrf.mxu0
        %1585 = vmatprep.mubr.bf16.mxu0 %v1083
        %1586 = vmatmul.mubr.bf16.gmra.mxu0 %v1011
        %v1587 = vpop.f32.mrf.mxu0
        %v1588 = vadd.f32 0.0, %v1587
        %v1589 = vpop.f32.mrf.mxu0
        %v1590 = vpop.f32.mrf.mxu0
        %v1591 = vadd.f32 0.0, %v1590
        %v1592 = vpop.f32.mrf.mxu0
        %1593 = vmatprep.mubr.bf16.mxu0 %v1084
        %1594 = vmatmul.mubr.bf16.gmra.mxu0 %v1012
        %v1595 = vpop.f32.mrf.mxu0
        %v1596 = vadd.f32 0.0, %v1595
        %v1597 = vpop.f32.mrf.mxu0
        %v1598 = vpop.f32.mrf.mxu0
        %v1599 = vadd.f32 0.0, %v1598
        %v1600 = vpop.f32.mrf.mxu0
        %1601 = vmatprep.mubr.bf16.mxu0 %v1085
        %1602 = vmatmul.mubr.bf16.gmra.mxu0 %v1013
        %v1603 = vpop.f32.mrf.mxu0
        %v1604 = vadd.f32 0.0, %v1603
        %v1605 = vpop.f32.mrf.mxu0
        %v1606 = vpop.f32.mrf.mxu0
        %v1607 = vadd.f32 0.0, %v1606
        %v1608 = vpop.f32.mrf.mxu0
        %1609 = vmatprep.mubr.bf16.mxu0 %v1086
        %1610 = vmatmul.mubr.bf16.gmra.mxu0 %v1014
        %v1611 = vpop.f32.mrf.mxu0
        %v1612 = vadd.f32 0.0, %v1611
        %v1613 = vpop.f32.mrf.mxu0
        %v1614 = vpop.f32.mrf.mxu0
        %v1615 = vadd.f32 0.0, %v1614
        %v1616 = vpop.f32.mrf.mxu0
        %1617 = vmatprep.mubr.bf16.mxu0 %v1087
        %1618 = vmatmul.mubr.bf16.gmra.mxu0 %v1015
        %v1619 = vpop.f32.mrf.mxu0
        %v1620 = vadd.f32 0.0, %v1619
        %v1621 = vpop.f32.mrf.mxu0
        %v1622 = vpop.f32.mrf.mxu0
        %v1623 = vadd.f32 0.0, %v1622
        %v1624 = vpop.f32.mrf.mxu0
        %1625 = vmatprep.mubr.bf16.mxu0 %v1088
        %1626 = vmatmul.mubr.bf16.gmra.mxu0 %v1016
        %v1627 = vpop.f32.mrf.mxu0
        %v1628 = vadd.f32 0.0, %v1627
        %v1629 = vpop.f32.mrf.mxu0
        %v1630 = vpop.f32.mrf.mxu0
        %v1631 = vadd.f32 0.0, %v1630
        %v1632 = vpop.f32.mrf.mxu0
        %1633 = vmatprep.mubr.bf16.mxu0 %v1267
        %1634 = vmatmul.mubr.bf16.gmra.mxu0 %v1263
        %v1635 = vpop.f32.mrf.mxu0
        %v1636 = vadd.f32 0.0, %v1635
        %v1637 = vpop.f32.mrf.mxu0
        %v1638 = vpop.f32.mrf.mxu0
        %v1639 = vadd.f32 0.0, %v1638
        %v1640 = vpop.f32.mrf.mxu0
        %1641 = vdwg.mxu0
        %1642 = vmatprep.subr.bf16.mxu0 0
        %1643 = vmatpush1.bf16.msra.mxu0 %v1440
        %1644 = vmatprep.subr.bf16.mxu0 0
        %1645 = vmatpush1.bf16.msra.mxu0 %v1439
        %1646 = vmatprep.subr.bf16.mxu0 0
        %1647 = vmatpush1.bf16.msra.mxu0 %v1438
        %1648 = vmatprep.subr.bf16.mxu0 0
        %1649 = vmatpush1.bf16.msra.mxu0 %v1437
        %1650 = vmatprep.subr.bf16.mxu0 0
        %1651 = vmatpush1.bf16.msra.mxu0 %v1436
        %1652 = vmatprep.subr.bf16.mxu0 0
        %1653 = vmatpush1.bf16.msra.mxu0 %v1435
        %1654 = vmatprep.subr.bf16.mxu0 0
        %1655 = vmatpush1.bf16.msra.mxu0 %v1434
        %1656 = vmatprep.subr.bf16.mxu0 0
        %1657 = vmatpush1.bf16.msra.mxu0 %v1433
        %1658 = vmatprep.subr.bf16.mxu0 0
        %1659 = vmatpush2.bf16.msra.mxu0 0
        %1660 = vmatprep.subr.bf16.mxu0 0
        %1661 = vmatpush2.bf16.msra.mxu0 0
        %1662 = vmatprep.subr.bf16.mxu0 0
        %1663 = vmatpush2.bf16.msra.mxu0 0
        %1664 = vmatprep.subr.bf16.mxu0 0
        %1665 = vmatpush2.bf16.msra.mxu0 0
        %1666 = vmatprep.subr.bf16.mxu0 0
        %1667 = vmatpush2.bf16.msra.mxu0 0
        %1668 = vmatprep.subr.bf16.mxu0 0
        %1669 = vmatpush2.bf16.msra.mxu0 0
        %1670 = vmatprep.subr.bf16.mxu0 0
        %1671 = vmatpush2.bf16.msra.mxu0 0
        %1672 = vmatprep.subr.bf16.mxu0 0
        %1673 = vmatpush2.bf16.msra.mxu0 0
        %1674 = vmatprep.mubr.bf16.mxu0 0
        %1675 = vmatmul.mubr.bf16.gmra.mxu0 %v1144
        %v1676 = vpop.f32.mrf.mxu0
        %v1677 = vadd.f32 %v1500, %v1676
        %v1678 = vpop.f32.mrf.mxu0
        %v1679 = vpop.f32.mrf.mxu0
        %v1680 = vadd.f32 %v1503, %v1679
        %v1681 = vpop.f32.mrf.mxu0
        %1682 = vmatprep.mubr.bf16.mxu0 0
        %1683 = vmatmul.mubr.bf16.gmra.mxu0 %v1145
        %v1684 = vpop.f32.mrf.mxu0
        %v1685 = vadd.f32 %v1508, %v1684
        %v1686 = vpop.f32.mrf.mxu0
        %v1687 = vpop.f32.mrf.mxu0
        %v1688 = vadd.f32 %v1511, %v1687
        %v1689 = vpop.f32.mrf.mxu0
        %1690 = vmatprep.mubr.bf16.mxu0 0
        %1691 = vmatmul.mubr.bf16.gmra.mxu0 %v1146
        %v1692 = vpop.f32.mrf.mxu0
        %v1693 = vadd.f32 %v1516, %v1692
        %v1694 = vpop.f32.mrf.mxu0
        %v1695 = vpop.f32.mrf.mxu0
        %v1696 = vadd.f32 %v1519, %v1695
        %v1697 = vpop.f32.mrf.mxu0
        %1698 = vmatprep.mubr.bf16.mxu0 0
        %1699 = vmatmul.mubr.bf16.gmra.mxu0 %v1147
        %v1700 = vpop.f32.mrf.mxu0
        %v1701 = vadd.f32 %v1524, %v1700
        %v1702 = vpop.f32.mrf.mxu0
        %v1703 = vpop.f32.mrf.mxu0
        %v1704 = vadd.f32 %v1527, %v1703
        %v1705 = vpop.f32.mrf.mxu0
        %1706 = vmatprep.mubr.bf16.mxu0 0
        %1707 = vmatmul.mubr.bf16.gmra.mxu0 %v1148
        %v1708 = vpop.f32.mrf.mxu0
        %v1709 = vadd.f32 %v1532, %v1708
        %v1710 = vpop.f32.mrf.mxu0
        %v1711 = vpop.f32.mrf.mxu0
        %v1712 = vadd.f32 %v1535, %v1711
        %v1713 = vpop.f32.mrf.mxu0
        %1714 = vmatprep.mubr.bf16.mxu0 0
        %1715 = vmatmul.mubr.bf16.gmra.mxu0 %v1149
        %v1716 = vpop.f32.mrf.mxu0
        %v1717 = vadd.f32 %v1540, %v1716
        %v1718 = vpop.f32.mrf.mxu0
        %v1719 = vpop.f32.mrf.mxu0
        %v1720 = vadd.f32 %v1543, %v1719
        %v1721 = vpop.f32.mrf.mxu0
        %1722 = vmatprep.mubr.bf16.mxu0 0
        %1723 = vmatmul.mubr.bf16.gmra.mxu0 %v1150
        %v1724 = vpop.f32.mrf.mxu0
        %v1725 = vadd.f32 %v1548, %v1724
        %v1726 = vpop.f32.mrf.mxu0
        %v1727 = vpop.f32.mrf.mxu0
        %v1728 = vadd.f32 %v1551, %v1727
        %v1729 = vpop.f32.mrf.mxu0
        %1730 = vmatprep.mubr.bf16.mxu0 0
        %1731 = vmatmul.mubr.bf16.gmra.mxu0 %v1151
        %v1732 = vpop.f32.mrf.mxu0
        %v1733 = vadd.f32 %v1556, %v1732
        %v1734 = vpop.f32.mrf.mxu0
        %v1735 = vpop.f32.mrf.mxu0
        %v1736 = vadd.f32 %v1559, %v1735
        %v1737 = vpop.f32.mrf.mxu0
        %1738 = vmatprep.mubr.bf16.mxu0 0
        %1739 = vmatmul.mubr.bf16.gmra.mxu0 %v1152
        %v1740 = vpop.f32.mrf.mxu0
        %v1741 = vadd.f32 %v1564, %v1740
        %v1742 = vpop.f32.mrf.mxu0
        %v1743 = vpop.f32.mrf.mxu0
        %v1744 = vadd.f32 %v1567, %v1743
        %v1745 = vpop.f32.mrf.mxu0
        %1746 = vmatprep.mubr.bf16.mxu0 0
        %1747 = vmatmul.mubr.bf16.gmra.mxu0 %v1153
        %v1748 = vpop.f32.mrf.mxu0
        %v1749 = vadd.f32 %v1572, %v1748
        %v1750 = vpop.f32.mrf.mxu0
        %v1751 = vpop.f32.mrf.mxu0
        %v1752 = vadd.f32 %v1575, %v1751
        %v1753 = vpop.f32.mrf.mxu0
        %1754 = vmatprep.mubr.bf16.mxu0 0
        %1755 = vmatmul.mubr.bf16.gmra.mxu0 %v1154
        %v1756 = vpop.f32.mrf.mxu0
        %v1757 = vadd.f32 %v1580, %v1756
        %v1758 = vpop.f32.mrf.mxu0
        %v1759 = vpop.f32.mrf.mxu0
        %v1760 = vadd.f32 %v1583, %v1759
        %v1761 = vpop.f32.mrf.mxu0
        %1762 = vmatprep.mubr.bf16.mxu0 0
        %1763 = vmatmul.mubr.bf16.gmra.mxu0 %v1155
        %v1764 = vpop.f32.mrf.mxu0
        %v1765 = vadd.f32 %v1588, %v1764
        %v1766 = vpop.f32.mrf.mxu0
        %v1767 = vpop.f32.mrf.mxu0
        %v1768 = vadd.f32 %v1591, %v1767
        %v1769 = vpop.f32.mrf.mxu0
        %1770 = vmatprep.mubr.bf16.mxu0 0
        %1771 = vmatmul.mubr.bf16.gmra.mxu0 %v1156
        %v1772 = vpop.f32.mrf.mxu0
        %v1773 = vadd.f32 %v1596, %v1772
        %v1774 = vpop.f32.mrf.mxu0
        %v1775 = vpop.f32.mrf.mxu0
        %v1776 = vadd.f32 %v1599, %v1775
        %v1777 = vpop.f32.mrf.mxu0
        %1778 = vmatprep.mubr.bf16.mxu0 0
        %1779 = vmatmul.mubr.bf16.gmra.mxu0 %v1157
        %v1780 = vpop.f32.mrf.mxu0
        %v1781 = vadd.f32 %v1604, %v1780
        %v1782 = vpop.f32.mrf.mxu0
        %v1783 = vpop.f32.mrf.mxu0
        %v1784 = vadd.f32 %v1607, %v1783
        %v1785 = vpop.f32.mrf.mxu0
        %1786 = vmatprep.mubr.bf16.mxu0 0
        %1787 = vmatmul.mubr.bf16.gmra.mxu0 %v1158
        %v1788 = vpop.f32.mrf.mxu0
        %v1789 = vadd.f32 %v1612, %v1788
        %v1790 = vpop.f32.mrf.mxu0
        %v1791 = vpop.f32.mrf.mxu0
        %v1792 = vadd.f32 %v1615, %v1791
        %v1793 = vpop.f32.mrf.mxu0
        %1794 = vmatprep.mubr.bf16.mxu0 0
        %1795 = vmatmul.mubr.bf16.gmra.mxu0 %v1159
        %v1796 = vpop.f32.mrf.mxu0
        %v1797 = vadd.f32 %v1620, %v1796
        %v1798 = vpop.f32.mrf.mxu0
        %v1799 = vpop.f32.mrf.mxu0
        %v1800 = vadd.f32 %v1623, %v1799
        %v1801 = vpop.f32.mrf.mxu0
        %1802 = vmatprep.mubr.bf16.mxu0 0
        %1803 = vmatmul.mubr.bf16.gmra.mxu0 %v1160
        %v1804 = vpop.f32.mrf.mxu0
        %v1805 = vadd.f32 %v1628, %v1804
        %v1806 = vpop.f32.mrf.mxu0
        %v1807 = vpop.f32.mrf.mxu0
        %v1808 = vadd.f32 %v1631, %v1807
        %v1809 = vpop.f32.mrf.mxu0
        %1810 = vmatprep.mubr.bf16.mxu0 0
        %1811 = vmatmul.mubr.bf16.gmra.mxu0 %v1271
        %v1812 = vpop.f32.mrf.mxu0
        %v1813 = vadd.f32 %v1636, %v1812
        %v1814 = vpop.f32.mrf.mxu0
        %v1815 = vpop.f32.mrf.mxu0
        %v1816 = vadd.f32 %v1639, %v1815
        %v1817 = vpop.f32.mrf.mxu0
        %1818 = vdwg.mxu0
        %v1867 = vunpack.c.l.b16 %v1179
        %v1868 = vunpack.c.l.b16 %v1180
        %v1869 = vunpack.c.l.b16 %v1181
        %v1870 = vunpack.c.l.b16 %v1182
        %v1871 = vunpack.c.l.b16 %v1183
        %v1872 = vunpack.c.l.b16 %v1184
        %v1873 = vunpack.c.l.b16 %v1185
        %v1874 = vunpack.c.l.b16 %v1186
        %v1875 = vunpack.c.l.b16 %v1187
        %v1876 = vunpack.c.l.b16 %v1188
        %v1877 = vunpack.c.l.b16 %v1189
        %v1878 = vunpack.c.l.b16 %v1190
        %v1879 = vunpack.c.l.b16 %v1191
        %v1880 = vunpack.c.l.b16 %v1192
        %v1881 = vunpack.c.l.b16 %v1193
        %v1882 = vunpack.c.l.b16 %v1194
        %v1883 = vunpack.c.l.b16 %v1195
        %v1884 = vunpack.c.l.b16 %v1196
        %v1885 = vunpack.c.l.b16 %v1197
        %v1886 = vunpack.c.l.b16 %v1198
        %v1887 = vunpack.c.l.b16 %v1199
        %v1888 = vunpack.c.l.b16 %v1200
        %v1889 = vunpack.c.l.b16 %v1201
        %v1890 = vunpack.c.l.b16 %v1202
        %v1891 = vunpack.c.l.b16 %v1203
        %v1892 = vunpack.c.l.b16 %v1204
        %v1893 = vunpack.c.l.b16 %v1205
        %v1894 = vunpack.c.l.b16 %v1206
        %v1895 = vunpack.c.l.b16 %v1207
        %v1896 = vunpack.c.l.b16 %v1208
        %v1897 = vunpack.c.l.b16 %v1209
        %v1898 = vunpack.c.l.b16 %v1210
        %v1899 = vunpack.c.l.b16 %v1211
        %v1900 = vunpack.c.l.b16 %v1212
        %v1901 = vunpack.c.l.b16 %v1213
        %v1902 = vunpack.c.l.b16 %v1214
        %v1903 = vunpack.c.l.b16 %v1215
        %v1904 = vunpack.c.l.b16 %v1216
        %v1905 = vunpack.c.l.b16 %v1217
        %v1906 = vunpack.c.l.b16 %v1218
        %v1907 = vunpack.c.l.b16 %v1219
        %v1908 = vunpack.c.l.b16 %v1220
        %v1909 = vunpack.c.l.b16 %v1221
        %v1910 = vunpack.c.l.b16 %v1222
        %v1911 = vunpack.c.l.b16 %v1223
        %v1912 = vunpack.c.l.b16 %v1224
        %v1913 = vunpack.c.l.b16 %v1225
        %v1914 = vunpack.c.l.b16 %v1226
        %v1915 = vpack.c.b16 %v1868, %v1867
        %v1916 = vpack.c.b16 %v1870, %v1869
        %v1917 = vpack.c.b16 %v1872, %v1871
        %v1918 = vpack.c.b16 %v1874, %v1873
        %v1919 = vpack.c.b16 %v1876, %v1875
        %v1920 = vpack.c.b16 %v1878, %v1877
        %v1921 = vpack.c.b16 %v1880, %v1879
        %v1922 = vpack.c.b16 %v1882, %v1881
        %v1923 = vpack.c.b16 %v1884, %v1883
        %v1924 = vpack.c.b16 %v1886, %v1885
        %v1925 = vpack.c.b16 %v1888, %v1887
        %v1926 = vpack.c.b16 %v1890, %v1889
        %v1927 = vpack.c.b16 %v1892, %v1891
        %v1928 = vpack.c.b16 %v1894, %v1893
        %v1929 = vpack.c.b16 %v1896, %v1895
        %v1930 = vpack.c.b16 %v1898, %v1897
        %v1931 = vpack.c.b16 %v1900, %v1899
        %v1932 = vpack.c.b16 %v1902, %v1901
        %v1933 = vpack.c.b16 %v1904, %v1903
        %v1934 = vpack.c.b16 %v1906, %v1905
        %v1935 = vpack.c.b16 %v1908, %v1907
        %v1936 = vpack.c.b16 %v1910, %v1909
        %v1937 = vpack.c.b16 %v1912, %v1911
        %v1938 = vpack.c.b16 %v1914, %v1913
        %1963 = vmatprep.subr.bf16.mxu0 0
        %1964 = vmatpush1.bf16.msra.mxu0 %v1922
        %1965 = vmatprep.subr.bf16.mxu0 0
        %1966 = vmatpush1.bf16.msra.mxu0 %v1921
        %1967 = vmatprep.subr.bf16.mxu0 0
        %1968 = vmatpush1.bf16.msra.mxu0 %v1920
        %1969 = vmatprep.subr.bf16.mxu0 0
        %1970 = vmatpush1.bf16.msra.mxu0 %v1919
        %1971 = vmatprep.subr.bf16.mxu0 0
        %1972 = vmatpush1.bf16.msra.mxu0 %v1918
        %1973 = vmatprep.subr.bf16.mxu0 0
        %1974 = vmatpush1.bf16.msra.mxu0 %v1917
        %1975 = vmatprep.subr.bf16.mxu0 0
        %1976 = vmatpush1.bf16.msra.mxu0 %v1916
        %1977 = vmatprep.subr.bf16.mxu0 0
        %1978 = vmatpush1.bf16.msra.mxu0 %v1915
        %1979 = vmatprep.subr.bf16.mxu0 0
        %1980 = vmatpush2.bf16.msra.mxu0 %v1930
        %1981 = vmatprep.subr.bf16.mxu0 0
        %1982 = vmatpush2.bf16.msra.mxu0 %v1929
        %1983 = vmatprep.subr.bf16.mxu0 0
        %1984 = vmatpush2.bf16.msra.mxu0 %v1928
        %1985 = vmatprep.subr.bf16.mxu0 0
        %1986 = vmatpush2.bf16.msra.mxu0 %v1927
        %1987 = vmatprep.subr.bf16.mxu0 0
        %1988 = vmatpush2.bf16.msra.mxu0 %v1926
        %1989 = vmatprep.subr.bf16.mxu0 0
        %1990 = vmatpush2.bf16.msra.mxu0 %v1925
        %1991 = vmatprep.subr.bf16.mxu0 0
        %1992 = vmatpush2.bf16.msra.mxu0 %v1924
        %1993 = vmatprep.subr.bf16.mxu0 0
        %1994 = vmatpush2.bf16.msra.mxu0 %v1923
        %1995 = vmatprep.mubr.bf16.mxu0 %v1071
        %1996 = vmatmul.mubr.bf16.gmra.mxu0 %v999
        %v1997 = vpop.f32.mrf.mxu0
        %v1998 = vadd.f32 %v1677, %v1997
        %v1999 = vpop.f32.mrf.mxu0
        %v2000 = vpop.f32.mrf.mxu0
        %v2001 = vadd.f32 %v1680, %v2000
        %v2002 = vpop.f32.mrf.mxu0
        %2003 = vmatprep.mubr.bf16.mxu0 %v1072
        %2004 = vmatmul.mubr.bf16.gmra.mxu0 %v1000
        %v2005 = vpop.f32.mrf.mxu0
        %v2006 = vadd.f32 %v1685, %v2005
        %v2007 = vpop.f32.mrf.mxu0
        %v2008 = vpop.f32.mrf.mxu0
        %v2009 = vadd.f32 %v1688, %v2008
        %v2010 = vpop.f32.mrf.mxu0
        %2011 = vmatprep.mubr.bf16.mxu0 %v1073
        %2012 = vmatmul.mubr.bf16.gmra.mxu0 %v1001
        %v2013 = vpop.f32.mrf.mxu0
        %v2014 = vadd.f32 %v1693, %v2013
        %v2015 = vpop.f32.mrf.mxu0
        %v2016 = vpop.f32.mrf.mxu0
        %v2017 = vadd.f32 %v1696, %v2016
        %v2018 = vpop.f32.mrf.mxu0
        %2019 = vmatprep.mubr.bf16.mxu0 %v1074
        %2020 = vmatmul.mubr.bf16.gmra.mxu0 %v1002
        %v2021 = vpop.f32.mrf.mxu0
        %v2022 = vadd.f32 %v1701, %v2021
        %v2023 = vpop.f32.mrf.mxu0
        %v2024 = vpop.f32.mrf.mxu0
        %v2025 = vadd.f32 %v1704, %v2024
        %v2026 = vpop.f32.mrf.mxu0
        %2027 = vmatprep.mubr.bf16.mxu0 %v1075
        %2028 = vmatmul.mubr.bf16.gmra.mxu0 %v1003
        %v2029 = vpop.f32.mrf.mxu0
        %v2030 = vadd.f32 %v1709, %v2029
        %v2031 = vpop.f32.mrf.mxu0
        %v2032 = vpop.f32.mrf.mxu0
        %v2033 = vadd.f32 %v1712, %v2032
        %v2034 = vpop.f32.mrf.mxu0
        %2035 = vmatprep.mubr.bf16.mxu0 %v1076
        %2036 = vmatmul.mubr.bf16.gmra.mxu0 %v1004
        %v2037 = vpop.f32.mrf.mxu0
        %v2038 = vadd.f32 %v1717, %v2037
        %v2039 = vpop.f32.mrf.mxu0
        %v2040 = vpop.f32.mrf.mxu0
        %v2041 = vadd.f32 %v1720, %v2040
        %v2042 = vpop.f32.mrf.mxu0
        %2043 = vmatprep.mubr.bf16.mxu0 %v1077
        %2044 = vmatmul.mubr.bf16.gmra.mxu0 %v1005
        %v2045 = vpop.f32.mrf.mxu0
        %v2046 = vadd.f32 %v1725, %v2045
        %v2047 = vpop.f32.mrf.mxu0
        %v2048 = vpop.f32.mrf.mxu0
        %v2049 = vadd.f32 %v1728, %v2048
        %v2050 = vpop.f32.mrf.mxu0
        %2051 = vmatprep.mubr.bf16.mxu0 %v1078
        %2052 = vmatmul.mubr.bf16.gmra.mxu0 %v1006
        %v2053 = vpop.f32.mrf.mxu0
        %v2054 = vadd.f32 %v1733, %v2053
        %v2055 = vpop.f32.mrf.mxu0
        %v2056 = vpop.f32.mrf.mxu0
        %v2057 = vadd.f32 %v1736, %v2056
        %v2058 = vpop.f32.mrf.mxu0
        %2059 = vmatprep.mubr.bf16.mxu0 %v1079
        %2060 = vmatmul.mubr.bf16.gmra.mxu0 %v1007
        %v2061 = vpop.f32.mrf.mxu0
        %v2062 = vadd.f32 %v1741, %v2061
        %v2063 = vpop.f32.mrf.mxu0
        %v2064 = vpop.f32.mrf.mxu0
        %v2065 = vadd.f32 %v1744, %v2064
        %v2066 = vpop.f32.mrf.mxu0
        %2067 = vmatprep.mubr.bf16.mxu0 %v1080
        %2068 = vmatmul.mubr.bf16.gmra.mxu0 %v1008
        %v2069 = vpop.f32.mrf.mxu0
        %v2070 = vadd.f32 %v1749, %v2069
        %v2071 = vpop.f32.mrf.mxu0
        %v2072 = vpop.f32.mrf.mxu0
        %v2073 = vadd.f32 %v1752, %v2072
        %v2074 = vpop.f32.mrf.mxu0
        %2075 = vmatprep.mubr.bf16.mxu0 %v1081
        %2076 = vmatmul.mubr.bf16.gmra.mxu0 %v1009
        %v2077 = vpop.f32.mrf.mxu0
        %v2078 = vadd.f32 %v1757, %v2077
        %v2079 = vpop.f32.mrf.mxu0
        %v2080 = vpop.f32.mrf.mxu0
        %v2081 = vadd.f32 %v1760, %v2080
        %v2082 = vpop.f32.mrf.mxu0
        %2083 = vmatprep.mubr.bf16.mxu0 %v1082
        %2084 = vmatmul.mubr.bf16.gmra.mxu0 %v1010
        %v2085 = vpop.f32.mrf.mxu0
        %v2086 = vadd.f32 %v1765, %v2085
        %v2087 = vpop.f32.mrf.mxu0
        %v2088 = vpop.f32.mrf.mxu0
        %v2089 = vadd.f32 %v1768, %v2088
        %v2090 = vpop.f32.mrf.mxu0
        %2091 = vmatprep.mubr.bf16.mxu0 %v1083
        %2092 = vmatmul.mubr.bf16.gmra.mxu0 %v1011
        %v2093 = vpop.f32.mrf.mxu0
        %v2094 = vadd.f32 %v1773, %v2093
        %v2095 = vpop.f32.mrf.mxu0
        %v2096 = vpop.f32.mrf.mxu0
        %v2097 = vadd.f32 %v1776, %v2096
        %v2098 = vpop.f32.mrf.mxu0
        %2099 = vmatprep.mubr.bf16.mxu0 %v1084
        %2100 = vmatmul.mubr.bf16.gmra.mxu0 %v1012
        %v2101 = vpop.f32.mrf.mxu0
        %v2102 = vadd.f32 %v1781, %v2101
        %v2103 = vpop.f32.mrf.mxu0
        %v2104 = vpop.f32.mrf.mxu0
        %v2105 = vadd.f32 %v1784, %v2104
        %v2106 = vpop.f32.mrf.mxu0
        %2107 = vmatprep.mubr.bf16.mxu0 %v1085
        %2108 = vmatmul.mubr.bf16.gmra.mxu0 %v1013
        %v2109 = vpop.f32.mrf.mxu0
        %v2110 = vadd.f32 %v1789, %v2109
        %v2111 = vpop.f32.mrf.mxu0
        %v2112 = vpop.f32.mrf.mxu0
        %v2113 = vadd.f32 %v1792, %v2112
        %v2114 = vpop.f32.mrf.mxu0
        %2115 = vmatprep.mubr.bf16.mxu0 %v1086
        %2116 = vmatmul.mubr.bf16.gmra.mxu0 %v1014
        %v2117 = vpop.f32.mrf.mxu0
        %v2118 = vadd.f32 %v1797, %v2117
        %v2119 = vpop.f32.mrf.mxu0
        %v2120 = vpop.f32.mrf.mxu0
        %v2121 = vadd.f32 %v1800, %v2120
        %v2122 = vpop.f32.mrf.mxu0
        %2123 = vmatprep.mubr.bf16.mxu0 %v1087
        %2124 = vmatmul.mubr.bf16.gmra.mxu0 %v1015
        %v2125 = vpop.f32.mrf.mxu0
        %v2126 = vadd.f32 %v1805, %v2125
        %v2127 = vpop.f32.mrf.mxu0
        %v2128 = vpop.f32.mrf.mxu0
        %v2129 = vadd.f32 %v1808, %v2128
        %v2130 = vpop.f32.mrf.mxu0
        %2131 = vmatprep.mubr.bf16.mxu0 %v1088
        %2132 = vmatmul.mubr.bf16.gmra.mxu0 %v1016
        %v2133 = vpop.f32.mrf.mxu0
        %v2134 = vadd.f32 %v1813, %v2133
        %v2135 = vpop.f32.mrf.mxu0
        %v2136 = vpop.f32.mrf.mxu0
        %v2137 = vadd.f32 %v1816, %v2136
        %v2138 = vpop.f32.mrf.mxu0
        %2139 = vdwg.mxu0
        %2140 = vmatprep.subr.bf16.mxu0 0
        %2141 = vmatpush1.bf16.msra.mxu0 %v1938
        %2142 = vmatprep.subr.bf16.mxu0 0
        %2143 = vmatpush1.bf16.msra.mxu0 %v1937
        %2144 = vmatprep.subr.bf16.mxu0 0
        %2145 = vmatpush1.bf16.msra.mxu0 %v1936
        %2146 = vmatprep.subr.bf16.mxu0 0
        %2147 = vmatpush1.bf16.msra.mxu0 %v1935
        %2148 = vmatprep.subr.bf16.mxu0 0
        %2149 = vmatpush1.bf16.msra.mxu0 %v1934
        %2150 = vmatprep.subr.bf16.mxu0 0
        %2151 = vmatpush1.bf16.msra.mxu0 %v1933
        %2152 = vmatprep.subr.bf16.mxu0 0
        %2153 = vmatpush1.bf16.msra.mxu0 %v1932
        %2154 = vmatprep.subr.bf16.mxu0 0
        %2155 = vmatpush1.bf16.msra.mxu0 %v1931
        %2156 = vmatprep.subr.bf16.mxu0 0
        %2157 = vmatpush2.bf16.msra.mxu0 0
        %2158 = vmatprep.subr.bf16.mxu0 0
        %2159 = vmatpush2.bf16.msra.mxu0 0
        %2160 = vmatprep.subr.bf16.mxu0 0
        %2161 = vmatpush2.bf16.msra.mxu0 0
        %2162 = vmatprep.subr.bf16.mxu0 0
        %2163 = vmatpush2.bf16.msra.mxu0 0
        %2164 = vmatprep.subr.bf16.mxu0 0
        %2165 = vmatpush2.bf16.msra.mxu0 0
        %2166 = vmatprep.subr.bf16.mxu0 0
        %2167 = vmatpush2.bf16.msra.mxu0 0
        %2168 = vmatprep.subr.bf16.mxu0 0
        %2169 = vmatpush2.bf16.msra.mxu0 0
        %2170 = vmatprep.subr.bf16.mxu0 0
        %2171 = vmatpush2.bf16.msra.mxu0 0
        %2172 = vmatprep.mubr.bf16.mxu0 0
        %2173 = vmatmul.mubr.bf16.gmra.mxu0 %v1143
        %v2174 = vpop.f32.mrf.mxu0
        %v2175 = vadd.f32 %v1998, %v2174
        %v2176 = vpop.f32.mrf.mxu0
        %v2177 = vpop.f32.mrf.mxu0
        %v2178 = vadd.f32 %v2001, %v2177
        %v2179 = vpop.f32.mrf.mxu0
        %2180 = vmatprep.mubr.bf16.mxu0 0
        %2181 = vmatmul.mubr.bf16.gmra.mxu0 %v1144
        %v2182 = vpop.f32.mrf.mxu0
        %v2183 = vadd.f32 %v2006, %v2182
        %v2184 = vpop.f32.mrf.mxu0
        %v2185 = vpop.f32.mrf.mxu0
        %v2186 = vadd.f32 %v2009, %v2185
        %v2187 = vpop.f32.mrf.mxu0
        %2188 = vmatprep.mubr.bf16.mxu0 0
        %2189 = vmatmul.mubr.bf16.gmra.mxu0 %v1145
        %v2190 = vpop.f32.mrf.mxu0
        %v2191 = vadd.f32 %v2014, %v2190
        %v2192 = vpop.f32.mrf.mxu0
        %v2193 = vpop.f32.mrf.mxu0
        %v2194 = vadd.f32 %v2017, %v2193
        %v2195 = vpop.f32.mrf.mxu0
        %2196 = vmatprep.mubr.bf16.mxu0 0
        %2197 = vmatmul.mubr.bf16.gmra.mxu0 %v1146
        %v2198 = vpop.f32.mrf.mxu0
        %v2199 = vadd.f32 %v2022, %v2198
        %v2200 = vpop.f32.mrf.mxu0
        %v2201 = vpop.f32.mrf.mxu0
        %v2202 = vadd.f32 %v2025, %v2201
        %v2203 = vpop.f32.mrf.mxu0
        %2204 = vmatprep.mubr.bf16.mxu0 0
        %2205 = vmatmul.mubr.bf16.gmra.mxu0 %v1147
        %v2206 = vpop.f32.mrf.mxu0
        %v2207 = vadd.f32 %v2030, %v2206
        %v2208 = vpop.f32.mrf.mxu0
        %v2209 = vpop.f32.mrf.mxu0
        %v2210 = vadd.f32 %v2033, %v2209
        %v2211 = vpop.f32.mrf.mxu0
        %2212 = vmatprep.mubr.bf16.mxu0 0
        %2213 = vmatmul.mubr.bf16.gmra.mxu0 %v1148
        %v2214 = vpop.f32.mrf.mxu0
        %v2215 = vadd.f32 %v2038, %v2214
        %v2216 = vpop.f32.mrf.mxu0
        %v2217 = vpop.f32.mrf.mxu0
        %v2218 = vadd.f32 %v2041, %v2217
        %v2219 = vpop.f32.mrf.mxu0
        %2220 = vmatprep.mubr.bf16.mxu0 0
        %2221 = vmatmul.mubr.bf16.gmra.mxu0 %v1149
        %v2222 = vpop.f32.mrf.mxu0
        %v2223 = vadd.f32 %v2046, %v2222
        %v2224 = vpop.f32.mrf.mxu0
        %v2225 = vpop.f32.mrf.mxu0
        %v2226 = vadd.f32 %v2049, %v2225
        %v2227 = vpop.f32.mrf.mxu0
        %2228 = vmatprep.mubr.bf16.mxu0 0
        %2229 = vmatmul.mubr.bf16.gmra.mxu0 %v1150
        %v2230 = vpop.f32.mrf.mxu0
        %v2231 = vadd.f32 %v2054, %v2230
        %v2232 = vpop.f32.mrf.mxu0
        %v2233 = vpop.f32.mrf.mxu0
        %v2234 = vadd.f32 %v2057, %v2233
        %v2235 = vpop.f32.mrf.mxu0
        %2236 = vmatprep.mubr.bf16.mxu0 0
        %2237 = vmatmul.mubr.bf16.gmra.mxu0 %v1151
        %v2238 = vpop.f32.mrf.mxu0
        %v2239 = vadd.f32 %v2062, %v2238
        %v2240 = vpop.f32.mrf.mxu0
        %v2241 = vpop.f32.mrf.mxu0
        %v2242 = vadd.f32 %v2065, %v2241
        %v2243 = vpop.f32.mrf.mxu0
        %2244 = vmatprep.mubr.bf16.mxu0 0
        %2245 = vmatmul.mubr.bf16.gmra.mxu0 %v1152
        %v2246 = vpop.f32.mrf.mxu0
        %v2247 = vadd.f32 %v2070, %v2246
        %v2248 = vpop.f32.mrf.mxu0
        %v2249 = vpop.f32.mrf.mxu0
        %v2250 = vadd.f32 %v2073, %v2249
        %v2251 = vpop.f32.mrf.mxu0
        %2252 = vmatprep.mubr.bf16.mxu0 0
        %2253 = vmatmul.mubr.bf16.gmra.mxu0 %v1153
        %v2254 = vpop.f32.mrf.mxu0
        %v2255 = vadd.f32 %v2078, %v2254
        %v2256 = vpop.f32.mrf.mxu0
        %v2257 = vpop.f32.mrf.mxu0
        %v2258 = vadd.f32 %v2081, %v2257
        %v2259 = vpop.f32.mrf.mxu0
        %2260 = vmatprep.mubr.bf16.mxu0 0
        %2261 = vmatmul.mubr.bf16.gmra.mxu0 %v1154
        %v2262 = vpop.f32.mrf.mxu0
        %v2263 = vadd.f32 %v2086, %v2262
        %v2264 = vpop.f32.mrf.mxu0
        %v2265 = vpop.f32.mrf.mxu0
        %v2266 = vadd.f32 %v2089, %v2265
        %v2267 = vpop.f32.mrf.mxu0
        %2268 = vmatprep.mubr.bf16.mxu0 0
        %2269 = vmatmul.mubr.bf16.gmra.mxu0 %v1155
        %v2270 = vpop.f32.mrf.mxu0
        %v2271 = vadd.f32 %v2094, %v2270
        %v2272 = vpop.f32.mrf.mxu0
        %v2273 = vpop.f32.mrf.mxu0
        %v2274 = vadd.f32 %v2097, %v2273
        %v2275 = vpop.f32.mrf.mxu0
        %2276 = vmatprep.mubr.bf16.mxu0 0
        %2277 = vmatmul.mubr.bf16.gmra.mxu0 %v1156
        %v2278 = vpop.f32.mrf.mxu0
        %v2279 = vadd.f32 %v2102, %v2278
        %v2280 = vpop.f32.mrf.mxu0
        %v2281 = vpop.f32.mrf.mxu0
        %v2282 = vadd.f32 %v2105, %v2281
        %v2283 = vpop.f32.mrf.mxu0
        %2284 = vmatprep.mubr.bf16.mxu0 0
        %2285 = vmatmul.mubr.bf16.gmra.mxu0 %v1157
        %v2286 = vpop.f32.mrf.mxu0
        %v2287 = vadd.f32 %v2110, %v2286
        %v2288 = vpop.f32.mrf.mxu0
        %v2289 = vpop.f32.mrf.mxu0
        %v2290 = vadd.f32 %v2113, %v2289
        %v2291 = vpop.f32.mrf.mxu0
        %2292 = vmatprep.mubr.bf16.mxu0 0
        %2293 = vmatmul.mubr.bf16.gmra.mxu0 %v1158
        %v2294 = vpop.f32.mrf.mxu0
        %v2295 = vadd.f32 %v2118, %v2294
        %v2296 = vpop.f32.mrf.mxu0
        %v2297 = vpop.f32.mrf.mxu0
        %v2298 = vadd.f32 %v2121, %v2297
        %v2299 = vpop.f32.mrf.mxu0
        %2300 = vmatprep.mubr.bf16.mxu0 0
        %2301 = vmatmul.mubr.bf16.gmra.mxu0 %v1159
        %v2302 = vpop.f32.mrf.mxu0
        %v2303 = vadd.f32 %v2126, %v2302
        %v2304 = vpop.f32.mrf.mxu0
        %v2305 = vpop.f32.mrf.mxu0
        %v2306 = vadd.f32 %v2129, %v2305
        %v2307 = vpop.f32.mrf.mxu0
        %2308 = vmatprep.mubr.bf16.mxu0 0
        %2309 = vmatmul.mubr.bf16.gmra.mxu0 %v1160
        %v2310 = vpop.f32.mrf.mxu0
        %v2311 = vadd.f32 %v2134, %v2310
        %v2312 = vpop.f32.mrf.mxu0
        %v2313 = vpop.f32.mrf.mxu0
        %v2314 = vadd.f32 %v2137, %v2313
        %v2315 = vpop.f32.mrf.mxu0
        %2316 = vdwg.mxu0
        %v2318 = vshrl.u32 %v342, 16
        %v2320 = vrot.slane %v2318, 4
        %v2321 = vshll.u32 %v342, 16
        %v2323 = vrot.slane %v2321, 5
        %v2324 = vor.u32 %v2320, %v2323
        %v2325 = vrot.slane %v2324, 4
        %v2327 = vshll.u32 %v343, 16
        %v2329 = vrot.slane %v2327, 5
        %v2330 = vsel %vm347, %v2325, %v2329
        %v2331 = vshrl.u32 %v343, 16
        %v2333 = vrot.slane %v2331, 4
        %v2334 = vor.u32 %v2333, %v2329
        %v2335 = vrot.slane %v2334, 4
        %v2337 = vshll.u32 %v344, 16
        %v2339 = vrot.slane %v2337, 5
        %v2340 = vsel %vm347, %v2335, %v2339
        %v2344 = vrot.slane %v342, 5
        %v2345 = vrot.slane %v2344, 4
        %v2346 = vrot.slane %v343, 5
        %v2347 = vsel %vm836, %v2345, %v2346
        %v2348 = vrot.slane %v2346, 4
        %v2349 = vrot.slane %v344, 5
        %v2350 = vsel %vm836, %v2348, %v2349
        %v2351 = vunpack.c.l.b16 %v342
        %v2352 = vunpack.c.l.b16 %v343
        %v2353 = vpack.c.b16 %v2352, %v2351
        %v2355 = vunpack.c.l.b16 %v2330
        %v2356 = vunpack.c.l.b16 %v2340
        %v2357 = vpack.c.b16 %v2356, %v2355
        %v2359 = vunpack.c.l.b16 %v2347
        %v2360 = vunpack.c.l.b16 %v2350
        %v2361 = vpack.c.b16 %v2360, %v2359
        %v2363 = vld [vmem:[%s1 + $0x180] sm:$0xf]
        %v2364 = vld [vmem:[%s1 + $0x184] sm:$0xf]
        %v2365 = vld [vmem:[%s1 + $0x188] sm:$0xf]
        %v2366 = vld [vmem:[%s1 + $0x18c] sm:$0xf]
        %v2367 = vld [vmem:[%s1 + $0x190] sm:$0xf]
        %v2368 = vld [vmem:[%s1 + $0x194] sm:$0xf]
        %v2369 = vld [vmem:[%s1 + $0x198] sm:$0xf]
        %v2370 = vld [vmem:[%s1 + $0x19c] sm:$0xf]
        %v2371 = vld [vmem:[%s1 + $0x1a0] sm:$0xf]
        %v2372 = vld [vmem:[%s1 + $0x1a4] sm:$0xf]
        %v2373 = vld [vmem:[%s1 + $0x1a8] sm:$0xf]
        %v2374 = vld [vmem:[%s1 + $0x1ac] sm:$0xf]
        %v2375 = vld [vmem:[%s1 + $0x1b0] sm:$0xf]
        %v2376 = vld [vmem:[%s1 + $0x1b4] sm:$0xf]
        %v2377 = vld [vmem:[%s1 + $0x1b8] sm:$0xf]
        %v2378 = vld [vmem:[%s1 + $0x1bc] sm:$0xf]
        %v2379 = vld [vmem:[%s1 + $0x1c0] sm:$0xf]
        %v2380 = vld [vmem:[%s1 + $0x1c4] sm:$0xf]
        %v2381 = vld [vmem:[%s1 + $0x1c8] sm:$0xf]
        %v2382 = vld [vmem:[%s1 + $0x1cc] sm:$0xf]
        %v2383 = vld [vmem:[%s1 + $0x1d0] sm:$0xf]
        %v2384 = vld [vmem:[%s1 + $0x1d4] sm:$0xf]
        %v2385 = vld [vmem:[%s1 + $0x1d8] sm:$0xf]
        %v2386 = vld [vmem:[%s1 + $0x1dc] sm:$0xf]
        %v2387 = vld [vmem:[%s1 + $0x1e0] sm:$0xf]
        %v2388 = vld [vmem:[%s1 + $0x1e4] sm:$0xf]
        %v2389 = vld [vmem:[%s1 + $0x1e8] sm:$0xf]
        %v2390 = vld [vmem:[%s1 + $0x1ec] sm:$0xf]
        %v2391 = vld [vmem:[%s1 + $0x1f0] sm:$0xf]
        %v2392 = vld [vmem:[%s1 + $0x1f4] sm:$0xf]
        %v2393 = vld [vmem:[%s1 + $0x1f8] sm:$0xf]
        %v2394 = vld [vmem:[%s1 + $0x1fc] sm:$0xf]
        %v2395 = vld [vmem:[%s1 + $0x200] sm:$0xf]
        %v2396 = vld [vmem:[%s1 + $0x204] sm:$0xf]
        %v2397 = vld [vmem:[%s1 + $0x208] sm:$0xf]
        %v2398 = vld [vmem:[%s1 + $0x20c] sm:$0xf]
        %v2399 = vld [vmem:[%s1 + $0x210] sm:$0xf]
        %v2400 = vld [vmem:[%s1 + $0x214] sm:$0xf]
        %v2401 = vld [vmem:[%s1 + $0x218] sm:$0xf]
        %v2402 = vld [vmem:[%s1 + $0x21c] sm:$0xf]
        %v2403 = vld [vmem:[%s1 + $0x220] sm:$0xf]
        %v2404 = vld [vmem:[%s1 + $0x224] sm:$0xf]
        %v2405 = vld [vmem:[%s1 + $0x228] sm:$0xf]
        %v2406 = vld [vmem:[%s1 + $0x22c] sm:$0xf]
        %v2407 = vld [vmem:[%s1 + $0x230] sm:$0xf]
        %v2408 = vld [vmem:[%s1 + $0x234] sm:$0xf]
        %v2409 = vld [vmem:[%s1 + $0x238] sm:$0xf]
        %v2410 = vld [vmem:[%s1 + $0x23c] sm:$0xf]
        %v2459 = vunpack.c.l.b16 %v2363
        %v2460 = vunpack.c.l.b16 %v2364
        %v2461 = vunpack.c.l.b16 %v2365
        %v2462 = vunpack.c.l.b16 %v2366
        %v2463 = vunpack.c.l.b16 %v2367
        %v2464 = vunpack.c.l.b16 %v2368
        %v2465 = vunpack.c.l.b16 %v2369
        %v2466 = vunpack.c.l.b16 %v2370
        %v2467 = vunpack.c.l.b16 %v2371
        %v2468 = vunpack.c.l.b16 %v2372
        %v2469 = vunpack.c.l.b16 %v2373
        %v2470 = vunpack.c.l.b16 %v2374
        %v2471 = vunpack.c.l.b16 %v2375
        %v2472 = vunpack.c.l.b16 %v2376
        %v2473 = vunpack.c.l.b16 %v2377
        %v2474 = vunpack.c.l.b16 %v2378
        %v2475 = vunpack.c.l.b16 %v2379
        %v2476 = vunpack.c.l.b16 %v2380
        %v2477 = vunpack.c.l.b16 %v2381
        %v2478 = vunpack.c.l.b16 %v2382
        %v2479 = vunpack.c.l.b16 %v2383
        %v2480 = vunpack.c.l.b16 %v2384
        %v2481 = vunpack.c.l.b16 %v2385
        %v2482 = vunpack.c.l.b16 %v2386
        %v2483 = vunpack.c.l.b16 %v2387
        %v2484 = vunpack.c.l.b16 %v2388
        %v2485 = vunpack.c.l.b16 %v2389
        %v2486 = vunpack.c.l.b16 %v2390
        %v2487 = vunpack.c.l.b16 %v2391
        %v2488 = vunpack.c.l.b16 %v2392
        %v2489 = vunpack.c.l.b16 %v2393
        %v2490 = vunpack.c.l.b16 %v2394
        %v2491 = vunpack.c.l.b16 %v2395
        %v2492 = vunpack.c.l.b16 %v2396
        %v2493 = vunpack.c.l.b16 %v2397
        %v2494 = vunpack.c.l.b16 %v2398
        %v2495 = vunpack.c.l.b16 %v2399
        %v2496 = vunpack.c.l.b16 %v2400
        %v2497 = vunpack.c.l.b16 %v2401
        %v2498 = vunpack.c.l.b16 %v2402
        %v2499 = vunpack.c.l.b16 %v2403
        %v2500 = vunpack.c.l.b16 %v2404
        %v2501 = vunpack.c.l.b16 %v2405
        %v2502 = vunpack.c.l.b16 %v2406
        %v2503 = vunpack.c.l.b16 %v2407
        %v2504 = vunpack.c.l.b16 %v2408
        %v2505 = vunpack.c.l.b16 %v2409
        %v2506 = vunpack.c.l.b16 %v2410
        %v2507 = vpack.c.b16 %v2460, %v2459
        %v2508 = vpack.c.b16 %v2462, %v2461
        %v2509 = vpack.c.b16 %v2464, %v2463
        %v2510 = vpack.c.b16 %v2466, %v2465
        %v2511 = vpack.c.b16 %v2468, %v2467
        %v2512 = vpack.c.b16 %v2470, %v2469
        %v2513 = vpack.c.b16 %v2472, %v2471
        %v2514 = vpack.c.b16 %v2474, %v2473
        %v2515 = vpack.c.b16 %v2476, %v2475
        %v2516 = vpack.c.b16 %v2478, %v2477
        %v2517 = vpack.c.b16 %v2480, %v2479
        %v2518 = vpack.c.b16 %v2482, %v2481
        %v2519 = vpack.c.b16 %v2484, %v2483
        %v2520 = vpack.c.b16 %v2486, %v2485
        %v2521 = vpack.c.b16 %v2488, %v2487
        %v2522 = vpack.c.b16 %v2490, %v2489
        %v2523 = vpack.c.b16 %v2492, %v2491
        %v2524 = vpack.c.b16 %v2494, %v2493
        %v2525 = vpack.c.b16 %v2496, %v2495
        %v2526 = vpack.c.b16 %v2498, %v2497
        %v2527 = vpack.c.b16 %v2500, %v2499
        %v2528 = vpack.c.b16 %v2502, %v2501
        %v2529 = vpack.c.b16 %v2504, %v2503
        %v2530 = vpack.c.b16 %v2506, %v2505
        %2555 = vmatprep.subr.bf16.mxu0 0
        %2556 = vmatpush1.bf16.msra.mxu0 %v2514
        %2557 = vmatprep.subr.bf16.mxu0 0
        %2558 = vmatpush1.bf16.msra.mxu0 %v2513
        %2559 = vmatprep.subr.bf16.mxu0 0
        %2560 = vmatpush1.bf16.msra.mxu0 %v2512
        %2561 = vmatprep.subr.bf16.mxu0 0
        %2562 = vmatpush1.bf16.msra.mxu0 %v2511
        %2563 = vmatprep.subr.bf16.mxu0 0
        %2564 = vmatpush1.bf16.msra.mxu0 %v2510
        %2565 = vmatprep.subr.bf16.mxu0 0
        %2566 = vmatpush1.bf16.msra.mxu0 %v2509
        %2567 = vmatprep.subr.bf16.mxu0 0
        %2568 = vmatpush1.bf16.msra.mxu0 %v2508
        %2569 = vmatprep.subr.bf16.mxu0 0
        %2570 = vmatpush1.bf16.msra.mxu0 %v2507
        %2571 = vmatprep.subr.bf16.mxu0 0
        %2572 = vmatpush2.bf16.msra.mxu0 %v2522
        %2573 = vmatprep.subr.bf16.mxu0 0
        %2574 = vmatpush2.bf16.msra.mxu0 %v2521
        %2575 = vmatprep.subr.bf16.mxu0 0
        %2576 = vmatpush2.bf16.msra.mxu0 %v2520
        %2577 = vmatprep.subr.bf16.mxu0 0
        %2578 = vmatpush2.bf16.msra.mxu0 %v2519
        %2579 = vmatprep.subr.bf16.mxu0 0
        %2580 = vmatpush2.bf16.msra.mxu0 %v2518
        %2581 = vmatprep.subr.bf16.mxu0 0
        %2582 = vmatpush2.bf16.msra.mxu0 %v2517
        %2583 = vmatprep.subr.bf16.mxu0 0
        %2584 = vmatpush2.bf16.msra.mxu0 %v2516
        %2585 = vmatprep.subr.bf16.mxu0 0
        %2586 = vmatpush2.bf16.msra.mxu0 %v2515
        %2587 = vmatprep.mubr.bf16.mxu0 %v1073
        %2588 = vmatmul.mubr.bf16.gmra.mxu0 %v1001
        %v2589 = vpop.f32.mrf.mxu0
        %v2590 = vadd.f32 0.0, %v2589
        %v2591 = vpop.f32.mrf.mxu0
        %v2592 = vpop.f32.mrf.mxu0
        %v2593 = vadd.f32 0.0, %v2592
        %v2594 = vpop.f32.mrf.mxu0
        %2595 = vmatprep.mubr.bf16.mxu0 %v1074
        %2596 = vmatmul.mubr.bf16.gmra.mxu0 %v1002
        %v2597 = vpop.f32.mrf.mxu0
        %v2598 = vadd.f32 0.0, %v2597
        %v2599 = vpop.f32.mrf.mxu0
        %v2600 = vpop.f32.mrf.mxu0
        %v2601 = vadd.f32 0.0, %v2600
        %v2602 = vpop.f32.mrf.mxu0
        %2603 = vmatprep.mubr.bf16.mxu0 %v1075
        %2604 = vmatmul.mubr.bf16.gmra.mxu0 %v1003
        %v2605 = vpop.f32.mrf.mxu0
        %v2606 = vadd.f32 0.0, %v2605
        %v2607 = vpop.f32.mrf.mxu0
        %v2608 = vpop.f32.mrf.mxu0
        %v2609 = vadd.f32 0.0, %v2608
        %v2610 = vpop.f32.mrf.mxu0
        %2611 = vmatprep.mubr.bf16.mxu0 %v1076
        %2612 = vmatmul.mubr.bf16.gmra.mxu0 %v1004
        %v2613 = vpop.f32.mrf.mxu0
        %v2614 = vadd.f32 0.0, %v2613
        %v2615 = vpop.f32.mrf.mxu0
        %v2616 = vpop.f32.mrf.mxu0
        %v2617 = vadd.f32 0.0, %v2616
        %v2618 = vpop.f32.mrf.mxu0
        %2619 = vmatprep.mubr.bf16.mxu0 %v1077
        %2620 = vmatmul.mubr.bf16.gmra.mxu0 %v1005
        %v2621 = vpop.f32.mrf.mxu0
        %v2622 = vadd.f32 0.0, %v2621
        %v2623 = vpop.f32.mrf.mxu0
        %v2624 = vpop.f32.mrf.mxu0
        %v2625 = vadd.f32 0.0, %v2624
        %v2626 = vpop.f32.mrf.mxu0
        %2627 = vmatprep.mubr.bf16.mxu0 %v1078
        %2628 = vmatmul.mubr.bf16.gmra.mxu0 %v1006
        %v2629 = vpop.f32.mrf.mxu0
        %v2630 = vadd.f32 0.0, %v2629
        %v2631 = vpop.f32.mrf.mxu0
        %v2632 = vpop.f32.mrf.mxu0
        %v2633 = vadd.f32 0.0, %v2632
        %v2634 = vpop.f32.mrf.mxu0
        %2635 = vmatprep.mubr.bf16.mxu0 %v1079
        %2636 = vmatmul.mubr.bf16.gmra.mxu0 %v1007
        %v2637 = vpop.f32.mrf.mxu0
        %v2638 = vadd.f32 0.0, %v2637
        %v2639 = vpop.f32.mrf.mxu0
        %v2640 = vpop.f32.mrf.mxu0
        %v2641 = vadd.f32 0.0, %v2640
        %v2642 = vpop.f32.mrf.mxu0
        %2643 = vmatprep.mubr.bf16.mxu0 %v1080
        %2644 = vmatmul.mubr.bf16.gmra.mxu0 %v1008
        %v2645 = vpop.f32.mrf.mxu0
        %v2646 = vadd.f32 0.0, %v2645
        %v2647 = vpop.f32.mrf.mxu0
        %v2648 = vpop.f32.mrf.mxu0
        %v2649 = vadd.f32 0.0, %v2648
        %v2650 = vpop.f32.mrf.mxu0
        %2651 = vmatprep.mubr.bf16.mxu0 %v1081
        %2652 = vmatmul.mubr.bf16.gmra.mxu0 %v1009
        %v2653 = vpop.f32.mrf.mxu0
        %v2654 = vadd.f32 0.0, %v2653
        %v2655 = vpop.f32.mrf.mxu0
        %v2656 = vpop.f32.mrf.mxu0
        %v2657 = vadd.f32 0.0, %v2656
        %v2658 = vpop.f32.mrf.mxu0
        %2659 = vmatprep.mubr.bf16.mxu0 %v1082
        %2660 = vmatmul.mubr.bf16.gmra.mxu0 %v1010
        %v2661 = vpop.f32.mrf.mxu0
        %v2662 = vadd.f32 0.0, %v2661
        %v2663 = vpop.f32.mrf.mxu0
        %v2664 = vpop.f32.mrf.mxu0
        %v2665 = vadd.f32 0.0, %v2664
        %v2666 = vpop.f32.mrf.mxu0
        %2667 = vmatprep.mubr.bf16.mxu0 %v1083
        %2668 = vmatmul.mubr.bf16.gmra.mxu0 %v1011
        %v2669 = vpop.f32.mrf.mxu0
        %v2670 = vadd.f32 0.0, %v2669
        %v2671 = vpop.f32.mrf.mxu0
        %v2672 = vpop.f32.mrf.mxu0
        %v2673 = vadd.f32 0.0, %v2672
        %v2674 = vpop.f32.mrf.mxu0
        %2675 = vmatprep.mubr.bf16.mxu0 %v1084
        %2676 = vmatmul.mubr.bf16.gmra.mxu0 %v1012
        %v2677 = vpop.f32.mrf.mxu0
        %v2678 = vadd.f32 0.0, %v2677
        %v2679 = vpop.f32.mrf.mxu0
        %v2680 = vpop.f32.mrf.mxu0
        %v2681 = vadd.f32 0.0, %v2680
        %v2682 = vpop.f32.mrf.mxu0
        %2683 = vmatprep.mubr.bf16.mxu0 %v1085
        %2684 = vmatmul.mubr.bf16.gmra.mxu0 %v1013
        %v2685 = vpop.f32.mrf.mxu0
        %v2686 = vadd.f32 0.0, %v2685
        %v2687 = vpop.f32.mrf.mxu0
        %v2688 = vpop.f32.mrf.mxu0
        %v2689 = vadd.f32 0.0, %v2688
        %v2690 = vpop.f32.mrf.mxu0
        %2691 = vmatprep.mubr.bf16.mxu0 %v1086
        %2692 = vmatmul.mubr.bf16.gmra.mxu0 %v1014
        %v2693 = vpop.f32.mrf.mxu0
        %v2694 = vadd.f32 0.0, %v2693
        %v2695 = vpop.f32.mrf.mxu0
        %v2696 = vpop.f32.mrf.mxu0
        %v2697 = vadd.f32 0.0, %v2696
        %v2698 = vpop.f32.mrf.mxu0
        %2699 = vmatprep.mubr.bf16.mxu0 %v1087
        %2700 = vmatmul.mubr.bf16.gmra.mxu0 %v1015
        %v2701 = vpop.f32.mrf.mxu0
        %v2702 = vadd.f32 0.0, %v2701
        %v2703 = vpop.f32.mrf.mxu0
        %v2704 = vpop.f32.mrf.mxu0
        %v2705 = vadd.f32 0.0, %v2704
        %v2706 = vpop.f32.mrf.mxu0
        %2707 = vmatprep.mubr.bf16.mxu0 %v1088
        %2708 = vmatmul.mubr.bf16.gmra.mxu0 %v1016
        %v2709 = vpop.f32.mrf.mxu0
        %v2710 = vadd.f32 0.0, %v2709
        %v2711 = vpop.f32.mrf.mxu0
        %v2712 = vpop.f32.mrf.mxu0
        %v2713 = vadd.f32 0.0, %v2712
        %v2714 = vpop.f32.mrf.mxu0
        %2715 = vmatprep.mubr.bf16.mxu0 %v1267
        %2716 = vmatmul.mubr.bf16.gmra.mxu0 %v1263
        %v2717 = vpop.f32.mrf.mxu0
        %v2718 = vadd.f32 0.0, %v2717
        %v2719 = vpop.f32.mrf.mxu0
        %v2720 = vpop.f32.mrf.mxu0
        %v2721 = vadd.f32 0.0, %v2720
        %v2722 = vpop.f32.mrf.mxu0
        %2723 = vmatprep.mubr.bf16.mxu0 %v2357
        %2724 = vmatmul.mubr.bf16.gmra.mxu0 %v2353
        %v2725 = vpop.f32.mrf.mxu0
        %v2726 = vadd.f32 0.0, %v2725
        %v2727 = vpop.f32.mrf.mxu0
        %v2728 = vpop.f32.mrf.mxu0
        %v2729 = vadd.f32 0.0, %v2728
        %v2730 = vpop.f32.mrf.mxu0
        %2731 = vdwg.mxu0
        %2732 = vmatprep.subr.bf16.mxu0 0
        %2733 = vmatpush1.bf16.msra.mxu0 %v2530
        %2734 = vmatprep.subr.bf16.mxu0 0
        %2735 = vmatpush1.bf16.msra.mxu0 %v2529
        %2736 = vmatprep.subr.bf16.mxu0 0
        %2737 = vmatpush1.bf16.msra.mxu0 %v2528
        %2738 = vmatprep.subr.bf16.mxu0 0
        %2739 = vmatpush1.bf16.msra.mxu0 %v2527
        %2740 = vmatprep.subr.bf16.mxu0 0
        %2741 = vmatpush1.bf16.msra.mxu0 %v2526
        %2742 = vmatprep.subr.bf16.mxu0 0
        %2743 = vmatpush1.bf16.msra.mxu0 %v2525
        %2744 = vmatprep.subr.bf16.mxu0 0
        %2745 = vmatpush1.bf16.msra.mxu0 %v2524
        %2746 = vmatprep.subr.bf16.mxu0 0
        %2747 = vmatpush1.bf16.msra.mxu0 %v2523
        %2748 = vmatprep.subr.bf16.mxu0 0
        %2749 = vmatpush2.bf16.msra.mxu0 0
        %2750 = vmatprep.subr.bf16.mxu0 0
        %2751 = vmatpush2.bf16.msra.mxu0 0
        %2752 = vmatprep.subr.bf16.mxu0 0
        %2753 = vmatpush2.bf16.msra.mxu0 0
        %2754 = vmatprep.subr.bf16.mxu0 0
        %2755 = vmatpush2.bf16.msra.mxu0 0
        %2756 = vmatprep.subr.bf16.mxu0 0
        %2757 = vmatpush2.bf16.msra.mxu0 0
        %2758 = vmatprep.subr.bf16.mxu0 0
        %2759 = vmatpush2.bf16.msra.mxu0 0
        %2760 = vmatprep.subr.bf16.mxu0 0
        %2761 = vmatpush2.bf16.msra.mxu0 0
        %2762 = vmatprep.subr.bf16.mxu0 0
        %2763 = vmatpush2.bf16.msra.mxu0 0
        %2764 = vmatprep.mubr.bf16.mxu0 0
        %2765 = vmatmul.mubr.bf16.gmra.mxu0 %v1145
        %v2766 = vpop.f32.mrf.mxu0
        %v2767 = vadd.f32 %v2590, %v2766
        %v2768 = vpop.f32.mrf.mxu0
        %v2769 = vpop.f32.mrf.mxu0
        %v2770 = vadd.f32 %v2593, %v2769
        %v2771 = vpop.f32.mrf.mxu0
        %2772 = vmatprep.mubr.bf16.mxu0 0
        %2773 = vmatmul.mubr.bf16.gmra.mxu0 %v1146
        %v2774 = vpop.f32.mrf.mxu0
        %v2775 = vadd.f32 %v2598, %v2774
        %v2776 = vpop.f32.mrf.mxu0
        %v2777 = vpop.f32.mrf.mxu0
        %v2778 = vadd.f32 %v2601, %v2777
        %v2779 = vpop.f32.mrf.mxu0
        %2780 = vmatprep.mubr.bf16.mxu0 0
        %2781 = vmatmul.mubr.bf16.gmra.mxu0 %v1147
        %v2782 = vpop.f32.mrf.mxu0
        %v2783 = vadd.f32 %v2606, %v2782
        %v2784 = vpop.f32.mrf.mxu0
        %v2785 = vpop.f32.mrf.mxu0
        %v2786 = vadd.f32 %v2609, %v2785
        %v2787 = vpop.f32.mrf.mxu0
        %2788 = vmatprep.mubr.bf16.mxu0 0
        %2789 = vmatmul.mubr.bf16.gmra.mxu0 %v1148
        %v2790 = vpop.f32.mrf.mxu0
        %v2791 = vadd.f32 %v2614, %v2790
        %v2792 = vpop.f32.mrf.mxu0
        %v2793 = vpop.f32.mrf.mxu0
        %v2794 = vadd.f32 %v2617, %v2793
        %v2795 = vpop.f32.mrf.mxu0
        %2796 = vmatprep.mubr.bf16.mxu0 0
        %2797 = vmatmul.mubr.bf16.gmra.mxu0 %v1149
        %v2798 = vpop.f32.mrf.mxu0
        %v2799 = vadd.f32 %v2622, %v2798
        %v2800 = vpop.f32.mrf.mxu0
        %v2801 = vpop.f32.mrf.mxu0
        %v2802 = vadd.f32 %v2625, %v2801
        %v2803 = vpop.f32.mrf.mxu0
        %2804 = vmatprep.mubr.bf16.mxu0 0
        %2805 = vmatmul.mubr.bf16.gmra.mxu0 %v1150
        %v2806 = vpop.f32.mrf.mxu0
        %v2807 = vadd.f32 %v2630, %v2806
        %v2808 = vpop.f32.mrf.mxu0
        %v2809 = vpop.f32.mrf.mxu0
        %v2810 = vadd.f32 %v2633, %v2809
        %v2811 = vpop.f32.mrf.mxu0
        %2812 = vmatprep.mubr.bf16.mxu0 0
        %2813 = vmatmul.mubr.bf16.gmra.mxu0 %v1151
        %v2814 = vpop.f32.mrf.mxu0
        %v2815 = vadd.f32 %v2638, %v2814
        %v2816 = vpop.f32.mrf.mxu0
        %v2817 = vpop.f32.mrf.mxu0
        %v2818 = vadd.f32 %v2641, %v2817
        %v2819 = vpop.f32.mrf.mxu0
        %2820 = vmatprep.mubr.bf16.mxu0 0
        %2821 = vmatmul.mubr.bf16.gmra.mxu0 %v1152
        %v2822 = vpop.f32.mrf.mxu0
        %v2823 = vadd.f32 %v2646, %v2822
        %v2824 = vpop.f32.mrf.mxu0
        %v2825 = vpop.f32.mrf.mxu0
        %v2826 = vadd.f32 %v2649, %v2825
        %v2827 = vpop.f32.mrf.mxu0
        %2828 = vmatprep.mubr.bf16.mxu0 0
        %2829 = vmatmul.mubr.bf16.gmra.mxu0 %v1153
        %v2830 = vpop.f32.mrf.mxu0
        %v2831 = vadd.f32 %v2654, %v2830
        %v2832 = vpop.f32.mrf.mxu0
        %v2833 = vpop.f32.mrf.mxu0
        %v2834 = vadd.f32 %v2657, %v2833
        %v2835 = vpop.f32.mrf.mxu0
        %2836 = vmatprep.mubr.bf16.mxu0 0
        %2837 = vmatmul.mubr.bf16.gmra.mxu0 %v1154
        %v2838 = vpop.f32.mrf.mxu0
        %v2839 = vadd.f32 %v2662, %v2838
        %v2840 = vpop.f32.mrf.mxu0
        %v2841 = vpop.f32.mrf.mxu0
        %v2842 = vadd.f32 %v2665, %v2841
        %v2843 = vpop.f32.mrf.mxu0
        %2844 = vmatprep.mubr.bf16.mxu0 0
        %2845 = vmatmul.mubr.bf16.gmra.mxu0 %v1155
        %v2846 = vpop.f32.mrf.mxu0
        %v2847 = vadd.f32 %v2670, %v2846
        %v2848 = vpop.f32.mrf.mxu0
        %v2849 = vpop.f32.mrf.mxu0
        %v2850 = vadd.f32 %v2673, %v2849
        %v2851 = vpop.f32.mrf.mxu0
        %2852 = vmatprep.mubr.bf16.mxu0 0
        %2853 = vmatmul.mubr.bf16.gmra.mxu0 %v1156
        %v2854 = vpop.f32.mrf.mxu0
        %v2855 = vadd.f32 %v2678, %v2854
        %v2856 = vpop.f32.mrf.mxu0
        %v2857 = vpop.f32.mrf.mxu0
        %v2858 = vadd.f32 %v2681, %v2857
        %v2859 = vpop.f32.mrf.mxu0
        %2860 = vmatprep.mubr.bf16.mxu0 0
        %2861 = vmatmul.mubr.bf16.gmra.mxu0 %v1157
        %v2862 = vpop.f32.mrf.mxu0
        %v2863 = vadd.f32 %v2686, %v2862
        %v2864 = vpop.f32.mrf.mxu0
        %v2865 = vpop.f32.mrf.mxu0
        %v2866 = vadd.f32 %v2689, %v2865
        %v2867 = vpop.f32.mrf.mxu0
        %2868 = vmatprep.mubr.bf16.mxu0 0
        %2869 = vmatmul.mubr.bf16.gmra.mxu0 %v1158
        %v2870 = vpop.f32.mrf.mxu0
        %v2871 = vadd.f32 %v2694, %v2870
        %v2872 = vpop.f32.mrf.mxu0
        %v2873 = vpop.f32.mrf.mxu0
        %v2874 = vadd.f32 %v2697, %v2873
        %v2875 = vpop.f32.mrf.mxu0
        %2876 = vmatprep.mubr.bf16.mxu0 0
        %2877 = vmatmul.mubr.bf16.gmra.mxu0 %v1159
        %v2878 = vpop.f32.mrf.mxu0
        %v2879 = vadd.f32 %v2702, %v2878
        %v2880 = vpop.f32.mrf.mxu0
        %v2881 = vpop.f32.mrf.mxu0
        %v2882 = vadd.f32 %v2705, %v2881
        %v2883 = vpop.f32.mrf.mxu0
        %2884 = vmatprep.mubr.bf16.mxu0 0
        %2885 = vmatmul.mubr.bf16.gmra.mxu0 %v1160
        %v2886 = vpop.f32.mrf.mxu0
        %v2887 = vadd.f32 %v2710, %v2886
        %v2888 = vpop.f32.mrf.mxu0
        %v2889 = vpop.f32.mrf.mxu0
        %v2890 = vadd.f32 %v2713, %v2889
        %v2891 = vpop.f32.mrf.mxu0
        %2892 = vmatprep.mubr.bf16.mxu0 0
        %2893 = vmatmul.mubr.bf16.gmra.mxu0 %v1271
        %v2894 = vpop.f32.mrf.mxu0
        %v2895 = vadd.f32 %v2718, %v2894
        %v2896 = vpop.f32.mrf.mxu0
        %v2897 = vpop.f32.mrf.mxu0
        %v2898 = vadd.f32 %v2721, %v2897
        %v2899 = vpop.f32.mrf.mxu0
        %2900 = vmatprep.mubr.bf16.mxu0 0
        %2901 = vmatmul.mubr.bf16.gmra.mxu0 %v2361
        %v2902 = vpop.f32.mrf.mxu0
        %v2903 = vadd.f32 %v2726, %v2902
        %v2904 = vpop.f32.mrf.mxu0
        %v2905 = vpop.f32.mrf.mxu0
        %v2906 = vadd.f32 %v2729, %v2905
        %v2907 = vpop.f32.mrf.mxu0
        %2908 = vdwg.mxu0
        %v2909 = vadd.f32 %v2175, %v2767
        %v2910 = vadd.f32 %v2178, %v2770
        %v2911 = vadd.f32 %v2183, %v2775
        %v2912 = vadd.f32 %v2186, %v2778
        %v2913 = vadd.f32 %v2191, %v2783
        %v2914 = vadd.f32 %v2194, %v2786
        %v2915 = vadd.f32 %v2199, %v2791
        %v2916 = vadd.f32 %v2202, %v2794
        %v2917 = vadd.f32 %v2207, %v2799
        %v2918 = vadd.f32 %v2210, %v2802
        %v2919 = vadd.f32 %v2215, %v2807
        %v2920 = vadd.f32 %v2218, %v2810
        %v2921 = vadd.f32 %v2223, %v2815
        %v2922 = vadd.f32 %v2226, %v2818
        %v2923 = vadd.f32 %v2231, %v2823
        %v2924 = vadd.f32 %v2234, %v2826
        %v2925 = vadd.f32 %v2239, %v2831
        %v2926 = vadd.f32 %v2242, %v2834
        %v2927 = vadd.f32 %v2247, %v2839
        %v2928 = vadd.f32 %v2250, %v2842
        %v2929 = vadd.f32 %v2255, %v2847
        %v2930 = vadd.f32 %v2258, %v2850
        %v2931 = vadd.f32 %v2263, %v2855
        %v2932 = vadd.f32 %v2266, %v2858
        %v2933 = vadd.f32 %v2271, %v2863
        %v2934 = vadd.f32 %v2274, %v2866
        %v2935 = vadd.f32 %v2279, %v2871
        %v2936 = vadd.f32 %v2282, %v2874
        %v2937 = vadd.f32 %v2287, %v2879
        %v2938 = vadd.f32 %v2290, %v2882
        %v2939 = vadd.f32 %v2295, %v2887
        %v2940 = vadd.f32 %v2298, %v2890
        %v2941 = vadd.f32 %v2303, %v2895
        %v2942 = vadd.f32 %v2306, %v2898
        %v2943 = vadd.f32 %v2311, %v2903
        %v2944 = vadd.f32 %v2314, %v2906
        %v2945 = vld [vmem:[%s2] sm:$0x1]
        %v2947 = vlaneseq
        %v2948 = vshrl.u32 %v2947, 7
        %v2949 = vsub.s32 0, %v2948
        %v2950 = vrot.slane %v2945, %v2949
        %v2952 = vadd.f32 %v2909, %v2950
        %v2953 = vadd.f32 %v2910, %v2950
        %v2954 = vadd.f32 %v2911, %v2950
        %v2955 = vadd.f32 %v2912, %v2950
        %v2956 = vadd.f32 %v2913, %v2950
        %v2957 = vadd.f32 %v2914, %v2950
        %v2958 = vadd.f32 %v2915, %v2950
        %v2959 = vadd.f32 %v2916, %v2950
        %v2960 = vadd.f32 %v2917, %v2950
        %v2961 = vadd.f32 %v2918, %v2950
        %v2962 = vadd.f32 %v2919, %v2950
        %v2963 = vadd.f32 %v2920, %v2950
        %v2964 = vadd.f32 %v2921, %v2950
        %v2965 = vadd.f32 %v2922, %v2950
        %v2966 = vadd.f32 %v2923, %v2950
        %v2967 = vadd.f32 %v2924, %v2950
        %v2968 = vadd.f32 %v2925, %v2950
        %v2969 = vadd.f32 %v2926, %v2950
        %v2970 = vadd.f32 %v2927, %v2950
        %v2971 = vadd.f32 %v2928, %v2950
        %v2972 = vadd.f32 %v2929, %v2950
        %v2973 = vadd.f32 %v2930, %v2950
        %v2974 = vadd.f32 %v2931, %v2950
        %v2975 = vadd.f32 %v2932, %v2950
        %v2976 = vadd.f32 %v2933, %v2950
        %v2977 = vadd.f32 %v2934, %v2950
        %v2978 = vadd.f32 %v2935, %v2950
        %v2979 = vadd.f32 %v2936, %v2950
        %v2980 = vadd.f32 %v2937, %v2950
        %v2981 = vadd.f32 %v2938, %v2950
        %v2982 = vadd.f32 %v2939, %v2950
        %v2983 = vadd.f32 %v2940, %v2950
        %v2984 = vadd.f32 %v2941, %v2950
        %v2985 = vadd.f32 %v2942, %v2950
        %v2986 = vadd.f32 %v2943, %v2950
        %v2987 = vadd.f32 %v2944, %v2950
        %v2988 = vmax.f32 %v2952, 0.0
        %v2989 = vmax.f32 %v2953, 0.0
        %v2990 = vmax.f32 %v2954, 0.0
        %v2991 = vmax.f32 %v2955, 0.0
        %v2992 = vmax.f32 %v2956, 0.0
        %v2993 = vmax.f32 %v2957, 0.0
        %v2994 = vmax.f32 %v2958, 0.0
        %v2995 = vmax.f32 %v2959, 0.0
        %v2996 = vmax.f32 %v2960, 0.0
        %v2997 = vmax.f32 %v2961, 0.0
        %v2998 = vmax.f32 %v2962, 0.0
        %v2999 = vmax.f32 %v2963, 0.0
        %v3000 = vmax.f32 %v2964, 0.0
        %v3001 = vmax.f32 %v2965, 0.0
        %v3002 = vmax.f32 %v2966, 0.0
        %v3003 = vmax.f32 %v2967, 0.0
        %v3004 = vmax.f32 %v2968, 0.0
        %v3005 = vmax.f32 %v2969, 0.0
        %v3006 = vmax.f32 %v2970, 0.0
        %v3007 = vmax.f32 %v2971, 0.0
        %v3008 = vmax.f32 %v2972, 0.0
        %v3009 = vmax.f32 %v2973, 0.0
        %v3010 = vmax.f32 %v2974, 0.0
        %v3011 = vmax.f32 %v2975, 0.0
        %v3012 = vmax.f32 %v2976, 0.0
        %v3013 = vmax.f32 %v2977, 0.0
        %v3014 = vmax.f32 %v2978, 0.0
        %v3015 = vmax.f32 %v2979, 0.0
        %v3016 = vmax.f32 %v2980, 0.0
        %v3017 = vmax.f32 %v2981, 0.0
        %v3018 = vmax.f32 %v2982, 0.0
        %v3019 = vmax.f32 %v2983, 0.0
        %v3020 = vmax.f32 %v2984, 0.0
        %v3021 = vmax.f32 %v2985, 0.0
        %v3022 = vmax.f32 %v2986, 0.0
        %v3023 = vmax.f32 %v2987, 0.0
        %p3024 = scmp.ge.s32.totalorder %s281, 1
        %s3025 = sadd.s32 %s281, 16
        %p3026 = scmp.lt.s32.totalorder %s3025, 16
        %s3027 = scalar_select %p3024, 1, 0
        %v3028 = vstv %s3027
        %vm3029 = vcmp.eq.s32.totalorder %v3028, 1
        %s3030 = scalar_select %p3026, 1, 0
        %v3031 = vstv %s3030
        %vm3032 = vcmp.eq.s32.totalorder %v3031, 1
        %v3033 = vsel %vm3029, 1, 0
        %v3034 = vsel %vm3032, 1, 0
        %vm3035 = vcmp.eq.s32.totalorder %v3033, 1
        %vm3036 = vcmp.eq.s32.totalorder %v3034, 1
        %v3037 = vsel %vm3035, %v2988, 0.0
        %v3038 = vsel %vm3035, %v2989, 0.0
        %v3039 = vsel 1, %v2990, 0.0
        %v3040 = vsel 1, %v2991, 0.0
        %v3041 = vsel 1, %v2992, 0.0
        %v3042 = vsel 1, %v2993, 0.0
        %v3043 = vsel 1, %v2994, 0.0
        %v3044 = vsel 1, %v2995, 0.0
        %v3045 = vsel 1, %v2996, 0.0
        %v3046 = vsel 1, %v2997, 0.0
        %v3047 = vsel 1, %v2998, 0.0
        %v3048 = vsel 1, %v2999, 0.0
        %v3049 = vsel 1, %v3000, 0.0
        %v3050 = vsel 1, %v3001, 0.0
        %v3051 = vsel 1, %v3002, 0.0
        %v3052 = vsel 1, %v3003, 0.0
        %v3053 = vsel 1, %v3004, 0.0
        %v3054 = vsel 1, %v3005, 0.0
        %v3055 = vsel 1, %v3006, 0.0
        %v3056 = vsel 1, %v3007, 0.0
        %v3057 = vsel 1, %v3008, 0.0
        %v3058 = vsel 1, %v3009, 0.0
        %v3059 = vsel 1, %v3010, 0.0
        %v3060 = vsel 1, %v3011, 0.0
        %v3061 = vsel 1, %v3012, 0.0
        %v3062 = vsel 1, %v3013, 0.0
        %v3063 = vsel 1, %v3014, 0.0
        %v3064 = vsel 1, %v3015, 0.0
        %v3065 = vsel 1, %v3016, 0.0
        %v3066 = vsel 1, %v3017, 0.0
        %v3067 = vsel 1, %v3018, 0.0
        %v3068 = vsel 1, %v3019, 0.0
        %v3069 = vsel 1, %v3020, 0.0
        %v3070 = vsel 1, %v3021, 0.0
        %v3071 = vsel %vm3036, %v3022, 0.0
        %v3072 = vsel %vm3036, %v3023, 0.0
        %v3073 = vpack.c.bf16 %v3038, %v3037
        %v3074 = vpack.c.bf16 %v3040, %v3039
        %v3075 = vpack.c.bf16 %v3042, %v3041
        %v3076 = vpack.c.bf16 %v3044, %v3043
        %v3077 = vpack.c.bf16 %v3046, %v3045
        %v3078 = vpack.c.bf16 %v3048, %v3047
        %v3079 = vpack.c.bf16 %v3050, %v3049
        %v3080 = vpack.c.bf16 %v3052, %v3051
        %v3081 = vpack.c.bf16 %v3054, %v3053
        %v3082 = vpack.c.bf16 %v3056, %v3055
        %v3083 = vpack.c.bf16 %v3058, %v3057
        %v3084 = vpack.c.bf16 %v3060, %v3059
        %v3085 = vpack.c.bf16 %v3062, %v3061
        %v3086 = vpack.c.bf16 %v3064, %v3063
        %v3087 = vpack.c.bf16 %v3066, %v3065
        %v3088 = vpack.c.bf16 %v3068, %v3067
        %v3089 = vpack.c.bf16 %v3070, %v3069
        %v3090 = vpack.c.bf16 %v3072, %v3071
        %v3091 = vld [vmem:[%s4] sm:$0xf]
        %v3092 = vld [vmem:[%s4 + $0x4] sm:$0xf]
        %v3093 = vld [vmem:[%s4 + $0x8] sm:$0xf]
        %v3094 = vld [vmem:[%s4 + $0xc] sm:$0xf]
        %v3095 = vld [vmem:[%s4 + $0x10] sm:$0xf]
        %v3096 = vld [vmem:[%s4 + $0x14] sm:$0xf]
        %v3097 = vld [vmem:[%s4 + $0x18] sm:$0xf]
        %v3098 = vld [vmem:[%s4 + $0x1c] sm:$0xf]
        %v3099 = vld [vmem:[%s4 + $0x20] sm:$0xf]
        %v3100 = vld [vmem:[%s4 + $0x24] sm:$0xf]
        %v3101 = vld [vmem:[%s4 + $0x28] sm:$0xf]
        %v3102 = vld [vmem:[%s4 + $0x2c] sm:$0xf]
        %v3103 = vld [vmem:[%s4 + $0x30] sm:$0xf]
        %v3104 = vld [vmem:[%s4 + $0x34] sm:$0xf]
        %v3105 = vld [vmem:[%s4 + $0x38] sm:$0xf]
        %v3106 = vld [vmem:[%s4 + $0x3c] sm:$0xf]
        %v3108 = vshrl.u32 %v3073, 16
        %v3110 = vrot.slane %v3108, 7
        %v3111 = vshll.u32 %v3073, 16
        %v3113 = vor.u32 %v3110, %v3111
        %v3115 = vshrl.u32 %v3074, 16
        %v3117 = vrot.slane %v3115, 7
        %v3118 = vshll.u32 %v3074, 16
        %v3120 = vor.u32 %v3117, %v3118
        %v3122 = vshrl.u32 %v3075, 16
        %v3124 = vrot.slane %v3122, 7
        %v3125 = vshll.u32 %v3075, 16
        %v3127 = vor.u32 %v3124, %v3125
        %v3129 = vshrl.u32 %v3076, 16
        %v3131 = vrot.slane %v3129, 7
        %v3132 = vshll.u32 %v3076, 16
        %v3134 = vor.u32 %v3131, %v3132
        %v3136 = vshrl.u32 %v3077, 16
        %v3138 = vrot.slane %v3136, 7
        %v3139 = vshll.u32 %v3077, 16
        %v3141 = vor.u32 %v3138, %v3139
        %v3143 = vshrl.u32 %v3078, 16
        %v3145 = vrot.slane %v3143, 7
        %v3146 = vshll.u32 %v3078, 16
        %v3148 = vor.u32 %v3145, %v3146
        %v3150 = vshrl.u32 %v3079, 16
        %v3152 = vrot.slane %v3150, 7
        %v3153 = vshll.u32 %v3079, 16
        %v3155 = vor.u32 %v3152, %v3153
        %v3157 = vshrl.u32 %v3080, 16
        %v3159 = vrot.slane %v3157, 7
        %v3160 = vshll.u32 %v3080, 16
        %v3162 = vor.u32 %v3159, %v3160
        %v3164 = vshrl.u32 %v3081, 16
        %v3166 = vrot.slane %v3164, 7
        %v3167 = vshll.u32 %v3081, 16
        %v3169 = vor.u32 %v3166, %v3167
        %v3171 = vshrl.u32 %v3082, 16
        %v3173 = vrot.slane %v3171, 7
        %v3174 = vshll.u32 %v3082, 16
        %v3176 = vor.u32 %v3173, %v3174
        %v3178 = vshrl.u32 %v3083, 16
        %v3180 = vrot.slane %v3178, 7
        %v3181 = vshll.u32 %v3083, 16
        %v3183 = vor.u32 %v3180, %v3181
        %v3185 = vshrl.u32 %v3084, 16
        %v3187 = vrot.slane %v3185, 7
        %v3188 = vshll.u32 %v3084, 16
        %v3190 = vor.u32 %v3187, %v3188
        %v3192 = vshrl.u32 %v3085, 16
        %v3194 = vrot.slane %v3192, 7
        %v3195 = vshll.u32 %v3085, 16
        %v3197 = vor.u32 %v3194, %v3195
        %v3199 = vshrl.u32 %v3086, 16
        %v3201 = vrot.slane %v3199, 7
        %v3202 = vshll.u32 %v3086, 16
        %v3204 = vor.u32 %v3201, %v3202
        %v3206 = vshrl.u32 %v3087, 16
        %v3208 = vrot.slane %v3206, 7
        %v3209 = vshll.u32 %v3087, 16
        %v3211 = vor.u32 %v3208, %v3209
        %v3213 = vshrl.u32 %v3088, 16
        %v3215 = vrot.slane %v3213, 7
        %v3216 = vshll.u32 %v3088, 16
        %v3218 = vor.u32 %v3215, %v3216
        %v3220 = vshrl.u32 %v3089, 16
        %v3222 = vrot.slane %v3220, 7
        %v3223 = vshll.u32 %v3089, 16
        %v3225 = vor.u32 %v3222, %v3223
        %v3227 = vshrl.u32 %v3090, 16
        %v3229 = vrot.slane %v3227, 7
        %v3230 = vshll.u32 %v3090, 16
        %v3232 = vor.u32 %v3229, %v3230
        %vm3269 = vcmask 1040384
        %vm3270 = vsmask.f32 256
        %vm3271 = vmand %vm3269, %vm3270
        %v3272 = vsel %vm3271, 0, %v3113
        %v3273 = vsel %vm3271, 0, %v3120
        %v3274 = vsel %vm3271, 0, %v3127
        %v3275 = vsel %vm3271, 0, %v3134
        %v3276 = vsel %vm3271, 0, %v3141
        %v3277 = vsel %vm3271, 0, %v3148
        %v3278 = vsel %vm3271, 0, %v3155
        %v3279 = vsel %vm3271, 0, %v3162
        %v3280 = vsel %vm3271, 0, %v3169
        %v3281 = vsel %vm3271, 0, %v3176
        %v3282 = vsel %vm3271, 0, %v3183
        %v3283 = vsel %vm3271, 0, %v3190
        %v3284 = vsel %vm3271, 0, %v3197
        %v3285 = vsel %vm3271, 0, %v3204
        %v3286 = vsel %vm3271, 0, %v3211
        %v3287 = vsel %vm3271, 0, %v3218
        %v3288 = vsel %vm3271, 0, %v3225
        %v3289 = vsel %vm3271, 0, %v3232
        %v3290 = vsel %vm3271, %v3110, 0
        %v3291 = vsel %vm3271, %v3117, 0
        %v3292 = vsel %vm3271, %v3124, 0
        %v3293 = vsel %vm3271, %v3131, 0
        %v3294 = vsel %vm3271, %v3138, 0
        %v3295 = vsel %vm3271, %v3145, 0
        %v3296 = vsel %vm3271, %v3152, 0
        %v3297 = vsel %vm3271, %v3159, 0
        %v3298 = vsel %vm3271, %v3166, 0
        %v3299 = vsel %vm3271, %v3173, 0
        %v3300 = vsel %vm3271, %v3180, 0
        %v3301 = vsel %vm3271, %v3187, 0
        %v3302 = vsel %vm3271, %v3194, 0
        %v3303 = vsel %vm3271, %v3201, 0
        %v3304 = vsel %vm3271, %v3208, 0
        %v3305 = vsel %vm3271, %v3215, 0
        %v3306 = vsel %vm3271, %v3222, 0
        %v3307 = vsel %vm3271, %v3229, 0
        %vm3308 = vsmask.f32 7424
        %v3310 = vshrl.u32 %v3272, 16
        %v3312 = vshll.u32 %v3272, 16
        %v3314 = vrot.slane %v3312, 1
        %v3315 = vor.u32 %v3310, %v3314
        %v3317 = vshll.u32 %v3290, 16
        %v3319 = vrot.slane %v3317, 1
        %v3320 = vsel %vm3308, %v3315, %v3319
        %v3322 = vshrl.u32 %v3273, 16
        %v3324 = vshll.u32 %v3273, 16
        %v3326 = vrot.slane %v3324, 1
        %v3327 = vor.u32 %v3322, %v3326
        %v3329 = vshll.u32 %v3291, 16
        %v3331 = vrot.slane %v3329, 1
        %v3332 = vsel %vm3308, %v3327, %v3331
        %v3334 = vshrl.u32 %v3274, 16
        %v3336 = vshll.u32 %v3274, 16
        %v3338 = vrot.slane %v3336, 1
        %v3339 = vor.u32 %v3334, %v3338
        %v3341 = vshll.u32 %v3292, 16
        %v3343 = vrot.slane %v3341, 1
        %v3344 = vsel %vm3308, %v3339, %v3343
        %v3346 = vshrl.u32 %v3275, 16
        %v3348 = vshll.u32 %v3275, 16
        %v3350 = vrot.slane %v3348, 1
        %v3351 = vor.u32 %v3346, %v3350
        %v3353 = vshll.u32 %v3293, 16
        %v3355 = vrot.slane %v3353, 1
        %v3356 = vsel %vm3308, %v3351, %v3355
        %v3358 = vshrl.u32 %v3276, 16
        %v3360 = vshll.u32 %v3276, 16
        %v3362 = vrot.slane %v3360, 1
        %v3363 = vor.u32 %v3358, %v3362
        %v3365 = vshll.u32 %v3294, 16
        %v3367 = vrot.slane %v3365, 1
        %v3368 = vsel %vm3308, %v3363, %v3367
        %v3370 = vshrl.u32 %v3277, 16
        %v3372 = vshll.u32 %v3277, 16
        %v3374 = vrot.slane %v3372, 1
        %v3375 = vor.u32 %v3370, %v3374
        %v3377 = vshll.u32 %v3295, 16
        %v3379 = vrot.slane %v3377, 1
        %v3380 = vsel %vm3308, %v3375, %v3379
        %v3382 = vshrl.u32 %v3278, 16
        %v3384 = vshll.u32 %v3278, 16
        %v3386 = vrot.slane %v3384, 1
        %v3387 = vor.u32 %v3382, %v3386
        %v3389 = vshll.u32 %v3296, 16
        %v3391 = vrot.slane %v3389, 1
        %v3392 = vsel %vm3308, %v3387, %v3391
        %v3394 = vshrl.u32 %v3279, 16
        %v3396 = vshll.u32 %v3279, 16
        %v3398 = vrot.slane %v3396, 1
        %v3399 = vor.u32 %v3394, %v3398
        %v3401 = vshll.u32 %v3297, 16
        %v3403 = vrot.slane %v3401, 1
        %v3404 = vsel %vm3308, %v3399, %v3403
        %v3406 = vshrl.u32 %v3280, 16
        %v3408 = vshll.u32 %v3280, 16
        %v3410 = vrot.slane %v3408, 1
        %v3411 = vor.u32 %v3406, %v3410
        %v3413 = vshll.u32 %v3298, 16
        %v3415 = vrot.slane %v3413, 1
        %v3416 = vsel %vm3308, %v3411, %v3415
        %v3418 = vshrl.u32 %v3281, 16
        %v3420 = vshll.u32 %v3281, 16
        %v3422 = vrot.slane %v3420, 1
        %v3423 = vor.u32 %v3418, %v3422
        %v3425 = vshll.u32 %v3299, 16
        %v3427 = vrot.slane %v3425, 1
        %v3428 = vsel %vm3308, %v3423, %v3427
        %v3430 = vshrl.u32 %v3282, 16
        %v3432 = vshll.u32 %v3282, 16
        %v3434 = vrot.slane %v3432, 1
        %v3435 = vor.u32 %v3430, %v3434
        %v3437 = vshll.u32 %v3300, 16
        %v3439 = vrot.slane %v3437, 1
        %v3440 = vsel %vm3308, %v3435, %v3439
        %v3442 = vshrl.u32 %v3283, 16
        %v3444 = vshll.u32 %v3283, 16
        %v3446 = vrot.slane %v3444, 1
        %v3447 = vor.u32 %v3442, %v3446
        %v3449 = vshll.u32 %v3301, 16
        %v3451 = vrot.slane %v3449, 1
        %v3452 = vsel %vm3308, %v3447, %v3451
        %v3454 = vshrl.u32 %v3284, 16
        %v3456 = vshll.u32 %v3284, 16
        %v3458 = vrot.slane %v3456, 1
        %v3459 = vor.u32 %v3454, %v3458
        %v3461 = vshll.u32 %v3302, 16
        %v3463 = vrot.slane %v3461, 1
        %v3464 = vsel %vm3308, %v3459, %v3463
        %v3466 = vshrl.u32 %v3285, 16
        %v3468 = vshll.u32 %v3285, 16
        %v3470 = vrot.slane %v3468, 1
        %v3471 = vor.u32 %v3466, %v3470
        %v3473 = vshll.u32 %v3303, 16
        %v3475 = vrot.slane %v3473, 1
        %v3476 = vsel %vm3308, %v3471, %v3475
        %v3478 = vshrl.u32 %v3286, 16
        %v3480 = vshll.u32 %v3286, 16
        %v3482 = vrot.slane %v3480, 1
        %v3483 = vor.u32 %v3478, %v3482
        %v3485 = vshll.u32 %v3304, 16
        %v3487 = vrot.slane %v3485, 1
        %v3488 = vsel %vm3308, %v3483, %v3487
        %v3490 = vshrl.u32 %v3287, 16
        %v3492 = vshll.u32 %v3287, 16
        %v3494 = vrot.slane %v3492, 1
        %v3495 = vor.u32 %v3490, %v3494
        %v3497 = vshll.u32 %v3305, 16
        %v3499 = vrot.slane %v3497, 1
        %v3500 = vsel %vm3308, %v3495, %v3499
        %vm3549 = vcmask 1046528
        %v3550 = vrot.slane %v3272, 1
        %v3551 = vrot.slane %v3290, 1
        %v3552 = vsel %vm3549, %v3550, %v3551
        %v3553 = vrot.slane %v3273, 1
        %v3554 = vrot.slane %v3291, 1
        %v3555 = vsel %vm3549, %v3553, %v3554
        %v3556 = vrot.slane %v3274, 1
        %v3557 = vrot.slane %v3292, 1
        %v3558 = vsel %vm3549, %v3556, %v3557
        %v3559 = vrot.slane %v3275, 1
        %v3560 = vrot.slane %v3293, 1
        %v3561 = vsel %vm3549, %v3559, %v3560
        %v3562 = vrot.slane %v3276, 1
        %v3563 = vrot.slane %v3294, 1
        %v3564 = vsel %vm3549, %v3562, %v3563
        %v3565 = vrot.slane %v3277, 1
        %v3566 = vrot.slane %v3295, 1
        %v3567 = vsel %vm3549, %v3565, %v3566
        %v3568 = vrot.slane %v3278, 1
        %v3569 = vrot.slane %v3296, 1
        %v3570 = vsel %vm3549, %v3568, %v3569
        %v3571 = vrot.slane %v3279, 1
        %v3572 = vrot.slane %v3297, 1
        %v3573 = vsel %vm3549, %v3571, %v3572
        %v3574 = vrot.slane %v3280, 1
        %v3575 = vrot.slane %v3298, 1
        %v3576 = vsel %vm3549, %v3574, %v3575
        %v3577 = vrot.slane %v3281, 1
        %v3578 = vrot.slane %v3299, 1
        %v3579 = vsel %vm3549, %v3577, %v3578
        %v3580 = vrot.slane %v3282, 1
        %v3581 = vrot.slane %v3300, 1
        %v3582 = vsel %vm3549, %v3580, %v3581
        %v3583 = vrot.slane %v3283, 1
        %v3584 = vrot.slane %v3301, 1
        %v3585 = vsel %vm3549, %v3583, %v3584
        %v3586 = vrot.slane %v3284, 1
        %v3587 = vrot.slane %v3302, 1
        %v3588 = vsel %vm3549, %v3586, %v3587
        %v3589 = vrot.slane %v3285, 1
        %v3590 = vrot.slane %v3303, 1
        %v3591 = vsel %vm3549, %v3589, %v3590
        %v3592 = vrot.slane %v3286, 1
        %v3593 = vrot.slane %v3304, 1
        %v3594 = vsel %vm3549, %v3592, %v3593
        %v3595 = vrot.slane %v3287, 1
        %v3596 = vrot.slane %v3305, 1
        %v3597 = vsel %vm3549, %v3595, %v3596
        %v3614 = vld [vmem:[#allocation2] sm:$0xf]
        %v3615 = vld [vmem:[#allocation2 + $0x4] sm:$0xf]
        %v3616 = vld [vmem:[#allocation2 + $0x8] sm:$0xf]
        %v3617 = vld [vmem:[#allocation2 + $0xc] sm:$0xf]
        %v3618 = vld [vmem:[#allocation2 + $0x10] sm:$0xf]
        %v3619 = vld [vmem:[#allocation2 + $0x14] sm:$0xf]
        %v3620 = vld [vmem:[#allocation2 + $0x18] sm:$0xf]
        %v3621 = vld [vmem:[#allocation2 + $0x1c] sm:$0xf]
        %v3622 = vld [vmem:[#allocation2 + $0x20] sm:$0xf]
        %v3623 = vld [vmem:[#allocation2 + $0x24] sm:$0xf]
        %v3624 = vld [vmem:[#allocation2 + $0x28] sm:$0xf]
        %v3625 = vld [vmem:[#allocation2 + $0x2c] sm:$0xf]
        %v3626 = vld [vmem:[#allocation2 + $0x30] sm:$0xf]
        %v3627 = vld [vmem:[#allocation2 + $0x34] sm:$0xf]
        %v3628 = vld [vmem:[#allocation2 + $0x38] sm:$0xf]
        %v3629 = vld [vmem:[#allocation2 + $0x3c] sm:$0xf]
        %v3630 = vld [vmem:[#allocation2 + $0x40] sm:$0xf]
        %v3631 = vld [vmem:[#allocation2 + $0x44] sm:$0xf]
        %v3632 = vld [vmem:[#allocation2 + $0x48] sm:$0xf]
        %v3633 = vld [vmem:[#allocation2 + $0x4c] sm:$0xf]
        %v3634 = vld [vmem:[#allocation2 + $0x50] sm:$0xf]
        %v3635 = vld [vmem:[#allocation2 + $0x54] sm:$0xf]
        %v3636 = vld [vmem:[#allocation2 + $0x58] sm:$0xf]
        %v3637 = vld [vmem:[#allocation2 + $0x5c] sm:$0xf]
        %v3638 = vld [vmem:[#allocation2 + $0x60] sm:$0xf]
        %v3639 = vld [vmem:[#allocation2 + $0x64] sm:$0xf]
        %v3640 = vld [vmem:[#allocation2 + $0x68] sm:$0xf]
        %v3641 = vld [vmem:[#allocation2 + $0x6c] sm:$0xf]
        %v3642 = vld [vmem:[#allocation2 + $0x70] sm:$0xf]
        %v3643 = vld [vmem:[#allocation2 + $0x74] sm:$0xf]
        %v3644 = vld [vmem:[#allocation2 + $0x78] sm:$0xf]
        %v3645 = vld [vmem:[#allocation2 + $0x7c] sm:$0xf]
        %v3646 = vld [vmem:[#allocation2 + $0x80] sm:$0xf]
        %v3647 = vld [vmem:[#allocation2 + $0x84] sm:$0xf]
        %v3648 = vld [vmem:[#allocation2 + $0x88] sm:$0xf]
        %v3649 = vld [vmem:[#allocation2 + $0x8c] sm:$0xf]
        %v3650 = vld [vmem:[#allocation2 + $0x90] sm:$0xf]
        %v3651 = vld [vmem:[#allocation2 + $0x94] sm:$0xf]
        %v3652 = vld [vmem:[#allocation2 + $0x98] sm:$0xf]
        %v3653 = vld [vmem:[#allocation2 + $0x9c] sm:$0xf]
        %v3654 = vld [vmem:[#allocation2 + $0xa0] sm:$0xf]
        %v3655 = vld [vmem:[#allocation2 + $0xa4] sm:$0xf]
        %v3656 = vld [vmem:[#allocation2 + $0xa8] sm:$0xf]
        %v3657 = vld [vmem:[#allocation2 + $0xac] sm:$0xf]
        %v3658 = vld [vmem:[#allocation2 + $0xb0] sm:$0xf]
        %v3659 = vld [vmem:[#allocation2 + $0xb4] sm:$0xf]
        %v3660 = vld [vmem:[#allocation2 + $0xb8] sm:$0xf]
        %v3661 = vld [vmem:[#allocation2 + $0xbc] sm:$0xf]
        %v3710 = vunpack.c.l.b16 %v3614
        %v3711 = vunpack.c.l.b16 %v3615
        %v3712 = vunpack.c.l.b16 %v3616
        %v3713 = vunpack.c.l.b16 %v3617
        %v3714 = vunpack.c.l.b16 %v3618
        %v3715 = vunpack.c.l.b16 %v3619
        %v3716 = vunpack.c.l.b16 %v3620
        %v3717 = vunpack.c.l.b16 %v3621
        %v3718 = vunpack.c.l.b16 %v3622
        %v3719 = vunpack.c.l.b16 %v3623
        %v3720 = vunpack.c.l.b16 %v3624
        %v3721 = vunpack.c.l.b16 %v3625
        %v3722 = vunpack.c.l.b16 %v3626
        %v3723 = vunpack.c.l.b16 %v3627
        %v3724 = vunpack.c.l.b16 %v3628
        %v3725 = vunpack.c.l.b16 %v3629
        %v3726 = vunpack.c.l.b16 %v3630
        %v3727 = vunpack.c.l.b16 %v3631
        %v3728 = vunpack.c.l.b16 %v3632
        %v3729 = vunpack.c.l.b16 %v3633
        %v3730 = vunpack.c.l.b16 %v3634
        %v3731 = vunpack.c.l.b16 %v3635
        %v3732 = vunpack.c.l.b16 %v3636
        %v3733 = vunpack.c.l.b16 %v3637
        %v3734 = vunpack.c.l.b16 %v3638
        %v3735 = vunpack.c.l.b16 %v3639
        %v3736 = vunpack.c.l.b16 %v3640
        %v3737 = vunpack.c.l.b16 %v3641
        %v3738 = vunpack.c.l.b16 %v3642
        %v3739 = vunpack.c.l.b16 %v3643
        %v3740 = vunpack.c.l.b16 %v3644
        %v3741 = vunpack.c.l.b16 %v3645
        %v3742 = vunpack.c.l.b16 %v3646
        %v3743 = vunpack.c.l.b16 %v3647
        %v3744 = vunpack.c.l.b16 %v3648
        %v3745 = vunpack.c.l.b16 %v3649
        %v3746 = vunpack.c.l.b16 %v3650
        %v3747 = vunpack.c.l.b16 %v3651
        %v3748 = vunpack.c.l.b16 %v3652
        %v3749 = vunpack.c.l.b16 %v3653
        %v3750 = vunpack.c.l.b16 %v3654
        %v3751 = vunpack.c.l.b16 %v3655
        %v3752 = vunpack.c.l.b16 %v3656
        %v3753 = vunpack.c.l.b16 %v3657
        %v3754 = vunpack.c.l.b16 %v3658
        %v3755 = vunpack.c.l.b16 %v3659
        %v3756 = vunpack.c.l.b16 %v3660
        %v3757 = vunpack.c.l.b16 %v3661
        %v3758 = vpack.c.b16 %v3711, %v3710
        %v3759 = vpack.c.b16 %v3713, %v3712
        %v3760 = vpack.c.b16 %v3715, %v3714
        %v3761 = vpack.c.b16 %v3717, %v3716
        %v3762 = vpack.c.b16 %v3719, %v3718
        %v3763 = vpack.c.b16 %v3721, %v3720
        %v3764 = vpack.c.b16 %v3723, %v3722
        %v3765 = vpack.c.b16 %v3725, %v3724
        %v3766 = vpack.c.b16 %v3727, %v3726
        %v3767 = vpack.c.b16 %v3729, %v3728
        %v3768 = vpack.c.b16 %v3731, %v3730
        %v3769 = vpack.c.b16 %v3733, %v3732
        %v3770 = vpack.c.b16 %v3735, %v3734
        %v3771 = vpack.c.b16 %v3737, %v3736
        %v3772 = vpack.c.b16 %v3739, %v3738
        %v3773 = vpack.c.b16 %v3741, %v3740
        %v3774 = vpack.c.b16 %v3743, %v3742
        %v3775 = vpack.c.b16 %v3745, %v3744
        %v3776 = vpack.c.b16 %v3747, %v3746
        %v3777 = vpack.c.b16 %v3749, %v3748
        %v3778 = vpack.c.b16 %v3751, %v3750
        %v3779 = vpack.c.b16 %v3753, %v3752
        %v3780 = vpack.c.b16 %v3755, %v3754
        %v3781 = vpack.c.b16 %v3757, %v3756
        %3806 = vmatprep.subr.bf16.mxu0 0
        %3807 = vmatpush1.bf16.msra.mxu0 %v3765
        %3808 = vmatprep.subr.bf16.mxu0 0
        %3809 = vmatpush1.bf16.msra.mxu0 %v3764
        %3810 = vmatprep.subr.bf16.mxu0 0
        %3811 = vmatpush1.bf16.msra.mxu0 %v3763
        %3812 = vmatprep.subr.bf16.mxu0 0
        %3813 = vmatpush1.bf16.msra.mxu0 %v3762
        %3814 = vmatprep.subr.bf16.mxu0 0
        %3815 = vmatpush1.bf16.msra.mxu0 %v3761
        %3816 = vmatprep.subr.bf16.mxu0 0
        %3817 = vmatpush1.bf16.msra.mxu0 %v3760
        %3818 = vmatprep.subr.bf16.mxu0 0
        %3819 = vmatpush1.bf16.msra.mxu0 %v3759
        %3820 = vmatprep.subr.bf16.mxu0 0
        %3821 = vmatpush1.bf16.msra.mxu0 %v3758
        %3822 = vmatprep.subr.bf16.mxu0 0
        %3823 = vmatpush2.bf16.msra.mxu0 %v3773
        %3824 = vmatprep.subr.bf16.mxu0 0
        %3825 = vmatpush2.bf16.msra.mxu0 %v3772
        %3826 = vmatprep.subr.bf16.mxu0 0
        %3827 = vmatpush2.bf16.msra.mxu0 %v3771
        %3828 = vmatprep.subr.bf16.mxu0 0
        %3829 = vmatpush2.bf16.msra.mxu0 %v3770
        %3830 = vmatprep.subr.bf16.mxu0 0
        %3831 = vmatpush2.bf16.msra.mxu0 %v3769
        %3832 = vmatprep.subr.bf16.mxu0 0
        %3833 = vmatpush2.bf16.msra.mxu0 %v3768
        %3834 = vmatprep.subr.bf16.mxu0 0
        %3835 = vmatpush2.bf16.msra.mxu0 %v3767
        %3836 = vmatprep.subr.bf16.mxu0 0
        %3837 = vmatpush2.bf16.msra.mxu0 %v3766
        %3838 = vmatprep.mubr.bf16.mxu0 %v3320
        %3839 = vmatmul.mubr.bf16.gmra.mxu0 %v3272
        %v3840 = vpop.f32.mrf.mxu0
        %v3841 = vadd.f32 0.0, %v3840
        %v3842 = vpop.f32.mrf.mxu0
        %v3843 = vpop.f32.mrf.mxu0
        %v3844 = vadd.f32 0.0, %v3843
        %v3845 = vpop.f32.mrf.mxu0
        %3846 = vmatprep.mubr.bf16.mxu0 %v3332
        %3847 = vmatmul.mubr.bf16.gmra.mxu0 %v3273
        %v3848 = vpop.f32.mrf.mxu0
        %v3849 = vadd.f32 0.0, %v3848
        %v3850 = vpop.f32.mrf.mxu0
        %v3851 = vpop.f32.mrf.mxu0
        %v3852 = vadd.f32 0.0, %v3851
        %v3853 = vpop.f32.mrf.mxu0
        %3854 = vmatprep.mubr.bf16.mxu0 %v3344
        %3855 = vmatmul.mubr.bf16.gmra.mxu0 %v3274
        %v3856 = vpop.f32.mrf.mxu0
        %v3857 = vadd.f32 0.0, %v3856
        %v3858 = vpop.f32.mrf.mxu0
        %v3859 = vpop.f32.mrf.mxu0
        %v3860 = vadd.f32 0.0, %v3859
        %v3861 = vpop.f32.mrf.mxu0
        %3862 = vmatprep.mubr.bf16.mxu0 %v3356
        %3863 = vmatmul.mubr.bf16.gmra.mxu0 %v3275
        %v3864 = vpop.f32.mrf.mxu0
        %v3865 = vadd.f32 0.0, %v3864
        %v3866 = vpop.f32.mrf.mxu0
        %v3867 = vpop.f32.mrf.mxu0
        %v3868 = vadd.f32 0.0, %v3867
        %v3869 = vpop.f32.mrf.mxu0
        %3870 = vmatprep.mubr.bf16.mxu0 %v3368
        %3871 = vmatmul.mubr.bf16.gmra.mxu0 %v3276
        %v3872 = vpop.f32.mrf.mxu0
        %v3873 = vadd.f32 0.0, %v3872
        %v3874 = vpop.f32.mrf.mxu0
        %v3875 = vpop.f32.mrf.mxu0
        %v3876 = vadd.f32 0.0, %v3875
        %v3877 = vpop.f32.mrf.mxu0
        %3878 = vmatprep.mubr.bf16.mxu0 %v3380
        %3879 = vmatmul.mubr.bf16.gmra.mxu0 %v3277
        %v3880 = vpop.f32.mrf.mxu0
        %v3881 = vadd.f32 0.0, %v3880
        %v3882 = vpop.f32.mrf.mxu0
        %v3883 = vpop.f32.mrf.mxu0
        %v3884 = vadd.f32 0.0, %v3883
        %v3885 = vpop.f32.mrf.mxu0
        %3886 = vmatprep.mubr.bf16.mxu0 %v3392
        %3887 = vmatmul.mubr.bf16.gmra.mxu0 %v3278
        %v3888 = vpop.f32.mrf.mxu0
        %v3889 = vadd.f32 0.0, %v3888
        %v3890 = vpop.f32.mrf.mxu0
        %v3891 = vpop.f32.mrf.mxu0
        %v3892 = vadd.f32 0.0, %v3891
        %v3893 = vpop.f32.mrf.mxu0
        %3894 = vmatprep.mubr.bf16.mxu0 %v3404
        %3895 = vmatmul.mubr.bf16.gmra.mxu0 %v3279
        %v3896 = vpop.f32.mrf.mxu0
        %v3897 = vadd.f32 0.0, %v3896
        %v3898 = vpop.f32.mrf.mxu0
        %v3899 = vpop.f32.mrf.mxu0
        %v3900 = vadd.f32 0.0, %v3899
        %v3901 = vpop.f32.mrf.mxu0
        %3902 = vmatprep.mubr.bf16.mxu0 %v3416
        %3903 = vmatmul.mubr.bf16.gmra.mxu0 %v3280
        %v3904 = vpop.f32.mrf.mxu0
        %v3905 = vadd.f32 0.0, %v3904
        %v3906 = vpop.f32.mrf.mxu0
        %v3907 = vpop.f32.mrf.mxu0
        %v3908 = vadd.f32 0.0, %v3907
        %v3909 = vpop.f32.mrf.mxu0
        %3910 = vmatprep.mubr.bf16.mxu0 %v3428
        %3911 = vmatmul.mubr.bf16.gmra.mxu0 %v3281
        %v3912 = vpop.f32.mrf.mxu0
        %v3913 = vadd.f32 0.0, %v3912
        %v3914 = vpop.f32.mrf.mxu0
        %v3915 = vpop.f32.mrf.mxu0
        %v3916 = vadd.f32 0.0, %v3915
        %v3917 = vpop.f32.mrf.mxu0
        %3918 = vmatprep.mubr.bf16.mxu0 %v3440
        %3919 = vmatmul.mubr.bf16.gmra.mxu0 %v3282
        %v3920 = vpop.f32.mrf.mxu0
        %v3921 = vadd.f32 0.0, %v3920
        %v3922 = vpop.f32.mrf.mxu0
        %v3923 = vpop.f32.mrf.mxu0
        %v3924 = vadd.f32 0.0, %v3923
        %v3925 = vpop.f32.mrf.mxu0
        %3926 = vmatprep.mubr.bf16.mxu0 %v3452
        %3927 = vmatmul.mubr.bf16.gmra.mxu0 %v3283
        %v3928 = vpop.f32.mrf.mxu0
        %v3929 = vadd.f32 0.0, %v3928
        %v3930 = vpop.f32.mrf.mxu0
        %v3931 = vpop.f32.mrf.mxu0
        %v3932 = vadd.f32 0.0, %v3931
        %v3933 = vpop.f32.mrf.mxu0
        %3934 = vmatprep.mubr.bf16.mxu0 %v3464
        %3935 = vmatmul.mubr.bf16.gmra.mxu0 %v3284
        %v3936 = vpop.f32.mrf.mxu0
        %v3937 = vadd.f32 0.0, %v3936
        %v3938 = vpop.f32.mrf.mxu0
        %v3939 = vpop.f32.mrf.mxu0
        %v3940 = vadd.f32 0.0, %v3939
        %v3941 = vpop.f32.mrf.mxu0
        %3942 = vmatprep.mubr.bf16.mxu0 %v3476
        %3943 = vmatmul.mubr.bf16.gmra.mxu0 %v3285
        %v3944 = vpop.f32.mrf.mxu0
        %v3945 = vadd.f32 0.0, %v3944
        %v3946 = vpop.f32.mrf.mxu0
        %v3947 = vpop.f32.mrf.mxu0
        %v3948 = vadd.f32 0.0, %v3947
        %v3949 = vpop.f32.mrf.mxu0
        %3950 = vmatprep.mubr.bf16.mxu0 %v3488
        %3951 = vmatmul.mubr.bf16.gmra.mxu0 %v3286
        %v3952 = vpop.f32.mrf.mxu0
        %v3953 = vadd.f32 0.0, %v3952
        %v3954 = vpop.f32.mrf.mxu0
        %v3955 = vpop.f32.mrf.mxu0
        %v3956 = vadd.f32 0.0, %v3955
        %v3957 = vpop.f32.mrf.mxu0
        %3958 = vmatprep.mubr.bf16.mxu0 %v3500
        %3959 = vmatmul.mubr.bf16.gmra.mxu0 %v3287
        %v3960 = vpop.f32.mrf.mxu0
        %v3961 = vadd.f32 0.0, %v3960
        %v3962 = vpop.f32.mrf.mxu0
        %v3963 = vpop.f32.mrf.mxu0
        %v3964 = vadd.f32 0.0, %v3963
        %v3965 = vpop.f32.mrf.mxu0
        %3966 = vdwg.mxu0
        %3967 = vmatprep.subr.bf16.mxu0 0
        %3968 = vmatpush1.bf16.msra.mxu0 %v3781
        %3969 = vmatprep.subr.bf16.mxu0 0
        %3970 = vmatpush1.bf16.msra.mxu0 %v3780
        %3971 = vmatprep.subr.bf16.mxu0 0
        %3972 = vmatpush1.bf16.msra.mxu0 %v3779
        %3973 = vmatprep.subr.bf16.mxu0 0
        %3974 = vmatpush1.bf16.msra.mxu0 %v3778
        %3975 = vmatprep.subr.bf16.mxu0 0
        %3976 = vmatpush1.bf16.msra.mxu0 %v3777
        %3977 = vmatprep.subr.bf16.mxu0 0
        %3978 = vmatpush1.bf16.msra.mxu0 %v3776
        %3979 = vmatprep.subr.bf16.mxu0 0
        %3980 = vmatpush1.bf16.msra.mxu0 %v3775
        %3981 = vmatprep.subr.bf16.mxu0 0
        %3982 = vmatpush1.bf16.msra.mxu0 %v3774
        %3983 = vmatprep.subr.bf16.mxu0 0
        %3984 = vmatpush2.bf16.msra.mxu0 0
        %3985 = vmatprep.subr.bf16.mxu0 0
        %3986 = vmatpush2.bf16.msra.mxu0 0
        %3987 = vmatprep.subr.bf16.mxu0 0
        %3988 = vmatpush2.bf16.msra.mxu0 0
        %3989 = vmatprep.subr.bf16.mxu0 0
        %3990 = vmatpush2.bf16.msra.mxu0 0
        %3991 = vmatprep.subr.bf16.mxu0 0
        %3992 = vmatpush2.bf16.msra.mxu0 0
        %3993 = vmatprep.subr.bf16.mxu0 0
        %3994 = vmatpush2.bf16.msra.mxu0 0
        %3995 = vmatprep.subr.bf16.mxu0 0
        %3996 = vmatpush2.bf16.msra.mxu0 0
        %3997 = vmatprep.subr.bf16.mxu0 0
        %3998 = vmatpush2.bf16.msra.mxu0 0
        %3999 = vmatprep.mubr.bf16.mxu0 0
        %4000 = vmatmul.mubr.bf16.gmra.mxu0 %v3552
        %v4001 = vpop.f32.mrf.mxu0
        %v4002 = vadd.f32 %v3841, %v4001
        %v4003 = vpop.f32.mrf.mxu0
        %v4004 = vpop.f32.mrf.mxu0
        %v4005 = vadd.f32 %v3844, %v4004
        %v4006 = vpop.f32.mrf.mxu0
        %4007 = vmatprep.mubr.bf16.mxu0 0
        %4008 = vmatmul.mubr.bf16.gmra.mxu0 %v3555
        %v4009 = vpop.f32.mrf.mxu0
        %v4010 = vadd.f32 %v3849, %v4009
        %v4011 = vpop.f32.mrf.mxu0
        %v4012 = vpop.f32.mrf.mxu0
        %v4013 = vadd.f32 %v3852, %v4012
        %v4014 = vpop.f32.mrf.mxu0
        %4015 = vmatprep.mubr.bf16.mxu0 0
        %4016 = vmatmul.mubr.bf16.gmra.mxu0 %v3558
        %v4017 = vpop.f32.mrf.mxu0
        %v4018 = vadd.f32 %v3857, %v4017
        %v4019 = vpop.f32.mrf.mxu0
        %v4020 = vpop.f32.mrf.mxu0
        %v4021 = vadd.f32 %v3860, %v4020
        %v4022 = vpop.f32.mrf.mxu0
        %4023 = vmatprep.mubr.bf16.mxu0 0
        %4024 = vmatmul.mubr.bf16.gmra.mxu0 %v3561
        %v4025 = vpop.f32.mrf.mxu0
        %v4026 = vadd.f32 %v3865, %v4025
        %v4027 = vpop.f32.mrf.mxu0
        %v4028 = vpop.f32.mrf.mxu0
        %v4029 = vadd.f32 %v3868, %v4028
        %v4030 = vpop.f32.mrf.mxu0
        %4031 = vmatprep.mubr.bf16.mxu0 0
        %4032 = vmatmul.mubr.bf16.gmra.mxu0 %v3564
        %v4033 = vpop.f32.mrf.mxu0
        %v4034 = vadd.f32 %v3873, %v4033
        %v4035 = vpop.f32.mrf.mxu0
        %v4036 = vpop.f32.mrf.mxu0
        %v4037 = vadd.f32 %v3876, %v4036
        %v4038 = vpop.f32.mrf.mxu0
        %4039 = vmatprep.mubr.bf16.mxu0 0
        %4040 = vmatmul.mubr.bf16.gmra.mxu0 %v3567
        %v4041 = vpop.f32.mrf.mxu0
        %v4042 = vadd.f32 %v3881, %v4041
        %v4043 = vpop.f32.mrf.mxu0
        %v4044 = vpop.f32.mrf.mxu0
        %v4045 = vadd.f32 %v3884, %v4044
        %v4046 = vpop.f32.mrf.mxu0
        %4047 = vmatprep.mubr.bf16.mxu0 0
        %4048 = vmatmul.mubr.bf16.gmra.mxu0 %v3570
        %v4049 = vpop.f32.mrf.mxu0
        %v4050 = vadd.f32 %v3889, %v4049
        %v4051 = vpop.f32.mrf.mxu0
        %v4052 = vpop.f32.mrf.mxu0
        %v4053 = vadd.f32 %v3892, %v4052
        %v4054 = vpop.f32.mrf.mxu0
        %4055 = vmatprep.mubr.bf16.mxu0 0
        %4056 = vmatmul.mubr.bf16.gmra.mxu0 %v3573
        %v4057 = vpop.f32.mrf.mxu0
        %v4058 = vadd.f32 %v3897, %v4057
        %v4059 = vpop.f32.mrf.mxu0
        %v4060 = vpop.f32.mrf.mxu0
        %v4061 = vadd.f32 %v3900, %v4060
        %v4062 = vpop.f32.mrf.mxu0
        %4063 = vmatprep.mubr.bf16.mxu0 0
        %4064 = vmatmul.mubr.bf16.gmra.mxu0 %v3576
        %v4065 = vpop.f32.mrf.mxu0
        %v4066 = vadd.f32 %v3905, %v4065
        %v4067 = vpop.f32.mrf.mxu0
        %v4068 = vpop.f32.mrf.mxu0
        %v4069 = vadd.f32 %v3908, %v4068
        %v4070 = vpop.f32.mrf.mxu0
        %4071 = vmatprep.mubr.bf16.mxu0 0
        %4072 = vmatmul.mubr.bf16.gmra.mxu0 %v3579
        %v4073 = vpop.f32.mrf.mxu0
        %v4074 = vadd.f32 %v3913, %v4073
        %v4075 = vpop.f32.mrf.mxu0
        %v4076 = vpop.f32.mrf.mxu0
        %v4077 = vadd.f32 %v3916, %v4076
        %v4078 = vpop.f32.mrf.mxu0
        %4079 = vmatprep.mubr.bf16.mxu0 0
        %4080 = vmatmul.mubr.bf16.gmra.mxu0 %v3582
        %v4081 = vpop.f32.mrf.mxu0
        %v4082 = vadd.f32 %v3921, %v4081
        %v4083 = vpop.f32.mrf.mxu0
        %v4084 = vpop.f32.mrf.mxu0
        %v4085 = vadd.f32 %v3924, %v4084
        %v4086 = vpop.f32.mrf.mxu0
        %4087 = vmatprep.mubr.bf16.mxu0 0
        %4088 = vmatmul.mubr.bf16.gmra.mxu0 %v3585
        %v4089 = vpop.f32.mrf.mxu0
        %v4090 = vadd.f32 %v3929, %v4089
        %v4091 = vpop.f32.mrf.mxu0
        %v4092 = vpop.f32.mrf.mxu0
        %v4093 = vadd.f32 %v3932, %v4092
        %v4094 = vpop.f32.mrf.mxu0
        %4095 = vmatprep.mubr.bf16.mxu0 0
        %4096 = vmatmul.mubr.bf16.gmra.mxu0 %v3588
        %v4097 = vpop.f32.mrf.mxu0
        %v4098 = vadd.f32 %v3937, %v4097
        %v4099 = vpop.f32.mrf.mxu0
        %v4100 = vpop.f32.mrf.mxu0
        %v4101 = vadd.f32 %v3940, %v4100
        %v4102 = vpop.f32.mrf.mxu0
        %4103 = vmatprep.mubr.bf16.mxu0 0
        %4104 = vmatmul.mubr.bf16.gmra.mxu0 %v3591
        %v4105 = vpop.f32.mrf.mxu0
        %v4106 = vadd.f32 %v3945, %v4105
        %v4107 = vpop.f32.mrf.mxu0
        %v4108 = vpop.f32.mrf.mxu0
        %v4109 = vadd.f32 %v3948, %v4108
        %v4110 = vpop.f32.mrf.mxu0
        %4111 = vmatprep.mubr.bf16.mxu0 0
        %4112 = vmatmul.mubr.bf16.gmra.mxu0 %v3594
        %v4113 = vpop.f32.mrf.mxu0
        %v4114 = vadd.f32 %v3953, %v4113
        %v4115 = vpop.f32.mrf.mxu0
        %v4116 = vpop.f32.mrf.mxu0
        %v4117 = vadd.f32 %v3956, %v4116
        %v4118 = vpop.f32.mrf.mxu0
        %4119 = vmatprep.mubr.bf16.mxu0 0
        %4120 = vmatmul.mubr.bf16.gmra.mxu0 %v3597
        %v4121 = vpop.f32.mrf.mxu0
        %v4122 = vadd.f32 %v3961, %v4121
        %v4123 = vpop.f32.mrf.mxu0
        %v4124 = vpop.f32.mrf.mxu0
        %v4125 = vadd.f32 %v3964, %v4124
        %v4126 = vpop.f32.mrf.mxu0
        %4127 = vdwg.mxu0
        %v4144 = vunpack.c.l.b16 %v3091
        %v4145 = vunpack.c.l.b16 %v3092
        %v4146 = vunpack.c.l.b16 %v3093
        %v4147 = vunpack.c.l.b16 %v3094
        %v4148 = vunpack.c.l.b16 %v3095
        %v4149 = vunpack.c.l.b16 %v3096
        %v4150 = vunpack.c.l.b16 %v3097
        %v4151 = vunpack.c.l.b16 %v3098
        %v4152 = vunpack.c.l.b16 %v3099
        %v4153 = vunpack.c.l.b16 %v3100
        %v4154 = vunpack.c.l.b16 %v3101
        %v4155 = vunpack.c.l.b16 %v3102
        %v4156 = vunpack.c.l.b16 %v3103
        %v4157 = vunpack.c.l.b16 %v3104
        %v4158 = vunpack.c.l.b16 %v3105
        %v4159 = vunpack.c.l.b16 %v3106
        %v4160 = vpack.c.b16 %v4145, %v4144
        %v4161 = vpack.c.b16 %v4147, %v4146
        %v4162 = vpack.c.b16 %v4149, %v4148
        %v4163 = vpack.c.b16 %v4151, %v4150
        %v4164 = vpack.c.b16 %v4153, %v4152
        %v4165 = vpack.c.b16 %v4155, %v4154
        %v4166 = vpack.c.b16 %v4157, %v4156
        %v4167 = vpack.c.b16 %v4159, %v4158
        %4176 = vmatprep.subr.bf16.mxu0 0
        %4177 = vmatpush1.bf16.msra.mxu0 %v4167
        %4178 = vmatprep.subr.bf16.mxu0 0
        %4179 = vmatpush1.bf16.msra.mxu0 %v4166
        %4180 = vmatprep.subr.bf16.mxu0 0
        %4181 = vmatpush1.bf16.msra.mxu0 %v4165
        %4182 = vmatprep.subr.bf16.mxu0 0
        %4183 = vmatpush1.bf16.msra.mxu0 %v4164
        %4184 = vmatprep.subr.bf16.mxu0 0
        %4185 = vmatpush1.bf16.msra.mxu0 %v4163
        %4186 = vmatprep.subr.bf16.mxu0 0
        %4187 = vmatpush1.bf16.msra.mxu0 %v4162
        %4188 = vmatprep.subr.bf16.mxu0 0
        %4189 = vmatpush1.bf16.msra.mxu0 %v4161
        %4190 = vmatprep.subr.bf16.mxu0 0
        %4191 = vmatpush1.bf16.msra.mxu0 %v4160
        %4192 = vmatprep.subr.bf16.mxu0 0
        %4193 = vmatpush2.bf16.msra.mxu0 0
        %4194 = vmatprep.subr.bf16.mxu0 0
        %4195 = vmatpush2.bf16.msra.mxu0 0
        %4196 = vmatprep.subr.bf16.mxu0 0
        %4197 = vmatpush2.bf16.msra.mxu0 0
        %4198 = vmatprep.subr.bf16.mxu0 0
        %4199 = vmatpush2.bf16.msra.mxu0 0
        %4200 = vmatprep.subr.bf16.mxu0 0
        %4201 = vmatpush2.bf16.msra.mxu0 0
        %4202 = vmatprep.subr.bf16.mxu0 0
        %4203 = vmatpush2.bf16.msra.mxu0 0
        %4204 = vmatprep.subr.bf16.mxu0 0
        %4205 = vmatpush2.bf16.msra.mxu0 0
        %4206 = vmatprep.subr.bf16.mxu0 0
        %4207 = vmatpush2.bf16.msra.mxu0 0
        %4208 = vmatprep.mubr.bf16.mxu0 0
        %4209 = vmatmul.mubr.bf16.gmra.mxu0 %v1073
        %v4210 = vpop.f32.mrf.mxu0
        %v4211 = vadd.f32 %v4002, %v4210
        %v4212 = vpop.f32.mrf.mxu0
        %v4213 = vpop.f32.mrf.mxu0
        %v4214 = vadd.f32 %v4005, %v4213
        %v4215 = vpop.f32.mrf.mxu0
        %4216 = vmatprep.mubr.bf16.mxu0 0
        %4217 = vmatmul.mubr.bf16.gmra.mxu0 %v1074
        %v4218 = vpop.f32.mrf.mxu0
        %v4219 = vadd.f32 %v4010, %v4218
        %v4220 = vpop.f32.mrf.mxu0
        %v4221 = vpop.f32.mrf.mxu0
        %v4222 = vadd.f32 %v4013, %v4221
        %v4223 = vpop.f32.mrf.mxu0
        %4224 = vmatprep.mubr.bf16.mxu0 0
        %4225 = vmatmul.mubr.bf16.gmra.mxu0 %v1075
        %v4226 = vpop.f32.mrf.mxu0
        %v4227 = vadd.f32 %v4018, %v4226
        %v4228 = vpop.f32.mrf.mxu0
        %v4229 = vpop.f32.mrf.mxu0
        %v4230 = vadd.f32 %v4021, %v4229
        %v4231 = vpop.f32.mrf.mxu0
        %4232 = vmatprep.mubr.bf16.mxu0 0
        %4233 = vmatmul.mubr.bf16.gmra.mxu0 %v1076
        %v4234 = vpop.f32.mrf.mxu0
        %v4235 = vadd.f32 %v4026, %v4234
        %v4236 = vpop.f32.mrf.mxu0
        %v4237 = vpop.f32.mrf.mxu0
        %v4238 = vadd.f32 %v4029, %v4237
        %v4239 = vpop.f32.mrf.mxu0
        %4240 = vmatprep.mubr.bf16.mxu0 0
        %4241 = vmatmul.mubr.bf16.gmra.mxu0 %v1077
        %v4242 = vpop.f32.mrf.mxu0
        %v4243 = vadd.f32 %v4034, %v4242
        %v4244 = vpop.f32.mrf.mxu0
        %v4245 = vpop.f32.mrf.mxu0
        %v4246 = vadd.f32 %v4037, %v4245
        %v4247 = vpop.f32.mrf.mxu0
        %4248 = vmatprep.mubr.bf16.mxu0 0
        %4249 = vmatmul.mubr.bf16.gmra.mxu0 %v1078
        %v4250 = vpop.f32.mrf.mxu0
        %v4251 = vadd.f32 %v4042, %v4250
        %v4252 = vpop.f32.mrf.mxu0
        %v4253 = vpop.f32.mrf.mxu0
        %v4254 = vadd.f32 %v4045, %v4253
        %v4255 = vpop.f32.mrf.mxu0
        %4256 = vmatprep.mubr.bf16.mxu0 0
        %4257 = vmatmul.mubr.bf16.gmra.mxu0 %v1079
        %v4258 = vpop.f32.mrf.mxu0
        %v4259 = vadd.f32 %v4050, %v4258
        %v4260 = vpop.f32.mrf.mxu0
        %v4261 = vpop.f32.mrf.mxu0
        %v4262 = vadd.f32 %v4053, %v4261
        %v4263 = vpop.f32.mrf.mxu0
        %4264 = vmatprep.mubr.bf16.mxu0 0
        %4265 = vmatmul.mubr.bf16.gmra.mxu0 %v1080
        %v4266 = vpop.f32.mrf.mxu0
        %v4267 = vadd.f32 %v4058, %v4266
        %v4268 = vpop.f32.mrf.mxu0
        %v4269 = vpop.f32.mrf.mxu0
        %v4270 = vadd.f32 %v4061, %v4269
        %v4271 = vpop.f32.mrf.mxu0
        %4272 = vmatprep.mubr.bf16.mxu0 0
        %4273 = vmatmul.mubr.bf16.gmra.mxu0 %v1081
        %v4274 = vpop.f32.mrf.mxu0
        %v4275 = vadd.f32 %v4066, %v4274
        %v4276 = vpop.f32.mrf.mxu0
        %v4277 = vpop.f32.mrf.mxu0
        %v4278 = vadd.f32 %v4069, %v4277
        %v4279 = vpop.f32.mrf.mxu0
        %4280 = vmatprep.mubr.bf16.mxu0 0
        %4281 = vmatmul.mubr.bf16.gmra.mxu0 %v1082
        %v4282 = vpop.f32.mrf.mxu0
        %v4283 = vadd.f32 %v4074, %v4282
        %v4284 = vpop.f32.mrf.mxu0
        %v4285 = vpop.f32.mrf.mxu0
        %v4286 = vadd.f32 %v4077, %v4285
        %v4287 = vpop.f32.mrf.mxu0
        %4288 = vmatprep.mubr.bf16.mxu0 0
        %4289 = vmatmul.mubr.bf16.gmra.mxu0 %v1083
        %v4290 = vpop.f32.mrf.mxu0
        %v4291 = vadd.f32 %v4082, %v4290
        %v4292 = vpop.f32.mrf.mxu0
        %v4293 = vpop.f32.mrf.mxu0
        %v4294 = vadd.f32 %v4085, %v4293
        %v4295 = vpop.f32.mrf.mxu0
        %4296 = vmatprep.mubr.bf16.mxu0 0
        %4297 = vmatmul.mubr.bf16.gmra.mxu0 %v1084
        %v4298 = vpop.f32.mrf.mxu0
        %v4299 = vadd.f32 %v4090, %v4298
        %v4300 = vpop.f32.mrf.mxu0
        %v4301 = vpop.f32.mrf.mxu0
        %v4302 = vadd.f32 %v4093, %v4301
        %v4303 = vpop.f32.mrf.mxu0
        %4304 = vmatprep.mubr.bf16.mxu0 0
        %4305 = vmatmul.mubr.bf16.gmra.mxu0 %v1085
        %v4306 = vpop.f32.mrf.mxu0
        %v4307 = vadd.f32 %v4098, %v4306
        %v4308 = vpop.f32.mrf.mxu0
        %v4309 = vpop.f32.mrf.mxu0
        %v4310 = vadd.f32 %v4101, %v4309
        %v4311 = vpop.f32.mrf.mxu0
        %4312 = vmatprep.mubr.bf16.mxu0 0
        %4313 = vmatmul.mubr.bf16.gmra.mxu0 %v1086
        %v4314 = vpop.f32.mrf.mxu0
        %v4315 = vadd.f32 %v4106, %v4314
        %v4316 = vpop.f32.mrf.mxu0
        %v4317 = vpop.f32.mrf.mxu0
        %v4318 = vadd.f32 %v4109, %v4317
        %v4319 = vpop.f32.mrf.mxu0
        %4320 = vmatprep.mubr.bf16.mxu0 0
        %4321 = vmatmul.mubr.bf16.gmra.mxu0 %v1087
        %v4322 = vpop.f32.mrf.mxu0
        %v4323 = vadd.f32 %v4114, %v4322
        %v4324 = vpop.f32.mrf.mxu0
        %v4325 = vpop.f32.mrf.mxu0
        %v4326 = vadd.f32 %v4117, %v4325
        %v4327 = vpop.f32.mrf.mxu0
        %4328 = vmatprep.mubr.bf16.mxu0 0
        %4329 = vmatmul.mubr.bf16.gmra.mxu0 %v1088
        %v4330 = vpop.f32.mrf.mxu0
        %v4331 = vadd.f32 %v4122, %v4330
        %v4332 = vpop.f32.mrf.mxu0
        %v4333 = vpop.f32.mrf.mxu0
        %v4334 = vadd.f32 %v4125, %v4333
        %v4335 = vpop.f32.mrf.mxu0
        %4336 = vdwg.mxu0
        %v4338 = vshrl.u32 %v3288, 16
        %v4340 = vshll.u32 %v3288, 16
        %v4342 = vrot.slane %v4340, 1
        %v4343 = vor.u32 %v4338, %v4342
        %v4345 = vshll.u32 %v3306, 16
        %v4347 = vrot.slane %v4345, 1
        %v4348 = vsel %vm3308, %v4343, %v4347
        %v4352 = vrot.slane %v3288, 1
        %v4353 = vrot.slane %v3306, 1
        %v4354 = vsel %vm3549, %v4352, %v4353
        %v4356 = vld [vmem:[#allocation2 + $0xc0] sm:$0xf]
        %v4357 = vld [vmem:[#allocation2 + $0xc4] sm:$0xf]
        %v4358 = vld [vmem:[#allocation2 + $0xc8] sm:$0xf]
        %v4359 = vld [vmem:[#allocation2 + $0xcc] sm:$0xf]
        %v4360 = vld [vmem:[#allocation2 + $0xd0] sm:$0xf]
        %v4361 = vld [vmem:[#allocation2 + $0xd4] sm:$0xf]
        %v4362 = vld [vmem:[#allocation2 + $0xd8] sm:$0xf]
        %v4363 = vld [vmem:[#allocation2 + $0xdc] sm:$0xf]
        %v4364 = vld [vmem:[#allocation2 + $0xe0] sm:$0xf]
        %v4365 = vld [vmem:[#allocation2 + $0xe4] sm:$0xf]
        %v4366 = vld [vmem:[#allocation2 + $0xe8] sm:$0xf]
        %v4367 = vld [vmem:[#allocation2 + $0xec] sm:$0xf]
        %v4368 = vld [vmem:[#allocation2 + $0xf0] sm:$0xf]
        %v4369 = vld [vmem:[#allocation2 + $0xf4] sm:$0xf]
        %v4370 = vld [vmem:[#allocation2 + $0xf8] sm:$0xf]
        %v4371 = vld [vmem:[#allocation2 + $0xfc] sm:$0xf]
        %v4372 = vld [vmem:[#allocation2 + $0x100] sm:$0xf]
        %v4373 = vld [vmem:[#allocation2 + $0x104] sm:$0xf]
        %v4374 = vld [vmem:[#allocation2 + $0x108] sm:$0xf]
        %v4375 = vld [vmem:[#allocation2 + $0x10c] sm:$0xf]
        %v4376 = vld [vmem:[#allocation2 + $0x110] sm:$0xf]
        %v4377 = vld [vmem:[#allocation2 + $0x114] sm:$0xf]
        %v4378 = vld [vmem:[#allocation2 + $0x118] sm:$0xf]
        %v4379 = vld [vmem:[#allocation2 + $0x11c] sm:$0xf]
        %v4380 = vld [vmem:[#allocation2 + $0x120] sm:$0xf]
        %v4381 = vld [vmem:[#allocation2 + $0x124] sm:$0xf]
        %v4382 = vld [vmem:[#allocation2 + $0x128] sm:$0xf]
        %v4383 = vld [vmem:[#allocation2 + $0x12c] sm:$0xf]
        %v4384 = vld [vmem:[#allocation2 + $0x130] sm:$0xf]
        %v4385 = vld [vmem:[#allocation2 + $0x134] sm:$0xf]
        %v4386 = vld [vmem:[#allocation2 + $0x138] sm:$0xf]
        %v4387 = vld [vmem:[#allocation2 + $0x13c] sm:$0xf]
        %v4388 = vld [vmem:[#allocation2 + $0x140] sm:$0xf]
        %v4389 = vld [vmem:[#allocation2 + $0x144] sm:$0xf]
        %v4390 = vld [vmem:[#allocation2 + $0x148] sm:$0xf]
        %v4391 = vld [vmem:[#allocation2 + $0x14c] sm:$0xf]
        %v4392 = vld [vmem:[#allocation2 + $0x150] sm:$0xf]
        %v4393 = vld [vmem:[#allocation2 + $0x154] sm:$0xf]
        %v4394 = vld [vmem:[#allocation2 + $0x158] sm:$0xf]
        %v4395 = vld [vmem:[#allocation2 + $0x15c] sm:$0xf]
        %v4396 = vld [vmem:[#allocation2 + $0x160] sm:$0xf]
        %v4397 = vld [vmem:[#allocation2 + $0x164] sm:$0xf]
        %v4398 = vld [vmem:[#allocation2 + $0x168] sm:$0xf]
        %v4399 = vld [vmem:[#allocation2 + $0x16c] sm:$0xf]
        %v4400 = vld [vmem:[#allocation2 + $0x170] sm:$0xf]
        %v4401 = vld [vmem:[#allocation2 + $0x174] sm:$0xf]
        %v4402 = vld [vmem:[#allocation2 + $0x178] sm:$0xf]
        %v4403 = vld [vmem:[#allocation2 + $0x17c] sm:$0xf]
        %v4452 = vunpack.c.l.b16 %v4356
        %v4453 = vunpack.c.l.b16 %v4357
        %v4454 = vunpack.c.l.b16 %v4358
        %v4455 = vunpack.c.l.b16 %v4359
        %v4456 = vunpack.c.l.b16 %v4360
        %v4457 = vunpack.c.l.b16 %v4361
        %v4458 = vunpack.c.l.b16 %v4362
        %v4459 = vunpack.c.l.b16 %v4363
        %v4460 = vunpack.c.l.b16 %v4364
        %v4461 = vunpack.c.l.b16 %v4365
        %v4462 = vunpack.c.l.b16 %v4366
        %v4463 = vunpack.c.l.b16 %v4367
        %v4464 = vunpack.c.l.b16 %v4368
        %v4465 = vunpack.c.l.b16 %v4369
        %v4466 = vunpack.c.l.b16 %v4370
        %v4467 = vunpack.c.l.b16 %v4371
        %v4468 = vunpack.c.l.b16 %v4372
        %v4469 = vunpack.c.l.b16 %v4373
        %v4470 = vunpack.c.l.b16 %v4374
        %v4471 = vunpack.c.l.b16 %v4375
        %v4472 = vunpack.c.l.b16 %v4376
        %v4473 = vunpack.c.l.b16 %v4377
        %v4474 = vunpack.c.l.b16 %v4378
        %v4475 = vunpack.c.l.b16 %v4379
        %v4476 = vunpack.c.l.b16 %v4380
        %v4477 = vunpack.c.l.b16 %v4381
        %v4478 = vunpack.c.l.b16 %v4382
        %v4479 = vunpack.c.l.b16 %v4383
        %v4480 = vunpack.c.l.b16 %v4384
        %v4481 = vunpack.c.l.b16 %v4385
        %v4482 = vunpack.c.l.b16 %v4386
        %v4483 = vunpack.c.l.b16 %v4387
        %v4484 = vunpack.c.l.b16 %v4388
        %v4485 = vunpack.c.l.b16 %v4389
        %v4486 = vunpack.c.l.b16 %v4390
        %v4487 = vunpack.c.l.b16 %v4391
        %v4488 = vunpack.c.l.b16 %v4392
        %v4489 = vunpack.c.l.b16 %v4393
        %v4490 = vunpack.c.l.b16 %v4394
        %v4491 = vunpack.c.l.b16 %v4395
        %v4492 = vunpack.c.l.b16 %v4396
        %v4493 = vunpack.c.l.b16 %v4397
        %v4494 = vunpack.c.l.b16 %v4398
        %v4495 = vunpack.c.l.b16 %v4399
        %v4496 = vunpack.c.l.b16 %v4400
        %v4497 = vunpack.c.l.b16 %v4401
        %v4498 = vunpack.c.l.b16 %v4402
        %v4499 = vunpack.c.l.b16 %v4403
        %v4500 = vpack.c.b16 %v4453, %v4452
        %v4501 = vpack.c.b16 %v4455, %v4454
        %v4502 = vpack.c.b16 %v4457, %v4456
        %v4503 = vpack.c.b16 %v4459, %v4458
        %v4504 = vpack.c.b16 %v4461, %v4460
        %v4505 = vpack.c.b16 %v4463, %v4462
        %v4506 = vpack.c.b16 %v4465, %v4464
        %v4507 = vpack.c.b16 %v4467, %v4466
        %v4508 = vpack.c.b16 %v4469, %v4468
        %v4509 = vpack.c.b16 %v4471, %v4470
        %v4510 = vpack.c.b16 %v4473, %v4472
        %v4511 = vpack.c.b16 %v4475, %v4474
        %v4512 = vpack.c.b16 %v4477, %v4476
        %v4513 = vpack.c.b16 %v4479, %v4478
        %v4514 = vpack.c.b16 %v4481, %v4480
        %v4515 = vpack.c.b16 %v4483, %v4482
        %v4516 = vpack.c.b16 %v4485, %v4484
        %v4517 = vpack.c.b16 %v4487, %v4486
        %v4518 = vpack.c.b16 %v4489, %v4488
        %v4519 = vpack.c.b16 %v4491, %v4490
        %v4520 = vpack.c.b16 %v4493, %v4492
        %v4521 = vpack.c.b16 %v4495, %v4494
        %v4522 = vpack.c.b16 %v4497, %v4496
        %v4523 = vpack.c.b16 %v4499, %v4498
        %4548 = vmatprep.subr.bf16.mxu0 0
        %4549 = vmatpush1.bf16.msra.mxu0 %v4507
        %4550 = vmatprep.subr.bf16.mxu0 0
        %4551 = vmatpush1.bf16.msra.mxu0 %v4506
        %4552 = vmatprep.subr.bf16.mxu0 0
        %4553 = vmatpush1.bf16.msra.mxu0 %v4505
        %4554 = vmatprep.subr.bf16.mxu0 0
        %4555 = vmatpush1.bf16.msra.mxu0 %v4504
        %4556 = vmatprep.subr.bf16.mxu0 0
        %4557 = vmatpush1.bf16.msra.mxu0 %v4503
        %4558 = vmatprep.subr.bf16.mxu0 0
        %4559 = vmatpush1.bf16.msra.mxu0 %v4502
        %4560 = vmatprep.subr.bf16.mxu0 0
        %4561 = vmatpush1.bf16.msra.mxu0 %v4501
        %4562 = vmatprep.subr.bf16.mxu0 0
        %4563 = vmatpush1.bf16.msra.mxu0 %v4500
        %4564 = vmatprep.subr.bf16.mxu0 0
        %4565 = vmatpush2.bf16.msra.mxu0 %v4515
        %4566 = vmatprep.subr.bf16.mxu0 0
        %4567 = vmatpush2.bf16.msra.mxu0 %v4514
        %4568 = vmatprep.subr.bf16.mxu0 0
        %4569 = vmatpush2.bf16.msra.mxu0 %v4513
        %4570 = vmatprep.subr.bf16.mxu0 0
        %4571 = vmatpush2.bf16.msra.mxu0 %v4512
        %4572 = vmatprep.subr.bf16.mxu0 0
        %4573 = vmatpush2.bf16.msra.mxu0 %v4511
        %4574 = vmatprep.subr.bf16.mxu0 0
        %4575 = vmatpush2.bf16.msra.mxu0 %v4510
        %4576 = vmatprep.subr.bf16.mxu0 0
        %4577 = vmatpush2.bf16.msra.mxu0 %v4509
        %4578 = vmatprep.subr.bf16.mxu0 0
        %4579 = vmatpush2.bf16.msra.mxu0 %v4508
        %4580 = vmatprep.mubr.bf16.mxu0 %v3332
        %4581 = vmatmul.mubr.bf16.gmra.mxu0 %v3273
        %v4582 = vpop.f32.mrf.mxu0
        %v4583 = vadd.f32 0.0, %v4582
        %v4584 = vpop.f32.mrf.mxu0
        %v4585 = vpop.f32.mrf.mxu0
        %v4586 = vadd.f32 0.0, %v4585
        %v4587 = vpop.f32.mrf.mxu0
        %4588 = vmatprep.mubr.bf16.mxu0 %v3344
        %4589 = vmatmul.mubr.bf16.gmra.mxu0 %v3274
        %v4590 = vpop.f32.mrf.mxu0
        %v4591 = vadd.f32 0.0, %v4590
        %v4592 = vpop.f32.mrf.mxu0
        %v4593 = vpop.f32.mrf.mxu0
        %v4594 = vadd.f32 0.0, %v4593
        %v4595 = vpop.f32.mrf.mxu0
        %4596 = vmatprep.mubr.bf16.mxu0 %v3356
        %4597 = vmatmul.mubr.bf16.gmra.mxu0 %v3275
        %v4598 = vpop.f32.mrf.mxu0
        %v4599 = vadd.f32 0.0, %v4598
        %v4600 = vpop.f32.mrf.mxu0
        %v4601 = vpop.f32.mrf.mxu0
        %v4602 = vadd.f32 0.0, %v4601
        %v4603 = vpop.f32.mrf.mxu0
        %4604 = vmatprep.mubr.bf16.mxu0 %v3368
        %4605 = vmatmul.mubr.bf16.gmra.mxu0 %v3276
        %v4606 = vpop.f32.mrf.mxu0
        %v4607 = vadd.f32 0.0, %v4606
        %v4608 = vpop.f32.mrf.mxu0
        %v4609 = vpop.f32.mrf.mxu0
        %v4610 = vadd.f32 0.0, %v4609
        %v4611 = vpop.f32.mrf.mxu0
        %4612 = vmatprep.mubr.bf16.mxu0 %v3380
        %4613 = vmatmul.mubr.bf16.gmra.mxu0 %v3277
        %v4614 = vpop.f32.mrf.mxu0
        %v4615 = vadd.f32 0.0, %v4614
        %v4616 = vpop.f32.mrf.mxu0
        %v4617 = vpop.f32.mrf.mxu0
        %v4618 = vadd.f32 0.0, %v4617
        %v4619 = vpop.f32.mrf.mxu0
        %4620 = vmatprep.mubr.bf16.mxu0 %v3392
        %4621 = vmatmul.mubr.bf16.gmra.mxu0 %v3278
        %v4622 = vpop.f32.mrf.mxu0
        %v4623 = vadd.f32 0.0, %v4622
        %v4624 = vpop.f32.mrf.mxu0
        %v4625 = vpop.f32.mrf.mxu0
        %v4626 = vadd.f32 0.0, %v4625
        %v4627 = vpop.f32.mrf.mxu0
        %4628 = vmatprep.mubr.bf16.mxu0 %v3404
        %4629 = vmatmul.mubr.bf16.gmra.mxu0 %v3279
        %v4630 = vpop.f32.mrf.mxu0
        %v4631 = vadd.f32 0.0, %v4630
        %v4632 = vpop.f32.mrf.mxu0
        %v4633 = vpop.f32.mrf.mxu0
        %v4634 = vadd.f32 0.0, %v4633
        %v4635 = vpop.f32.mrf.mxu0
        %4636 = vmatprep.mubr.bf16.mxu0 %v3416
        %4637 = vmatmul.mubr.bf16.gmra.mxu0 %v3280
        %v4638 = vpop.f32.mrf.mxu0
        %v4639 = vadd.f32 0.0, %v4638
        %v4640 = vpop.f32.mrf.mxu0
        %v4641 = vpop.f32.mrf.mxu0
        %v4642 = vadd.f32 0.0, %v4641
        %v4643 = vpop.f32.mrf.mxu0
        %4644 = vmatprep.mubr.bf16.mxu0 %v3428
        %4645 = vmatmul.mubr.bf16.gmra.mxu0 %v3281
        %v4646 = vpop.f32.mrf.mxu0
        %v4647 = vadd.f32 0.0, %v4646
        %v4648 = vpop.f32.mrf.mxu0
        %v4649 = vpop.f32.mrf.mxu0
        %v4650 = vadd.f32 0.0, %v4649
        %v4651 = vpop.f32.mrf.mxu0
        %4652 = vmatprep.mubr.bf16.mxu0 %v3440
        %4653 = vmatmul.mubr.bf16.gmra.mxu0 %v3282
        %v4654 = vpop.f32.mrf.mxu0
        %v4655 = vadd.f32 0.0, %v4654
        %v4656 = vpop.f32.mrf.mxu0
        %v4657 = vpop.f32.mrf.mxu0
        %v4658 = vadd.f32 0.0, %v4657
        %v4659 = vpop.f32.mrf.mxu0
        %4660 = vmatprep.mubr.bf16.mxu0 %v3452
        %4661 = vmatmul.mubr.bf16.gmra.mxu0 %v3283
        %v4662 = vpop.f32.mrf.mxu0
        %v4663 = vadd.f32 0.0, %v4662
        %v4664 = vpop.f32.mrf.mxu0
        %v4665 = vpop.f32.mrf.mxu0
        %v4666 = vadd.f32 0.0, %v4665
        %v4667 = vpop.f32.mrf.mxu0
        %4668 = vmatprep.mubr.bf16.mxu0 %v3464
        %4669 = vmatmul.mubr.bf16.gmra.mxu0 %v3284
        %v4670 = vpop.f32.mrf.mxu0
        %v4671 = vadd.f32 0.0, %v4670
        %v4672 = vpop.f32.mrf.mxu0
        %v4673 = vpop.f32.mrf.mxu0
        %v4674 = vadd.f32 0.0, %v4673
        %v4675 = vpop.f32.mrf.mxu0
        %4676 = vmatprep.mubr.bf16.mxu0 %v3476
        %4677 = vmatmul.mubr.bf16.gmra.mxu0 %v3285
        %v4678 = vpop.f32.mrf.mxu0
        %v4679 = vadd.f32 0.0, %v4678
        %v4680 = vpop.f32.mrf.mxu0
        %v4681 = vpop.f32.mrf.mxu0
        %v4682 = vadd.f32 0.0, %v4681
        %v4683 = vpop.f32.mrf.mxu0
        %4684 = vmatprep.mubr.bf16.mxu0 %v3488
        %4685 = vmatmul.mubr.bf16.gmra.mxu0 %v3286
        %v4686 = vpop.f32.mrf.mxu0
        %v4687 = vadd.f32 0.0, %v4686
        %v4688 = vpop.f32.mrf.mxu0
        %v4689 = vpop.f32.mrf.mxu0
        %v4690 = vadd.f32 0.0, %v4689
        %v4691 = vpop.f32.mrf.mxu0
        %4692 = vmatprep.mubr.bf16.mxu0 %v3500
        %4693 = vmatmul.mubr.bf16.gmra.mxu0 %v3287
        %v4694 = vpop.f32.mrf.mxu0
        %v4695 = vadd.f32 0.0, %v4694
        %v4696 = vpop.f32.mrf.mxu0
        %v4697 = vpop.f32.mrf.mxu0
        %v4698 = vadd.f32 0.0, %v4697
        %v4699 = vpop.f32.mrf.mxu0
        %4700 = vmatprep.mubr.bf16.mxu0 %v4348
        %4701 = vmatmul.mubr.bf16.gmra.mxu0 %v3288
        %v4702 = vpop.f32.mrf.mxu0
        %v4703 = vadd.f32 0.0, %v4702
        %v4704 = vpop.f32.mrf.mxu0
        %v4705 = vpop.f32.mrf.mxu0
        %v4706 = vadd.f32 0.0, %v4705
        %v4707 = vpop.f32.mrf.mxu0
        %4708 = vdwg.mxu0
        %4709 = vmatprep.subr.bf16.mxu0 0
        %4710 = vmatpush1.bf16.msra.mxu0 %v4523
        %4711 = vmatprep.subr.bf16.mxu0 0
        %4712 = vmatpush1.bf16.msra.mxu0 %v4522
        %4713 = vmatprep.subr.bf16.mxu0 0
        %4714 = vmatpush1.bf16.msra.mxu0 %v4521
        %4715 = vmatprep.subr.bf16.mxu0 0
        %4716 = vmatpush1.bf16.msra.mxu0 %v4520
        %4717 = vmatprep.subr.bf16.mxu0 0
        %4718 = vmatpush1.bf16.msra.mxu0 %v4519
        %4719 = vmatprep.subr.bf16.mxu0 0
        %4720 = vmatpush1.bf16.msra.mxu0 %v4518
        %4721 = vmatprep.subr.bf16.mxu0 0
        %4722 = vmatpush1.bf16.msra.mxu0 %v4517
        %4723 = vmatprep.subr.bf16.mxu0 0
        %4724 = vmatpush1.bf16.msra.mxu0 %v4516
        %4725 = vmatprep.subr.bf16.mxu0 0
        %4726 = vmatpush2.bf16.msra.mxu0 0
        %4727 = vmatprep.subr.bf16.mxu0 0
        %4728 = vmatpush2.bf16.msra.mxu0 0
        %4729 = vmatprep.subr.bf16.mxu0 0
        %4730 = vmatpush2.bf16.msra.mxu0 0
        %4731 = vmatprep.subr.bf16.mxu0 0
        %4732 = vmatpush2.bf16.msra.mxu0 0
        %4733 = vmatprep.subr.bf16.mxu0 0
        %4734 = vmatpush2.bf16.msra.mxu0 0
        %4735 = vmatprep.subr.bf16.mxu0 0
        %4736 = vmatpush2.bf16.msra.mxu0 0
        %4737 = vmatprep.subr.bf16.mxu0 0
        %4738 = vmatpush2.bf16.msra.mxu0 0
        %4739 = vmatprep.subr.bf16.mxu0 0
        %4740 = vmatpush2.bf16.msra.mxu0 0
        %4741 = vmatprep.mubr.bf16.mxu0 0
        %4742 = vmatmul.mubr.bf16.gmra.mxu0 %v3555
        %v4743 = vpop.f32.mrf.mxu0
        %v4744 = vadd.f32 %v4583, %v4743
        %v4745 = vpop.f32.mrf.mxu0
        %v4746 = vpop.f32.mrf.mxu0
        %v4747 = vadd.f32 %v4586, %v4746
        %v4748 = vpop.f32.mrf.mxu0
        %4749 = vmatprep.mubr.bf16.mxu0 0
        %4750 = vmatmul.mubr.bf16.gmra.mxu0 %v3558
        %v4751 = vpop.f32.mrf.mxu0
        %v4752 = vadd.f32 %v4591, %v4751
        %v4753 = vpop.f32.mrf.mxu0
        %v4754 = vpop.f32.mrf.mxu0
        %v4755 = vadd.f32 %v4594, %v4754
        %v4756 = vpop.f32.mrf.mxu0
        %4757 = vmatprep.mubr.bf16.mxu0 0
        %4758 = vmatmul.mubr.bf16.gmra.mxu0 %v3561
        %v4759 = vpop.f32.mrf.mxu0
        %v4760 = vadd.f32 %v4599, %v4759
        %v4761 = vpop.f32.mrf.mxu0
        %v4762 = vpop.f32.mrf.mxu0
        %v4763 = vadd.f32 %v4602, %v4762
        %v4764 = vpop.f32.mrf.mxu0
        %4765 = vmatprep.mubr.bf16.mxu0 0
        %4766 = vmatmul.mubr.bf16.gmra.mxu0 %v3564
        %v4767 = vpop.f32.mrf.mxu0
        %v4768 = vadd.f32 %v4607, %v4767
        %v4769 = vpop.f32.mrf.mxu0
        %v4770 = vpop.f32.mrf.mxu0
        %v4771 = vadd.f32 %v4610, %v4770
        %v4772 = vpop.f32.mrf.mxu0
        %4773 = vmatprep.mubr.bf16.mxu0 0
        %4774 = vmatmul.mubr.bf16.gmra.mxu0 %v3567
        %v4775 = vpop.f32.mrf.mxu0
        %v4776 = vadd.f32 %v4615, %v4775
        %v4777 = vpop.f32.mrf.mxu0
        %v4778 = vpop.f32.mrf.mxu0
        %v4779 = vadd.f32 %v4618, %v4778
        %v4780 = vpop.f32.mrf.mxu0
        %4781 = vmatprep.mubr.bf16.mxu0 0
        %4782 = vmatmul.mubr.bf16.gmra.mxu0 %v3570
        %v4783 = vpop.f32.mrf.mxu0
        %v4784 = vadd.f32 %v4623, %v4783
        %v4785 = vpop.f32.mrf.mxu0
        %v4786 = vpop.f32.mrf.mxu0
        %v4787 = vadd.f32 %v4626, %v4786
        %v4788 = vpop.f32.mrf.mxu0
        %4789 = vmatprep.mubr.bf16.mxu0 0
        %4790 = vmatmul.mubr.bf16.gmra.mxu0 %v3573
        %v4791 = vpop.f32.mrf.mxu0
        %v4792 = vadd.f32 %v4631, %v4791
        %v4793 = vpop.f32.mrf.mxu0
        %v4794 = vpop.f32.mrf.mxu0
        %v4795 = vadd.f32 %v4634, %v4794
        %v4796 = vpop.f32.mrf.mxu0
        %4797 = vmatprep.mubr.bf16.mxu0 0
        %4798 = vmatmul.mubr.bf16.gmra.mxu0 %v3576
        %v4799 = vpop.f32.mrf.mxu0
        %v4800 = vadd.f32 %v4639, %v4799
        %v4801 = vpop.f32.mrf.mxu0
        %v4802 = vpop.f32.mrf.mxu0
        %v4803 = vadd.f32 %v4642, %v4802
        %v4804 = vpop.f32.mrf.mxu0
        %4805 = vmatprep.mubr.bf16.mxu0 0
        %4806 = vmatmul.mubr.bf16.gmra.mxu0 %v3579
        %v4807 = vpop.f32.mrf.mxu0
        %v4808 = vadd.f32 %v4647, %v4807
        %v4809 = vpop.f32.mrf.mxu0
        %v4810 = vpop.f32.mrf.mxu0
        %v4811 = vadd.f32 %v4650, %v4810
        %v4812 = vpop.f32.mrf.mxu0
        %4813 = vmatprep.mubr.bf16.mxu0 0
        %4814 = vmatmul.mubr.bf16.gmra.mxu0 %v3582
        %v4815 = vpop.f32.mrf.mxu0
        %v4816 = vadd.f32 %v4655, %v4815
        %v4817 = vpop.f32.mrf.mxu0
        %v4818 = vpop.f32.mrf.mxu0
        %v4819 = vadd.f32 %v4658, %v4818
        %v4820 = vpop.f32.mrf.mxu0
        %4821 = vmatprep.mubr.bf16.mxu0 0
        %4822 = vmatmul.mubr.bf16.gmra.mxu0 %v3585
        %v4823 = vpop.f32.mrf.mxu0
        %v4824 = vadd.f32 %v4663, %v4823
        %v4825 = vpop.f32.mrf.mxu0
        %v4826 = vpop.f32.mrf.mxu0
        %v4827 = vadd.f32 %v4666, %v4826
        %v4828 = vpop.f32.mrf.mxu0
        %4829 = vmatprep.mubr.bf16.mxu0 0
        %4830 = vmatmul.mubr.bf16.gmra.mxu0 %v3588
        %v4831 = vpop.f32.mrf.mxu0
        %v4832 = vadd.f32 %v4671, %v4831
        %v4833 = vpop.f32.mrf.mxu0
        %v4834 = vpop.f32.mrf.mxu0
        %v4835 = vadd.f32 %v4674, %v4834
        %v4836 = vpop.f32.mrf.mxu0
        %4837 = vmatprep.mubr.bf16.mxu0 0
        %4838 = vmatmul.mubr.bf16.gmra.mxu0 %v3591
        %v4839 = vpop.f32.mrf.mxu0
        %v4840 = vadd.f32 %v4679, %v4839
        %v4841 = vpop.f32.mrf.mxu0
        %v4842 = vpop.f32.mrf.mxu0
        %v4843 = vadd.f32 %v4682, %v4842
        %v4844 = vpop.f32.mrf.mxu0
        %4845 = vmatprep.mubr.bf16.mxu0 0
        %4846 = vmatmul.mubr.bf16.gmra.mxu0 %v3594
        %v4847 = vpop.f32.mrf.mxu0
        %v4848 = vadd.f32 %v4687, %v4847
        %v4849 = vpop.f32.mrf.mxu0
        %v4850 = vpop.f32.mrf.mxu0
        %v4851 = vadd.f32 %v4690, %v4850
        %v4852 = vpop.f32.mrf.mxu0
        %4853 = vmatprep.mubr.bf16.mxu0 0
        %4854 = vmatmul.mubr.bf16.gmra.mxu0 %v3597
        %v4855 = vpop.f32.mrf.mxu0
        %v4856 = vadd.f32 %v4695, %v4855
        %v4857 = vpop.f32.mrf.mxu0
        %v4858 = vpop.f32.mrf.mxu0
        %v4859 = vadd.f32 %v4698, %v4858
        %v4860 = vpop.f32.mrf.mxu0
        %4861 = vmatprep.mubr.bf16.mxu0 0
        %4862 = vmatmul.mubr.bf16.gmra.mxu0 %v4354
        %v4863 = vpop.f32.mrf.mxu0
        %v4864 = vadd.f32 %v4703, %v4863
        %v4865 = vpop.f32.mrf.mxu0
        %v4866 = vpop.f32.mrf.mxu0
        %v4867 = vadd.f32 %v4706, %v4866
        %v4868 = vpop.f32.mrf.mxu0
        %4869 = vdwg.mxu0
        %v4870 = vadd.f32 %v4211, %v4744
        %v4871 = vadd.f32 %v4214, %v4747
        %v4872 = vadd.f32 %v4219, %v4752
        %v4873 = vadd.f32 %v4222, %v4755
        %v4874 = vadd.f32 %v4227, %v4760
        %v4875 = vadd.f32 %v4230, %v4763
        %v4876 = vadd.f32 %v4235, %v4768
        %v4877 = vadd.f32 %v4238, %v4771
        %v4878 = vadd.f32 %v4243, %v4776
        %v4879 = vadd.f32 %v4246, %v4779
        %v4880 = vadd.f32 %v4251, %v4784
        %v4881 = vadd.f32 %v4254, %v4787
        %v4882 = vadd.f32 %v4259, %v4792
        %v4883 = vadd.f32 %v4262, %v4795
        %v4884 = vadd.f32 %v4267, %v4800
        %v4885 = vadd.f32 %v4270, %v4803
        %v4886 = vadd.f32 %v4275, %v4808
        %v4887 = vadd.f32 %v4278, %v4811
        %v4888 = vadd.f32 %v4283, %v4816
        %v4889 = vadd.f32 %v4286, %v4819
        %v4890 = vadd.f32 %v4291, %v4824
        %v4891 = vadd.f32 %v4294, %v4827
        %v4892 = vadd.f32 %v4299, %v4832
        %v4893 = vadd.f32 %v4302, %v4835
        %v4894 = vadd.f32 %v4307, %v4840
        %v4895 = vadd.f32 %v4310, %v4843
        %v4896 = vadd.f32 %v4315, %v4848
        %v4897 = vadd.f32 %v4318, %v4851
        %v4898 = vadd.f32 %v4323, %v4856
        %v4899 = vadd.f32 %v4326, %v4859
        %v4900 = vadd.f32 %v4331, %v4864
        %v4901 = vadd.f32 %v4334, %v4867
        %v4903 = vshrl.u32 %v3289, 16
        %v4905 = vshll.u32 %v3289, 16
        %v4907 = vrot.slane %v4905, 1
        %v4908 = vor.u32 %v4903, %v4907
        %v4910 = vshll.u32 %v3307, 16
        %v4912 = vrot.slane %v4910, 1
        %v4913 = vsel %vm3308, %v4908, %v4912
        %v4917 = vrot.slane %v3289, 1
        %v4918 = vrot.slane %v3307, 1
        %v4919 = vsel %vm3549, %v4917, %v4918
        %v4921 = vld [vmem:[#allocation2 + $0x180] sm:$0xf]
        %v4922 = vld [vmem:[#allocation2 + $0x184] sm:$0xf]
        %v4923 = vld [vmem:[#allocation2 + $0x188] sm:$0xf]
        %v4924 = vld [vmem:[#allocation2 + $0x18c] sm:$0xf]
        %v4925 = vld [vmem:[#allocation2 + $0x190] sm:$0xf]
        %v4926 = vld [vmem:[#allocation2 + $0x194] sm:$0xf]
        %v4927 = vld [vmem:[#allocation2 + $0x198] sm:$0xf]
        %v4928 = vld [vmem:[#allocation2 + $0x19c] sm:$0xf]
        %v4929 = vld [vmem:[#allocation2 + $0x1a0] sm:$0xf]
        %v4930 = vld [vmem:[#allocation2 + $0x1a4] sm:$0xf]
        %v4931 = vld [vmem:[#allocation2 + $0x1a8] sm:$0xf]
        %v4932 = vld [vmem:[#allocation2 + $0x1ac] sm:$0xf]
        %v4933 = vld [vmem:[#allocation2 + $0x1b0] sm:$0xf]
        %v4934 = vld [vmem:[#allocation2 + $0x1b4] sm:$0xf]
        %v4935 = vld [vmem:[#allocation2 + $0x1b8] sm:$0xf]
        %v4936 = vld [vmem:[#allocation2 + $0x1bc] sm:$0xf]
        %v4937 = vld [vmem:[#allocation2 + $0x1c0] sm:$0xf]
        %v4938 = vld [vmem:[#allocation2 + $0x1c4] sm:$0xf]
        %v4939 = vld [vmem:[#allocation2 + $0x1c8] sm:$0xf]
        %v4940 = vld [vmem:[#allocation2 + $0x1cc] sm:$0xf]
        %v4941 = vld [vmem:[#allocation2 + $0x1d0] sm:$0xf]
        %v4942 = vld [vmem:[#allocation2 + $0x1d4] sm:$0xf]
        %v4943 = vld [vmem:[#allocation2 + $0x1d8] sm:$0xf]
        %v4944 = vld [vmem:[#allocation2 + $0x1dc] sm:$0xf]
        %v4945 = vld [vmem:[#allocation2 + $0x1e0] sm:$0xf]
        %v4946 = vld [vmem:[#allocation2 + $0x1e4] sm:$0xf]
        %v4947 = vld [vmem:[#allocation2 + $0x1e8] sm:$0xf]
        %v4948 = vld [vmem:[#allocation2 + $0x1ec] sm:$0xf]
        %v4949 = vld [vmem:[#allocation2 + $0x1f0] sm:$0xf]
        %v4950 = vld [vmem:[#allocation2 + $0x1f4] sm:$0xf]
        %v4951 = vld [vmem:[#allocation2 + $0x1f8] sm:$0xf]
        %v4952 = vld [vmem:[#allocation2 + $0x1fc] sm:$0xf]
        %v4953 = vld [vmem:[#allocation2 + $0x200] sm:$0xf]
        %v4954 = vld [vmem:[#allocation2 + $0x204] sm:$0xf]
        %v4955 = vld [vmem:[#allocation2 + $0x208] sm:$0xf]
        %v4956 = vld [vmem:[#allocation2 + $0x20c] sm:$0xf]
        %v4957 = vld [vmem:[#allocation2 + $0x210] sm:$0xf]
        %v4958 = vld [vmem:[#allocation2 + $0x214] sm:$0xf]
        %v4959 = vld [vmem:[#allocation2 + $0x218] sm:$0xf]
        %v4960 = vld [vmem:[#allocation2 + $0x21c] sm:$0xf]
        %v4961 = vld [vmem:[#allocation2 + $0x220] sm:$0xf]
        %v4962 = vld [vmem:[#allocation2 + $0x224] sm:$0xf]
        %v4963 = vld [vmem:[#allocation2 + $0x228] sm:$0xf]
        %v4964 = vld [vmem:[#allocation2 + $0x22c] sm:$0xf]
        %v4965 = vld [vmem:[#allocation2 + $0x230] sm:$0xf]
        %v4966 = vld [vmem:[#allocation2 + $0x234] sm:$0xf]
        %v4967 = vld [vmem:[#allocation2 + $0x238] sm:$0xf]
        %v4968 = vld [vmem:[#allocation2 + $0x23c] sm:$0xf]
        %v5017 = vunpack.c.l.b16 %v4921
        %v5018 = vunpack.c.l.b16 %v4922
        %v5019 = vunpack.c.l.b16 %v4923
        %v5020 = vunpack.c.l.b16 %v4924
        %v5021 = vunpack.c.l.b16 %v4925
        %v5022 = vunpack.c.l.b16 %v4926
        %v5023 = vunpack.c.l.b16 %v4927
        %v5024 = vunpack.c.l.b16 %v4928
        %v5025 = vunpack.c.l.b16 %v4929
        %v5026 = vunpack.c.l.b16 %v4930
        %v5027 = vunpack.c.l.b16 %v4931
        %v5028 = vunpack.c.l.b16 %v4932
        %v5029 = vunpack.c.l.b16 %v4933
        %v5030 = vunpack.c.l.b16 %v4934
        %v5031 = vunpack.c.l.b16 %v4935
        %v5032 = vunpack.c.l.b16 %v4936
        %v5033 = vunpack.c.l.b16 %v4937
        %v5034 = vunpack.c.l.b16 %v4938
        %v5035 = vunpack.c.l.b16 %v4939
        %v5036 = vunpack.c.l.b16 %v4940
        %v5037 = vunpack.c.l.b16 %v4941
        %v5038 = vunpack.c.l.b16 %v4942
        %v5039 = vunpack.c.l.b16 %v4943
        %v5040 = vunpack.c.l.b16 %v4944
        %v5041 = vunpack.c.l.b16 %v4945
        %v5042 = vunpack.c.l.b16 %v4946
        %v5043 = vunpack.c.l.b16 %v4947
        %v5044 = vunpack.c.l.b16 %v4948
        %v5045 = vunpack.c.l.b16 %v4949
        %v5046 = vunpack.c.l.b16 %v4950
        %v5047 = vunpack.c.l.b16 %v4951
        %v5048 = vunpack.c.l.b16 %v4952
        %v5049 = vunpack.c.l.b16 %v4953
        %v5050 = vunpack.c.l.b16 %v4954
        %v5051 = vunpack.c.l.b16 %v4955
        %v5052 = vunpack.c.l.b16 %v4956
        %v5053 = vunpack.c.l.b16 %v4957
        %v5054 = vunpack.c.l.b16 %v4958
        %v5055 = vunpack.c.l.b16 %v4959
        %v5056 = vunpack.c.l.b16 %v4960
        %v5057 = vunpack.c.l.b16 %v4961
        %v5058 = vunpack.c.l.b16 %v4962
        %v5059 = vunpack.c.l.b16 %v4963
        %v5060 = vunpack.c.l.b16 %v4964
        %v5061 = vunpack.c.l.b16 %v4965
        %v5062 = vunpack.c.l.b16 %v4966
        %v5063 = vunpack.c.l.b16 %v4967
        %v5064 = vunpack.c.l.b16 %v4968
        %v5065 = vpack.c.b16 %v5018, %v5017
        %v5066 = vpack.c.b16 %v5020, %v5019
        %v5067 = vpack.c.b16 %v5022, %v5021
        %v5068 = vpack.c.b16 %v5024, %v5023
        %v5069 = vpack.c.b16 %v5026, %v5025
        %v5070 = vpack.c.b16 %v5028, %v5027
        %v5071 = vpack.c.b16 %v5030, %v5029
        %v5072 = vpack.c.b16 %v5032, %v5031
        %v5073 = vpack.c.b16 %v5034, %v5033
        %v5074 = vpack.c.b16 %v5036, %v5035
        %v5075 = vpack.c.b16 %v5038, %v5037
        %v5076 = vpack.c.b16 %v5040, %v5039
        %v5077 = vpack.c.b16 %v5042, %v5041
        %v5078 = vpack.c.b16 %v5044, %v5043
        %v5079 = vpack.c.b16 %v5046, %v5045
        %v5080 = vpack.c.b16 %v5048, %v5047
        %v5081 = vpack.c.b16 %v5050, %v5049
        %v5082 = vpack.c.b16 %v5052, %v5051
        %v5083 = vpack.c.b16 %v5054, %v5053
        %v5084 = vpack.c.b16 %v5056, %v5055
        %v5085 = vpack.c.b16 %v5058, %v5057
        %v5086 = vpack.c.b16 %v5060, %v5059
        %v5087 = vpack.c.b16 %v5062, %v5061
        %v5088 = vpack.c.b16 %v5064, %v5063
        %5113 = vmatprep.subr.bf16.mxu0 0
        %5114 = vmatpush1.bf16.msra.mxu0 %v5072
        %5115 = vmatprep.subr.bf16.mxu0 0
        %5116 = vmatpush1.bf16.msra.mxu0 %v5071
        %5117 = vmatprep.subr.bf16.mxu0 0
        %5118 = vmatpush1.bf16.msra.mxu0 %v5070
        %5119 = vmatprep.subr.bf16.mxu0 0
        %5120 = vmatpush1.bf16.msra.mxu0 %v5069
        %5121 = vmatprep.subr.bf16.mxu0 0
        %5122 = vmatpush1.bf16.msra.mxu0 %v5068
        %5123 = vmatprep.subr.bf16.mxu0 0
        %5124 = vmatpush1.bf16.msra.mxu0 %v5067
        %5125 = vmatprep.subr.bf16.mxu0 0
        %5126 = vmatpush1.bf16.msra.mxu0 %v5066
        %5127 = vmatprep.subr.bf16.mxu0 0
        %5128 = vmatpush1.bf16.msra.mxu0 %v5065
        %5129 = vmatprep.subr.bf16.mxu0 0
        %5130 = vmatpush2.bf16.msra.mxu0 %v5080
        %5131 = vmatprep.subr.bf16.mxu0 0
        %5132 = vmatpush2.bf16.msra.mxu0 %v5079
        %5133 = vmatprep.subr.bf16.mxu0 0
        %5134 = vmatpush2.bf16.msra.mxu0 %v5078
        %5135 = vmatprep.subr.bf16.mxu0 0
        %5136 = vmatpush2.bf16.msra.mxu0 %v5077
        %5137 = vmatprep.subr.bf16.mxu0 0
        %5138 = vmatpush2.bf16.msra.mxu0 %v5076
        %5139 = vmatprep.subr.bf16.mxu0 0
        %5140 = vmatpush2.bf16.msra.mxu0 %v5075
        %5141 = vmatprep.subr.bf16.mxu0 0
        %5142 = vmatpush2.bf16.msra.mxu0 %v5074
        %5143 = vmatprep.subr.bf16.mxu0 0
        %5144 = vmatpush2.bf16.msra.mxu0 %v5073
        %5145 = vmatprep.mubr.bf16.mxu0 %v3344
        %5146 = vmatmul.mubr.bf16.gmra.mxu0 %v3274
        %v5147 = vpop.f32.mrf.mxu0
        %v5148 = vadd.f32 0.0, %v5147
        %v5149 = vpop.f32.mrf.mxu0
        %v5150 = vpop.f32.mrf.mxu0
        %v5151 = vadd.f32 0.0, %v5150
        %v5152 = vpop.f32.mrf.mxu0
        %5153 = vmatprep.mubr.bf16.mxu0 %v3356
        %5154 = vmatmul.mubr.bf16.gmra.mxu0 %v3275
        %v5155 = vpop.f32.mrf.mxu0
        %v5156 = vadd.f32 0.0, %v5155
        %v5157 = vpop.f32.mrf.mxu0
        %v5158 = vpop.f32.mrf.mxu0
        %v5159 = vadd.f32 0.0, %v5158
        %v5160 = vpop.f32.mrf.mxu0
        %5161 = vmatprep.mubr.bf16.mxu0 %v3368
        %5162 = vmatmul.mubr.bf16.gmra.mxu0 %v3276
        %v5163 = vpop.f32.mrf.mxu0
        %v5164 = vadd.f32 0.0, %v5163
        %v5165 = vpop.f32.mrf.mxu0
        %v5166 = vpop.f32.mrf.mxu0
        %v5167 = vadd.f32 0.0, %v5166
        %v5168 = vpop.f32.mrf.mxu0
        %5169 = vmatprep.mubr.bf16.mxu0 %v3380
        %5170 = vmatmul.mubr.bf16.gmra.mxu0 %v3277
        %v5171 = vpop.f32.mrf.mxu0
        %v5172 = vadd.f32 0.0, %v5171
        %v5173 = vpop.f32.mrf.mxu0
        %v5174 = vpop.f32.mrf.mxu0
        %v5175 = vadd.f32 0.0, %v5174
        %v5176 = vpop.f32.mrf.mxu0
        %5177 = vmatprep.mubr.bf16.mxu0 %v3392
        %5178 = vmatmul.mubr.bf16.gmra.mxu0 %v3278
        %v5179 = vpop.f32.mrf.mxu0
        %v5180 = vadd.f32 0.0, %v5179
        %v5181 = vpop.f32.mrf.mxu0
        %v5182 = vpop.f32.mrf.mxu0
        %v5183 = vadd.f32 0.0, %v5182
        %v5184 = vpop.f32.mrf.mxu0
        %5185 = vmatprep.mubr.bf16.mxu0 %v3404
        %5186 = vmatmul.mubr.bf16.gmra.mxu0 %v3279
        %v5187 = vpop.f32.mrf.mxu0
        %v5188 = vadd.f32 0.0, %v5187
        %v5189 = vpop.f32.mrf.mxu0
        %v5190 = vpop.f32.mrf.mxu0
        %v5191 = vadd.f32 0.0, %v5190
        %v5192 = vpop.f32.mrf.mxu0
        %5193 = vmatprep.mubr.bf16.mxu0 %v3416
        %5194 = vmatmul.mubr.bf16.gmra.mxu0 %v3280
        %v5195 = vpop.f32.mrf.mxu0
        %v5196 = vadd.f32 0.0, %v5195
        %v5197 = vpop.f32.mrf.mxu0
        %v5198 = vpop.f32.mrf.mxu0
        %v5199 = vadd.f32 0.0, %v5198
        %v5200 = vpop.f32.mrf.mxu0
        %5201 = vmatprep.mubr.bf16.mxu0 %v3428
        %5202 = vmatmul.mubr.bf16.gmra.mxu0 %v3281
        %v5203 = vpop.f32.mrf.mxu0
        %v5204 = vadd.f32 0.0, %v5203
        %v5205 = vpop.f32.mrf.mxu0
        %v5206 = vpop.f32.mrf.mxu0
        %v5207 = vadd.f32 0.0, %v5206
        %v5208 = vpop.f32.mrf.mxu0
        %5209 = vmatprep.mubr.bf16.mxu0 %v3440
        %5210 = vmatmul.mubr.bf16.gmra.mxu0 %v3282
        %v5211 = vpop.f32.mrf.mxu0
        %v5212 = vadd.f32 0.0, %v5211
        %v5213 = vpop.f32.mrf.mxu0
        %v5214 = vpop.f32.mrf.mxu0
        %v5215 = vadd.f32 0.0, %v5214
        %v5216 = vpop.f32.mrf.mxu0
        %5217 = vmatprep.mubr.bf16.mxu0 %v3452
        %5218 = vmatmul.mubr.bf16.gmra.mxu0 %v3283
        %v5219 = vpop.f32.mrf.mxu0
        %v5220 = vadd.f32 0.0, %v5219
        %v5221 = vpop.f32.mrf.mxu0
        %v5222 = vpop.f32.mrf.mxu0
        %v5223 = vadd.f32 0.0, %v5222
        %v5224 = vpop.f32.mrf.mxu0
        %5225 = vmatprep.mubr.bf16.mxu0 %v3464
        %5226 = vmatmul.mubr.bf16.gmra.mxu0 %v3284
        %v5227 = vpop.f32.mrf.mxu0
        %v5228 = vadd.f32 0.0, %v5227
        %v5229 = vpop.f32.mrf.mxu0
        %v5230 = vpop.f32.mrf.mxu0
        %v5231 = vadd.f32 0.0, %v5230
        %v5232 = vpop.f32.mrf.mxu0
        %5233 = vmatprep.mubr.bf16.mxu0 %v3476
        %5234 = vmatmul.mubr.bf16.gmra.mxu0 %v3285
        %v5235 = vpop.f32.mrf.mxu0
        %v5236 = vadd.f32 0.0, %v5235
        %v5237 = vpop.f32.mrf.mxu0
        %v5238 = vpop.f32.mrf.mxu0
        %v5239 = vadd.f32 0.0, %v5238
        %v5240 = vpop.f32.mrf.mxu0
        %5241 = vmatprep.mubr.bf16.mxu0 %v3488
        %5242 = vmatmul.mubr.bf16.gmra.mxu0 %v3286
        %v5243 = vpop.f32.mrf.mxu0
        %v5244 = vadd.f32 0.0, %v5243
        %v5245 = vpop.f32.mrf.mxu0
        %v5246 = vpop.f32.mrf.mxu0
        %v5247 = vadd.f32 0.0, %v5246
        %v5248 = vpop.f32.mrf.mxu0
        %5249 = vmatprep.mubr.bf16.mxu0 %v3500
        %5250 = vmatmul.mubr.bf16.gmra.mxu0 %v3287
        %v5251 = vpop.f32.mrf.mxu0
        %v5252 = vadd.f32 0.0, %v5251
        %v5253 = vpop.f32.mrf.mxu0
        %v5254 = vpop.f32.mrf.mxu0
        %v5255 = vadd.f32 0.0, %v5254
        %v5256 = vpop.f32.mrf.mxu0
        %5257 = vmatprep.mubr.bf16.mxu0 %v4348
        %5258 = vmatmul.mubr.bf16.gmra.mxu0 %v3288
        %v5259 = vpop.f32.mrf.mxu0
        %v5260 = vadd.f32 0.0, %v5259
        %v5261 = vpop.f32.mrf.mxu0
        %v5262 = vpop.f32.mrf.mxu0
        %v5263 = vadd.f32 0.0, %v5262
        %v5264 = vpop.f32.mrf.mxu0
        %5265 = vmatprep.mubr.bf16.mxu0 %v4913
        %5266 = vmatmul.mubr.bf16.gmra.mxu0 %v3289
        %v5267 = vpop.f32.mrf.mxu0
        %v5268 = vadd.f32 0.0, %v5267
        %v5269 = vpop.f32.mrf.mxu0
        %v5270 = vpop.f32.mrf.mxu0
        %v5271 = vadd.f32 0.0, %v5270
        %v5272 = vpop.f32.mrf.mxu0
        %5273 = vdwg.mxu0
        %5274 = vmatprep.subr.bf16.mxu0 0
        %5275 = vmatpush1.bf16.msra.mxu0 %v5088
        %5276 = vmatprep.subr.bf16.mxu0 0
        %5277 = vmatpush1.bf16.msra.mxu0 %v5087
        %5278 = vmatprep.subr.bf16.mxu0 0
        %5279 = vmatpush1.bf16.msra.mxu0 %v5086
        %5280 = vmatprep.subr.bf16.mxu0 0
        %5281 = vmatpush1.bf16.msra.mxu0 %v5085
        %5282 = vmatprep.subr.bf16.mxu0 0
        %5283 = vmatpush1.bf16.msra.mxu0 %v5084
        %5284 = vmatprep.subr.bf16.mxu0 0
        %5285 = vmatpush1.bf16.msra.mxu0 %v5083
        %5286 = vmatprep.subr.bf16.mxu0 0
        %5287 = vmatpush1.bf16.msra.mxu0 %v5082
        %5288 = vmatprep.subr.bf16.mxu0 0
        %5289 = vmatpush1.bf16.msra.mxu0 %v5081
        %5290 = vmatprep.subr.bf16.mxu0 0
        %5291 = vmatpush2.bf16.msra.mxu0 0
        %5292 = vmatprep.subr.bf16.mxu0 0
        %5293 = vmatpush2.bf16.msra.mxu0 0
        %5294 = vmatprep.subr.bf16.mxu0 0
        %5295 = vmatpush2.bf16.msra.mxu0 0
        %5296 = vmatprep.subr.bf16.mxu0 0
        %5297 = vmatpush2.bf16.msra.mxu0 0
        %5298 = vmatprep.subr.bf16.mxu0 0
        %5299 = vmatpush2.bf16.msra.mxu0 0
        %5300 = vmatprep.subr.bf16.mxu0 0
        %5301 = vmatpush2.bf16.msra.mxu0 0
        %5302 = vmatprep.subr.bf16.mxu0 0
        %5303 = vmatpush2.bf16.msra.mxu0 0
        %5304 = vmatprep.subr.bf16.mxu0 0
        %5305 = vmatpush2.bf16.msra.mxu0 0
        %5306 = vmatprep.mubr.bf16.mxu0 0
        %5307 = vmatmul.mubr.bf16.gmra.mxu0 %v3558
        %v5308 = vpop.f32.mrf.mxu0
        %v5309 = vadd.f32 %v5148, %v5308
        %v5310 = vpop.f32.mrf.mxu0
        %v5311 = vpop.f32.mrf.mxu0
        %v5312 = vadd.f32 %v5151, %v5311
        %v5313 = vpop.f32.mrf.mxu0
        %5314 = vmatprep.mubr.bf16.mxu0 0
        %5315 = vmatmul.mubr.bf16.gmra.mxu0 %v3561
        %v5316 = vpop.f32.mrf.mxu0
        %v5317 = vadd.f32 %v5156, %v5316
        %v5318 = vpop.f32.mrf.mxu0
        %v5319 = vpop.f32.mrf.mxu0
        %v5320 = vadd.f32 %v5159, %v5319
        %v5321 = vpop.f32.mrf.mxu0
        %5322 = vmatprep.mubr.bf16.mxu0 0
        %5323 = vmatmul.mubr.bf16.gmra.mxu0 %v3564
        %v5324 = vpop.f32.mrf.mxu0
        %v5325 = vadd.f32 %v5164, %v5324
        %v5326 = vpop.f32.mrf.mxu0
        %v5327 = vpop.f32.mrf.mxu0
        %v5328 = vadd.f32 %v5167, %v5327
        %v5329 = vpop.f32.mrf.mxu0
        %5330 = vmatprep.mubr.bf16.mxu0 0
        %5331 = vmatmul.mubr.bf16.gmra.mxu0 %v3567
        %v5332 = vpop.f32.mrf.mxu0
        %v5333 = vadd.f32 %v5172, %v5332
        %v5334 = vpop.f32.mrf.mxu0
        %v5335 = vpop.f32.mrf.mxu0
        %v5336 = vadd.f32 %v5175, %v5335
        %v5337 = vpop.f32.mrf.mxu0
        %5338 = vmatprep.mubr.bf16.mxu0 0
        %5339 = vmatmul.mubr.bf16.gmra.mxu0 %v3570
        %v5340 = vpop.f32.mrf.mxu0
        %v5341 = vadd.f32 %v5180, %v5340
        %v5342 = vpop.f32.mrf.mxu0
        %v5343 = vpop.f32.mrf.mxu0
        %v5344 = vadd.f32 %v5183, %v5343
        %v5345 = vpop.f32.mrf.mxu0
        %5346 = vmatprep.mubr.bf16.mxu0 0
        %5347 = vmatmul.mubr.bf16.gmra.mxu0 %v3573
        %v5348 = vpop.f32.mrf.mxu0
        %v5349 = vadd.f32 %v5188, %v5348
        %v5350 = vpop.f32.mrf.mxu0
        %v5351 = vpop.f32.mrf.mxu0
        %v5352 = vadd.f32 %v5191, %v5351
        %v5353 = vpop.f32.mrf.mxu0
        %5354 = vmatprep.mubr.bf16.mxu0 0
        %5355 = vmatmul.mubr.bf16.gmra.mxu0 %v3576
        %v5356 = vpop.f32.mrf.mxu0
        %v5357 = vadd.f32 %v5196, %v5356
        %v5358 = vpop.f32.mrf.mxu0
        %v5359 = vpop.f32.mrf.mxu0
        %v5360 = vadd.f32 %v5199, %v5359
        %v5361 = vpop.f32.mrf.mxu0
        %5362 = vmatprep.mubr.bf16.mxu0 0
        %5363 = vmatmul.mubr.bf16.gmra.mxu0 %v3579
        %v5364 = vpop.f32.mrf.mxu0
        %v5365 = vadd.f32 %v5204, %v5364
        %v5366 = vpop.f32.mrf.mxu0
        %v5367 = vpop.f32.mrf.mxu0
        %v5368 = vadd.f32 %v5207, %v5367
        %v5369 = vpop.f32.mrf.mxu0
        %5370 = vmatprep.mubr.bf16.mxu0 0
        %5371 = vmatmul.mubr.bf16.gmra.mxu0 %v3582
        %v5372 = vpop.f32.mrf.mxu0
        %v5373 = vadd.f32 %v5212, %v5372
        %v5374 = vpop.f32.mrf.mxu0
        %v5375 = vpop.f32.mrf.mxu0
        %v5376 = vadd.f32 %v5215, %v5375
        %v5377 = vpop.f32.mrf.mxu0
        %5378 = vmatprep.mubr.bf16.mxu0 0
        %5379 = vmatmul.mubr.bf16.gmra.mxu0 %v3585
        %v5380 = vpop.f32.mrf.mxu0
        %v5381 = vadd.f32 %v5220, %v5380
        %v5382 = vpop.f32.mrf.mxu0
        %v5383 = vpop.f32.mrf.mxu0
        %v5384 = vadd.f32 %v5223, %v5383
        %v5385 = vpop.f32.mrf.mxu0
        %5386 = vmatprep.mubr.bf16.mxu0 0
        %5387 = vmatmul.mubr.bf16.gmra.mxu0 %v3588
        %v5388 = vpop.f32.mrf.mxu0
        %v5389 = vadd.f32 %v5228, %v5388
        %v5390 = vpop.f32.mrf.mxu0
        %v5391 = vpop.f32.mrf.mxu0
        %v5392 = vadd.f32 %v5231, %v5391
        %v5393 = vpop.f32.mrf.mxu0
        %5394 = vmatprep.mubr.bf16.mxu0 0
        %5395 = vmatmul.mubr.bf16.gmra.mxu0 %v3591
        %v5396 = vpop.f32.mrf.mxu0
        %v5397 = vadd.f32 %v5236, %v5396
        %v5398 = vpop.f32.mrf.mxu0
        %v5399 = vpop.f32.mrf.mxu0
        %v5400 = vadd.f32 %v5239, %v5399
        %v5401 = vpop.f32.mrf.mxu0
        %5402 = vmatprep.mubr.bf16.mxu0 0
        %5403 = vmatmul.mubr.bf16.gmra.mxu0 %v3594
        %v5404 = vpop.f32.mrf.mxu0
        %v5405 = vadd.f32 %v5244, %v5404
        %v5406 = vpop.f32.mrf.mxu0
        %v5407 = vpop.f32.mrf.mxu0
        %v5408 = vadd.f32 %v5247, %v5407
        %v5409 = vpop.f32.mrf.mxu0
        %5410 = vmatprep.mubr.bf16.mxu0 0
        %5411 = vmatmul.mubr.bf16.gmra.mxu0 %v3597
        %v5412 = vpop.f32.mrf.mxu0
        %v5413 = vadd.f32 %v5252, %v5412
        %v5414 = vpop.f32.mrf.mxu0
        %v5415 = vpop.f32.mrf.mxu0
        %v5416 = vadd.f32 %v5255, %v5415
        %v5417 = vpop.f32.mrf.mxu0
        %5418 = vmatprep.mubr.bf16.mxu0 0
        %5419 = vmatmul.mubr.bf16.gmra.mxu0 %v4354
        %v5420 = vpop.f32.mrf.mxu0
        %v5421 = vadd.f32 %v5260, %v5420
        %v5422 = vpop.f32.mrf.mxu0
        %v5423 = vpop.f32.mrf.mxu0
        %v5424 = vadd.f32 %v5263, %v5423
        %v5425 = vpop.f32.mrf.mxu0
        %5426 = vmatprep.mubr.bf16.mxu0 0
        %5427 = vmatmul.mubr.bf16.gmra.mxu0 %v4919
        %v5428 = vpop.f32.mrf.mxu0
        %v5429 = vadd.f32 %v5268, %v5428
        %v5430 = vpop.f32.mrf.mxu0
        %v5431 = vpop.f32.mrf.mxu0
        %v5432 = vadd.f32 %v5271, %v5431
        %v5433 = vpop.f32.mrf.mxu0
        %5434 = vdwg.mxu0
        %v5435 = vadd.f32 %v4870, %v5309
        %v5436 = vadd.f32 %v4871, %v5312
        %v5437 = vadd.f32 %v4872, %v5317
        %v5438 = vadd.f32 %v4873, %v5320
        %v5439 = vadd.f32 %v4874, %v5325
        %v5440 = vadd.f32 %v4875, %v5328
        %v5441 = vadd.f32 %v4876, %v5333
        %v5442 = vadd.f32 %v4877, %v5336
        %v5443 = vadd.f32 %v4878, %v5341
        %v5444 = vadd.f32 %v4879, %v5344
        %v5445 = vadd.f32 %v4880, %v5349
        %v5446 = vadd.f32 %v4881, %v5352
        %v5447 = vadd.f32 %v4882, %v5357
        %v5448 = vadd.f32 %v4883, %v5360
        %v5449 = vadd.f32 %v4884, %v5365
        %v5450 = vadd.f32 %v4885, %v5368
        %v5451 = vadd.f32 %v4886, %v5373
        %v5452 = vadd.f32 %v4887, %v5376
        %v5453 = vadd.f32 %v4888, %v5381
        %v5454 = vadd.f32 %v4889, %v5384
        %v5455 = vadd.f32 %v4890, %v5389
        %v5456 = vadd.f32 %v4891, %v5392
        %v5457 = vadd.f32 %v4892, %v5397
        %v5458 = vadd.f32 %v4893, %v5400
        %v5459 = vadd.f32 %v4894, %v5405
        %v5460 = vadd.f32 %v4895, %v5408
        %v5461 = vadd.f32 %v4896, %v5413
        %v5462 = vadd.f32 %v4897, %v5416
        %v5463 = vadd.f32 %v4898, %v5421
        %v5464 = vadd.f32 %v4899, %v5424
        %v5465 = vadd.f32 %v4900, %v5429
        %v5466 = vadd.f32 %v4901, %v5432
        %v5467 = vld [vmem:[%s5] sm:$0x1]
        %v5469 = vlaneseq
        %v5470 = vshrl.u32 %v5469, 7
        %v5471 = vsub.s32 0, %v5470
        %v5472 = vrot.slane %v5467, %v5471
        %v5474 = vadd.f32 %v5435, %v5472
        %v5475 = vadd.f32 %v5436, %v5472
        %v5476 = vadd.f32 %v5437, %v5472
        %v5477 = vadd.f32 %v5438, %v5472
        %v5478 = vadd.f32 %v5439, %v5472
        %v5479 = vadd.f32 %v5440, %v5472
        %v5480 = vadd.f32 %v5441, %v5472
        %v5481 = vadd.f32 %v5442, %v5472
        %v5482 = vadd.f32 %v5443, %v5472
        %v5483 = vadd.f32 %v5444, %v5472
        %v5484 = vadd.f32 %v5445, %v5472
        %v5485 = vadd.f32 %v5446, %v5472
        %v5486 = vadd.f32 %v5447, %v5472
        %v5487 = vadd.f32 %v5448, %v5472
        %v5488 = vadd.f32 %v5449, %v5472
        %v5489 = vadd.f32 %v5450, %v5472
        %v5490 = vadd.f32 %v5451, %v5472
        %v5491 = vadd.f32 %v5452, %v5472
        %v5492 = vadd.f32 %v5453, %v5472
        %v5493 = vadd.f32 %v5454, %v5472
        %v5494 = vadd.f32 %v5455, %v5472
        %v5495 = vadd.f32 %v5456, %v5472
        %v5496 = vadd.f32 %v5457, %v5472
        %v5497 = vadd.f32 %v5458, %v5472
        %v5498 = vadd.f32 %v5459, %v5472
        %v5499 = vadd.f32 %v5460, %v5472
        %v5500 = vadd.f32 %v5461, %v5472
        %v5501 = vadd.f32 %v5462, %v5472
        %v5502 = vadd.f32 %v5463, %v5472
        %v5503 = vadd.f32 %v5464, %v5472
        %v5504 = vadd.f32 %v5465, %v5472
        %v5505 = vadd.f32 %v5466, %v5472
        %v5506 = vmax.f32 %v5474, 0.0
        %v5507 = vmax.f32 %v5475, 0.0
        %v5508 = vmax.f32 %v5476, 0.0
        %v5509 = vmax.f32 %v5477, 0.0
        %v5510 = vmax.f32 %v5478, 0.0
        %v5511 = vmax.f32 %v5479, 0.0
        %v5512 = vmax.f32 %v5480, 0.0
        %v5513 = vmax.f32 %v5481, 0.0
        %v5514 = vmax.f32 %v5482, 0.0
        %v5515 = vmax.f32 %v5483, 0.0
        %v5516 = vmax.f32 %v5484, 0.0
        %v5517 = vmax.f32 %v5485, 0.0
        %v5518 = vmax.f32 %v5486, 0.0
        %v5519 = vmax.f32 %v5487, 0.0
        %v5520 = vmax.f32 %v5488, 0.0
        %v5521 = vmax.f32 %v5489, 0.0
        %v5522 = vmax.f32 %v5490, 0.0
        %v5523 = vmax.f32 %v5491, 0.0
        %v5524 = vmax.f32 %v5492, 0.0
        %v5525 = vmax.f32 %v5493, 0.0
        %v5526 = vmax.f32 %v5494, 0.0
        %v5527 = vmax.f32 %v5495, 0.0
        %v5528 = vmax.f32 %v5496, 0.0
        %v5529 = vmax.f32 %v5497, 0.0
        %v5530 = vmax.f32 %v5498, 0.0
        %v5531 = vmax.f32 %v5499, 0.0
        %v5532 = vmax.f32 %v5500, 0.0
        %v5533 = vmax.f32 %v5501, 0.0
        %v5534 = vmax.f32 %v5502, 0.0
        %v5535 = vmax.f32 %v5503, 0.0
        %v5536 = vmax.f32 %v5504, 0.0
        %v5537 = vmax.f32 %v5505, 0.0
        %v5538 = vpack.c.bf16 %v5507, %v5506
        %v5539 = vpack.c.bf16 %v5509, %v5508
        %v5540 = vpack.c.bf16 %v5511, %v5510
        %v5541 = vpack.c.bf16 %v5513, %v5512
        %v5542 = vpack.c.bf16 %v5515, %v5514
        %v5543 = vpack.c.bf16 %v5517, %v5516
        %v5544 = vpack.c.bf16 %v5519, %v5518
        %v5545 = vpack.c.bf16 %v5521, %v5520
        %v5546 = vpack.c.bf16 %v5523, %v5522
        %v5547 = vpack.c.bf16 %v5525, %v5524
        %v5548 = vpack.c.bf16 %v5527, %v5526
        %v5549 = vpack.c.bf16 %v5529, %v5528
        %v5550 = vpack.c.bf16 %v5531, %v5530
        %v5551 = vpack.c.bf16 %v5533, %v5532
        %v5552 = vpack.c.bf16 %v5535, %v5534
        %v5553 = vpack.c.bf16 %v5537, %v5536
        %v5570 = vunpack.c.l.b16 %v5538
        %v5571 = vunpack.c.h.b16 %v5538
        %v5572 = vunpack.c.l.b16 %v5539
        %v5573 = vunpack.c.h.b16 %v5539
        %v5574 = vunpack.c.l.b16 %v5540
        %v5575 = vunpack.c.h.b16 %v5540
        %v5576 = vunpack.c.l.b16 %v5541
        %v5577 = vunpack.c.h.b16 %v5541
        %v5578 = vunpack.c.l.b16 %v5542
        %v5579 = vunpack.c.h.b16 %v5542
        %v5580 = vunpack.c.l.b16 %v5543
        %v5581 = vunpack.c.h.b16 %v5543
        %v5582 = vunpack.c.l.b16 %v5544
        %v5583 = vunpack.c.h.b16 %v5544
        %v5584 = vunpack.c.l.b16 %v5545
        %v5585 = vunpack.c.h.b16 %v5545
        %v5586 = vunpack.c.l.b16 %v5546
        %v5587 = vunpack.c.h.b16 %v5546
        %v5588 = vunpack.c.l.b16 %v5547
        %v5589 = vunpack.c.h.b16 %v5547
        %v5590 = vunpack.c.l.b16 %v5548
        %v5591 = vunpack.c.h.b16 %v5548
        %v5592 = vunpack.c.l.b16 %v5549
        %v5593 = vunpack.c.h.b16 %v5549
        %v5594 = vunpack.c.l.b16 %v5550
        %v5595 = vunpack.c.h.b16 %v5550
        %v5596 = vunpack.c.l.b16 %v5551
        %v5597 = vunpack.c.h.b16 %v5551
        %v5598 = vunpack.c.l.b16 %v5552
        %v5599 = vunpack.c.h.b16 %v5552
        %v5600 = vunpack.c.l.b16 %v5553
        %v5601 = vunpack.c.h.b16 %v5553
        %v5602 = vpack.c.b16 %v5570, %v5570
        %v5603 = vpack.c.b16 %v5571, %v5571
        %v5604 = vpack.c.b16 %v5572, %v5572
        %v5605 = vpack.c.b16 %v5573, %v5573
        %v5606 = vpack.c.b16 %v5574, %v5574
        %v5607 = vpack.c.b16 %v5575, %v5575
        %v5608 = vpack.c.b16 %v5576, %v5576
        %v5609 = vpack.c.b16 %v5577, %v5577
        %v5610 = vpack.c.b16 %v5578, %v5578
        %v5611 = vpack.c.b16 %v5579, %v5579
        %v5612 = vpack.c.b16 %v5580, %v5580
        %v5613 = vpack.c.b16 %v5581, %v5581
        %v5614 = vpack.c.b16 %v5582, %v5582
        %v5615 = vpack.c.b16 %v5583, %v5583
        %v5616 = vpack.c.b16 %v5584, %v5584
        %v5617 = vpack.c.b16 %v5585, %v5585
        %v5618 = vpack.c.b16 %v5586, %v5586
        %v5619 = vpack.c.b16 %v5587, %v5587
        %v5620 = vpack.c.b16 %v5588, %v5588
        %v5621 = vpack.c.b16 %v5589, %v5589
        %v5622 = vpack.c.b16 %v5590, %v5590
        %v5623 = vpack.c.b16 %v5591, %v5591
        %v5624 = vpack.c.b16 %v5592, %v5592
        %v5625 = vpack.c.b16 %v5593, %v5593
        %v5626 = vpack.c.b16 %v5594, %v5594
        %v5627 = vpack.c.b16 %v5595, %v5595
        %v5628 = vpack.c.b16 %v5596, %v5596
        %v5629 = vpack.c.b16 %v5597, %v5597
        %v5630 = vpack.c.b16 %v5598, %v5598
        %v5631 = vpack.c.b16 %v5599, %v5599
        %v5632 = vpack.c.b16 %v5600, %v5600
        %v5633 = vpack.c.b16 %v5601, %v5601
        %5666 = vst [vmem:[%s273] sm:$0xf] %v5602
        %5667 = vst [vmem:[%s273 + $0x4] sm:$0xf] %v5603
        %5668 = vst [vmem:[%s273 + $0x8] sm:$0xf] %v5604
        %5669 = vst [vmem:[%s273 + $0xc] sm:$0xf] %v5605
        %5670 = vst [vmem:[%s273 + $0x10] sm:$0xf] %v5606
        %5671 = vst [vmem:[%s273 + $0x14] sm:$0xf] %v5607
        %5672 = vst [vmem:[%s273 + $0x18] sm:$0xf] %v5608
        %5673 = vst [vmem:[%s273 + $0x1c] sm:$0xf] %v5609
        %5674 = vst [vmem:[%s273 + $0x20] sm:$0xf] %v5610
        %5675 = vst [vmem:[%s273 + $0x24] sm:$0xf] %v5611
        %5676 = vst [vmem:[%s273 + $0x28] sm:$0xf] %v5612
        %5677 = vst [vmem:[%s273 + $0x2c] sm:$0xf] %v5613
        %5678 = vst [vmem:[%s273 + $0x30] sm:$0xf] %v5614
        %5679 = vst [vmem:[%s273 + $0x34] sm:$0xf] %v5615
        %5680 = vst [vmem:[%s273 + $0x38] sm:$0xf] %v5616
        %5681 = vst [vmem:[%s273 + $0x3c] sm:$0xf] %v5617
        %5682 = vst [vmem:[%s273 + $0x40] sm:$0xf] %v5618
        %5683 = vst [vmem:[%s273 + $0x44] sm:$0xf] %v5619
        %5684 = vst [vmem:[%s273 + $0x48] sm:$0xf] %v5620
        %5685 = vst [vmem:[%s273 + $0x4c] sm:$0xf] %v5621
        %5686 = vst [vmem:[%s273 + $0x50] sm:$0xf] %v5622
        %5687 = vst [vmem:[%s273 + $0x54] sm:$0xf] %v5623
        %5688 = vst [vmem:[%s273 + $0x58] sm:$0xf] %v5624
        %5689 = vst [vmem:[%s273 + $0x5c] sm:$0xf] %v5625
        %5690 = vst [vmem:[%s273 + $0x60] sm:$0xf] %v5626
        %5691 = vst [vmem:[%s273 + $0x64] sm:$0xf] %v5627
        %5692 = vst [vmem:[%s273 + $0x68] sm:$0xf] %v5628
        %5693 = vst [vmem:[%s273 + $0x6c] sm:$0xf] %v5629
        %5694 = vst [vmem:[%s273 + $0x70] sm:$0xf] %v5630
        %5695 = vst [vmem:[%s273 + $0x74] sm:$0xf] %v5631
        %5696 = vst [vmem:[%s273 + $0x78] sm:$0xf] %v5632
        %5697 = vst [vmem:[%s273 + $0x7c] sm:$0xf] %v5633
        %s5698 = sand.u32 %s174, 1
        %s5699 = scalar_lea.sflag [#allocation4], %s5698
        %s5700 = sand.u32 %s174, 1
        %s5701 = smul.addr %s5700, 128
        %s5702 = scalar_lea.vmem [#allocation5], %s5701
        // Predicated region
        $region49: #{tpu_custom_call.1} parent=43 // pred_check
          %p5703 = pneg %p184
        $region50: #{tpu_custom_call.1} parent=43 // pred_check_branch
          %5705 = sbr.rel (%p5703) target = $region52
        $region51: #{tpu_custom_call.1} parent=43 // pred_region
          %s5706 = smul.u32 16, %s26
          %s5708 = ssub.s32 2048, 2048
          %5709 = vsyncadd %s5699, %s5708
          %s5710 = smul.addr %s5706, 2
          %s5711 = smul.addr %s25, 32
          %s5712 = sadd.s32 %s5710, %s5711
          %s5713 = smul.addr %s5712, 64
          %s5714 = scalar_lea.hbm %s6, %s5713
          %s5715 = sshll.u32 %s5702, 4
          %s5716 = int_to_ptr.vmem [resolvable:$true] %s5715
          %5721 = dma.vmem_to_hbm [thread:$0]  %s5716, 2048, %s5714, %s5699, 64, 64, 4
        $region52: #{tpu_custom_call.1} parent=43 // pred_fallthru
          _
      $region44: #{tpu_custom_call.1} parent=5 // pred_fallthru
        _
      %p5722 = scmp.le.s32.totalorder 2, %s16
      // Predicated region
      $region53: #{tpu_custom_call.1} parent=5 // pred_check
        %p5723 = pneg %p5722
      $region54: #{tpu_custom_call.1} parent=5 // pred_check_branch
        %5725 = sbr.rel (%p5723) target = $region56
      $region55: #{tpu_custom_call.1} parent=5 // pred_region
        %s5726 = ssub.s32 %s16, 2
        // Predicated region
        $region57: #{tpu_custom_call.1} parent=55 // pred_check
          %p5727 = pneg %p190
        $region58: #{tpu_custom_call.1} parent=55 // pred_check_branch
          %5729 = sbr.rel (%p5727) target = $region60
        $region59: #{tpu_custom_call.1} parent=55 // pred_region
          %s5730 = sand.u32 %s175, 1
          %s5731 = scalar_lea.sflag [#allocation4], %s5730
          %s5732 = sand.u32 %s175, 1
          %s5733 = smul.addr %s5732, 128
          %s5734 = scalar_lea.vmem [#allocation5], %s5733
          %5735 = dma.done %s5731, 2048
        $region60: #{tpu_custom_call.1} parent=55 // pred_fallthru
          _
      $region56: #{tpu_custom_call.1} parent=5 // pred_fallthru
        _
    $region6: #{tpu_custom_call.1} parent=1 // loop_footer
      %s20 = sadd.s32 1, %s16
    $region7: #{tpu_custom_call.1} parent=1 // loop_footer_branch
      %15 = sbr.rel target = $region3
    $region8: #{tpu_custom_call.1} parent=1 // loop_exit
      _
    %5736 = vsyncpa [#allocation3], 1
    %s5737 = scalar_lea.sflag [#allocation3], 1
    %5738 = vsyncpa %s5737, 1
    %5739 = vsyncpa [#allocation4], 1
    %s5740 = scalar_lea.sflag [#allocation4], 1
    %5741 = vsyncpa %s5740, 1

</llo_original>
